<compile_context>
chip_gen: v5e
topology: v5e:2x2
jax: 0.10.0
libtpu: 0.0.40
codegen_flags: <defaults>
</compile_context>

<pallas_src>
import functools

import jax
import jax.numpy as jnp
from jax.experimental import pallas as pl
from jax.experimental.pallas import tpu as pltpu


SOFF = 8  # sublane-aligned interior offset along the packed-W axis of scratch

# (output-column parity t, kw) -> (packed-column offset, source column half)
_TAP = {(0, 0): (-1, 1), (0, 1): (0, 0), (0, 2): (0, 1),
        (1, 0): (0, 0), (1, 1): (0, 1), (1, 2): (1, 0)}


# --------------------------- Pallas kernel ----------------------------------

def _upsampling1_kernel(x_ref, y_ref, wdec_ref, bdec_ref, w2a_ref, t2a_ref,
                        w2b_ref, t2b_ref, w3_ref, b3_ref,
                        out_even_ref, out_odd_ref, pad1, pad2, *, Bt, H, W):
    f32 = jnp.float32
    H2 = 2 * H
    M = Bt * H2 * W                       # matmul rows per output-column parity

    # ---- zero only the 1-pixel halo (interiors are fully overwritten) ------
    for pad, C in ((pad1, 128), (pad2, 64)):
        zrow = jnp.zeros((Bt, 1, W + 2, C), f32)
        pad[:, 0:1, SOFF - 1:SOFF + W + 1, :] = zrow
        pad[:, H2 + 1:H2 + 2, SOFF - 1:SOFF + W + 1, :] = zrow
        zcol = jnp.zeros((Bt, H2 + 2, 1, C), f32)
        pad[:, :, SOFF - 1:SOFF, :] = zcol
        pad[:, :, SOFF + W:SOFF + W + 1, :] = zcol

    # ---- ConvTranspose2d(64 -> 32, k=2, stride=2) ---------------------------
    # One matmul per output-row parity di; weight columns are (dj*64 + co) so
    # each result row is already in the column-pair packed layout (up channels
    # in lanes [dj*64, dj*64+32), zeros where y will be written).
    x2 = x_ref[...].reshape(Bt * H * W, 64)
    rows = []
    for di in range(2):
        acc = jnp.dot(x2, wdec_ref[di], preferred_element_type=f32)
        rows.append((acc + bdec_ref[...]).reshape(Bt, H, W, 128))
    # Row (di) interleave touches only major axes: stack + merge, no relayout.
    up = jnp.stack(rows, axis=2).reshape(Bt, H2, W, 128)

    # torch.cat((up, y), dim=1): y fills channels 32:64 of each column half.
    pad1[:, 1:H2 + 1, SOFF:SOFF + W, :] = up
    pad1[:, 1:H2 + 1, SOFF:SOFF + W, 32:64] = y_ref[:, :, :, 0:32]     # even cols
    pad1[:, 1:H2 + 1, SOFF:SOFF + W, 96:128] = y_ref[:, :, :, 32:64]   # odd cols

    def conv3x3(pad, w_ref, cin):
        # 3x3 "SAME" conv on the packed buffer: 9 accumulating K=cin matmuls
        # per output-column parity (no concat temporaries).
        outs = []
        for t in range(2):
            acc = jnp.zeros((M, 32), f32)
            for kh in range(3):
                for kw in range(3):
                    ds_, half = _TAP[(t, kw)]
                    win = pad[:, kh:kh + H2, SOFF + ds_:SOFF + ds_ + W,
                              half * cin:(half + 1) * cin]
                    acc = acc + jnp.dot(win.reshape(M, cin),
                                        w_ref[3 * kh + kw],
                                        preferred_element_type=f32)
            outs.append(acc)
        return outs

    # conv2a (64->32) + folded BN + ReLU
    ev, od = conv3x3(pad1, w2a_ref, 64)
    pad2[:, 1:H2 + 1, SOFF:SOFF + W, 0:32] = (
        jnp.maximum(ev + t2a_ref[...], 0.0).reshape(Bt, H2, W, 32))
    pad2[:, 1:H2 + 1, SOFF:SOFF + W, 32:64] = (
        jnp.maximum(od + t2a_ref[...], 0.0).reshape(Bt, H2, W, 32))

    # conv2b (32->32) + folded BN + ReLU (pad2 reused in place)
    ev, od = conv3x3(pad2, w2b_ref, 32)
    pad2[:, 1:H2 + 1, SOFF:SOFF + W, 0:32] = (
        jnp.maximum(ev + t2b_ref[...], 0.0).reshape(Bt, H2, W, 32))
    pad2[:, 1:H2 + 1, SOFF:SOFF + W, 32:64] = (
        jnp.maximum(od + t2b_ref[...], 0.0).reshape(Bt, H2, W, 32))

    # conv3 (32->1): cout == 1, so use the VPU (mul + lane reduce); the output
    # stays in packed (even/odd column) form -> two full-block stores.
    b3 = b3_ref[0]
    for t, o_ref in ((0, out_even_ref), (1, out_odd_ref)):
        acc = jnp.zeros((Bt, H2, W, 32), f32)
        for kh in range(3):
            for kw in range(3):
                ds_, half = _TAP[(t, kw)]
                win = pad2[:, kh:kh + H2, SOFF + ds_:SOFF + ds_ + W,
                           half * 32:(half + 1) * 32]
                acc = acc + win * w3_ref[3 * kh + kw]
        o_ref[...] = (jnp.sum(acc, axis=-1) + b3).astype(o_ref.dtype)


# --------------------------- wrapper ------------------------------------------

def _fold_bn(w_hwio, bias, bn, eps=1e-5):
    # scale*(conv(x,w)+b)+shift  ==  conv(x, w*scale) + (b*scale + shift)
    scale = bn["gamma"] * jax.lax.rsqrt(bn["var"] + eps)
    shift = bn["beta"] - bn["mean"] * scale
    return w_hwio * scale[None, None, None, :], bias * scale + shift


def upsampling1_forward(params, x_nchw, y_nchw, *, batch_tile=None):
    x = jnp.transpose(x_nchw, (0, 2, 3, 1)).astype(jnp.float32)   # (B, H, W, 64)
    y = jnp.transpose(y_nchw, (0, 2, 3, 1)).astype(jnp.float32)   # (B, H2, W2, 32)
    B, H, W, _ = x.shape
    H2, W2 = 2 * H, 2 * W

    if batch_tile is None:
        # >= 2 parallel grid steps when possible (v7x: 2 TensorCores); on
        # v5e/v6e prefer batch_tile=B (single step over the whole batch).
        batch_tile = B // 2 if (B >= 2 and B % 2 == 0) else B
    Bt = batch_tile
    assert B % Bt == 0, (B, Bt)

    # y with adjacent column pairs packed into the lane dim (free XLA reshape).
    y_pk = y.reshape(B, H2, W, 64)

    # ConvTranspose2d weight (Cin, Cout, 2, 2) -> (di, Cin, dj*64 + co), with
    # the 32 lanes that y will occupy zeroed out.
    wdec = jnp.transpose(params["ct_w"], (2, 0, 3, 1))             # (di,ci,dj,co)
    wdec = jnp.pad(wdec, ((0, 0), (0, 0), (0, 0), (0, 32)))
    wdec = wdec.reshape(2, 64, 128)
    bdec = jnp.tile(jnp.pad(params["ct_b"], (0, 32)), 2).reshape(1, 128)

    # Conv + BN folding (inference-mode running statistics).
    w2a, t2a = _fold_bn(params["c2a_w"], params["c2a_b"], params["bn1"])
    w2b, t2b = _fold_bn(params["c2b_w"], params["c2b_b"], params["bn2"])
    w2a = w2a.reshape(9, 64, 32)
    w2b = w2b.reshape(9, 32, 32)
    t2a = t2a.reshape(1, 32)
    t2b = t2b.reshape(1, 32)
    w3 = params["c3_w"].reshape(9, 32)[:, None, :]                 # (9, 1, 32)
    b3 = params["c3_b"].reshape(1)

    WP = ((W + 9) + 7) // 8 * 8            # packed scratch width (sublane mult.)

    def _full(shape):
        n = len(shape)
        return pl.BlockSpec(shape, lambda g, _n=n: (0,) * _n)

    ev_cols, od_cols = pl.pallas_call(
        functools.partial(_upsampling1_kernel, Bt=Bt, H=H, W=W),
        out_shape=(jax.ShapeDtypeStruct((B, H2, W), x.dtype),
                   jax.ShapeDtypeStruct((B, H2, W), x.dtype)),
        grid=(B // Bt,),
        in_specs=[
            pl.BlockSpec((Bt, H, W, 64), lambda g: (g, 0, 0, 0)),    # x
            pl.BlockSpec((Bt, H2, W, 64), lambda g: (g, 0, 0, 0)),   # y (packed)
            _full((2, 64, 128)),                                      # wdec
            _full((1, 128)),                                          # bdec
            _full((9, 64, 32)),                                       # w2a
            _full((1, 32)),                                           # t2a
            _full((9, 32, 32)),                                       # w2b
            _full((1, 32)),                                           # t2b
            _full((9, 1, 32)),                                        # w3
            pl.BlockSpec(memory_space=pltpu.MemorySpace.SMEM),        # b3 scalar
        ],
        out_specs=(pl.BlockSpec((Bt, H2, W), lambda g: (g, 0, 0)),
                   pl.BlockSpec((Bt, H2, W), lambda g: (g, 0, 0))),
        scratch_shapes=[
            pltpu.VMEM((Bt, H2 + 2, WP, 128), jnp.float32),   # up||y, zero-padded
            pltpu.VMEM((Bt, H2 + 2, WP, 64), jnp.float32),    # conv2a/2b activations
        ],
        compiler_params=pltpu.CompilerParams(
            dimension_semantics=("parallel",)),
    )(x, y_pk, wdec, bdec, w2a, t2a, w2b, t2b, w3, b3)

    # Un-pack the tiny even/odd column planes (free XLA reshape).
    out = jnp.stack([ev_cols, od_cols], axis=-1).reshape(B, H2, W2)
    return out.reshape(B, 1, H2, W2)


# --------------------------- pure-JAX reference ------------------------------

def _bn_affine(bn, eps=1e-5):
    scale = bn["gamma"] * jax.lax.rsqrt(bn["var"] + eps)
    shift = bn["beta"] - bn["mean"] * scale
    return scale, shift


def reference_forward(params, x_nchw, y_nchw):
    x = jnp.transpose(x_nchw, (0, 2, 3, 1))
    y = jnp.transpose(y_nchw, (0, 2, 3, 1))
    B, H, W, _ = x.shape
    Cout = params["ct_w"].shape[1]
    up = jnp.einsum("bijc,code->bidjeo", x, params["ct_w"])
    up = up.reshape(B, 2 * H, 2 * W, Cout) + params["ct_b"]
    x = jnp.concatenate([up, y], axis=-1)

    def conv(z, w, b):
        return jax.lax.conv_general_dilated(
            z, w, (1, 1), "SAME",
            dimension_numbers=("NHWC", "HWIO", "NHWC")) + b

    s1, t1 = _bn_affine(params["bn1"])
    x = jnp.maximum(conv(x, params["c2a_w"], params["c2a_b"]) * s1 + t1, 0.0)
    s2, t2 = _bn_affine(params["bn2"])
    x = jnp.maximum(conv(x, params["c2b_w"], params["c2b_b"]) * s2 + t2, 0.0)
    out = conv(x, params["c3_w"], params["c3_b"])
    return jnp.transpose(out, (0, 3, 1, 2))


# --------------------------- main --------------------------------------------

def init_params(key):
    ks = jax.random.split(key, 12)
    n = lambda k, s: (0.05 * jax.random.normal(k, s)).astype(jnp.float32)
    params = {
        # ConvTranspose2d(64, 32, 2, 2): PyTorch weight (Cin, Cout, kH, kW)
        "ct_w": n(ks[0], (64, 32, 2, 2)),
        "ct_b": n(ks[1], (32,)),
        # Conv2d(64, 32, 3): HWIO
        "c2a_w": n(ks[2], (3, 3, 64, 32)),
        "c2a_b": n(ks[3], (32,)),
        "bn1": {
            "gamma": 1.0 + 0.1 * jax.random.normal(ks[4], (32,), jnp.float32),
            "beta": n(ks[5], (32,)),
            "mean": n(ks[6], (32,)),
            "var": jnp.abs(0.1 * jax.random.normal(ks[7], (32,), jnp.float32)) + 1.0,
        },
        # Conv2d(32, 32, 3): HWIO
        "c2b_w": n(ks[8], (3, 3, 32, 32)),
        "c2b_b": n(ks[9], (32,)),
        "bn2": {
            "gamma": 1.0 + 0.1 * jax.random.normal(ks[10], (32,), jnp.float32),
            "beta": n(ks[11], (32,)),
            "mean": jnp.zeros((32,), jnp.float32),
            "var": jnp.ones((32,), jnp.float32),
        },
        # Conv2d(32, 1, 3): HWIO
        "c3_w": n(jax.random.fold_in(key, 100), (3, 3, 32, 1)),
        "c3_b": n(jax.random.fold_in(key, 101), (1,)),
    }
    return params


if __name__ == "__main__":
    key = jax.random.PRNGKey(0)
    kx, ky, kp = jax.random.split(key, 3)

    B, H, W = 2, 8, 8
    x = jax.random.normal(kx, (B, 64, H, W), jnp.float32)          # NCHW
    y = jax.random.normal(ky, (B, 32, 2 * H, 2 * W), jnp.float32)  # NCHW

    params = init_params(kp)

    fwd = jax.jit(upsampling1_forward)
    out = jax.block_until_ready(fwd(params, x, y))
    assert out.shape == (B, 1, 2 * H, 2 * W), out.shape

    ref = jax.block_until_ready(reference_forward(params, x, y))
    assert jnp.allclose(out, ref, atol=1e-4, rtol=1e-4), (
        float(jnp.max(jnp.abs(out - ref))))

    print("KERNEL_OK")
</pallas_src>

<mosaic_0001>
module attributes {stable_mosaic.version = 11 : i64} {
  func.func @_upsampling1_kernel(%arg0: i32, %arg1: memref<1x8x8x64xf32, #tpu.memory_space<vmem>>, %arg2: memref<1x16x8x64xf32, #tpu.memory_space<vmem>>, %arg3: memref<2x64x128xf32, #tpu.memory_space<vmem>>, %arg4: memref<1x128xf32, #tpu.memory_space<vmem>>, %arg5: memref<9x64x32xf32, #tpu.memory_space<vmem>>, %arg6: memref<1x32xf32, #tpu.memory_space<vmem>>, %arg7: memref<9x32x32xf32, #tpu.memory_space<vmem>>, %arg8: memref<1x32xf32, #tpu.memory_space<vmem>>, %arg9: memref<9x1x32xf32, #tpu.memory_space<vmem>>, %arg10: memref<1xf32, #tpu.memory_space<smem>>, %arg11: memref<1x16x8xf32, #tpu.memory_space<vmem>>, %arg12: memref<1x16x8xf32, #tpu.memory_space<vmem>>, %arg13: memref<1x18x24x128xf32, #tpu.memory_space<vmem>>, %arg14: memref<1x18x24x64xf32, #tpu.memory_space<vmem>>) attributes {dimension_semantics = [#tpu.dimension_semantics<parallel>], iteration_bounds = array<i64: 2>, scalar_prefetch = 0 : i64, scratch_operands = 2 : i64, tpu.core_type = #tpu.core_type<tc>, window_params = [{transform_indices = @transform_0, window_bounds = array<i64: 1, 8, 8, 64>}, {transform_indices = @transform_1, window_bounds = array<i64: 1, 16, 8, 64>}, {pipeline_mode = #tpu.pipeline_mode<synchronous>, transform_indices = @transform_2, window_bounds = array<i64: 2, 64, 128>}, {pipeline_mode = #tpu.pipeline_mode<synchronous>, transform_indices = @transform_3, window_bounds = array<i64: 1, 128>}, {pipeline_mode = #tpu.pipeline_mode<synchronous>, transform_indices = @transform_4, window_bounds = array<i64: 9, 64, 32>}, {pipeline_mode = #tpu.pipeline_mode<synchronous>, transform_indices = @transform_5, window_bounds = array<i64: 1, 32>}, {pipeline_mode = #tpu.pipeline_mode<synchronous>, transform_indices = @transform_6, window_bounds = array<i64: 9, 32, 32>}, {pipeline_mode = #tpu.pipeline_mode<synchronous>, transform_indices = @transform_7, window_bounds = array<i64: 1, 32>}, {pipeline_mode = #tpu.pipeline_mode<synchronous>, transform_indices = @transform_8, window_bounds = array<i64: 9, 1, 32>}, {transform_indices = @transform_9, window_bounds = array<i64: 1>}, {transform_indices = @transform_10, window_bounds = array<i64: 1, 16, 8>}, {transform_indices = @transform_11, window_bounds = array<i64: 1, 16, 8>}]} {
    %cst = arith.constant 0.000000e+00 : f32
    %0 = vector.broadcast %cst : f32 to vector<1x1x10x128xf32>
    %c0 = arith.constant 0 : index
    %c0_0 = arith.constant 0 : index
    %c7 = arith.constant 7 : index
    %c0_1 = arith.constant 0 : index
    %1 = vector.load %arg13[%c0, %c0_0, %c7, %c0_1] : memref<1x18x24x128xf32, #tpu.memory_space<vmem>>, vector<1x1x10x128xf32>
    tpu.vector_store %arg13[%c0, %c0_0, %c7, %c0_1], %0 {strides = array<i32>} : memref<1x18x24x128xf32, #tpu.memory_space<vmem>>, vector<1x1x10x128xf32>,
    %c0_2 = arith.constant 0 : index
    %c17 = arith.constant 17 : index
    %c7_3 = arith.constant 7 : index
    %c0_4 = arith.constant 0 : index
    %2 = vector.load %arg13[%c0_2, %c17, %c7_3, %c0_4] : memref<1x18x24x128xf32, #tpu.memory_space<vmem>>, vector<1x1x10x128xf32>
    tpu.vector_store %arg13[%c0_2, %c17, %c7_3, %c0_4], %0 {strides = array<i32>} : memref<1x18x24x128xf32, #tpu.memory_space<vmem>>, vector<1x1x10x128xf32>,
    %cst_5 = arith.constant 0.000000e+00 : f32
    %3 = vector.broadcast %cst_5 : f32 to vector<1x18x1x128xf32>
    %c0_6 = arith.constant 0 : index
    %c0_7 = arith.constant 0 : index
    %c7_8 = arith.constant 7 : index
    %c0_9 = arith.constant 0 : index
    %4 = vector.load %arg13[%c0_6, %c0_7, %c7_8, %c0_9] : memref<1x18x24x128xf32, #tpu.memory_space<vmem>>, vector<1x18x1x128xf32>
    tpu.vector_store %arg13[%c0_6, %c0_7, %c7_8, %c0_9], %3 {strides = array<i32>} : memref<1x18x24x128xf32, #tpu.memory_space<vmem>>, vector<1x18x1x128xf32>,
    %c0_10 = arith.constant 0 : index
    %c0_11 = arith.constant 0 : index
    %c16 = arith.constant 16 : index
    %c0_12 = arith.constant 0 : index
    %5 = vector.load %arg13[%c0_10, %c0_11, %c16, %c0_12] : memref<1x18x24x128xf32, #tpu.memory_space<vmem>>, vector<1x18x1x128xf32>
    tpu.vector_store %arg13[%c0_10, %c0_11, %c16, %c0_12], %3 {strides = array<i32>} : memref<1x18x24x128xf32, #tpu.memory_space<vmem>>, vector<1x18x1x128xf32>,
    %cst_13 = arith.constant 0.000000e+00 : f32
    %6 = vector.broadcast %cst_13 : f32 to vector<1x1x10x64xf32>
    %c0_14 = arith.constant 0 : index
    %c0_15 = arith.constant 0 : index
    %c7_16 = arith.constant 7 : index
    %c0_17 = arith.constant 0 : index
    %7 = vector.load %arg14[%c0_14, %c0_15, %c7_16, %c0_17] : memref<1x18x24x64xf32, #tpu.memory_space<vmem>>, vector<1x1x10x64xf32>
    tpu.vector_store %arg14[%c0_14, %c0_15, %c7_16, %c0_17], %6 {strides = array<i32>} : memref<1x18x24x64xf32, #tpu.memory_space<vmem>>, vector<1x1x10x64xf32>,
    %c0_18 = arith.constant 0 : index
    %c17_19 = arith.constant 17 : index
    %c7_20 = arith.constant 7 : index
    %c0_21 = arith.constant 0 : index
    %8 = vector.load %arg14[%c0_18, %c17_19, %c7_20, %c0_21] : memref<1x18x24x64xf32, #tpu.memory_space<vmem>>, vector<1x1x10x64xf32>
    tpu.vector_store %arg14[%c0_18, %c17_19, %c7_20, %c0_21], %6 {strides = array<i32>} : memref<1x18x24x64xf32, #tpu.memory_space<vmem>>, vector<1x1x10x64xf32>,
    %cst_22 = arith.constant 0.000000e+00 : f32
    %9 = vector.broadcast %cst_22 : f32 to vector<1x18x1x64xf32>
    %c0_23 = arith.constant 0 : index
    %c0_24 = arith.constant 0 : index
    %c7_25 = arith.constant 7 : index
    %c0_26 = arith.constant 0 : index
    %10 = vector.load %arg14[%c0_23, %c0_24, %c7_25, %c0_26] : memref<1x18x24x64xf32, #tpu.memory_space<vmem>>, vector<1x18x1x64xf32>
    tpu.vector_store %arg14[%c0_23, %c0_24, %c7_25, %c0_26], %9 {strides = array<i32>} : memref<1x18x24x64xf32, #tpu.memory_space<vmem>>, vector<1x18x1x64xf32>,
    %c0_27 = arith.constant 0 : index
    %c0_28 = arith.constant 0 : index
    %c16_29 = arith.constant 16 : index
    %c0_30 = arith.constant 0 : index
    %11 = vector.load %arg14[%c0_27, %c0_28, %c16_29, %c0_30] : memref<1x18x24x64xf32, #tpu.memory_space<vmem>>, vector<1x18x1x64xf32>
    tpu.vector_store %arg14[%c0_27, %c0_28, %c16_29, %c0_30], %9 {strides = array<i32>} : memref<1x18x24x64xf32, #tpu.memory_space<vmem>>, vector<1x18x1x64xf32>,
    %c0_31 = arith.constant 0 : index
    %c0_32 = arith.constant 0 : index
    %c0_33 = arith.constant 0 : index
    %c0_34 = arith.constant 0 : index
    %12 = vector.load %arg1[%c0_31, %c0_32, %c0_33, %c0_34] : memref<1x8x8x64xf32, #tpu.memory_space<vmem>>, vector<1x8x8x64xf32>
    %13 = vector.shape_cast %12 : vector<1x8x8x64xf32> to vector<64x64xf32>
    %c0_35 = arith.constant 0 : index
    %c0_36 = arith.constant 0 : index
    %c0_37 = arith.constant 0 : index
    %14 = vector.load %arg3[%c0_35, %c0_36, %c0_37] : memref<2x64x128xf32, #tpu.memory_space<vmem>>, vector<1x64x128xf32>
    %15 = vector.shape_cast %14 : vector<1x64x128xf32> to vector<64x128xf32>
    %cst_38 = arith.constant dense<0.000000e+00> : vector<64x128xf32>
    %16 = tpu.matmul %13, %15, %cst_38 {dimension_numbers = #tpu.dot_dimension_numbers<[1], [0], [0], [1], [0, 0, 1, 1], [], []>} : vector<64x64xf32>, vector<64x128xf32>, vector<64x128xf32> -> vector<64x128xf32>
    %c0_39 = arith.constant 0 : index
    %c0_40 = arith.constant 0 : index
    %17 = vector.load %arg4[%c0_39, %c0_40] : memref<1x128xf32, #tpu.memory_space<vmem>>, vector<1x128xf32>
    %18 = vector.broadcast %17 : vector<1x128xf32> to vector<64x128xf32>
    %19 = arith.addf %16, %18 : vector<64x128xf32>
    %20 = vector.shape_cast %19 : vector<64x128xf32> to vector<1x8x8x128xf32>
    %c1 = arith.constant 1 : index
    %c0_41 = arith.constant 0 : index
    %c0_42 = arith.constant 0 : index
    %21 = vector.load %arg3[%c1, %c0_41, %c0_42] : memref<2x64x128xf32, #tpu.memory_space<vmem>>, vector<1x64x128xf32>
    %22 = vector.shape_cast %21 : vector<1x64x128xf32> to vector<64x128xf32>
    %cst_43 = arith.constant dense<0.000000e+00> : vector<64x128xf32>
    %23 = tpu.matmul %13, %22, %cst_43 {dimension_numbers = #tpu.dot_dimension_numbers<[1], [0], [0], [1], [0, 0, 1, 1], [], []>} : vector<64x64xf32>, vector<64x128xf32>, vector<64x128xf32> -> vector<64x128xf32>
    %c0_44 = arith.constant 0 : index
    %c0_45 = arith.constant 0 : index
    %24 = vector.load %arg4[%c0_44, %c0_45] : memref<1x128xf32, #tpu.memory_space<vmem>>, vector<1x128xf32>
    %25 = vector.broadcast %24 : vector<1x128xf32> to vector<64x128xf32>
    %26 = arith.addf %23, %25 : vector<64x128xf32>
    %27 = vector.shape_cast %26 : vector<64x128xf32> to vector<1x8x8x128xf32>
    %28 = vector.shape_cast %20 : vector<1x8x8x128xf32> to vector<1x8x1x8x128xf32>
    %29 = vector.shape_cast %27 : vector<1x8x8x128xf32> to vector<1x8x1x8x128xf32>
    %30 = tpu.concatenate %28, %29 in 2 : vector<1x8x1x8x128xf32>, vector<1x8x1x8x128xf32> -> vector<1x8x2x8x128xf32>
    %31 = vector.shape_cast %30 : vector<1x8x2x8x128xf32> to vector<1x16x8x128xf32>
    %c0_46 = arith.constant 0 : index
    %c1_47 = arith.constant 1 : index
    %c8 = arith.constant 8 : index
    %c0_48 = arith.constant 0 : index
    %32 = vector.load %arg13[%c0_46, %c1_47, %c8, %c0_48] : memref<1x18x24x128xf32, #tpu.memory_space<vmem>>, vector<1x16x8x128xf32>
    tpu.vector_store %arg13[%c0_46, %c1_47, %c8, %c0_48], %31 {strides = array<i32>} : memref<1x18x24x128xf32, #tpu.memory_space<vmem>>, vector<1x16x8x128xf32>,
    %c0_49 = arith.constant 0 : index
    %c0_50 = arith.constant 0 : index
    %c0_51 = arith.constant 0 : index
    %c0_52 = arith.constant 0 : index
    %33 = vector.load %arg2[%c0_49, %c0_50, %c0_51, %c0_52] : memref<1x16x8x64xf32, #tpu.memory_space<vmem>>, vector<1x16x8x32xf32>
    %c0_53 = arith.constant 0 : index
    %c1_54 = arith.constant 1 : index
    %c8_55 = arith.constant 8 : index
    %c32 = arith.constant 32 : index
    %34 = vector.load %arg13[%c0_53, %c1_54, %c8_55, %c32] : memref<1x18x24x128xf32, #tpu.memory_space<vmem>>, vector<1x16x8x32xf32>
    tpu.vector_store %arg13[%c0_53, %c1_54, %c8_55, %c32], %33 {strides = array<i32>} : memref<1x18x24x128xf32, #tpu.memory_space<vmem>>, vector<1x16x8x32xf32>,
    %c0_56 = arith.constant 0 : index
    %c0_57 = arith.constant 0 : index
    %c0_58 = arith.constant 0 : index
    %c32_59 = arith.constant 32 : index
    %35 = vector.load %arg2[%c0_56, %c0_57, %c0_58, %c32_59] : memref<1x16x8x64xf32, #tpu.memory_space<vmem>>, vector<1x16x8x32xf32>
    %c0_60 = arith.constant 0 : index
    %c1_61 = arith.constant 1 : index
    %c8_62 = arith.constant 8 : index
    %c96 = arith.constant 96 : index
    %36 = vector.load %arg13[%c0_60, %c1_61, %c8_62, %c96] : memref<1x18x24x128xf32, #tpu.memory_space<vmem>>, vector<1x16x8x32xf32>
    tpu.vector_store %arg13[%c0_60, %c1_61, %c8_62, %c96], %35 {strides = array<i32>} : memref<1x18x24x128xf32, #tpu.memory_space<vmem>>, vector<1x16x8x32xf32>,
    %cst_63 = arith.constant 0.000000e+00 : f32
    %37 = vector.broadcast %cst_63 : f32 to vector<128x32xf32>
    %c0_64 = arith.constant 0 : index
    %c0_65 = arith.constant 0 : index
    %c7_66 = arith.constant 7 : index
    %c64 = arith.constant 64 : index
    %38 = vector.load %arg13[%c0_64, %c0_65, %c7_66, %c64] : memref<1x18x24x128xf32, #tpu.memory_space<vmem>>, vector<1x16x8x64xf32>
    %39 = vector.shape_cast %38 : vector<1x16x8x64xf32> to vector<128x64xf32>
    %c0_67 = arith.constant 0 : index
    %c0_68 = arith.constant 0 : index
    %c0_69 = arith.constant 0 : index
    %40 = vector.load %arg5[%c0_67, %c0_68, %c0_69] : memref<9x64x32xf32, #tpu.memory_space<vmem>>, vector<1x64x32xf32>
    %41 = vector.shape_cast %40 : vector<1x64x32xf32> to vector<64x32xf32>
    %cst_70 = arith.constant dense<0.000000e+00> : vector<128x32xf32>
    %42 = tpu.matmul %39, %41, %cst_70 {dimension_numbers = #tpu.dot_dimension_numbers<[1], [0], [0], [1], [0, 0, 1, 1], [], []>} : vector<128x64xf32>, vector<64x32xf32>, vector<128x32xf32> -> vector<128x32xf32>
    %43 = arith.addf %37, %42 : vector<128x32xf32>
    %c0_71 = arith.constant 0 : index
    %c0_72 = arith.constant 0 : index
    %c8_73 = arith.constant 8 : index
    %c0_74 = arith.constant 0 : index
    %44 = vector.load %arg13[%c0_71, %c0_72, %c8_73, %c0_74] : memref<1x18x24x128xf32, #tpu.memory_space<vmem>>, vector<1x16x8x64xf32>
    %45 = vector.shape_cast %44 : vector<1x16x8x64xf32> to vector<128x64xf32>
    %c1_75 = arith.constant 1 : index
    %c0_76 = arith.constant 0 : index
    %c0_77 = arith.constant 0 : index
    %46 = vector.load %arg5[%c1_75, %c0_76, %c0_77] : memref<9x64x32xf32, #tpu.memory_space<vmem>>, vector<1x64x32xf32>
    %47 = vector.shape_cast %46 : vector<1x64x32xf32> to vector<64x32xf32>
    %cst_78 = arith.constant dense<0.000000e+00> : vector<128x32xf32>
    %48 = tpu.matmul %45, %47, %cst_78 {dimension_numbers = #tpu.dot_dimension_numbers<[1], [0], [0], [1], [0, 0, 1, 1], [], []>} : vector<128x64xf32>, vector<64x32xf32>, vector<128x32xf32> -> vector<128x32xf32>
    %49 = arith.addf %43, %48 : vector<128x32xf32>
    %c0_79 = arith.constant 0 : index
    %c0_80 = arith.constant 0 : index
    %c8_81 = arith.constant 8 : index
    %c64_82 = arith.constant 64 : index
    %50 = vector.load %arg13[%c0_79, %c0_80, %c8_81, %c64_82] : memref<1x18x24x128xf32, #tpu.memory_space<vmem>>, vector<1x16x8x64xf32>
    %51 = vector.shape_cast %50 : vector<1x16x8x64xf32> to vector<128x64xf32>
    %c2 = arith.constant 2 : index
    %c0_83 = arith.constant 0 : index
    %c0_84 = arith.constant 0 : index
    %52 = vector.load %arg5[%c2, %c0_83, %c0_84] : memref<9x64x32xf32, #tpu.memory_space<vmem>>, vector<1x64x32xf32>
    %53 = vector.shape_cast %52 : vector<1x64x32xf32> to vector<64x32xf32>
    %cst_85 = arith.constant dense<0.000000e+00> : vector<128x32xf32>
    %54 = tpu.matmul %51, %53, %cst_85 {dimension_numbers = #tpu.dot_dimension_numbers<[1], [0], [0], [1], [0, 0, 1, 1], [], []>} : vector<128x64xf32>, vector<64x32xf32>, vector<128x32xf32> -> vector<128x32xf32>
    %55 = arith.addf %49, %54 : vector<128x32xf32>
    %c0_86 = arith.constant 0 : index
    %c1_87 = arith.constant 1 : index
    %c7_88 = arith.constant 7 : index
    %c64_89 = arith.constant 64 : index
    %56 = vector.load %arg13[%c0_86, %c1_87, %c7_88, %c64_89] : memref<1x18x24x128xf32, #tpu.memory_space<vmem>>, vector<1x16x8x64xf32>
    %57 = vector.shape_cast %56 : vector<1x16x8x64xf32> to vector<128x64xf32>
    %c3 = arith.constant 3 : index
    %c0_90 = arith.constant 0 : index
    %c0_91 = arith.constant 0 : index
    %58 = vector.load %arg5[%c3, %c0_90, %c0_91] : memref<9x64x32xf32, #tpu.memory_space<vmem>>, vector<1x64x32xf32>
    %59 = vector.shape_cast %58 : vector<1x64x32xf32> to vector<64x32xf32>
    %cst_92 = arith.constant dense<0.000000e+00> : vector<128x32xf32>
    %60 = tpu.matmul %57, %59, %cst_92 {dimension_numbers = #tpu.dot_dimension_numbers<[1], [0], [0], [1], [0, 0, 1, 1], [], []>} : vector<128x64xf32>, vector<64x32xf32>, vector<128x32xf32> -> vector<128x32xf32>
    %61 = arith.addf %55, %60 : vector<128x32xf32>
    %c0_93 = arith.constant 0 : index
    %c1_94 = arith.constant 1 : index
    %c8_95 = arith.constant 8 : index
    %c0_96 = arith.constant 0 : index
    %62 = vector.load %arg13[%c0_93, %c1_94, %c8_95, %c0_96] : memref<1x18x24x128xf32, #tpu.memory_space<vmem>>, vector<1x16x8x64xf32>
    %63 = vector.shape_cast %62 : vector<1x16x8x64xf32> to vector<128x64xf32>
    %c4 = arith.constant 4 : index
    %c0_97 = arith.constant 0 : index
    %c0_98 = arith.constant 0 : index
    %64 = vector.load %arg5[%c4, %c0_97, %c0_98] : memref<9x64x32xf32, #tpu.memory_space<vmem>>, vector<1x64x32xf32>
    %65 = vector.shape_cast %64 : vector<1x64x32xf32> to vector<64x32xf32>
    %cst_99 = arith.constant dense<0.000000e+00> : vector<128x32xf32>
    %66 = tpu.matmul %63, %65, %cst_99 {dimension_numbers = #tpu.dot_dimension_numbers<[1], [0], [0], [1], [0, 0, 1, 1], [], []>} : vector<128x64xf32>, vector<64x32xf32>, vector<128x32xf32> -> vector<128x32xf32>
    %67 = arith.addf %61, %66 : vector<128x32xf32>
    %c0_100 = arith.constant 0 : index
    %c1_101 = arith.constant 1 : index
    %c8_102 = arith.constant 8 : index
    %c64_103 = arith.constant 64 : index
    %68 = vector.load %arg13[%c0_100, %c1_101, %c8_102, %c64_103] : memref<1x18x24x128xf32, #tpu.memory_space<vmem>>, vector<1x16x8x64xf32>
    %69 = vector.shape_cast %68 : vector<1x16x8x64xf32> to vector<128x64xf32>
    %c5 = arith.constant 5 : index
    %c0_104 = arith.constant 0 : index
    %c0_105 = arith.constant 0 : index
    %70 = vector.load %arg5[%c5, %c0_104, %c0_105] : memref<9x64x32xf32, #tpu.memory_space<vmem>>, vector<1x64x32xf32>
    %71 = vector.shape_cast %70 : vector<1x64x32xf32> to vector<64x32xf32>
    %cst_106 = arith.constant dense<0.000000e+00> : vector<128x32xf32>
    %72 = tpu.matmul %69, %71, %cst_106 {dimension_numbers = #tpu.dot_dimension_numbers<[1], [0], [0], [1], [0, 0, 1, 1], [], []>} : vector<128x64xf32>, vector<64x32xf32>, vector<128x32xf32> -> vector<128x32xf32>
    %73 = arith.addf %67, %72 : vector<128x32xf32>
    %c0_107 = arith.constant 0 : index
    %c2_108 = arith.constant 2 : index
    %c7_109 = arith.constant 7 : index
    %c64_110 = arith.constant 64 : index
    %74 = vector.load %arg13[%c0_107, %c2_108, %c7_109, %c64_110] : memref<1x18x24x128xf32, #tpu.memory_space<vmem>>, vector<1x16x8x64xf32>
    %75 = vector.shape_cast %74 : vector<1x16x8x64xf32> to vector<128x64xf32>
    %c6 = arith.constant 6 : index
    %c0_111 = arith.constant 0 : index
    %c0_112 = arith.constant 0 : index
    %76 = vector.load %arg5[%c6, %c0_111, %c0_112] : memref<9x64x32xf32, #tpu.memory_space<vmem>>, vector<1x64x32xf32>
    %77 = vector.shape_cast %76 : vector<1x64x32xf32> to vector<64x32xf32>
    %cst_113 = arith.constant dense<0.000000e+00> : vector<128x32xf32>
    %78 = tpu.matmul %75, %77, %cst_113 {dimension_numbers = #tpu.dot_dimension_numbers<[1], [0], [0], [1], [0, 0, 1, 1], [], []>} : vector<128x64xf32>, vector<64x32xf32>, vector<128x32xf32> -> vector<128x32xf32>
    %79 = arith.addf %73, %78 : vector<128x32xf32>
    %c0_114 = arith.constant 0 : index
    %c2_115 = arith.constant 2 : index
    %c8_116 = arith.constant 8 : index
    %c0_117 = arith.constant 0 : index
    %80 = vector.load %arg13[%c0_114, %c2_115, %c8_116, %c0_117] : memref<1x18x24x128xf32, #tpu.memory_space<vmem>>, vector<1x16x8x64xf32>
    %81 = vector.shape_cast %80 : vector<1x16x8x64xf32> to vector<128x64xf32>
    %c7_118 = arith.constant 7 : index
    %c0_119 = arith.constant 0 : index
    %c0_120 = arith.constant 0 : index
    %82 = vector.load %arg5[%c7_118, %c0_119, %c0_120] : memref<9x64x32xf32, #tpu.memory_space<vmem>>, vector<1x64x32xf32>
    %83 = vector.shape_cast %82 : vector<1x64x32xf32> to vector<64x32xf32>
    %cst_121 = arith.constant dense<0.000000e+00> : vector<128x32xf32>
    %84 = tpu.matmul %81, %83, %cst_121 {dimension_numbers = #tpu.dot_dimension_numbers<[1], [0], [0], [1], [0, 0, 1, 1], [], []>} : vector<128x64xf32>, vector<64x32xf32>, vector<128x32xf32> -> vector<128x32xf32>
    %85 = arith.addf %79, %84 : vector<128x32xf32>
    %c0_122 = arith.constant 0 : index
    %c2_123 = arith.constant 2 : index
    %c8_124 = arith.constant 8 : index
    %c64_125 = arith.constant 64 : index
    %86 = vector.load %arg13[%c0_122, %c2_123, %c8_124, %c64_125] : memref<1x18x24x128xf32, #tpu.memory_space<vmem>>, vector<1x16x8x64xf32>
    %87 = vector.shape_cast %86 : vector<1x16x8x64xf32> to vector<128x64xf32>
    %c8_126 = arith.constant 8 : index
    %c0_127 = arith.constant 0 : index
    %c0_128 = arith.constant 0 : index
    %88 = vector.load %arg5[%c8_126, %c0_127, %c0_128] : memref<9x64x32xf32, #tpu.memory_space<vmem>>, vector<1x64x32xf32>
    %89 = vector.shape_cast %88 : vector<1x64x32xf32> to vector<64x32xf32>
    %cst_129 = arith.constant dense<0.000000e+00> : vector<128x32xf32>
    %90 = tpu.matmul %87, %89, %cst_129 {dimension_numbers = #tpu.dot_dimension_numbers<[1], [0], [0], [1], [0, 0, 1, 1], [], []>} : vector<128x64xf32>, vector<64x32xf32>, vector<128x32xf32> -> vector<128x32xf32>
    %91 = arith.addf %85, %90 : vector<128x32xf32>
    %cst_130 = arith.constant 0.000000e+00 : f32
    %92 = vector.broadcast %cst_130 : f32 to vector<128x32xf32>
    %c0_131 = arith.constant 0 : index
    %c0_132 = arith.constant 0 : index
    %c8_133 = arith.constant 8 : index
    %c0_134 = arith.constant 0 : index
    %93 = vector.load %arg13[%c0_131, %c0_132, %c8_133, %c0_134] : memref<1x18x24x128xf32, #tpu.memory_space<vmem>>, vector<1x16x8x64xf32>
    %94 = vector.shape_cast %93 : vector<1x16x8x64xf32> to vector<128x64xf32>
    %c0_135 = arith.constant 0 : index
    %c0_136 = arith.constant 0 : index
    %c0_137 = arith.constant 0 : index
    %95 = vector.load %arg5[%c0_135, %c0_136, %c0_137] : memref<9x64x32xf32, #tpu.memory_space<vmem>>, vector<1x64x32xf32>
    %96 = vector.shape_cast %95 : vector<1x64x32xf32> to vector<64x32xf32>
    %cst_138 = arith.constant dense<0.000000e+00> : vector<128x32xf32>
    %97 = tpu.matmul %94, %96, %cst_138 {dimension_numbers = #tpu.dot_dimension_numbers<[1], [0], [0], [1], [0, 0, 1, 1], [], []>} : vector<128x64xf32>, vector<64x32xf32>, vector<128x32xf32> -> vector<128x32xf32>
    %98 = arith.addf %92, %97 : vector<128x32xf32>
    %c0_139 = arith.constant 0 : index
    %c0_140 = arith.constant 0 : index
    %c8_141 = arith.constant 8 : index
    %c64_142 = arith.constant 64 : index
    %99 = vector.load %arg13[%c0_139, %c0_140, %c8_141, %c64_142] : memref<1x18x24x128xf32, #tpu.memory_space<vmem>>, vector<1x16x8x64xf32>
    %100 = vector.shape_cast %99 : vector<1x16x8x64xf32> to vector<128x64xf32>
    %c1_143 = arith.constant 1 : index
    %c0_144 = arith.constant 0 : index
    %c0_145 = arith.constant 0 : index
    %101 = vector.load %arg5[%c1_143, %c0_144, %c0_145] : memref<9x64x32xf32, #tpu.memory_space<vmem>>, vector<1x64x32xf32>
    %102 = vector.shape_cast %101 : vector<1x64x32xf32> to vector<64x32xf32>
    %cst_146 = arith.constant dense<0.000000e+00> : vector<128x32xf32>
    %103 = tpu.matmul %100, %102, %cst_146 {dimension_numbers = #tpu.dot_dimension_numbers<[1], [0], [0], [1], [0, 0, 1, 1], [], []>} : vector<128x64xf32>, vector<64x32xf32>, vector<128x32xf32> -> vector<128x32xf32>
    %104 = arith.addf %98, %103 : vector<128x32xf32>
    %c0_147 = arith.constant 0 : index
    %c0_148 = arith.constant 0 : index
    %c9 = arith.constant 9 : index
    %c0_149 = arith.constant 0 : index
    %105 = vector.load %arg13[%c0_147, %c0_148, %c9, %c0_149] : memref<1x18x24x128xf32, #tpu.memory_space<vmem>>, vector<1x16x8x64xf32>
    %106 = vector.shape_cast %105 : vector<1x16x8x64xf32> to vector<128x64xf32>
    %c2_150 = arith.constant 2 : index
    %c0_151 = arith.constant 0 : index
    %c0_152 = arith.constant 0 : index
    %107 = vector.load %arg5[%c2_150, %c0_151, %c0_152] : memref<9x64x32xf32, #tpu.memory_space<vmem>>, vector<1x64x32xf32>
    %108 = vector.shape_cast %107 : vector<1x64x32xf32> to vector<64x32xf32>
    %cst_153 = arith.constant dense<0.000000e+00> : vector<128x32xf32>
    %109 = tpu.matmul %106, %108, %cst_153 {dimension_numbers = #tpu.dot_dimension_numbers<[1], [0], [0], [1], [0, 0, 1, 1], [], []>} : vector<128x64xf32>, vector<64x32xf32>, vector<128x32xf32> -> vector<128x32xf32>
    %110 = arith.addf %104, %109 : vector<128x32xf32>
    %c0_154 = arith.constant 0 : index
    %c1_155 = arith.constant 1 : index
    %c8_156 = arith.constant 8 : index
    %c0_157 = arith.constant 0 : index
    %111 = vector.load %arg13[%c0_154, %c1_155, %c8_156, %c0_157] : memref<1x18x24x128xf32, #tpu.memory_space<vmem>>, vector<1x16x8x64xf32>
    %112 = vector.shape_cast %111 : vector<1x16x8x64xf32> to vector<128x64xf32>
    %c3_158 = arith.constant 3 : index
    %c0_159 = arith.constant 0 : index
    %c0_160 = arith.constant 0 : index
    %113 = vector.load %arg5[%c3_158, %c0_159, %c0_160] : memref<9x64x32xf32, #tpu.memory_space<vmem>>, vector<1x64x32xf32>
    %114 = vector.shape_cast %113 : vector<1x64x32xf32> to vector<64x32xf32>
    %cst_161 = arith.constant dense<0.000000e+00> : vector<128x32xf32>
    %115 = tpu.matmul %112, %114, %cst_161 {dimension_numbers = #tpu.dot_dimension_numbers<[1], [0], [0], [1], [0, 0, 1, 1], [], []>} : vector<128x64xf32>, vector<64x32xf32>, vector<128x32xf32> -> vector<128x32xf32>
    %116 = arith.addf %110, %115 : vector<128x32xf32>
    %c0_162 = arith.constant 0 : index
    %c1_163 = arith.constant 1 : index
    %c8_164 = arith.constant 8 : index
    %c64_165 = arith.constant 64 : index
    %117 = vector.load %arg13[%c0_162, %c1_163, %c8_164, %c64_165] : memref<1x18x24x128xf32, #tpu.memory_space<vmem>>, vector<1x16x8x64xf32>
    %118 = vector.shape_cast %117 : vector<1x16x8x64xf32> to vector<128x64xf32>
    %c4_166 = arith.constant 4 : index
    %c0_167 = arith.constant 0 : index
    %c0_168 = arith.constant 0 : index
    %119 = vector.load %arg5[%c4_166, %c0_167, %c0_168] : memref<9x64x32xf32, #tpu.memory_space<vmem>>, vector<1x64x32xf32>
    %120 = vector.shape_cast %119 : vector<1x64x32xf32> to vector<64x32xf32>
    %cst_169 = arith.constant dense<0.000000e+00> : vector<128x32xf32>
    %121 = tpu.matmul %118, %120, %cst_169 {dimension_numbers = #tpu.dot_dimension_numbers<[1], [0], [0], [1], [0, 0, 1, 1], [], []>} : vector<128x64xf32>, vector<64x32xf32>, vector<128x32xf32> -> vector<128x32xf32>
    %122 = arith.addf %116, %121 : vector<128x32xf32>
    %c0_170 = arith.constant 0 : index
    %c1_171 = arith.constant 1 : index
    %c9_172 = arith.constant 9 : index
    %c0_173 = arith.constant 0 : index
    %123 = vector.load %arg13[%c0_170, %c1_171, %c9_172, %c0_173] : memref<1x18x24x128xf32, #tpu.memory_space<vmem>>, vector<1x16x8x64xf32>
    %124 = vector.shape_cast %123 : vector<1x16x8x64xf32> to vector<128x64xf32>
    %c5_174 = arith.constant 5 : index
    %c0_175 = arith.constant 0 : index
    %c0_176 = arith.constant 0 : index
    %125 = vector.load %arg5[%c5_174, %c0_175, %c0_176] : memref<9x64x32xf32, #tpu.memory_space<vmem>>, vector<1x64x32xf32>
    %126 = vector.shape_cast %125 : vector<1x64x32xf32> to vector<64x32xf32>
    %cst_177 = arith.constant dense<0.000000e+00> : vector<128x32xf32>
    %127 = tpu.matmul %124, %126, %cst_177 {dimension_numbers = #tpu.dot_dimension_numbers<[1], [0], [0], [1], [0, 0, 1, 1], [], []>} : vector<128x64xf32>, vector<64x32xf32>, vector<128x32xf32> -> vector<128x32xf32>
    %128 = arith.addf %122, %127 : vector<128x32xf32>
    %c0_178 = arith.constant 0 : index
    %c2_179 = arith.constant 2 : index
    %c8_180 = arith.constant 8 : index
    %c0_181 = arith.constant 0 : index
    %129 = vector.load %arg13[%c0_178, %c2_179, %c8_180, %c0_181] : memref<1x18x24x128xf32, #tpu.memory_space<vmem>>, vector<1x16x8x64xf32>
    %130 = vector.shape_cast %129 : vector<1x16x8x64xf32> to vector<128x64xf32>
    %c6_182 = arith.constant 6 : index
    %c0_183 = arith.constant 0 : index
    %c0_184 = arith.constant 0 : index
    %131 = vector.load %arg5[%c6_182, %c0_183, %c0_184] : memref<9x64x32xf32, #tpu.memory_space<vmem>>, vector<1x64x32xf32>
    %132 = vector.shape_cast %131 : vector<1x64x32xf32> to vector<64x32xf32>
    %cst_185 = arith.constant dense<0.000000e+00> : vector<128x32xf32>
    %133 = tpu.matmul %130, %132, %cst_185 {dimension_numbers = #tpu.dot_dimension_numbers<[1], [0], [0], [1], [0, 0, 1, 1], [], []>} : vector<128x64xf32>, vector<64x32xf32>, vector<128x32xf32> -> vector<128x32xf32>
    %134 = arith.addf %128, %133 : vector<128x32xf32>
    %c0_186 = arith.constant 0 : index
    %c2_187 = arith.constant 2 : index
    %c8_188 = arith.constant 8 : index
    %c64_189 = arith.constant 64 : index
    %135 = vector.load %arg13[%c0_186, %c2_187, %c8_188, %c64_189] : memref<1x18x24x128xf32, #tpu.memory_space<vmem>>, vector<1x16x8x64xf32>
    %136 = vector.shape_cast %135 : vector<1x16x8x64xf32> to vector<128x64xf32>
    %c7_190 = arith.constant 7 : index
    %c0_191 = arith.constant 0 : index
    %c0_192 = arith.constant 0 : index
    %137 = vector.load %arg5[%c7_190, %c0_191, %c0_192] : memref<9x64x32xf32, #tpu.memory_space<vmem>>, vector<1x64x32xf32>
    %138 = vector.shape_cast %137 : vector<1x64x32xf32> to vector<64x32xf32>
    %cst_193 = arith.constant dense<0.000000e+00> : vector<128x32xf32>
    %139 = tpu.matmul %136, %138, %cst_193 {dimension_numbers = #tpu.dot_dimension_numbers<[1], [0], [0], [1], [0, 0, 1, 1], [], []>} : vector<128x64xf32>, vector<64x32xf32>, vector<128x32xf32> -> vector<128x32xf32>
    %140 = arith.addf %134, %139 : vector<128x32xf32>
    %c0_194 = arith.constant 0 : index
    %c2_195 = arith.constant 2 : index
    %c9_196 = arith.constant 9 : index
    %c0_197 = arith.constant 0 : index
    %141 = vector.load %arg13[%c0_194, %c2_195, %c9_196, %c0_197] : memref<1x18x24x128xf32, #tpu.memory_space<vmem>>, vector<1x16x8x64xf32>
    %142 = vector.shape_cast %141 : vector<1x16x8x64xf32> to vector<128x64xf32>
    %c8_198 = arith.constant 8 : index
    %c0_199 = arith.constant 0 : index
    %c0_200 = arith.constant 0 : index
    %143 = vector.load %arg5[%c8_198, %c0_199, %c0_200] : memref<9x64x32xf32, #tpu.memory_space<vmem>>, vector<1x64x32xf32>
    %144 = vector.shape_cast %143 : vector<1x64x32xf32> to vector<64x32xf32>
    %cst_201 = arith.constant dense<0.000000e+00> : vector<128x32xf32>
    %145 = tpu.matmul %142, %144, %cst_201 {dimension_numbers = #tpu.dot_dimension_numbers<[1], [0], [0], [1], [0, 0, 1, 1], [], []>} : vector<128x64xf32>, vector<64x32xf32>, vector<128x32xf32> -> vector<128x32xf32>
    %146 = arith.addf %140, %145 : vector<128x32xf32>
    %c0_202 = arith.constant 0 : index
    %c0_203 = arith.constant 0 : index
    %147 = vector.load %arg6[%c0_202, %c0_203] : memref<1x32xf32, #tpu.memory_space<vmem>>, vector<1x32xf32>
    %148 = vector.broadcast %147 : vector<1x32xf32> to vector<128x32xf32>
    %149 = arith.addf %91, %148 : vector<128x32xf32>
    %cst_204 = arith.constant 0.000000e+00 : f32
    %150 = vector.broadcast %cst_204 : f32 to vector<128x32xf32>
    %151 = arith.maximumf %149, %150 : vector<128x32xf32>
    %152 = vector.shape_cast %151 : vector<128x32xf32> to vector<1x16x8x32xf32>
    %c0_205 = arith.constant 0 : index
    %c1_206 = arith.constant 1 : index
    %c8_207 = arith.constant 8 : index
    %c0_208 = arith.constant 0 : index
    %153 = vector.load %arg14[%c0_205, %c1_206, %c8_207, %c0_208] : memref<1x18x24x64xf32, #tpu.memory_space<vmem>>, vector<1x16x8x32xf32>
    tpu.vector_store %arg14[%c0_205, %c1_206, %c8_207, %c0_208], %152 {strides = array<i32>} : memref<1x18x24x64xf32, #tpu.memory_space<vmem>>, vector<1x16x8x32xf32>,
    %c0_209 = arith.constant 0 : index
    %c0_210 = arith.constant 0 : index
    %154 = vector.load %arg6[%c0_209, %c0_210] : memref<1x32xf32, #tpu.memory_space<vmem>>, vector<1x32xf32>
    %155 = vector.broadcast %154 : vector<1x32xf32> to vector<128x32xf32>
    %156 = arith.addf %146, %155 : vector<128x32xf32>
    %cst_211 = arith.constant 0.000000e+00 : f32
    %157 = vector.broadcast %cst_211 : f32 to vector<128x32xf32>
    %158 = arith.maximumf %156, %157 : vector<128x32xf32>
    %159 = vector.shape_cast %158 : vector<128x32xf32> to vector<1x16x8x32xf32>
    %c0_212 = arith.constant 0 : index
    %c1_213 = arith.constant 1 : index
    %c8_214 = arith.constant 8 : index
    %c32_215 = arith.constant 32 : index
    %160 = vector.load %arg14[%c0_212, %c1_213, %c8_214, %c32_215] : memref<1x18x24x64xf32, #tpu.memory_space<vmem>>, vector<1x16x8x32xf32>
    tpu.vector_store %arg14[%c0_212, %c1_213, %c8_214, %c32_215], %159 {strides = array<i32>} : memref<1x18x24x64xf32, #tpu.memory_space<vmem>>, vector<1x16x8x32xf32>,
    %cst_216 = arith.constant 0.000000e+00 : f32
    %161 = vector.broadcast %cst_216 : f32 to vector<128x32xf32>
    %c0_217 = arith.constant 0 : index
    %c0_218 = arith.constant 0 : index
    %c7_219 = arith.constant 7 : index
    %c32_220 = arith.constant 32 : index
    %162 = vector.load %arg14[%c0_217, %c0_218, %c7_219, %c32_220] : memref<1x18x24x64xf32, #tpu.memory_space<vmem>>, vector<1x16x8x32xf32>
    %163 = vector.shape_cast %162 : vector<1x16x8x32xf32> to vector<128x32xf32>
    %c0_221 = arith.constant 0 : index
    %c0_222 = arith.constant 0 : index
    %c0_223 = arith.constant 0 : index
    %164 = vector.load %arg7[%c0_221, %c0_222, %c0_223] : memref<9x32x32xf32, #tpu.memory_space<vmem>>, vector<1x32x32xf32>
    %165 = vector.shape_cast %164 : vector<1x32x32xf32> to vector<32x32xf32>
    %cst_224 = arith.constant dense<0.000000e+00> : vector<128x32xf32>
    %166 = tpu.matmul %163, %165, %cst_224 {dimension_numbers = #tpu.dot_dimension_numbers<[1], [0], [0], [1], [0, 0, 1, 1], [], []>} : vector<128x32xf32>, vector<32x32xf32>, vector<128x32xf32> -> vector<128x32xf32>
    %167 = arith.addf %161, %166 : vector<128x32xf32>
    %c0_225 = arith.constant 0 : index
    %c0_226 = arith.constant 0 : index
    %c8_227 = arith.constant 8 : index
    %c0_228 = arith.constant 0 : index
    %168 = vector.load %arg14[%c0_225, %c0_226, %c8_227, %c0_228] : memref<1x18x24x64xf32, #tpu.memory_space<vmem>>, vector<1x16x8x32xf32>
    %169 = vector.shape_cast %168 : vector<1x16x8x32xf32> to vector<128x32xf32>
    %c1_229 = arith.constant 1 : index
    %c0_230 = arith.constant 0 : index
    %c0_231 = arith.constant 0 : index
    %170 = vector.load %arg7[%c1_229, %c0_230, %c0_231] : memref<9x32x32xf32, #tpu.memory_space<vmem>>, vector<1x32x32xf32>
    %171 = vector.shape_cast %170 : vector<1x32x32xf32> to vector<32x32xf32>
    %cst_232 = arith.constant dense<0.000000e+00> : vector<128x32xf32>
    %172 = tpu.matmul %169, %171, %cst_232 {dimension_numbers = #tpu.dot_dimension_numbers<[1], [0], [0], [1], [0, 0, 1, 1], [], []>} : vector<128x32xf32>, vector<32x32xf32>, vector<128x32xf32> -> vector<128x32xf32>
    %173 = arith.addf %167, %172 : vector<128x32xf32>
    %c0_233 = arith.constant 0 : index
    %c0_234 = arith.constant 0 : index
    %c8_235 = arith.constant 8 : index
    %c32_236 = arith.constant 32 : index
    %174 = vector.load %arg14[%c0_233, %c0_234, %c8_235, %c32_236] : memref<1x18x24x64xf32, #tpu.memory_space<vmem>>, vector<1x16x8x32xf32>
    %175 = vector.shape_cast %174 : vector<1x16x8x32xf32> to vector<128x32xf32>
    %c2_237 = arith.constant 2 : index
    %c0_238 = arith.constant 0 : index
    %c0_239 = arith.constant 0 : index
    %176 = vector.load %arg7[%c2_237, %c0_238, %c0_239] : memref<9x32x32xf32, #tpu.memory_space<vmem>>, vector<1x32x32xf32>
    %177 = vector.shape_cast %176 : vector<1x32x32xf32> to vector<32x32xf32>
    %cst_240 = arith.constant dense<0.000000e+00> : vector<128x32xf32>
    %178 = tpu.matmul %175, %177, %cst_240 {dimension_numbers = #tpu.dot_dimension_numbers<[1], [0], [0], [1], [0, 0, 1, 1], [], []>} : vector<128x32xf32>, vector<32x32xf32>, vector<128x32xf32> -> vector<128x32xf32>
    %179 = arith.addf %173, %178 : vector<128x32xf32>
    %c0_241 = arith.constant 0 : index
    %c1_242 = arith.constant 1 : index
    %c7_243 = arith.constant 7 : index
    %c32_244 = arith.constant 32 : index
    %180 = vector.load %arg14[%c0_241, %c1_242, %c7_243, %c32_244] : memref<1x18x24x64xf32, #tpu.memory_space<vmem>>, vector<1x16x8x32xf32>
    %181 = vector.shape_cast %180 : vector<1x16x8x32xf32> to vector<128x32xf32>
    %c3_245 = arith.constant 3 : index
    %c0_246 = arith.constant 0 : index
    %c0_247 = arith.constant 0 : index
    %182 = vector.load %arg7[%c3_245, %c0_246, %c0_247] : memref<9x32x32xf32, #tpu.memory_space<vmem>>, vector<1x32x32xf32>
    %183 = vector.shape_cast %182 : vector<1x32x32xf32> to vector<32x32xf32>
    %cst_248 = arith.constant dense<0.000000e+00> : vector<128x32xf32>
    %184 = tpu.matmul %181, %183, %cst_248 {dimension_numbers = #tpu.dot_dimension_numbers<[1], [0], [0], [1], [0, 0, 1, 1], [], []>} : vector<128x32xf32>, vector<32x32xf32>, vector<128x32xf32> -> vector<128x32xf32>
    %185 = arith.addf %179, %184 : vector<128x32xf32>
    %c0_249 = arith.constant 0 : index
    %c1_250 = arith.constant 1 : index
    %c8_251 = arith.constant 8 : index
    %c0_252 = arith.constant 0 : index
    %186 = vector.load %arg14[%c0_249, %c1_250, %c8_251, %c0_252] : memref<1x18x24x64xf32, #tpu.memory_space<vmem>>, vector<1x16x8x32xf32>
    %187 = vector.shape_cast %186 : vector<1x16x8x32xf32> to vector<128x32xf32>
    %c4_253 = arith.constant 4 : index
    %c0_254 = arith.constant 0 : index
    %c0_255 = arith.constant 0 : index
    %188 = vector.load %arg7[%c4_253, %c0_254, %c0_255] : memref<9x32x32xf32, #tpu.memory_space<vmem>>, vector<1x32x32xf32>
    %189 = vector.shape_cast %188 : vector<1x32x32xf32> to vector<32x32xf32>
    %cst_256 = arith.constant dense<0.000000e+00> : vector<128x32xf32>
    %190 = tpu.matmul %187, %189, %cst_256 {dimension_numbers = #tpu.dot_dimension_numbers<[1], [0], [0], [1], [0, 0, 1, 1], [], []>} : vector<128x32xf32>, vector<32x32xf32>, vector<128x32xf32> -> vector<128x32xf32>
    %191 = arith.addf %185, %190 : vector<128x32xf32>
    %c0_257 = arith.constant 0 : index
    %c1_258 = arith.constant 1 : index
    %c8_259 = arith.constant 8 : index
    %c32_260 = arith.constant 32 : index
    %192 = vector.load %arg14[%c0_257, %c1_258, %c8_259, %c32_260] : memref<1x18x24x64xf32, #tpu.memory_space<vmem>>, vector<1x16x8x32xf32>
    %193 = vector.shape_cast %192 : vector<1x16x8x32xf32> to vector<128x32xf32>
    %c5_261 = arith.constant 5 : index
    %c0_262 = arith.constant 0 : index
    %c0_263 = arith.constant 0 : index
    %194 = vector.load %arg7[%c5_261, %c0_262, %c0_263] : memref<9x32x32xf32, #tpu.memory_space<vmem>>, vector<1x32x32xf32>
    %195 = vector.shape_cast %194 : vector<1x32x32xf32> to vector<32x32xf32>
    %cst_264 = arith.constant dense<0.000000e+00> : vector<128x32xf32>
    %196 = tpu.matmul %193, %195, %cst_264 {dimension_numbers = #tpu.dot_dimension_numbers<[1], [0], [0], [1], [0, 0, 1, 1], [], []>} : vector<128x32xf32>, vector<32x32xf32>, vector<128x32xf32> -> vector<128x32xf32>
    %197 = arith.addf %191, %196 : vector<128x32xf32>
    %c0_265 = arith.constant 0 : index
    %c2_266 = arith.constant 2 : index
    %c7_267 = arith.constant 7 : index
    %c32_268 = arith.constant 32 : index
    %198 = vector.load %arg14[%c0_265, %c2_266, %c7_267, %c32_268] : memref<1x18x24x64xf32, #tpu.memory_space<vmem>>, vector<1x16x8x32xf32>
    %199 = vector.shape_cast %198 : vector<1x16x8x32xf32> to vector<128x32xf32>
    %c6_269 = arith.constant 6 : index
    %c0_270 = arith.constant 0 : index
    %c0_271 = arith.constant 0 : index
    %200 = vector.load %arg7[%c6_269, %c0_270, %c0_271] : memref<9x32x32xf32, #tpu.memory_space<vmem>>, vector<1x32x32xf32>
    %201 = vector.shape_cast %200 : vector<1x32x32xf32> to vector<32x32xf32>
    %cst_272 = arith.constant dense<0.000000e+00> : vector<128x32xf32>
    %202 = tpu.matmul %199, %201, %cst_272 {dimension_numbers = #tpu.dot_dimension_numbers<[1], [0], [0], [1], [0, 0, 1, 1], [], []>} : vector<128x32xf32>, vector<32x32xf32>, vector<128x32xf32> -> vector<128x32xf32>
    %203 = arith.addf %197, %202 : vector<128x32xf32>
    %c0_273 = arith.constant 0 : index
    %c2_274 = arith.constant 2 : index
    %c8_275 = arith.constant 8 : index
    %c0_276 = arith.constant 0 : index
    %204 = vector.load %arg14[%c0_273, %c2_274, %c8_275, %c0_276] : memref<1x18x24x64xf32, #tpu.memory_space<vmem>>, vector<1x16x8x32xf32>
    %205 = vector.shape_cast %204 : vector<1x16x8x32xf32> to vector<128x32xf32>
    %c7_277 = arith.constant 7 : index
    %c0_278 = arith.constant 0 : index
    %c0_279 = arith.constant 0 : index
    %206 = vector.load %arg7[%c7_277, %c0_278, %c0_279] : memref<9x32x32xf32, #tpu.memory_space<vmem>>, vector<1x32x32xf32>
    %207 = vector.shape_cast %206 : vector<1x32x32xf32> to vector<32x32xf32>
    %cst_280 = arith.constant dense<0.000000e+00> : vector<128x32xf32>
    %208 = tpu.matmul %205, %207, %cst_280 {dimension_numbers = #tpu.dot_dimension_numbers<[1], [0], [0], [1], [0, 0, 1, 1], [], []>} : vector<128x32xf32>, vector<32x32xf32>, vector<128x32xf32> -> vector<128x32xf32>
    %209 = arith.addf %203, %208 : vector<128x32xf32>
    %c0_281 = arith.constant 0 : index
    %c2_282 = arith.constant 2 : index
    %c8_283 = arith.constant 8 : index
    %c32_284 = arith.constant 32 : index
    %210 = vector.load %arg14[%c0_281, %c2_282, %c8_283, %c32_284] : memref<1x18x24x64xf32, #tpu.memory_space<vmem>>, vector<1x16x8x32xf32>
    %211 = vector.shape_cast %210 : vector<1x16x8x32xf32> to vector<128x32xf32>
    %c8_285 = arith.constant 8 : index
    %c0_286 = arith.constant 0 : index
    %c0_287 = arith.constant 0 : index
    %212 = vector.load %arg7[%c8_285, %c0_286, %c0_287] : memref<9x32x32xf32, #tpu.memory_space<vmem>>, vector<1x32x32xf32>
    %213 = vector.shape_cast %212 : vector<1x32x32xf32> to vector<32x32xf32>
    %cst_288 = arith.constant dense<0.000000e+00> : vector<128x32xf32>
    %214 = tpu.matmul %211, %213, %cst_288 {dimension_numbers = #tpu.dot_dimension_numbers<[1], [0], [0], [1], [0, 0, 1, 1], [], []>} : vector<128x32xf32>, vector<32x32xf32>, vector<128x32xf32> -> vector<128x32xf32>
    %215 = arith.addf %209, %214 : vector<128x32xf32>
    %cst_289 = arith.constant 0.000000e+00 : f32
    %216 = vector.broadcast %cst_289 : f32 to vector<128x32xf32>
    %c0_290 = arith.constant 0 : index
    %c0_291 = arith.constant 0 : index
    %c8_292 = arith.constant 8 : index
    %c0_293 = arith.constant 0 : index
    %217 = vector.load %arg14[%c0_290, %c0_291, %c8_292, %c0_293] : memref<1x18x24x64xf32, #tpu.memory_space<vmem>>, vector<1x16x8x32xf32>
    %218 = vector.shape_cast %217 : vector<1x16x8x32xf32> to vector<128x32xf32>
    %c0_294 = arith.constant 0 : index
    %c0_295 = arith.constant 0 : index
    %c0_296 = arith.constant 0 : index
    %219 = vector.load %arg7[%c0_294, %c0_295, %c0_296] : memref<9x32x32xf32, #tpu.memory_space<vmem>>, vector<1x32x32xf32>
    %220 = vector.shape_cast %219 : vector<1x32x32xf32> to vector<32x32xf32>
    %cst_297 = arith.constant dense<0.000000e+00> : vector<128x32xf32>
    %221 = tpu.matmul %218, %220, %cst_297 {dimension_numbers = #tpu.dot_dimension_numbers<[1], [0], [0], [1], [0, 0, 1, 1], [], []>} : vector<128x32xf32>, vector<32x32xf32>, vector<128x32xf32> -> vector<128x32xf32>
    %222 = arith.addf %216, %221 : vector<128x32xf32>
    %c0_298 = arith.constant 0 : index
    %c0_299 = arith.constant 0 : index
    %c8_300 = arith.constant 8 : index
    %c32_301 = arith.constant 32 : index
    %223 = vector.load %arg14[%c0_298, %c0_299, %c8_300, %c32_301] : memref<1x18x24x64xf32, #tpu.memory_space<vmem>>, vector<1x16x8x32xf32>
    %224 = vector.shape_cast %223 : vector<1x16x8x32xf32> to vector<128x32xf32>
    %c1_302 = arith.constant 1 : index
    %c0_303 = arith.constant 0 : index
    %c0_304 = arith.constant 0 : index
    %225 = vector.load %arg7[%c1_302, %c0_303, %c0_304] : memref<9x32x32xf32, #tpu.memory_space<vmem>>, vector<1x32x32xf32>
    %226 = vector.shape_cast %225 : vector<1x32x32xf32> to vector<32x32xf32>
    %cst_305 = arith.constant dense<0.000000e+00> : vector<128x32xf32>
    %227 = tpu.matmul %224, %226, %cst_305 {dimension_numbers = #tpu.dot_dimension_numbers<[1], [0], [0], [1], [0, 0, 1, 1], [], []>} : vector<128x32xf32>, vector<32x32xf32>, vector<128x32xf32> -> vector<128x32xf32>
    %228 = arith.addf %222, %227 : vector<128x32xf32>
    %c0_306 = arith.constant 0 : index
    %c0_307 = arith.constant 0 : index
    %c9_308 = arith.constant 9 : index
    %c0_309 = arith.constant 0 : index
    %229 = vector.load %arg14[%c0_306, %c0_307, %c9_308, %c0_309] : memref<1x18x24x64xf32, #tpu.memory_space<vmem>>, vector<1x16x8x32xf32>
    %230 = vector.shape_cast %229 : vector<1x16x8x32xf32> to vector<128x32xf32>
    %c2_310 = arith.constant 2 : index
    %c0_311 = arith.constant 0 : index
    %c0_312 = arith.constant 0 : index
    %231 = vector.load %arg7[%c2_310, %c0_311, %c0_312] : memref<9x32x32xf32, #tpu.memory_space<vmem>>, vector<1x32x32xf32>
    %232 = vector.shape_cast %231 : vector<1x32x32xf32> to vector<32x32xf32>
    %cst_313 = arith.constant dense<0.000000e+00> : vector<128x32xf32>
    %233 = tpu.matmul %230, %232, %cst_313 {dimension_numbers = #tpu.dot_dimension_numbers<[1], [0], [0], [1], [0, 0, 1, 1], [], []>} : vector<128x32xf32>, vector<32x32xf32>, vector<128x32xf32> -> vector<128x32xf32>
    %234 = arith.addf %228, %233 : vector<128x32xf32>
    %c0_314 = arith.constant 0 : index
    %c1_315 = arith.constant 1 : index
    %c8_316 = arith.constant 8 : index
    %c0_317 = arith.constant 0 : index
    %235 = vector.load %arg14[%c0_314, %c1_315, %c8_316, %c0_317] : memref<1x18x24x64xf32, #tpu.memory_space<vmem>>, vector<1x16x8x32xf32>
    %236 = vector.shape_cast %235 : vector<1x16x8x32xf32> to vector<128x32xf32>
    %c3_318 = arith.constant 3 : index
    %c0_319 = arith.constant 0 : index
    %c0_320 = arith.constant 0 : index
    %237 = vector.load %arg7[%c3_318, %c0_319, %c0_320] : memref<9x32x32xf32, #tpu.memory_space<vmem>>, vector<1x32x32xf32>
    %238 = vector.shape_cast %237 : vector<1x32x32xf32> to vector<32x32xf32>
    %cst_321 = arith.constant dense<0.000000e+00> : vector<128x32xf32>
    %239 = tpu.matmul %236, %238, %cst_321 {dimension_numbers = #tpu.dot_dimension_numbers<[1], [0], [0], [1], [0, 0, 1, 1], [], []>} : vector<128x32xf32>, vector<32x32xf32>, vector<128x32xf32> -> vector<128x32xf32>
    %240 = arith.addf %234, %239 : vector<128x32xf32>
    %c0_322 = arith.constant 0 : index
    %c1_323 = arith.constant 1 : index
    %c8_324 = arith.constant 8 : index
    %c32_325 = arith.constant 32 : index
    %241 = vector.load %arg14[%c0_322, %c1_323, %c8_324, %c32_325] : memref<1x18x24x64xf32, #tpu.memory_space<vmem>>, vector<1x16x8x32xf32>
    %242 = vector.shape_cast %241 : vector<1x16x8x32xf32> to vector<128x32xf32>
    %c4_326 = arith.constant 4 : index
    %c0_327 = arith.constant 0 : index
    %c0_328 = arith.constant 0 : index
    %243 = vector.load %arg7[%c4_326, %c0_327, %c0_328] : memref<9x32x32xf32, #tpu.memory_space<vmem>>, vector<1x32x32xf32>
    %244 = vector.shape_cast %243 : vector<1x32x32xf32> to vector<32x32xf32>
    %cst_329 = arith.constant dense<0.000000e+00> : vector<128x32xf32>
    %245 = tpu.matmul %242, %244, %cst_329 {dimension_numbers = #tpu.dot_dimension_numbers<[1], [0], [0], [1], [0, 0, 1, 1], [], []>} : vector<128x32xf32>, vector<32x32xf32>, vector<128x32xf32> -> vector<128x32xf32>
    %246 = arith.addf %240, %245 : vector<128x32xf32>
    %c0_330 = arith.constant 0 : index
    %c1_331 = arith.constant 1 : index
    %c9_332 = arith.constant 9 : index
    %c0_333 = arith.constant 0 : index
    %247 = vector.load %arg14[%c0_330, %c1_331, %c9_332, %c0_333] : memref<1x18x24x64xf32, #tpu.memory_space<vmem>>, vector<1x16x8x32xf32>
    %248 = vector.shape_cast %247 : vector<1x16x8x32xf32> to vector<128x32xf32>
    %c5_334 = arith.constant 5 : index
    %c0_335 = arith.constant 0 : index
    %c0_336 = arith.constant 0 : index
    %249 = vector.load %arg7[%c5_334, %c0_335, %c0_336] : memref<9x32x32xf32, #tpu.memory_space<vmem>>, vector<1x32x32xf32>
    %250 = vector.shape_cast %249 : vector<1x32x32xf32> to vector<32x32xf32>
    %cst_337 = arith.constant dense<0.000000e+00> : vector<128x32xf32>
    %251 = tpu.matmul %248, %250, %cst_337 {dimension_numbers = #tpu.dot_dimension_numbers<[1], [0], [0], [1], [0, 0, 1, 1], [], []>} : vector<128x32xf32>, vector<32x32xf32>, vector<128x32xf32> -> vector<128x32xf32>
    %252 = arith.addf %246, %251 : vector<128x32xf32>
    %c0_338 = arith.constant 0 : index
    %c2_339 = arith.constant 2 : index
    %c8_340 = arith.constant 8 : index
    %c0_341 = arith.constant 0 : index
    %253 = vector.load %arg14[%c0_338, %c2_339, %c8_340, %c0_341] : memref<1x18x24x64xf32, #tpu.memory_space<vmem>>, vector<1x16x8x32xf32>
    %254 = vector.shape_cast %253 : vector<1x16x8x32xf32> to vector<128x32xf32>
    %c6_342 = arith.constant 6 : index
    %c0_343 = arith.constant 0 : index
    %c0_344 = arith.constant 0 : index
    %255 = vector.load %arg7[%c6_342, %c0_343, %c0_344] : memref<9x32x32xf32, #tpu.memory_space<vmem>>, vector<1x32x32xf32>
    %256 = vector.shape_cast %255 : vector<1x32x32xf32> to vector<32x32xf32>
    %cst_345 = arith.constant dense<0.000000e+00> : vector<128x32xf32>
    %257 = tpu.matmul %254, %256, %cst_345 {dimension_numbers = #tpu.dot_dimension_numbers<[1], [0], [0], [1], [0, 0, 1, 1], [], []>} : vector<128x32xf32>, vector<32x32xf32>, vector<128x32xf32> -> vector<128x32xf32>
    %258 = arith.addf %252, %257 : vector<128x32xf32>
    %c0_346 = arith.constant 0 : index
    %c2_347 = arith.constant 2 : index
    %c8_348 = arith.constant 8 : index
    %c32_349 = arith.constant 32 : index
    %259 = vector.load %arg14[%c0_346, %c2_347, %c8_348, %c32_349] : memref<1x18x24x64xf32, #tpu.memory_space<vmem>>, vector<1x16x8x32xf32>
    %260 = vector.shape_cast %259 : vector<1x16x8x32xf32> to vector<128x32xf32>
    %c7_350 = arith.constant 7 : index
    %c0_351 = arith.constant 0 : index
    %c0_352 = arith.constant 0 : index
    %261 = vector.load %arg7[%c7_350, %c0_351, %c0_352] : memref<9x32x32xf32, #tpu.memory_space<vmem>>, vector<1x32x32xf32>
    %262 = vector.shape_cast %261 : vector<1x32x32xf32> to vector<32x32xf32>
    %cst_353 = arith.constant dense<0.000000e+00> : vector<128x32xf32>
    %263 = tpu.matmul %260, %262, %cst_353 {dimension_numbers = #tpu.dot_dimension_numbers<[1], [0], [0], [1], [0, 0, 1, 1], [], []>} : vector<128x32xf32>, vector<32x32xf32>, vector<128x32xf32> -> vector<128x32xf32>
    %264 = arith.addf %258, %263 : vector<128x32xf32>
    %c0_354 = arith.constant 0 : index
    %c2_355 = arith.constant 2 : index
    %c9_356 = arith.constant 9 : index
    %c0_357 = arith.constant 0 : index
    %265 = vector.load %arg14[%c0_354, %c2_355, %c9_356, %c0_357] : memref<1x18x24x64xf32, #tpu.memory_space<vmem>>, vector<1x16x8x32xf32>
    %266 = vector.shape_cast %265 : vector<1x16x8x32xf32> to vector<128x32xf32>
    %c8_358 = arith.constant 8 : index
    %c0_359 = arith.constant 0 : index
    %c0_360 = arith.constant 0 : index
    %267 = vector.load %arg7[%c8_358, %c0_359, %c0_360] : memref<9x32x32xf32, #tpu.memory_space<vmem>>, vector<1x32x32xf32>
    %268 = vector.shape_cast %267 : vector<1x32x32xf32> to vector<32x32xf32>
    %cst_361 = arith.constant dense<0.000000e+00> : vector<128x32xf32>
    %269 = tpu.matmul %266, %268, %cst_361 {dimension_numbers = #tpu.dot_dimension_numbers<[1], [0], [0], [1], [0, 0, 1, 1], [], []>} : vector<128x32xf32>, vector<32x32xf32>, vector<128x32xf32> -> vector<128x32xf32>
    %270 = arith.addf %264, %269 : vector<128x32xf32>
    %c0_362 = arith.constant 0 : index
    %c0_363 = arith.constant 0 : index
    %271 = vector.load %arg8[%c0_362, %c0_363] : memref<1x32xf32, #tpu.memory_space<vmem>>, vector<1x32xf32>
    %272 = vector.broadcast %271 : vector<1x32xf32> to vector<128x32xf32>
    %273 = arith.addf %215, %272 : vector<128x32xf32>
    %cst_364 = arith.constant 0.000000e+00 : f32
    %274 = vector.broadcast %cst_364 : f32 to vector<128x32xf32>
    %275 = arith.maximumf %273, %274 : vector<128x32xf32>
    %276 = vector.shape_cast %275 : vector<128x32xf32> to vector<1x16x8x32xf32>
    %c0_365 = arith.constant 0 : index
    %c1_366 = arith.constant 1 : index
    %c8_367 = arith.constant 8 : index
    %c0_368 = arith.constant 0 : index
    %277 = vector.load %arg14[%c0_365, %c1_366, %c8_367, %c0_368] : memref<1x18x24x64xf32, #tpu.memory_space<vmem>>, vector<1x16x8x32xf32>
    tpu.vector_store %arg14[%c0_365, %c1_366, %c8_367, %c0_368], %276 {strides = array<i32>} : memref<1x18x24x64xf32, #tpu.memory_space<vmem>>, vector<1x16x8x32xf32>,
    %c0_369 = arith.constant 0 : index
    %c0_370 = arith.constant 0 : index
    %278 = vector.load %arg8[%c0_369, %c0_370] : memref<1x32xf32, #tpu.memory_space<vmem>>, vector<1x32xf32>
    %279 = vector.broadcast %278 : vector<1x32xf32> to vector<128x32xf32>
    %280 = arith.addf %270, %279 : vector<128x32xf32>
    %cst_371 = arith.constant 0.000000e+00 : f32
    %281 = vector.broadcast %cst_371 : f32 to vector<128x32xf32>
    %282 = arith.maximumf %280, %281 : vector<128x32xf32>
    %283 = vector.shape_cast %282 : vector<128x32xf32> to vector<1x16x8x32xf32>
    %c0_372 = arith.constant 0 : index
    %c1_373 = arith.constant 1 : index
    %c8_374 = arith.constant 8 : index
    %c32_375 = arith.constant 32 : index
    %284 = vector.load %arg14[%c0_372, %c1_373, %c8_374, %c32_375] : memref<1x18x24x64xf32, #tpu.memory_space<vmem>>, vector<1x16x8x32xf32>
    tpu.vector_store %arg14[%c0_372, %c1_373, %c8_374, %c32_375], %283 {strides = array<i32>} : memref<1x18x24x64xf32, #tpu.memory_space<vmem>>, vector<1x16x8x32xf32>,
    %c0_376 = arith.constant 0 : index
    %285 = memref.load %arg10[%c0_376] : memref<1xf32, #tpu.memory_space<smem>>
    %cst_377 = arith.constant 0.000000e+00 : f32
    %286 = vector.broadcast %cst_377 : f32 to vector<1x16x8x32xf32>
    %c0_378 = arith.constant 0 : index
    %c0_379 = arith.constant 0 : index
    %c7_380 = arith.constant 7 : index
    %c32_381 = arith.constant 32 : index
    %287 = vector.load %arg14[%c0_378, %c0_379, %c7_380, %c32_381] : memref<1x18x24x64xf32, #tpu.memory_space<vmem>>, vector<1x16x8x32xf32>
    %c0_382 = arith.constant 0 : index
    %c0_383 = arith.constant 0 : index
    %c0_384 = arith.constant 0 : index
    %288 = vector.load %arg9[%c0_382, %c0_383, %c0_384] : memref<9x1x32xf32, #tpu.memory_space<vmem>>, vector<1x1x32xf32>
    %289 = vector.shape_cast %288 : vector<1x1x32xf32> to vector<1x32xf32>
    %290 = vector.shape_cast %289 : vector<1x32xf32> to vector<1x1x1x32xf32>
    %291 = vector.broadcast %290 : vector<1x1x1x32xf32> to vector<1x16x8x32xf32>
    %292 = arith.mulf %287, %291 : vector<1x16x8x32xf32>
    %293 = arith.addf %286, %292 : vector<1x16x8x32xf32>
    %c0_385 = arith.constant 0 : index
    %c0_386 = arith.constant 0 : index
    %c8_387 = arith.constant 8 : index
    %c0_388 = arith.constant 0 : index
    %294 = vector.load %arg14[%c0_385, %c0_386, %c8_387, %c0_388] : memref<1x18x24x64xf32, #tpu.memory_space<vmem>>, vector<1x16x8x32xf32>
    %c1_389 = arith.constant 1 : index
    %c0_390 = arith.constant 0 : index
    %c0_391 = arith.constant 0 : index
    %295 = vector.load %arg9[%c1_389, %c0_390, %c0_391] : memref<9x1x32xf32, #tpu.memory_space<vmem>>, vector<1x1x32xf32>
    %296 = vector.shape_cast %295 : vector<1x1x32xf32> to vector<1x32xf32>
    %297 = vector.shape_cast %296 : vector<1x32xf32> to vector<1x1x1x32xf32>
    %298 = vector.broadcast %297 : vector<1x1x1x32xf32> to vector<1x16x8x32xf32>
    %299 = arith.mulf %294, %298 : vector<1x16x8x32xf32>
    %300 = arith.addf %293, %299 : vector<1x16x8x32xf32>
    %c0_392 = arith.constant 0 : index
    %c0_393 = arith.constant 0 : index
    %c8_394 = arith.constant 8 : index
    %c32_395 = arith.constant 32 : index
    %301 = vector.load %arg14[%c0_392, %c0_393, %c8_394, %c32_395] : memref<1x18x24x64xf32, #tpu.memory_space<vmem>>, vector<1x16x8x32xf32>
    %c2_396 = arith.constant 2 : index
    %c0_397 = arith.constant 0 : index
    %c0_398 = arith.constant 0 : index
    %302 = vector.load %arg9[%c2_396, %c0_397, %c0_398] : memref<9x1x32xf32, #tpu.memory_space<vmem>>, vector<1x1x32xf32>
    %303 = vector.shape_cast %302 : vector<1x1x32xf32> to vector<1x32xf32>
    %304 = vector.shape_cast %303 : vector<1x32xf32> to vector<1x1x1x32xf32>
    %305 = vector.broadcast %304 : vector<1x1x1x32xf32> to vector<1x16x8x32xf32>
    %306 = arith.mulf %301, %305 : vector<1x16x8x32xf32>
    %307 = arith.addf %300, %306 : vector<1x16x8x32xf32>
    %c0_399 = arith.constant 0 : index
    %c1_400 = arith.constant 1 : index
    %c7_401 = arith.constant 7 : index
    %c32_402 = arith.constant 32 : index
    %308 = vector.load %arg14[%c0_399, %c1_400, %c7_401, %c32_402] : memref<1x18x24x64xf32, #tpu.memory_space<vmem>>, vector<1x16x8x32xf32>
    %c3_403 = arith.constant 3 : index
    %c0_404 = arith.constant 0 : index
    %c0_405 = arith.constant 0 : index
    %309 = vector.load %arg9[%c3_403, %c0_404, %c0_405] : memref<9x1x32xf32, #tpu.memory_space<vmem>>, vector<1x1x32xf32>
    %310 = vector.shape_cast %309 : vector<1x1x32xf32> to vector<1x32xf32>
    %311 = vector.shape_cast %310 : vector<1x32xf32> to vector<1x1x1x32xf32>
    %312 = vector.broadcast %311 : vector<1x1x1x32xf32> to vector<1x16x8x32xf32>
    %313 = arith.mulf %308, %312 : vector<1x16x8x32xf32>
    %314 = arith.addf %307, %313 : vector<1x16x8x32xf32>
    %c0_406 = arith.constant 0 : index
    %c1_407 = arith.constant 1 : index
    %c8_408 = arith.constant 8 : index
    %c0_409 = arith.constant 0 : index
    %315 = vector.load %arg14[%c0_406, %c1_407, %c8_408, %c0_409] : memref<1x18x24x64xf32, #tpu.memory_space<vmem>>, vector<1x16x8x32xf32>
    %c4_410 = arith.constant 4 : index
    %c0_411 = arith.constant 0 : index
    %c0_412 = arith.constant 0 : index
    %316 = vector.load %arg9[%c4_410, %c0_411, %c0_412] : memref<9x1x32xf32, #tpu.memory_space<vmem>>, vector<1x1x32xf32>
    %317 = vector.shape_cast %316 : vector<1x1x32xf32> to vector<1x32xf32>
    %318 = vector.shape_cast %317 : vector<1x32xf32> to vector<1x1x1x32xf32>
    %319 = vector.broadcast %318 : vector<1x1x1x32xf32> to vector<1x16x8x32xf32>
    %320 = arith.mulf %315, %319 : vector<1x16x8x32xf32>
    %321 = arith.addf %314, %320 : vector<1x16x8x32xf32>
    %c0_413 = arith.constant 0 : index
    %c1_414 = arith.constant 1 : index
    %c8_415 = arith.constant 8 : index
    %c32_416 = arith.constant 32 : index
    %322 = vector.load %arg14[%c0_413, %c1_414, %c8_415, %c32_416] : memref<1x18x24x64xf32, #tpu.memory_space<vmem>>, vector<1x16x8x32xf32>
    %c5_417 = arith.constant 5 : index
    %c0_418 = arith.constant 0 : index
    %c0_419 = arith.constant 0 : index
    %323 = vector.load %arg9[%c5_417, %c0_418, %c0_419] : memref<9x1x32xf32, #tpu.memory_space<vmem>>, vector<1x1x32xf32>
    %324 = vector.shape_cast %323 : vector<1x1x32xf32> to vector<1x32xf32>
    %325 = vector.shape_cast %324 : vector<1x32xf32> to vector<1x1x1x32xf32>
    %326 = vector.broadcast %325 : vector<1x1x1x32xf32> to vector<1x16x8x32xf32>
    %327 = arith.mulf %322, %326 : vector<1x16x8x32xf32>
    %328 = arith.addf %321, %327 : vector<1x16x8x32xf32>
    %c0_420 = arith.constant 0 : index
    %c2_421 = arith.constant 2 : index
    %c7_422 = arith.constant 7 : index
    %c32_423 = arith.constant 32 : index
    %329 = vector.load %arg14[%c0_420, %c2_421, %c7_422, %c32_423] : memref<1x18x24x64xf32, #tpu.memory_space<vmem>>, vector<1x16x8x32xf32>
    %c6_424 = arith.constant 6 : index
    %c0_425 = arith.constant 0 : index
    %c0_426 = arith.constant 0 : index
    %330 = vector.load %arg9[%c6_424, %c0_425, %c0_426] : memref<9x1x32xf32, #tpu.memory_space<vmem>>, vector<1x1x32xf32>
    %331 = vector.shape_cast %330 : vector<1x1x32xf32> to vector<1x32xf32>
    %332 = vector.shape_cast %331 : vector<1x32xf32> to vector<1x1x1x32xf32>
    %333 = vector.broadcast %332 : vector<1x1x1x32xf32> to vector<1x16x8x32xf32>
    %334 = arith.mulf %329, %333 : vector<1x16x8x32xf32>
    %335 = arith.addf %328, %334 : vector<1x16x8x32xf32>
    %c0_427 = arith.constant 0 : index
    %c2_428 = arith.constant 2 : index
    %c8_429 = arith.constant 8 : index
    %c0_430 = arith.constant 0 : index
    %336 = vector.load %arg14[%c0_427, %c2_428, %c8_429, %c0_430] : memref<1x18x24x64xf32, #tpu.memory_space<vmem>>, vector<1x16x8x32xf32>
    %c7_431 = arith.constant 7 : index
    %c0_432 = arith.constant 0 : index
    %c0_433 = arith.constant 0 : index
    %337 = vector.load %arg9[%c7_431, %c0_432, %c0_433] : memref<9x1x32xf32, #tpu.memory_space<vmem>>, vector<1x1x32xf32>
    %338 = vector.shape_cast %337 : vector<1x1x32xf32> to vector<1x32xf32>
    %339 = vector.shape_cast %338 : vector<1x32xf32> to vector<1x1x1x32xf32>
    %340 = vector.broadcast %339 : vector<1x1x1x32xf32> to vector<1x16x8x32xf32>
    %341 = arith.mulf %336, %340 : vector<1x16x8x32xf32>
    %342 = arith.addf %335, %341 : vector<1x16x8x32xf32>
    %c0_434 = arith.constant 0 : index
    %c2_435 = arith.constant 2 : index
    %c8_436 = arith.constant 8 : index
    %c32_437 = arith.constant 32 : index
    %343 = vector.load %arg14[%c0_434, %c2_435, %c8_436, %c32_437] : memref<1x18x24x64xf32, #tpu.memory_space<vmem>>, vector<1x16x8x32xf32>
    %c8_438 = arith.constant 8 : index
    %c0_439 = arith.constant 0 : index
    %c0_440 = arith.constant 0 : index
    %344 = vector.load %arg9[%c8_438, %c0_439, %c0_440] : memref<9x1x32xf32, #tpu.memory_space<vmem>>, vector<1x1x32xf32>
    %345 = vector.shape_cast %344 : vector<1x1x32xf32> to vector<1x32xf32>
    %346 = vector.shape_cast %345 : vector<1x32xf32> to vector<1x1x1x32xf32>
    %347 = vector.broadcast %346 : vector<1x1x1x32xf32> to vector<1x16x8x32xf32>
    %348 = arith.mulf %343, %347 : vector<1x16x8x32xf32>
    %349 = arith.addf %342, %348 : vector<1x16x8x32xf32>
    %cst_441 = arith.constant dense<0.000000e+00> : vector<1x16x8xf32>
    %350 = vector.multi_reduction <add>, %349, %cst_441 [3] : vector<1x16x8x32xf32> to vector<1x16x8xf32>
    %351 = vector.broadcast %285 : f32 to vector<1x16x8xf32>
    %352 = arith.addf %350, %351 : vector<1x16x8xf32>
    %c0_442 = arith.constant 0 : index
    %c0_443 = arith.constant 0 : index
    %c0_444 = arith.constant 0 : index
    %353 = vector.load %arg11[%c0_442, %c0_443, %c0_444] : memref<1x16x8xf32, #tpu.memory_space<vmem>>, vector<1x16x8xf32>
    tpu.vector_store %arg11[%c0_442, %c0_443, %c0_444], %352 {strides = array<i32>} : memref<1x16x8xf32, #tpu.memory_space<vmem>>, vector<1x16x8xf32>,
    %cst_445 = arith.constant 0.000000e+00 : f32
    %354 = vector.broadcast %cst_445 : f32 to vector<1x16x8x32xf32>
    %c0_446 = arith.constant 0 : index
    %c0_447 = arith.constant 0 : index
    %c8_448 = arith.constant 8 : index
    %c0_449 = arith.constant 0 : index
    %355 = vector.load %arg14[%c0_446, %c0_447, %c8_448, %c0_449] : memref<1x18x24x64xf32, #tpu.memory_space<vmem>>, vector<1x16x8x32xf32>
    %c0_450 = arith.constant 0 : index
    %c0_451 = arith.constant 0 : index
    %c0_452 = arith.constant 0 : index
    %356 = vector.load %arg9[%c0_450, %c0_451, %c0_452] : memref<9x1x32xf32, #tpu.memory_space<vmem>>, vector<1x1x32xf32>
    %357 = vector.shape_cast %356 : vector<1x1x32xf32> to vector<1x32xf32>
    %358 = vector.shape_cast %357 : vector<1x32xf32> to vector<1x1x1x32xf32>
    %359 = vector.broadcast %358 : vector<1x1x1x32xf32> to vector<1x16x8x32xf32>
    %360 = arith.mulf %355, %359 : vector<1x16x8x32xf32>
    %361 = arith.addf %354, %360 : vector<1x16x8x32xf32>
    %c0_453 = arith.constant 0 : index
    %c0_454 = arith.constant 0 : index
    %c8_455 = arith.constant 8 : index
    %c32_456 = arith.constant 32 : index
    %362 = vector.load %arg14[%c0_453, %c0_454, %c8_455, %c32_456] : memref<1x18x24x64xf32, #tpu.memory_space<vmem>>, vector<1x16x8x32xf32>
    %c1_457 = arith.constant 1 : index
    %c0_458 = arith.constant 0 : index
    %c0_459 = arith.constant 0 : index
    %363 = vector.load %arg9[%c1_457, %c0_458, %c0_459] : memref<9x1x32xf32, #tpu.memory_space<vmem>>, vector<1x1x32xf32>
    %364 = vector.shape_cast %363 : vector<1x1x32xf32> to vector<1x32xf32>
    %365 = vector.shape_cast %364 : vector<1x32xf32> to vector<1x1x1x32xf32>
    %366 = vector.broadcast %365 : vector<1x1x1x32xf32> to vector<1x16x8x32xf32>
    %367 = arith.mulf %362, %366 : vector<1x16x8x32xf32>
    %368 = arith.addf %361, %367 : vector<1x16x8x32xf32>
    %c0_460 = arith.constant 0 : index
    %c0_461 = arith.constant 0 : index
    %c9_462 = arith.constant 9 : index
    %c0_463 = arith.constant 0 : index
    %369 = vector.load %arg14[%c0_460, %c0_461, %c9_462, %c0_463] : memref<1x18x24x64xf32, #tpu.memory_space<vmem>>, vector<1x16x8x32xf32>
    %c2_464 = arith.constant 2 : index
    %c0_465 = arith.constant 0 : index
    %c0_466 = arith.constant 0 : index
    %370 = vector.load %arg9[%c2_464, %c0_465, %c0_466] : memref<9x1x32xf32, #tpu.memory_space<vmem>>, vector<1x1x32xf32>
    %371 = vector.shape_cast %370 : vector<1x1x32xf32> to vector<1x32xf32>
    %372 = vector.shape_cast %371 : vector<1x32xf32> to vector<1x1x1x32xf32>
    %373 = vector.broadcast %372 : vector<1x1x1x32xf32> to vector<1x16x8x32xf32>
    %374 = arith.mulf %369, %373 : vector<1x16x8x32xf32>
    %375 = arith.addf %368, %374 : vector<1x16x8x32xf32>
    %c0_467 = arith.constant 0 : index
    %c1_468 = arith.constant 1 : index
    %c8_469 = arith.constant 8 : index
    %c0_470 = arith.constant 0 : index
    %376 = vector.load %arg14[%c0_467, %c1_468, %c8_469, %c0_470] : memref<1x18x24x64xf32, #tpu.memory_space<vmem>>, vector<1x16x8x32xf32>
    %c3_471 = arith.constant 3 : index
    %c0_472 = arith.constant 0 : index
    %c0_473 = arith.constant 0 : index
    %377 = vector.load %arg9[%c3_471, %c0_472, %c0_473] : memref<9x1x32xf32, #tpu.memory_space<vmem>>, vector<1x1x32xf32>
    %378 = vector.shape_cast %377 : vector<1x1x32xf32> to vector<1x32xf32>
    %379 = vector.shape_cast %378 : vector<1x32xf32> to vector<1x1x1x32xf32>
    %380 = vector.broadcast %379 : vector<1x1x1x32xf32> to vector<1x16x8x32xf32>
    %381 = arith.mulf %376, %380 : vector<1x16x8x32xf32>
    %382 = arith.addf %375, %381 : vector<1x16x8x32xf32>
    %c0_474 = arith.constant 0 : index
    %c1_475 = arith.constant 1 : index
    %c8_476 = arith.constant 8 : index
    %c32_477 = arith.constant 32 : index
    %383 = vector.load %arg14[%c0_474, %c1_475, %c8_476, %c32_477] : memref<1x18x24x64xf32, #tpu.memory_space<vmem>>, vector<1x16x8x32xf32>
    %c4_478 = arith.constant 4 : index
    %c0_479 = arith.constant 0 : index
    %c0_480 = arith.constant 0 : index
    %384 = vector.load %arg9[%c4_478, %c0_479, %c0_480] : memref<9x1x32xf32, #tpu.memory_space<vmem>>, vector<1x1x32xf32>
    %385 = vector.shape_cast %384 : vector<1x1x32xf32> to vector<1x32xf32>
    %386 = vector.shape_cast %385 : vector<1x32xf32> to vector<1x1x1x32xf32>
    %387 = vector.broadcast %386 : vector<1x1x1x32xf32> to vector<1x16x8x32xf32>
    %388 = arith.mulf %383, %387 : vector<1x16x8x32xf32>
    %389 = arith.addf %382, %388 : vector<1x16x8x32xf32>
    %c0_481 = arith.constant 0 : index
    %c1_482 = arith.constant 1 : index
    %c9_483 = arith.constant 9 : index
    %c0_484 = arith.constant 0 : index
    %390 = vector.load %arg14[%c0_481, %c1_482, %c9_483, %c0_484] : memref<1x18x24x64xf32, #tpu.memory_space<vmem>>, vector<1x16x8x32xf32>
    %c5_485 = arith.constant 5 : index
    %c0_486 = arith.constant 0 : index
    %c0_487 = arith.constant 0 : index
    %391 = vector.load %arg9[%c5_485, %c0_486, %c0_487] : memref<9x1x32xf32, #tpu.memory_space<vmem>>, vector<1x1x32xf32>
    %392 = vector.shape_cast %391 : vector<1x1x32xf32> to vector<1x32xf32>
    %393 = vector.shape_cast %392 : vector<1x32xf32> to vector<1x1x1x32xf32>
    %394 = vector.broadcast %393 : vector<1x1x1x32xf32> to vector<1x16x8x32xf32>
    %395 = arith.mulf %390, %394 : vector<1x16x8x32xf32>
    %396 = arith.addf %389, %395 : vector<1x16x8x32xf32>
    %c0_488 = arith.constant 0 : index
    %c2_489 = arith.constant 2 : index
    %c8_490 = arith.constant 8 : index
    %c0_491 = arith.constant 0 : index
    %397 = vector.load %arg14[%c0_488, %c2_489, %c8_490, %c0_491] : memref<1x18x24x64xf32, #tpu.memory_space<vmem>>, vector<1x16x8x32xf32>
    %c6_492 = arith.constant 6 : index
    %c0_493 = arith.constant 0 : index
    %c0_494 = arith.constant 0 : index
    %398 = vector.load %arg9[%c6_492, %c0_493, %c0_494] : memref<9x1x32xf32, #tpu.memory_space<vmem>>, vector<1x1x32xf32>
    %399 = vector.shape_cast %398 : vector<1x1x32xf32> to vector<1x32xf32>
    %400 = vector.shape_cast %399 : vector<1x32xf32> to vector<1x1x1x32xf32>
    %401 = vector.broadcast %400 : vector<1x1x1x32xf32> to vector<1x16x8x32xf32>
    %402 = arith.mulf %397, %401 : vector<1x16x8x32xf32>
    %403 = arith.addf %396, %402 : vector<1x16x8x32xf32>
    %c0_495 = arith.constant 0 : index
    %c2_496 = arith.constant 2 : index
    %c8_497 = arith.constant 8 : index
    %c32_498 = arith.constant 32 : index
    %404 = vector.load %arg14[%c0_495, %c2_496, %c8_497, %c32_498] : memref<1x18x24x64xf32, #tpu.memory_space<vmem>>, vector<1x16x8x32xf32>
    %c7_499 = arith.constant 7 : index
    %c0_500 = arith.constant 0 : index
    %c0_501 = arith.constant 0 : index
    %405 = vector.load %arg9[%c7_499, %c0_500, %c0_501] : memref<9x1x32xf32, #tpu.memory_space<vmem>>, vector<1x1x32xf32>
    %406 = vector.shape_cast %405 : vector<1x1x32xf32> to vector<1x32xf32>
    %407 = vector.shape_cast %406 : vector<1x32xf32> to vector<1x1x1x32xf32>
    %408 = vector.broadcast %407 : vector<1x1x1x32xf32> to vector<1x16x8x32xf32>
    %409 = arith.mulf %404, %408 : vector<1x16x8x32xf32>
    %410 = arith.addf %403, %409 : vector<1x16x8x32xf32>
    %c0_502 = arith.constant 0 : index
    %c2_503 = arith.constant 2 : index
    %c9_504 = arith.constant 9 : index
    %c0_505 = arith.constant 0 : index
    %411 = vector.load %arg14[%c0_502, %c2_503, %c9_504, %c0_505] : memref<1x18x24x64xf32, #tpu.memory_space<vmem>>, vector<1x16x8x32xf32>
    %c8_506 = arith.constant 8 : index
    %c0_507 = arith.constant 0 : index
    %c0_508 = arith.constant 0 : index
    %412 = vector.load %arg9[%c8_506, %c0_507, %c0_508] : memref<9x1x32xf32, #tpu.memory_space<vmem>>, vector<1x1x32xf32>
    %413 = vector.shape_cast %412 : vector<1x1x32xf32> to vector<1x32xf32>
    %414 = vector.shape_cast %413 : vector<1x32xf32> to vector<1x1x1x32xf32>
    %415 = vector.broadcast %414 : vector<1x1x1x32xf32> to vector<1x16x8x32xf32>
    %416 = arith.mulf %411, %415 : vector<1x16x8x32xf32>
    %417 = arith.addf %410, %416 : vector<1x16x8x32xf32>
    %cst_509 = arith.constant dense<0.000000e+00> : vector<1x16x8xf32>
    %418 = vector.multi_reduction <add>, %417, %cst_509 [3] : vector<1x16x8x32xf32> to vector<1x16x8xf32>
    %419 = vector.broadcast %285 : f32 to vector<1x16x8xf32>
    %420 = arith.addf %418, %419 : vector<1x16x8xf32>
    %c0_510 = arith.constant 0 : index
    %c0_511 = arith.constant 0 : index
    %c0_512 = arith.constant 0 : index
    %421 = vector.load %arg12[%c0_510, %c0_511, %c0_512] : memref<1x16x8xf32, #tpu.memory_space<vmem>>, vector<1x16x8xf32>
    tpu.vector_store %arg12[%c0_510, %c0_511, %c0_512], %420 {strides = array<i32>} : memref<1x16x8xf32, #tpu.memory_space<vmem>>, vector<1x16x8xf32>,
    return
  }
  func.func @transform_0(%arg0: i32) -> (i32, i32, i32, i32) {
    %c0_i32 = arith.constant 0 : i32
    %c0_i32_0 = arith.constant 0 : i32
    %c0_i32_1 = arith.constant 0 : i32
    %c0_i32_2 = arith.constant 0 : i32
    return %arg0, %c0_i32, %c0_i32_0, %c0_i32_1 : i32, i32, i32, i32
  }
  func.func @transform_1(%arg0: i32) -> (i32, i32, i32, i32) {
    %c0_i32 = arith.constant 0 : i32
    %c0_i32_0 = arith.constant 0 : i32
    %c0_i32_1 = arith.constant 0 : i32
    %c0_i32_2 = arith.constant 0 : i32
    return %arg0, %c0_i32, %c0_i32_0, %c0_i32_1 : i32, i32, i32, i32
  }
  func.func @transform_2(%arg0: i32) -> (i32, i32, i32) {
    %c0_i32 = arith.constant 0 : i32
    %c0_i32_0 = arith.constant 0 : i32
    %c0_i32_1 = arith.constant 0 : i32
    %c0_i32_2 = arith.constant 0 : i32
    return %c0_i32, %c0_i32_0, %c0_i32_1 : i32, i32, i32
  }
  func.func @transform_3(%arg0: i32) -> (i32, i32) {
    %c0_i32 = arith.constant 0 : i32
    %c0_i32_0 = arith.constant 0 : i32
    %c0_i32_1 = arith.constant 0 : i32
    return %c0_i32, %c0_i32_0 : i32, i32
  }
  func.func @transform_4(%arg0: i32) -> (i32, i32, i32) {
    %c0_i32 = arith.constant 0 : i32
    %c0_i32_0 = arith.constant 0 : i32
    %c0_i32_1 = arith.constant 0 : i32
    %c0_i32_2 = arith.constant 0 : i32
    return %c0_i32, %c0_i32_0, %c0_i32_1 : i32, i32, i32
  }
  func.func @transform_5(%arg0: i32) -> (i32, i32) {
    %c0_i32 = arith.constant 0 : i32
    %c0_i32_0 = arith.constant 0 : i32
    %c0_i32_1 = arith.constant 0 : i32
    return %c0_i32, %c0_i32_0 : i32, i32
  }
  func.func @transform_6(%arg0: i32) -> (i32, i32, i32) {
    %c0_i32 = arith.constant 0 : i32
    %c0_i32_0 = arith.constant 0 : i32
    %c0_i32_1 = arith.constant 0 : i32
    %c0_i32_2 = arith.constant 0 : i32
    return %c0_i32, %c0_i32_0, %c0_i32_1 : i32, i32, i32
  }
  func.func @transform_7(%arg0: i32) -> (i32, i32) {
    %c0_i32 = arith.constant 0 : i32
    %c0_i32_0 = arith.constant 0 : i32
    %c0_i32_1 = arith.constant 0 : i32
    return %c0_i32, %c0_i32_0 : i32, i32
  }
  func.func @transform_8(%arg0: i32) -> (i32, i32, i32) {
    %c0_i32 = arith.constant 0 : i32
    %c0_i32_0 = arith.constant 0 : i32
    %c0_i32_1 = arith.constant 0 : i32
    %c0_i32_2 = arith.constant 0 : i32
    return %c0_i32, %c0_i32_0, %c0_i32_1 : i32, i32, i32
  }
  func.func @transform_9(%arg0: i32) -> i32 {
    %c0_i32 = arith.constant 0 : i32
    %c0_i32_0 = arith.constant 0 : i32
    return %c0_i32 : i32
  }
  func.func @transform_10(%arg0: i32) -> (i32, i32, i32) {
    %c0_i32 = arith.constant 0 : i32
    %c0_i32_0 = arith.constant 0 : i32
    %c0_i32_1 = arith.constant 0 : i32
    return %arg0, %c0_i32, %c0_i32_0 : i32, i32, i32
  }
  func.func @transform_11(%arg0: i32) -> (i32, i32, i32) {
    %c0_i32 = arith.constant 0 : i32
    %c0_i32_0 = arith.constant 0 : i32
    %c0_i32_1 = arith.constant 0 : i32
    return %arg0, %c0_i32, %c0_i32_0 : i32, i32, i32
  }
}

</mosaic_0001>

<llo_original>
// kernel: tile.8
$region0: #{tile.8}
  #allocation0 [shape = 's32[1]{0}', space=sflag, size = 0x4, scoped, tag = 'scoped memory for tile.8']
  %s0 = inlined_call_operand.vmem [shape: f32[64], index: 0, kind: input, shape index: {}]
  %s1 = inlined_call_operand.vmem [shape: f32[2,64], index: 1, kind: output, shape index: {}]
  // Predicated region
  $region2: #{tile.8} parent=0 // pred_check
    _
  $region3: #{tile.8} parent=0 // pred_check_branch
    %3 = sbr.rel (0) target = $region5
  $region4: #{tile.8} parent=0 // pred_region
    _
  $region5: #{tile.8} parent=0 // pred_fallthru
    _
  %v4 = vld [vmem:[%s0] ss:$0 sm:$0xff]
  %5 = vst [vmem:[%s1] sm:$0x3] %v4

// kernel: tile.9
$region0: #{tile.9}
  %s0 = inlined_call_operand.vmem [shape: f32[2,64], index: 0, kind: input, shape index: {}]
  %s1 = inlined_call_operand.vmem [shape: f32[1,128], index: 1, kind: output, shape index: {}]
  $region1: #{tile.9} parent=0
    #allocation0 [shape = 'u8[4096]{0}', space=vmem, size = 0x1000, scoped, tag = 'scoped mem for output reshape']
    #allocation1 [shape = 'u8[4096]{0}', space=vmem, size = 0x1000, scoped, tag = 'scoped mem for input reshape']
    %s3 = ssub.s32 4, 1
    %v4 = vld [vmem:[%s0] sm:%s3]
    %5 = vst [vmem:[#allocation1] sm:%s3] %v4
    %v6 = vld [vmem:[#allocation1] sm:$0x1]
    %vm7 = vcmask 523264
    %8 = vst.msk [vmem:[#allocation0] sm:$0x1] %vm7, %v6
    %s9 = scalar_lea.vmem [#allocation1], 1
    %v10 = vld [vmem:[%s9] sm:$0x1]
    %11 = vrot.lane.b32.xlu0 %v10, 64
    %v12 = vpop.permute.xlu0 %11
    %vm13 = vcmask 1048064
    %14 = vst.msk [vmem:[#allocation0] sm:$0x1] %vm13, %v12
    %s16 = ssub.s32 2, 1
    %v17 = vld [vmem:[#allocation0] sm:%s16]
    %s19 = ssub.s32 2, 1
    %20 = vst [vmem:[%s1] sm:%s19] %v17

// kernel: upsampling1_forward.1
$region0: #{upsampling1_forward.1}
  #allocation0 [shape = 'u32[]', space=smem, size = 0x4, offset = 0x4, fixed_abs, tag = 'smem constant byte address 0x4 - core index']
  #allocation1 [shape = 'u32[72,128]{1,0:T(1,128)}', space=vmem, size = 0x9000, scoped, tag = 'internal scratch']
  #allocation2 [shape = 'f32[1,18,24,128]{3,2,1,0:T(8,128)}', space=vmem, size = 0x36000, scoped, tag = 'scratch operand']
  #allocation3 [shape = 'f32[1,18,24,64]{3,2,1,0:T(8,128)}', space=vmem, size = 0x36000, scoped, tag = 'scratch operand']
  #allocation4 [shape = 'f32[1]{0:T(128)S(6)}', space=smem, size = 0x200, scoped, tag = 'scoped memory for upsampling1_forward.1']
  %s0 = inlined_call_operand.vmem [shape: f32[2,8,8,64], index: 0, kind: input, shape index: {}]
  %s1 = inlined_call_operand.vmem [shape: f32[2,16,8,64], index: 1, kind: input, shape index: {}]
  %s2 = inlined_call_operand.vmem [shape: f32[2,64,128], index: 2, kind: input, shape index: {}]
  %s3 = inlined_call_operand.vmem [shape: f32[1,128], index: 3, kind: input, shape index: {}]
  %s4 = inlined_call_operand.vmem [shape: f32[9,64,32], index: 4, kind: input, shape index: {}]
  %s5 = inlined_call_operand.vmem [shape: f32[1,32], index: 5, kind: input, shape index: {}]
  %s6 = inlined_call_operand.vmem [shape: f32[9,32,32], index: 6, kind: input, shape index: {}]
  %s7 = inlined_call_operand.vmem [shape: f32[1,32], index: 7, kind: input, shape index: {}]
  %s8 = inlined_call_operand.vmem [shape: f32[9,1,32], index: 8, kind: input, shape index: {}]
  %s9 = inlined_call_operand.<no memory space> [shape: f32[1], index: 9, kind: input, shape index: {}]
  %s10 = inlined_call_operand.vmem [shape: f32[2,16,8], index: 10, kind: output, shape index: {0}]
  %s11 = inlined_call_operand.vmem [shape: f32[2,16,8], index: 11, kind: output, shape index: {1}]
  %12 = xla_tuple %s10, %s11
  %s13 = sld [smem:[#allocation0]]
  $region81: #{upsampling1_forward.1} parent=0
    _
  %s15 = ssub.s32 1, %s13
  %s16 = scalar_select 0, %s15, %s13
  %17 = sst [smem:[#allocation4]] %s9
  loop: start=0, step=1, limit=4
  $region2: #{upsampling1_forward.1} parent=0 // loop_pre_header
    _
  $region3: #{upsampling1_forward.1} parent=0 // loop_header
    %s19 = sphi 0, %s23
    %p20 = scmp.ge.s32.totalorder %s19, 4
    %s29 = sphi 0, %s31
    %s32 = sphi 0, %s29
    %s33 = sphi 0, %s32
    %s49 = sphi 0, %s33
    %s55 = sphi 0, %s57
    %s58 = sphi 0, %s55
    %s59 = sphi 0, %s58
    %s75 = sphi 0, %s59
    %s79 = sphi 0, %s79
    %s81 = sphi 0, %s79
    %s82 = sphi 0, %s81
    %s96 = sphi 0, %s82
    %s100 = sphi 0, %s100
    %s102 = sphi 0, %s100
    %s103 = sphi 0, %s102
    %s117 = sphi 0, %s103
    %s121 = sphi 0, %s121
    %s123 = sphi 0, %s121
    %s124 = sphi 0, %s123
    %s138 = sphi 0, %s124
    %s142 = sphi 0, %s142
    %s144 = sphi 0, %s142
    %s145 = sphi 0, %s144
    %s159 = sphi 0, %s145
    %s163 = sphi 0, %s163
    %s165 = sphi 0, %s163
    %s166 = sphi 0, %s165
    %s180 = sphi 0, %s166
    %s184 = sphi 0, %s184
    %s186 = sphi 0, %s184
    %s187 = sphi 0, %s186
    %s201 = sphi 0, %s187
    %s205 = sphi 0, %s205
    %s207 = sphi 0, %s205
    %s208 = sphi 0, %s207
    %s222 = sphi 0, %s208
    %s226 = sphi 0, %s226
    %s228 = sphi 0, %s226
    %s229 = sphi 0, %s228
    %s243 = sphi 0, %s229
    %s249 = sphi 0, %s251
    %s252 = sphi 0, %s249
    %s253 = sphi 0, %s252
    %s269 = sphi 0, %s253
    %s275 = sphi 0, %s277
    %s278 = sphi 0, %s275
    %s279 = sphi 0, %s278
    %s295 = sphi 0, %s279
  $region4: #{upsampling1_forward.1} parent=0 // loop_header_branch
    %22 = sbr.rel (%p20) target = $region8
  $region5: #{upsampling1_forward.1} parent=0 // loop_body
    %s24 = ssub.s32 %s19, 1
    %s25 = ssub.s32 %s19, 2
    %s26 = sadd.s32 %s19, 1
    %s27 = ssub.s32 %s19, %s26
    %p28 = scmp.eq.s32.totalorder %s27, 0
    %s30 = sadd.s32 %s29, 1
    %s31 = scalar_select %p28, %s29, %s30
    %p34 = pneg %p28
    %p35 = scmp.eq.s32.totalorder %s19, 1
    %p36 = por %p34, %p35
    %p37 = scmp.ne.s32.totalorder %s29, %s32
    %p38 = scmp.eq.s32.totalorder %s19, 0
    %p39 = por %p37, %p38
    %p40 = scmp.ne.s32.totalorder %s29, %s32
    %p41 = scmp.eq.s32.totalorder %s24, 1
    %p42 = por %p40, %p41
    %p43 = scmp.ne.s32.totalorder %s32, %s33
    %p44 = scmp.eq.s32.totalorder %s24, 0
    %p45 = por %p43, %p44
    %p46 = scmp.ne.s32.totalorder %s32, %s33
    %p47 = scmp.eq.s32.totalorder %s25, 1
    %p48 = por %p46, %p47
    %p50 = scmp.ne.s32.totalorder %s33, %s49
    %p51 = scmp.eq.s32.totalorder %s25, 0
    %p52 = por %p50, %p51
    %s53 = ssub.s32 %s19, %s26
    %p54 = scmp.eq.s32.totalorder %s53, 0
    %s56 = sadd.s32 %s55, 1
    %s57 = scalar_select %p54, %s55, %s56
    %p60 = pneg %p54
    %p61 = scmp.eq.s32.totalorder %s19, 1
    %p62 = por %p60, %p61
    %p63 = scmp.ne.s32.totalorder %s55, %s58
    %p64 = scmp.eq.s32.totalorder %s19, 0
    %p65 = por %p63, %p64
    %p66 = scmp.ne.s32.totalorder %s55, %s58
    %p67 = scmp.eq.s32.totalorder %s24, 1
    %p68 = por %p66, %p67
    %p69 = scmp.ne.s32.totalorder %s58, %s59
    %p70 = scmp.eq.s32.totalorder %s24, 0
    %p71 = por %p69, %p70
    %p72 = scmp.ne.s32.totalorder %s58, %s59
    %p73 = scmp.eq.s32.totalorder %s25, 1
    %p74 = por %p72, %p73
    %p76 = scmp.ne.s32.totalorder %s59, %s75
    %p77 = scmp.eq.s32.totalorder %s25, 0
    %p78 = por %p76, %p77
    %s80 = sadd.s32 %s79, 1
    %p83 = scmp.eq.s32.totalorder %s19, 1
    %p84 = scmp.ne.s32.totalorder %s79, %s81
    %p85 = scmp.eq.s32.totalorder %s19, 0
    %p86 = por %p84, %p85
    %p87 = scmp.ne.s32.totalorder %s79, %s81
    %p88 = scmp.eq.s32.totalorder %s24, 1
    %p89 = por %p87, %p88
    %p90 = scmp.ne.s32.totalorder %s81, %s82
    %p91 = scmp.eq.s32.totalorder %s24, 0
    %p92 = por %p90, %p91
    %p93 = scmp.ne.s32.totalorder %s81, %s82
    %p94 = scmp.eq.s32.totalorder %s25, 1
    %p95 = por %p93, %p94
    %p97 = scmp.ne.s32.totalorder %s82, %s96
    %p98 = scmp.eq.s32.totalorder %s25, 0
    %p99 = por %p97, %p98
    %s101 = sadd.s32 %s100, 1
    %p104 = scmp.eq.s32.totalorder %s19, 1
    %p105 = scmp.ne.s32.totalorder %s100, %s102
    %p106 = scmp.eq.s32.totalorder %s19, 0
    %p107 = por %p105, %p106
    %p108 = scmp.ne.s32.totalorder %s100, %s102
    %p109 = scmp.eq.s32.totalorder %s24, 1
    %p110 = por %p108, %p109
    %p111 = scmp.ne.s32.totalorder %s102, %s103
    %p112 = scmp.eq.s32.totalorder %s24, 0
    %p113 = por %p111, %p112
    %p114 = scmp.ne.s32.totalorder %s102, %s103
    %p115 = scmp.eq.s32.totalorder %s25, 1
    %p116 = por %p114, %p115
    %p118 = scmp.ne.s32.totalorder %s103, %s117
    %p119 = scmp.eq.s32.totalorder %s25, 0
    %p120 = por %p118, %p119
    %s122 = sadd.s32 %s121, 1
    %p125 = scmp.eq.s32.totalorder %s19, 1
    %p126 = scmp.ne.s32.totalorder %s121, %s123
    %p127 = scmp.eq.s32.totalorder %s19, 0
    %p128 = por %p126, %p127
    %p129 = scmp.ne.s32.totalorder %s121, %s123
    %p130 = scmp.eq.s32.totalorder %s24, 1
    %p131 = por %p129, %p130
    %p132 = scmp.ne.s32.totalorder %s123, %s124
    %p133 = scmp.eq.s32.totalorder %s24, 0
    %p134 = por %p132, %p133
    %p135 = scmp.ne.s32.totalorder %s123, %s124
    %p136 = scmp.eq.s32.totalorder %s25, 1
    %p137 = por %p135, %p136
    %p139 = scmp.ne.s32.totalorder %s124, %s138
    %p140 = scmp.eq.s32.totalorder %s25, 0
    %p141 = por %p139, %p140
    %s143 = sadd.s32 %s142, 1
    %p146 = scmp.eq.s32.totalorder %s19, 1
    %p147 = scmp.ne.s32.totalorder %s142, %s144
    %p148 = scmp.eq.s32.totalorder %s19, 0
    %p149 = por %p147, %p148
    %p150 = scmp.ne.s32.totalorder %s142, %s144
    %p151 = scmp.eq.s32.totalorder %s24, 1
    %p152 = por %p150, %p151
    %p153 = scmp.ne.s32.totalorder %s144, %s145
    %p154 = scmp.eq.s32.totalorder %s24, 0
    %p155 = por %p153, %p154
    %p156 = scmp.ne.s32.totalorder %s144, %s145
    %p157 = scmp.eq.s32.totalorder %s25, 1
    %p158 = por %p156, %p157
    %p160 = scmp.ne.s32.totalorder %s145, %s159
    %p161 = scmp.eq.s32.totalorder %s25, 0
    %p162 = por %p160, %p161
    %s164 = sadd.s32 %s163, 1
    %p167 = scmp.eq.s32.totalorder %s19, 1
    %p168 = scmp.ne.s32.totalorder %s163, %s165
    %p169 = scmp.eq.s32.totalorder %s19, 0
    %p170 = por %p168, %p169
    %p171 = scmp.ne.s32.totalorder %s163, %s165
    %p172 = scmp.eq.s32.totalorder %s24, 1
    %p173 = por %p171, %p172
    %p174 = scmp.ne.s32.totalorder %s165, %s166
    %p175 = scmp.eq.s32.totalorder %s24, 0
    %p176 = por %p174, %p175
    %p177 = scmp.ne.s32.totalorder %s165, %s166
    %p178 = scmp.eq.s32.totalorder %s25, 1
    %p179 = por %p177, %p178
    %p181 = scmp.ne.s32.totalorder %s166, %s180
    %p182 = scmp.eq.s32.totalorder %s25, 0
    %p183 = por %p181, %p182
    %s185 = sadd.s32 %s184, 1
    %p188 = scmp.eq.s32.totalorder %s19, 1
    %p189 = scmp.ne.s32.totalorder %s184, %s186
    %p190 = scmp.eq.s32.totalorder %s19, 0
    %p191 = por %p189, %p190
    %p192 = scmp.ne.s32.totalorder %s184, %s186
    %p193 = scmp.eq.s32.totalorder %s24, 1
    %p194 = por %p192, %p193
    %p195 = scmp.ne.s32.totalorder %s186, %s187
    %p196 = scmp.eq.s32.totalorder %s24, 0
    %p197 = por %p195, %p196
    %p198 = scmp.ne.s32.totalorder %s186, %s187
    %p199 = scmp.eq.s32.totalorder %s25, 1
    %p200 = por %p198, %p199
    %p202 = scmp.ne.s32.totalorder %s187, %s201
    %p203 = scmp.eq.s32.totalorder %s25, 0
    %p204 = por %p202, %p203
    %s206 = sadd.s32 %s205, 1
    %p209 = scmp.eq.s32.totalorder %s19, 1
    %p210 = scmp.ne.s32.totalorder %s205, %s207
    %p211 = scmp.eq.s32.totalorder %s19, 0
    %p212 = por %p210, %p211
    %p213 = scmp.ne.s32.totalorder %s205, %s207
    %p214 = scmp.eq.s32.totalorder %s24, 1
    %p215 = por %p213, %p214
    %p216 = scmp.ne.s32.totalorder %s207, %s208
    %p217 = scmp.eq.s32.totalorder %s24, 0
    %p218 = por %p216, %p217
    %p219 = scmp.ne.s32.totalorder %s207, %s208
    %p220 = scmp.eq.s32.totalorder %s25, 1
    %p221 = por %p219, %p220
    %p223 = scmp.ne.s32.totalorder %s208, %s222
    %p224 = scmp.eq.s32.totalorder %s25, 0
    %p225 = por %p223, %p224
    %s227 = sadd.s32 %s226, 1
    %p230 = scmp.eq.s32.totalorder %s19, 1
    %p231 = scmp.ne.s32.totalorder %s226, %s228
    %p232 = scmp.eq.s32.totalorder %s19, 0
    %p233 = por %p231, %p232
    %p234 = scmp.ne.s32.totalorder %s226, %s228
    %p235 = scmp.eq.s32.totalorder %s24, 1
    %p236 = por %p234, %p235
    %p237 = scmp.ne.s32.totalorder %s228, %s229
    %p238 = scmp.eq.s32.totalorder %s24, 0
    %p239 = por %p237, %p238
    %p240 = scmp.ne.s32.totalorder %s228, %s229
    %p241 = scmp.eq.s32.totalorder %s25, 1
    %p242 = por %p240, %p241
    %p244 = scmp.ne.s32.totalorder %s229, %s243
    %p245 = scmp.eq.s32.totalorder %s25, 0
    %p246 = por %p244, %p245
    %s247 = ssub.s32 %s19, %s26
    %p248 = scmp.eq.s32.totalorder %s247, 0
    %s250 = sadd.s32 %s249, 1
    %s251 = scalar_select %p248, %s249, %s250
    %p254 = pneg %p248
    %p255 = scmp.eq.s32.totalorder %s19, 1
    %p256 = por %p254, %p255
    %p257 = scmp.ne.s32.totalorder %s249, %s252
    %p258 = scmp.eq.s32.totalorder %s19, 0
    %p259 = por %p257, %p258
    %p260 = scmp.ne.s32.totalorder %s249, %s252
    %p261 = scmp.eq.s32.totalorder %s24, 1
    %p262 = por %p260, %p261
    %p263 = scmp.ne.s32.totalorder %s252, %s253
    %p264 = scmp.eq.s32.totalorder %s24, 0
    %p265 = por %p263, %p264
    %p266 = scmp.ne.s32.totalorder %s252, %s253
    %p267 = scmp.eq.s32.totalorder %s25, 1
    %p268 = por %p266, %p267
    %p270 = scmp.ne.s32.totalorder %s253, %s269
    %p271 = scmp.eq.s32.totalorder %s25, 0
    %p272 = por %p270, %p271
    %s273 = ssub.s32 %s19, %s26
    %p274 = scmp.eq.s32.totalorder %s273, 0
    %s276 = sadd.s32 %s275, 1
    %s277 = scalar_select %p274, %s275, %s276
    %p280 = pneg %p274
    %p281 = scmp.eq.s32.totalorder %s19, 1
    %p282 = por %p280, %p281
    %p283 = scmp.ne.s32.totalorder %s275, %s278
    %p284 = scmp.eq.s32.totalorder %s19, 0
    %p285 = por %p283, %p284
    %p286 = scmp.ne.s32.totalorder %s275, %s278
    %p287 = scmp.eq.s32.totalorder %s24, 1
    %p288 = por %p286, %p287
    %p289 = scmp.ne.s32.totalorder %s278, %s279
    %p290 = scmp.eq.s32.totalorder %s24, 0
    %p291 = por %p289, %p290
    %p292 = scmp.ne.s32.totalorder %s278, %s279
    %p293 = scmp.eq.s32.totalorder %s25, 1
    %p294 = por %p292, %p293
    %p296 = scmp.ne.s32.totalorder %s279, %s295
    %p297 = scmp.eq.s32.totalorder %s25, 0
    %p298 = por %p296, %p297
    %p299 = scmp.le.s32.totalorder 1, %s19
    %p300 = scmp.lt.s32.totalorder %s19, 3
    %p301 = pnand %p299, %p300
    %p302 = pneg %p301
    // Predicated region
    $region9: #{upsampling1_forward.1} parent=5 // pred_check
      _
    $region10: #{upsampling1_forward.1} parent=5 // pred_check_branch
      %304 = sbr.rel (%p301) target = $region12
    $region11: #{upsampling1_forward.1} parent=5 // pred_region
      %s305 = ssub.s32 %s19, 1
      // Predicated region
      $region13: #{upsampling1_forward.1} parent=11 // pred_check
        %p306 = pneg %p92
      $region14: #{upsampling1_forward.1} parent=11 // pred_check_branch
        %308 = sbr.rel (%p306) target = $region16
      $region15: #{upsampling1_forward.1} parent=11 // pred_region
        _
      $region16: #{upsampling1_forward.1} parent=11 // pred_fallthru
        _
      // Predicated region
      $region17: #{upsampling1_forward.1} parent=11 // pred_check
        %p309 = pneg %p113
      $region18: #{upsampling1_forward.1} parent=11 // pred_check_branch
        %311 = sbr.rel (%p309) target = $region20
      $region19: #{upsampling1_forward.1} parent=11 // pred_region
        _
      $region20: #{upsampling1_forward.1} parent=11 // pred_fallthru
        _
      // Predicated region
      $region21: #{upsampling1_forward.1} parent=11 // pred_check
        %p312 = pneg %p134
      $region22: #{upsampling1_forward.1} parent=11 // pred_check_branch
        %314 = sbr.rel (%p312) target = $region24
      $region23: #{upsampling1_forward.1} parent=11 // pred_region
        _
      $region24: #{upsampling1_forward.1} parent=11 // pred_fallthru
        _
      // Predicated region
      $region25: #{upsampling1_forward.1} parent=11 // pred_check
        %p315 = pneg %p155
      $region26: #{upsampling1_forward.1} parent=11 // pred_check_branch
        %317 = sbr.rel (%p315) target = $region28
      $region27: #{upsampling1_forward.1} parent=11 // pred_region
        _
      $region28: #{upsampling1_forward.1} parent=11 // pred_fallthru
        _
      // Predicated region
      $region29: #{upsampling1_forward.1} parent=11 // pred_check
        %p318 = pneg %p176
      $region30: #{upsampling1_forward.1} parent=11 // pred_check_branch
        %320 = sbr.rel (%p318) target = $region32
      $region31: #{upsampling1_forward.1} parent=11 // pred_region
        _
      $region32: #{upsampling1_forward.1} parent=11 // pred_fallthru
        _
      // Predicated region
      $region33: #{upsampling1_forward.1} parent=11 // pred_check
        %p321 = pneg %p197
      $region34: #{upsampling1_forward.1} parent=11 // pred_check_branch
        %323 = sbr.rel (%p321) target = $region36
      $region35: #{upsampling1_forward.1} parent=11 // pred_region
        _
      $region36: #{upsampling1_forward.1} parent=11 // pred_fallthru
        _
      // Predicated region
      $region37: #{upsampling1_forward.1} parent=11 // pred_check
        %p324 = pneg %p218
      $region38: #{upsampling1_forward.1} parent=11 // pred_check_branch
        %326 = sbr.rel (%p324) target = $region40
      $region39: #{upsampling1_forward.1} parent=11 // pred_region
        _
      $region40: #{upsampling1_forward.1} parent=11 // pred_fallthru
        _
      // Predicated region
      $region41: #{upsampling1_forward.1} parent=11 // pred_check
        %p327 = pneg %p239
      $region42: #{upsampling1_forward.1} parent=11 // pred_check_branch
        %329 = sbr.rel (%p327) target = $region44
      $region43: #{upsampling1_forward.1} parent=11 // pred_region
        _
      $region44: #{upsampling1_forward.1} parent=11 // pred_fallthru
        _
    $region12: #{upsampling1_forward.1} parent=5 // pred_fallthru
      _
    %p330 = scmp.lt.s32.totalorder %s19, 2
    // Predicated region
    $region45: #{upsampling1_forward.1} parent=5 // pred_check
      %p331 = pneg %p330
    $region46: #{upsampling1_forward.1} parent=5 // pred_check_branch
      %333 = sbr.rel (%p331) target = $region48
    $region47: #{upsampling1_forward.1} parent=5 // pred_region
      // Predicated region
      $region49: #{upsampling1_forward.1} parent=47 // pred_check
        %p334 = pneg %p39
      $region50: #{upsampling1_forward.1} parent=47 // pred_check_branch
        %336 = sbr.rel (%p334) target = $region52
      $region51: #{upsampling1_forward.1} parent=47 // pred_region
        %p337 = scmp.lt.s32.totalorder %s19, 1
        %s338 = scalar_select %p337, %s19, 1
        %s339 = smul.addr %s338, 8
        %s340 = smul.addr %s339, 8
        %s341 = scalar_lea.vmem %s0, %s340
      $region52: #{upsampling1_forward.1} parent=47 // pred_fallthru
        _
      // Predicated region
      $region53: #{upsampling1_forward.1} parent=47 // pred_check
        %p342 = pneg %p65
      $region54: #{upsampling1_forward.1} parent=47 // pred_check_branch
        %344 = sbr.rel (%p342) target = $region56
      $region55: #{upsampling1_forward.1} parent=47 // pred_region
        %p345 = scmp.lt.s32.totalorder %s19, 1
        %s346 = scalar_select %p345, %s19, 1
        %s347 = smul.addr %s346, 16
        %s348 = smul.addr %s347, 8
        %s349 = scalar_lea.vmem %s1, %s348
      $region56: #{upsampling1_forward.1} parent=47 // pred_fallthru
        _
    $region48: #{upsampling1_forward.1} parent=5 // pred_fallthru
      _
    %p350 = scmp.le.s32.totalorder 1, %s19
    %p351 = scmp.lt.s32.totalorder %s19, 3
    %p352 = pnand %p350, %p351
    %p353 = pneg %p352
    // Predicated region
    $region57: #{upsampling1_forward.1} parent=5 // pred_check
      _
    $region58: #{upsampling1_forward.1} parent=5 // pred_check_branch
      %355 = sbr.rel (%p352) target = $region60
    $region59: #{upsampling1_forward.1} parent=5 // pred_region
      %s356 = ssub.s32 %s19, 1
      %p357 = scmp.lt.s32.totalorder %s24, 1
      %s358 = scalar_select %p357, %s24, 1
      %s359 = smul.addr %s358, 8
      %s360 = smul.addr %s359, 8
      %s361 = scalar_lea.vmem %s0, %s360
      %p362 = pneg %p45
      %p363 = pneg %p42
      %p364 = scmp.lt.s32.totalorder %s24, 1
      %s365 = scalar_select %p364, %s24, 1
      %s366 = smul.addr %s365, 16
      %s367 = smul.addr %s366, 8
      %s368 = scalar_lea.vmem %s1, %s367
      %p369 = pneg %p71
      %p370 = pneg %p68
      %p371 = pneg %p92
      %p372 = pneg %p89
      %p373 = pneg %p113
      %p374 = pneg %p110
      %p375 = pneg %p134
      %p376 = pneg %p131
      %p377 = pneg %p155
      %p378 = pneg %p152
      %p379 = pneg %p176
      %p380 = pneg %p173
      %p381 = pneg %p197
      %p382 = pneg %p194
      %p383 = pneg %p218
      %p384 = pneg %p215
      %p385 = pneg %p239
      %p386 = pneg %p236
      %p387 = pneg %p265
      %p388 = pneg %p262
      %p389 = scmp.lt.s32.totalorder %s24, 1
      %s390 = scalar_select %p389, %s24, 1
      %s391 = smul.addr %s390, 2
      %s392 = smul.addr %s391, 8
      %s393 = scalar_lea.vmem %s10, %s392
      %p394 = pneg %p291
      %p395 = pneg %p288
      %p396 = scmp.lt.s32.totalorder %s24, 1
      %s397 = scalar_select %p396, %s24, 1
      %s398 = smul.addr %s397, 2
      %s399 = smul.addr %s398, 8
      %s400 = scalar_lea.vmem %s11, %s399
      %p401 = scmp.lt.s32.totalorder %s24, 1
      %s402 = scalar_select %p401, %s24, 1
      %s403 = smul.addr %s402, 8
      %s404 = smul.addr %s403, 8
      %s405 = scalar_lea.vmem %s0, %s404
      %p406 = scmp.lt.s32.totalorder %s24, 1
      %s407 = scalar_select %p406, %s24, 1
      %s408 = smul.addr %s407, 16
      %s409 = smul.addr %s408, 8
      %s410 = scalar_lea.vmem %s1, %s409
      %p411 = scmp.lt.s32.totalorder %s24, 1
      %s412 = scalar_select %p411, %s24, 1
      %s413 = smul.addr %s412, 2
      %s414 = smul.addr %s413, 8
      %s415 = scalar_lea.vmem %s10, %s414
      %p416 = scmp.lt.s32.totalorder %s24, 1
      %s417 = scalar_select %p416, %s24, 1
      %s418 = smul.addr %s417, 2
      %s419 = smul.addr %s418, 8
      %s420 = scalar_lea.vmem %s11, %s419
      %421 = vst [vmem:[#allocation2 + $0x7] sm:$0xff] 0.0
      %422 = vst [vmem:[#allocation2 + $0xf] sm:$0x3] 0.0
      %s423 = scalar_lea.vmem [#allocation2], 408
      %424 = vst [vmem:[%s423 + $0x7] sm:$0xff] 0.0
      %425 = vst [vmem:[%s423 + $0xf] sm:$0x3] 0.0
      %426 = vst [vmem:[#allocation2 + $0x7] sm:$0x1] 0.0
      %427 = vst [vmem:[#allocation2 + $0x1f] sm:$0x1] 0.0
      %428 = vst [vmem:[#allocation2 + $0x37] sm:$0x1] 0.0
      %429 = vst [vmem:[#allocation2 + $0x4f] sm:$0x1] 0.0
      %430 = vst [vmem:[#allocation2 + $0x67] sm:$0x1] 0.0
      %431 = vst [vmem:[#allocation2 + $0x7f] sm:$0x1] 0.0
      %432 = vst [vmem:[#allocation2 + $0x97] sm:$0x1] 0.0
      %433 = vst [vmem:[#allocation2 + $0xaf] sm:$0x1] 0.0
      %434 = vst [vmem:[#allocation2 + $0xc7] sm:$0x1] 0.0
      %435 = vst [vmem:[#allocation2 + $0xdf] sm:$0x1] 0.0
      %436 = vst [vmem:[#allocation2 + $0xf7] sm:$0x1] 0.0
      %437 = vst [vmem:[#allocation2 + $0x10f] sm:$0x1] 0.0
      %438 = vst [vmem:[#allocation2 + $0x127] sm:$0x1] 0.0
      %439 = vst [vmem:[#allocation2 + $0x13f] sm:$0x1] 0.0
      %440 = vst [vmem:[#allocation2 + $0x157] sm:$0x1] 0.0
      %441 = vst [vmem:[#allocation2 + $0x16f] sm:$0x1] 0.0
      %442 = vst [vmem:[#allocation2 + $0x187] sm:$0x1] 0.0
      %443 = vst [vmem:[#allocation2 + $0x19f] sm:$0x1] 0.0
      %444 = vst [vmem:[#allocation2 + $0x10] sm:$0x1] 0.0
      %445 = vst [vmem:[#allocation2 + $0x28] sm:$0x1] 0.0
      %446 = vst [vmem:[#allocation2 + $0x40] sm:$0x1] 0.0
      %447 = vst [vmem:[#allocation2 + $0x58] sm:$0x1] 0.0
      %448 = vst [vmem:[#allocation2 + $0x70] sm:$0x1] 0.0
      %449 = vst [vmem:[#allocation2 + $0x88] sm:$0x1] 0.0
      %450 = vst [vmem:[#allocation2 + $0xa0] sm:$0x1] 0.0
      %451 = vst [vmem:[#allocation2 + $0xb8] sm:$0x1] 0.0
      %452 = vst [vmem:[#allocation2 + $0xd0] sm:$0x1] 0.0
      %453 = vst [vmem:[#allocation2 + $0xe8] sm:$0x1] 0.0
      %454 = vst [vmem:[#allocation2 + $0x100] sm:$0x1] 0.0
      %455 = vst [vmem:[#allocation2 + $0x118] sm:$0x1] 0.0
      %456 = vst [vmem:[#allocation2 + $0x130] sm:$0x1] 0.0
      %457 = vst [vmem:[#allocation2 + $0x148] sm:$0x1] 0.0
      %458 = vst [vmem:[#allocation2 + $0x160] sm:$0x1] 0.0
      %459 = vst [vmem:[#allocation2 + $0x178] sm:$0x1] 0.0
      %460 = vst [vmem:[#allocation2 + $0x190] sm:$0x1] 0.0
      %461 = vst [vmem:[#allocation2 + $0x1a8] sm:$0x1] 0.0
      %vm462 = vcmask 523264
      %463 = vst.msk [vmem:[#allocation3 + $0x7] sm:$0xff] %vm462, 0.0
      %vm464 = vcmask 517120
      %465 = vst.msk [vmem:[#allocation3 + $0xf] sm:$0x3] %vm464, 0.0
      %s466 = scalar_lea.vmem [#allocation3], 408
      %467 = vst.msk [vmem:[%s466 + $0x7] sm:$0xff] %vm462, 0.0
      %468 = vst.msk [vmem:[%s466 + $0xf] sm:$0x3] %vm464, 0.0
      %vm469 = vcmask 516096
      %470 = vst.msk [vmem:[#allocation3 + $0x7] sm:$0x1] %vm469, 0.0
      %471 = vst.msk [vmem:[#allocation3 + $0x1f] sm:$0x1] %vm469, 0.0
      %472 = vst.msk [vmem:[#allocation3 + $0x37] sm:$0x1] %vm469, 0.0
      %473 = vst.msk [vmem:[#allocation3 + $0x4f] sm:$0x1] %vm469, 0.0
      %474 = vst.msk [vmem:[#allocation3 + $0x67] sm:$0x1] %vm469, 0.0
      %475 = vst.msk [vmem:[#allocation3 + $0x7f] sm:$0x1] %vm469, 0.0
      %476 = vst.msk [vmem:[#allocation3 + $0x97] sm:$0x1] %vm469, 0.0
      %477 = vst.msk [vmem:[#allocation3 + $0xaf] sm:$0x1] %vm469, 0.0
      %478 = vst.msk [vmem:[#allocation3 + $0xc7] sm:$0x1] %vm469, 0.0
      %479 = vst.msk [vmem:[#allocation3 + $0xdf] sm:$0x1] %vm469, 0.0
      %480 = vst.msk [vmem:[#allocation3 + $0xf7] sm:$0x1] %vm469, 0.0
      %481 = vst.msk [vmem:[#allocation3 + $0x10f] sm:$0x1] %vm469, 0.0
      %482 = vst.msk [vmem:[#allocation3 + $0x127] sm:$0x1] %vm469, 0.0
      %483 = vst.msk [vmem:[#allocation3 + $0x13f] sm:$0x1] %vm469, 0.0
      %484 = vst.msk [vmem:[#allocation3 + $0x157] sm:$0x1] %vm469, 0.0
      %485 = vst.msk [vmem:[#allocation3 + $0x16f] sm:$0x1] %vm469, 0.0
      %486 = vst.msk [vmem:[#allocation3 + $0x187] sm:$0x1] %vm469, 0.0
      %487 = vst.msk [vmem:[#allocation3 + $0x19f] sm:$0x1] %vm469, 0.0
      %488 = vst.msk [vmem:[#allocation3 + $0x10] sm:$0x1] %vm469, 0.0
      %489 = vst.msk [vmem:[#allocation3 + $0x28] sm:$0x1] %vm469, 0.0
      %490 = vst.msk [vmem:[#allocation3 + $0x40] sm:$0x1] %vm469, 0.0
      %491 = vst.msk [vmem:[#allocation3 + $0x58] sm:$0x1] %vm469, 0.0
      %492 = vst.msk [vmem:[#allocation3 + $0x70] sm:$0x1] %vm469, 0.0
      %493 = vst.msk [vmem:[#allocation3 + $0x88] sm:$0x1] %vm469, 0.0
      %494 = vst.msk [vmem:[#allocation3 + $0xa0] sm:$0x1] %vm469, 0.0
      %495 = vst.msk [vmem:[#allocation3 + $0xb8] sm:$0x1] %vm469, 0.0
      %496 = vst.msk [vmem:[#allocation3 + $0xd0] sm:$0x1] %vm469, 0.0
      %497 = vst.msk [vmem:[#allocation3 + $0xe8] sm:$0x1] %vm469, 0.0
      %498 = vst.msk [vmem:[#allocation3 + $0x100] sm:$0x1] %vm469, 0.0
      %499 = vst.msk [vmem:[#allocation3 + $0x118] sm:$0x1] %vm469, 0.0
      %500 = vst.msk [vmem:[#allocation3 + $0x130] sm:$0x1] %vm469, 0.0
      %501 = vst.msk [vmem:[#allocation3 + $0x148] sm:$0x1] %vm469, 0.0
      %502 = vst.msk [vmem:[#allocation3 + $0x160] sm:$0x1] %vm469, 0.0
      %503 = vst.msk [vmem:[#allocation3 + $0x178] sm:$0x1] %vm469, 0.0
      %504 = vst.msk [vmem:[#allocation3 + $0x190] sm:$0x1] %vm469, 0.0
      %505 = vst.msk [vmem:[#allocation3 + $0x1a8] sm:$0x1] %vm469, 0.0
      %v506 = vld [vmem:[%s405] sm:$0xff]
      %v507 = vld [vmem:[%s405 + $0x8] sm:$0xff]
      %v508 = vld [vmem:[%s405 + $0x10] sm:$0xff]
      %v509 = vld [vmem:[%s405 + $0x18] sm:$0xff]
      %v510 = vld [vmem:[%s405 + $0x20] sm:$0xff]
      %v511 = vld [vmem:[%s405 + $0x28] sm:$0xff]
      %v512 = vld [vmem:[%s405 + $0x30] sm:$0xff]
      %v513 = vld [vmem:[%s405 + $0x38] sm:$0xff]
      %v514 = vld [vmem:[%s2] sm:$0xff]
      %v515 = vld [vmem:[%s2 + $0x8] sm:$0xff]
      %v516 = vld [vmem:[%s2 + $0x10] sm:$0xff]
      %v517 = vld [vmem:[%s2 + $0x18] sm:$0xff]
      %v518 = vld [vmem:[%s2 + $0x20] sm:$0xff]
      %v519 = vld [vmem:[%s2 + $0x28] sm:$0xff]
      %v520 = vld [vmem:[%s2 + $0x30] sm:$0xff]
      %v521 = vld [vmem:[%s2 + $0x38] sm:$0xff]
      %v522 = vld [vmem:[%s3] sm:$0x1]
      %v524 = vperm.slane %v522, 0
      %v527 = vsel %vm462, %v506, 0
      %v530 = vsel %vm462, %v507, 0
      %v533 = vsel %vm462, %v508, 0
      %v536 = vsel %vm462, %v509, 0
      %v539 = vsel %vm462, %v510, 0
      %v542 = vsel %vm462, %v511, 0
      %v545 = vsel %vm462, %v512, 0
      %v548 = vsel %vm462, %v513, 0
      %550 = vmatpush.msra.mxu0 0.0
      %551 = vmatpush.msra.mxu0 0.0
      %552 = vmatpush.msra.mxu0 0.0
      %553 = vmatpush.msra.mxu0 0.0
      %554 = vmatpush.msra.mxu0 0.0
      %555 = vmatpush.msra.mxu0 0.0
      %556 = vmatpush.msra.mxu0 0.0
      %557 = vmatpush.msra.mxu0 0.0
      %558 = vmatpush.msra.mxu0 %v521
      %559 = vmatpush.msra.mxu0 %v520
      %560 = vmatpush.msra.mxu0 %v519
      %561 = vmatpush.msra.mxu0 %v518
      %562 = vmatpush.msra.mxu0 %v517
      %563 = vmatpush.msra.mxu0 %v516
      %564 = vmatpush.msra.mxu0 %v515
      %565 = vmatpush.msra.mxu0 %v514
      %566 = vmatmul.f32.gmra.mxu0 %v527
      %v567 = vpop.f32.mrf.mxu0
      %v568 = vadd.f32 %v524, %v567
      %569 = vmatmul.f32.gmra.mxu0 %v530
      %v570 = vpop.f32.mrf.mxu0
      %v571 = vadd.f32 %v524, %v570
      %572 = vmatmul.f32.gmra.mxu0 %v533
      %v573 = vpop.f32.mrf.mxu0
      %v574 = vadd.f32 %v524, %v573
      %575 = vmatmul.f32.gmra.mxu0 %v536
      %v576 = vpop.f32.mrf.mxu0
      %v577 = vadd.f32 %v524, %v576
      %578 = vmatmul.f32.gmra.mxu0 %v539
      %v579 = vpop.f32.mrf.mxu0
      %v580 = vadd.f32 %v524, %v579
      %581 = vmatmul.f32.gmra.mxu0 %v542
      %v582 = vpop.f32.mrf.mxu0
      %v583 = vadd.f32 %v524, %v582
      %584 = vmatmul.f32.gmra.mxu0 %v545
      %v585 = vpop.f32.mrf.mxu0
      %v586 = vadd.f32 %v524, %v585
      %587 = vmatmul.f32.gmra.mxu0 %v548
      %v588 = vpop.f32.mrf.mxu0
      %v589 = vadd.f32 %v524, %v588
      %590 = vdwg.mxu0
      %s591 = scalar_lea.vmem %s2, 64
      %v592 = vld [vmem:[%s591] sm:$0xff]
      %v593 = vld [vmem:[%s591 + $0x8] sm:$0xff]
      %v594 = vld [vmem:[%s591 + $0x10] sm:$0xff]
      %v595 = vld [vmem:[%s591 + $0x18] sm:$0xff]
      %v596 = vld [vmem:[%s591 + $0x20] sm:$0xff]
      %v597 = vld [vmem:[%s591 + $0x28] sm:$0xff]
      %v598 = vld [vmem:[%s591 + $0x30] sm:$0xff]
      %v599 = vld [vmem:[%s591 + $0x38] sm:$0xff]
      %600 = vmatpush.msra.mxu0 0.0
      %601 = vmatpush.msra.mxu0 0.0
      %602 = vmatpush.msra.mxu0 0.0
      %603 = vmatpush.msra.mxu0 0.0
      %604 = vmatpush.msra.mxu0 0.0
      %605 = vmatpush.msra.mxu0 0.0
      %606 = vmatpush.msra.mxu0 0.0
      %607 = vmatpush.msra.mxu0 0.0
      %608 = vmatpush.msra.mxu0 %v599
      %609 = vmatpush.msra.mxu0 %v598
      %610 = vmatpush.msra.mxu0 %v597
      %611 = vmatpush.msra.mxu0 %v596
      %612 = vmatpush.msra.mxu0 %v595
      %613 = vmatpush.msra.mxu0 %v594
      %614 = vmatpush.msra.mxu0 %v593
      %615 = vmatpush.msra.mxu0 %v592
      %616 = vmatmul.f32.gmra.mxu0 %v527
      %v617 = vpop.f32.mrf.mxu0
      %v618 = vadd.f32 %v524, %v617
      %619 = vmatmul.f32.gmra.mxu0 %v530
      %v620 = vpop.f32.mrf.mxu0
      %v621 = vadd.f32 %v524, %v620
      %622 = vmatmul.f32.gmra.mxu0 %v533
      %v623 = vpop.f32.mrf.mxu0
      %v624 = vadd.f32 %v524, %v623
      %625 = vmatmul.f32.gmra.mxu0 %v536
      %v626 = vpop.f32.mrf.mxu0
      %v627 = vadd.f32 %v524, %v626
      %628 = vmatmul.f32.gmra.mxu0 %v539
      %v629 = vpop.f32.mrf.mxu0
      %v630 = vadd.f32 %v524, %v629
      %631 = vmatmul.f32.gmra.mxu0 %v542
      %v632 = vpop.f32.mrf.mxu0
      %v633 = vadd.f32 %v524, %v632
      %634 = vmatmul.f32.gmra.mxu0 %v545
      %v635 = vpop.f32.mrf.mxu0
      %v636 = vadd.f32 %v524, %v635
      %637 = vmatmul.f32.gmra.mxu0 %v548
      %v638 = vpop.f32.mrf.mxu0
      %v639 = vadd.f32 %v524, %v638
      %640 = vdwg.mxu0
      %s641 = scalar_lea.vmem [#allocation2], 24
      %642 = vst [vmem:[%s641 + $0x8] sm:$0xff] %v568
      %643 = vst [vmem:[%s641 + $0x20] sm:$0xff] %v618
      %644 = vst [vmem:[%s641 + $0x38] sm:$0xff] %v571
      %645 = vst [vmem:[%s641 + $0x50] sm:$0xff] %v621
      %646 = vst [vmem:[%s641 + $0x68] sm:$0xff] %v574
      %647 = vst [vmem:[%s641 + $0x80] sm:$0xff] %v624
      %648 = vst [vmem:[%s641 + $0x98] sm:$0xff] %v577
      %649 = vst [vmem:[%s641 + $0xb0] sm:$0xff] %v627
      %650 = vst [vmem:[%s641 + $0xc8] sm:$0xff] %v580
      %651 = vst [vmem:[%s641 + $0xe0] sm:$0xff] %v630
      %652 = vst [vmem:[%s641 + $0xf8] sm:$0xff] %v583
      %653 = vst [vmem:[%s641 + $0x110] sm:$0xff] %v633
      %654 = vst [vmem:[%s641 + $0x128] sm:$0xff] %v586
      %655 = vst [vmem:[%s641 + $0x140] sm:$0xff] %v636
      %656 = vst [vmem:[%s641 + $0x158] sm:$0xff] %v589
      %657 = vst [vmem:[%s641 + $0x170] sm:$0xff] %v639
      %v658 = vld [vmem:[%s410] sm:$0xff]
      %v659 = vld [vmem:[%s410 + $0x8] sm:$0xff]
      %v660 = vld [vmem:[%s410 + $0x10] sm:$0xff]
      %v661 = vld [vmem:[%s410 + $0x18] sm:$0xff]
      %v662 = vld [vmem:[%s410 + $0x20] sm:$0xff]
      %v663 = vld [vmem:[%s410 + $0x28] sm:$0xff]
      %v664 = vld [vmem:[%s410 + $0x30] sm:$0xff]
      %v665 = vld [vmem:[%s410 + $0x38] sm:$0xff]
      %v666 = vld [vmem:[%s410 + $0x40] sm:$0xff]
      %v667 = vld [vmem:[%s410 + $0x48] sm:$0xff]
      %v668 = vld [vmem:[%s410 + $0x50] sm:$0xff]
      %v669 = vld [vmem:[%s410 + $0x58] sm:$0xff]
      %v670 = vld [vmem:[%s410 + $0x60] sm:$0xff]
      %v671 = vld [vmem:[%s410 + $0x68] sm:$0xff]
      %v672 = vld [vmem:[%s410 + $0x70] sm:$0xff]
      %v673 = vld [vmem:[%s410 + $0x78] sm:$0xff]
      %690 = vrot.lane.b32.xlu0 %v658, 32
      %v691 = vpop.permute.xlu0 %690
      %692 = vrot.lane.b32.xlu0 %v659, 32
      %v693 = vpop.permute.xlu0 %692
      %694 = vrot.lane.b32.xlu0 %v660, 32
      %v695 = vpop.permute.xlu0 %694
      %696 = vrot.lane.b32.xlu0 %v661, 32
      %v697 = vpop.permute.xlu0 %696
      %698 = vrot.lane.b32.xlu0 %v662, 32
      %v699 = vpop.permute.xlu0 %698
      %700 = vrot.lane.b32.xlu0 %v663, 32
      %v701 = vpop.permute.xlu0 %700
      %702 = vrot.lane.b32.xlu0 %v664, 32
      %v703 = vpop.permute.xlu0 %702
      %704 = vrot.lane.b32.xlu0 %v665, 32
      %v705 = vpop.permute.xlu0 %704
      %706 = vrot.lane.b32.xlu0 %v666, 32
      %v707 = vpop.permute.xlu0 %706
      %708 = vrot.lane.b32.xlu0 %v667, 32
      %v709 = vpop.permute.xlu0 %708
      %710 = vrot.lane.b32.xlu0 %v668, 32
      %v711 = vpop.permute.xlu0 %710
      %712 = vrot.lane.b32.xlu0 %v669, 32
      %v713 = vpop.permute.xlu0 %712
      %714 = vrot.lane.b32.xlu0 %v670, 32
      %v715 = vpop.permute.xlu0 %714
      %716 = vrot.lane.b32.xlu0 %v671, 32
      %v717 = vpop.permute.xlu0 %716
      %718 = vrot.lane.b32.xlu0 %v672, 32
      %v719 = vpop.permute.xlu0 %718
      %720 = vrot.lane.b32.xlu0 %v673, 32
      %v721 = vpop.permute.xlu0 %720
      %vm738 = vcmask 523520
      %739 = vst.msk [vmem:[%s641 + $0x8] sm:$0xff] %vm738, %v691
      %740 = vst.msk [vmem:[%s641 + $0x20] sm:$0xff] %vm738, %v693
      %741 = vst.msk [vmem:[%s641 + $0x38] sm:$0xff] %vm738, %v695
      %742 = vst.msk [vmem:[%s641 + $0x50] sm:$0xff] %vm738, %v697
      %743 = vst.msk [vmem:[%s641 + $0x68] sm:$0xff] %vm738, %v699
      %744 = vst.msk [vmem:[%s641 + $0x80] sm:$0xff] %vm738, %v701
      %745 = vst.msk [vmem:[%s641 + $0x98] sm:$0xff] %vm738, %v703
      %746 = vst.msk [vmem:[%s641 + $0xb0] sm:$0xff] %vm738, %v705
      %747 = vst.msk [vmem:[%s641 + $0xc8] sm:$0xff] %vm738, %v707
      %748 = vst.msk [vmem:[%s641 + $0xe0] sm:$0xff] %vm738, %v709
      %749 = vst.msk [vmem:[%s641 + $0xf8] sm:$0xff] %vm738, %v711
      %750 = vst.msk [vmem:[%s641 + $0x110] sm:$0xff] %vm738, %v713
      %751 = vst.msk [vmem:[%s641 + $0x128] sm:$0xff] %vm738, %v715
      %752 = vst.msk [vmem:[%s641 + $0x140] sm:$0xff] %vm738, %v717
      %753 = vst.msk [vmem:[%s641 + $0x158] sm:$0xff] %vm738, %v719
      %754 = vst.msk [vmem:[%s641 + $0x170] sm:$0xff] %vm738, %v721
      %v755 = vld [vmem:[%s410] sm:$0xff]
      %v756 = vld [vmem:[%s410 + $0x8] sm:$0xff]
      %v757 = vld [vmem:[%s410 + $0x10] sm:$0xff]
      %v758 = vld [vmem:[%s410 + $0x18] sm:$0xff]
      %v759 = vld [vmem:[%s410 + $0x20] sm:$0xff]
      %v760 = vld [vmem:[%s410 + $0x28] sm:$0xff]
      %v761 = vld [vmem:[%s410 + $0x30] sm:$0xff]
      %v762 = vld [vmem:[%s410 + $0x38] sm:$0xff]
      %v763 = vld [vmem:[%s410 + $0x40] sm:$0xff]
      %v764 = vld [vmem:[%s410 + $0x48] sm:$0xff]
      %v765 = vld [vmem:[%s410 + $0x50] sm:$0xff]
      %v766 = vld [vmem:[%s410 + $0x58] sm:$0xff]
      %v767 = vld [vmem:[%s410 + $0x60] sm:$0xff]
      %v768 = vld [vmem:[%s410 + $0x68] sm:$0xff]
      %v769 = vld [vmem:[%s410 + $0x70] sm:$0xff]
      %v770 = vld [vmem:[%s410 + $0x78] sm:$0xff]
      %787 = vrot.lane.b32.xlu0 %v755, 64
      %v788 = vpop.permute.xlu0 %787
      %789 = vrot.lane.b32.xlu0 %v756, 64
      %v790 = vpop.permute.xlu0 %789
      %791 = vrot.lane.b32.xlu0 %v757, 64
      %v792 = vpop.permute.xlu0 %791
      %793 = vrot.lane.b32.xlu0 %v758, 64
      %v794 = vpop.permute.xlu0 %793
      %795 = vrot.lane.b32.xlu0 %v759, 64
      %v796 = vpop.permute.xlu0 %795
      %797 = vrot.lane.b32.xlu0 %v760, 64
      %v798 = vpop.permute.xlu0 %797
      %799 = vrot.lane.b32.xlu0 %v761, 64
      %v800 = vpop.permute.xlu0 %799
      %801 = vrot.lane.b32.xlu0 %v762, 64
      %v802 = vpop.permute.xlu0 %801
      %803 = vrot.lane.b32.xlu0 %v763, 64
      %v804 = vpop.permute.xlu0 %803
      %805 = vrot.lane.b32.xlu0 %v764, 64
      %v806 = vpop.permute.xlu0 %805
      %807 = vrot.lane.b32.xlu0 %v765, 64
      %v808 = vpop.permute.xlu0 %807
      %809 = vrot.lane.b32.xlu0 %v766, 64
      %v810 = vpop.permute.xlu0 %809
      %811 = vrot.lane.b32.xlu0 %v767, 64
      %v812 = vpop.permute.xlu0 %811
      %813 = vrot.lane.b32.xlu0 %v768, 64
      %v814 = vpop.permute.xlu0 %813
      %815 = vrot.lane.b32.xlu0 %v769, 64
      %v816 = vpop.permute.xlu0 %815
      %817 = vrot.lane.b32.xlu0 %v770, 64
      %v818 = vpop.permute.xlu0 %817
      %vm835 = vcmask 1048320
      %836 = vst.msk [vmem:[%s641 + $0x8] sm:$0xff] %vm835, %v788
      %837 = vst.msk [vmem:[%s641 + $0x20] sm:$0xff] %vm835, %v790
      %838 = vst.msk [vmem:[%s641 + $0x38] sm:$0xff] %vm835, %v792
      %839 = vst.msk [vmem:[%s641 + $0x50] sm:$0xff] %vm835, %v794
      %840 = vst.msk [vmem:[%s641 + $0x68] sm:$0xff] %vm835, %v796
      %841 = vst.msk [vmem:[%s641 + $0x80] sm:$0xff] %vm835, %v798
      %842 = vst.msk [vmem:[%s641 + $0x98] sm:$0xff] %vm835, %v800
      %843 = vst.msk [vmem:[%s641 + $0xb0] sm:$0xff] %vm835, %v802
      %844 = vst.msk [vmem:[%s641 + $0xc8] sm:$0xff] %vm835, %v804
      %845 = vst.msk [vmem:[%s641 + $0xe0] sm:$0xff] %vm835, %v806
      %846 = vst.msk [vmem:[%s641 + $0xf8] sm:$0xff] %vm835, %v808
      %847 = vst.msk [vmem:[%s641 + $0x110] sm:$0xff] %vm835, %v810
      %848 = vst.msk [vmem:[%s641 + $0x128] sm:$0xff] %vm835, %v812
      %849 = vst.msk [vmem:[%s641 + $0x140] sm:$0xff] %vm835, %v814
      %850 = vst.msk [vmem:[%s641 + $0x158] sm:$0xff] %vm835, %v816
      %851 = vst.msk [vmem:[%s641 + $0x170] sm:$0xff] %vm835, %v818
      %v852 = vld [vmem:[#allocation2 + $0x7] sm:$0xff]
      %v853 = vld [vmem:[#allocation2 + $0x1f] sm:$0xff]
      %v854 = vld [vmem:[#allocation2 + $0x37] sm:$0xff]
      %v855 = vld [vmem:[#allocation2 + $0x4f] sm:$0xff]
      %v856 = vld [vmem:[#allocation2 + $0x67] sm:$0xff]
      %v857 = vld [vmem:[#allocation2 + $0x7f] sm:$0xff]
      %v858 = vld [vmem:[#allocation2 + $0x97] sm:$0xff]
      %v859 = vld [vmem:[#allocation2 + $0xaf] sm:$0xff]
      %v860 = vld [vmem:[#allocation2 + $0xc7] sm:$0xff]
      %v861 = vld [vmem:[#allocation2 + $0xdf] sm:$0xff]
      %v862 = vld [vmem:[#allocation2 + $0xf7] sm:$0xff]
      %v863 = vld [vmem:[#allocation2 + $0x10f] sm:$0xff]
      %v864 = vld [vmem:[#allocation2 + $0x127] sm:$0xff]
      %v865 = vld [vmem:[#allocation2 + $0x13f] sm:$0xff]
      %v866 = vld [vmem:[#allocation2 + $0x157] sm:$0xff]
      %v867 = vld [vmem:[#allocation2 + $0x16f] sm:$0xff]
      %v868 = vld [vmem:[%s4] sm:$0xff]
      %v869 = vld [vmem:[%s4 + $0x8] sm:$0xff]
      %v870 = vld [vmem:[%s4 + $0x10] sm:$0xff]
      %v871 = vld [vmem:[%s4 + $0x18] sm:$0xff]
      %v872 = vld [vmem:[%s4 + $0x20] sm:$0xff]
      %v873 = vld [vmem:[%s4 + $0x28] sm:$0xff]
      %v874 = vld [vmem:[%s4 + $0x30] sm:$0xff]
      %v875 = vld [vmem:[%s4 + $0x38] sm:$0xff]
      %v876 = vld [vmem:[#allocation2 + $0x8] sm:$0xff]
      %v877 = vld [vmem:[#allocation2 + $0x20] sm:$0xff]
      %v878 = vld [vmem:[#allocation2 + $0x38] sm:$0xff]
      %v879 = vld [vmem:[#allocation2 + $0x50] sm:$0xff]
      %v880 = vld [vmem:[#allocation2 + $0x68] sm:$0xff]
      %v881 = vld [vmem:[#allocation2 + $0x80] sm:$0xff]
      %v882 = vld [vmem:[#allocation2 + $0x98] sm:$0xff]
      %v883 = vld [vmem:[#allocation2 + $0xb0] sm:$0xff]
      %v884 = vld [vmem:[#allocation2 + $0xc8] sm:$0xff]
      %v885 = vld [vmem:[#allocation2 + $0xe0] sm:$0xff]
      %v886 = vld [vmem:[#allocation2 + $0xf8] sm:$0xff]
      %v887 = vld [vmem:[#allocation2 + $0x110] sm:$0xff]
      %v888 = vld [vmem:[#allocation2 + $0x128] sm:$0xff]
      %v889 = vld [vmem:[#allocation2 + $0x140] sm:$0xff]
      %v890 = vld [vmem:[#allocation2 + $0x158] sm:$0xff]
      %v891 = vld [vmem:[#allocation2 + $0x170] sm:$0xff]
      %s892 = scalar_lea.vmem %s4, 64
      %v893 = vld [vmem:[%s892] sm:$0xff]
      %v894 = vld [vmem:[%s892 + $0x8] sm:$0xff]
      %v895 = vld [vmem:[%s892 + $0x10] sm:$0xff]
      %v896 = vld [vmem:[%s892 + $0x18] sm:$0xff]
      %v897 = vld [vmem:[%s892 + $0x20] sm:$0xff]
      %v898 = vld [vmem:[%s892 + $0x28] sm:$0xff]
      %v899 = vld [vmem:[%s892 + $0x30] sm:$0xff]
      %v900 = vld [vmem:[%s892 + $0x38] sm:$0xff]
      %v902 = vsel %vm462, %v876, 0
      %v905 = vsel %vm462, %v877, 0
      %v908 = vsel %vm462, %v878, 0
      %v911 = vsel %vm462, %v879, 0
      %v914 = vsel %vm462, %v880, 0
      %v917 = vsel %vm462, %v881, 0
      %v920 = vsel %vm462, %v882, 0
      %v923 = vsel %vm462, %v883, 0
      %v926 = vsel %vm462, %v884, 0
      %v929 = vsel %vm462, %v885, 0
      %v932 = vsel %vm462, %v886, 0
      %v935 = vsel %vm462, %v887, 0
      %v938 = vsel %vm462, %v888, 0
      %v941 = vsel %vm462, %v889, 0
      %v944 = vsel %vm462, %v890, 0
      %v947 = vsel %vm462, %v891, 0
      %949 = vmatpush.msra.mxu0 0.0
      %950 = vmatpush.msra.mxu0 0.0
      %951 = vmatpush.msra.mxu0 0.0
      %952 = vmatpush.msra.mxu0 0.0
      %953 = vmatpush.msra.mxu0 0.0
      %954 = vmatpush.msra.mxu0 0.0
      %955 = vmatpush.msra.mxu0 0.0
      %956 = vmatpush.msra.mxu0 0.0
      %957 = vmatpush.msra.mxu0 %v900
      %958 = vmatpush.msra.mxu0 %v899
      %959 = vmatpush.msra.mxu0 %v898
      %960 = vmatpush.msra.mxu0 %v897
      %961 = vmatpush.msra.mxu0 %v896
      %962 = vmatpush.msra.mxu0 %v895
      %963 = vmatpush.msra.mxu0 %v894
      %964 = vmatpush.msra.mxu0 %v893
      %965 = vmatmul.f32.gmra.mxu0 %v902
      %v966 = vpop.f32.mrf.mxu0
      %v967 = vadd.f32 0.0, %v966
      %968 = vmatmul.f32.gmra.mxu0 %v905
      %v969 = vpop.f32.mrf.mxu0
      %v970 = vadd.f32 0.0, %v969
      %971 = vmatmul.f32.gmra.mxu0 %v908
      %v972 = vpop.f32.mrf.mxu0
      %v973 = vadd.f32 0.0, %v972
      %974 = vmatmul.f32.gmra.mxu0 %v911
      %v975 = vpop.f32.mrf.mxu0
      %v976 = vadd.f32 0.0, %v975
      %977 = vmatmul.f32.gmra.mxu0 %v914
      %v978 = vpop.f32.mrf.mxu0
      %v979 = vadd.f32 0.0, %v978
      %980 = vmatmul.f32.gmra.mxu0 %v917
      %v981 = vpop.f32.mrf.mxu0
      %v982 = vadd.f32 0.0, %v981
      %983 = vmatmul.f32.gmra.mxu0 %v920
      %v984 = vpop.f32.mrf.mxu0
      %v985 = vadd.f32 0.0, %v984
      %986 = vmatmul.f32.gmra.mxu0 %v923
      %v987 = vpop.f32.mrf.mxu0
      %v988 = vadd.f32 0.0, %v987
      %989 = vmatmul.f32.gmra.mxu0 %v926
      %v990 = vpop.f32.mrf.mxu0
      %v991 = vadd.f32 0.0, %v990
      %992 = vmatmul.f32.gmra.mxu0 %v929
      %v993 = vpop.f32.mrf.mxu0
      %v994 = vadd.f32 0.0, %v993
      %995 = vmatmul.f32.gmra.mxu0 %v932
      %v996 = vpop.f32.mrf.mxu0
      %v997 = vadd.f32 0.0, %v996
      %998 = vmatmul.f32.gmra.mxu0 %v935
      %v999 = vpop.f32.mrf.mxu0
      %v1000 = vadd.f32 0.0, %v999
      %1001 = vmatmul.f32.gmra.mxu0 %v938
      %v1002 = vpop.f32.mrf.mxu0
      %v1003 = vadd.f32 0.0, %v1002
      %1004 = vmatmul.f32.gmra.mxu0 %v941
      %v1005 = vpop.f32.mrf.mxu0
      %v1006 = vadd.f32 0.0, %v1005
      %1007 = vmatmul.f32.gmra.mxu0 %v944
      %v1008 = vpop.f32.mrf.mxu0
      %v1009 = vadd.f32 0.0, %v1008
      %1010 = vmatmul.f32.gmra.mxu0 %v947
      %v1011 = vpop.f32.mrf.mxu0
      %v1012 = vadd.f32 0.0, %v1011
      %1013 = vdwg.mxu0
      %1030 = vrot.lane.b32.xlu0 %v852, 64
      %v1031 = vpop.permute.xlu0 %1030
      %1032 = vrot.lane.b32.xlu0 %v853, 64
      %v1033 = vpop.permute.xlu0 %1032
      %1034 = vrot.lane.b32.xlu0 %v854, 64
      %v1035 = vpop.permute.xlu0 %1034
      %1036 = vrot.lane.b32.xlu0 %v855, 64
      %v1037 = vpop.permute.xlu0 %1036
      %1038 = vrot.lane.b32.xlu0 %v856, 64
      %v1039 = vpop.permute.xlu0 %1038
      %1040 = vrot.lane.b32.xlu0 %v857, 64
      %v1041 = vpop.permute.xlu0 %1040
      %1042 = vrot.lane.b32.xlu0 %v858, 64
      %v1043 = vpop.permute.xlu0 %1042
      %1044 = vrot.lane.b32.xlu0 %v859, 64
      %v1045 = vpop.permute.xlu0 %1044
      %1046 = vrot.lane.b32.xlu0 %v860, 64
      %v1047 = vpop.permute.xlu0 %1046
      %1048 = vrot.lane.b32.xlu0 %v861, 64
      %v1049 = vpop.permute.xlu0 %1048
      %1050 = vrot.lane.b32.xlu0 %v862, 64
      %v1051 = vpop.permute.xlu0 %1050
      %1052 = vrot.lane.b32.xlu0 %v863, 64
      %v1053 = vpop.permute.xlu0 %1052
      %1054 = vrot.lane.b32.xlu0 %v864, 64
      %v1055 = vpop.permute.xlu0 %1054
      %1056 = vrot.lane.b32.xlu0 %v865, 64
      %v1057 = vpop.permute.xlu0 %1056
      %1058 = vrot.lane.b32.xlu0 %v866, 64
      %v1059 = vpop.permute.xlu0 %1058
      %1060 = vrot.lane.b32.xlu0 %v867, 64
      %v1061 = vpop.permute.xlu0 %1060
      %v1062 = vsel %vm462, %v1031, 0
      %v1064 = vsel %vm462, %v1033, 0
      %v1066 = vsel %vm462, %v1035, 0
      %v1068 = vsel %vm462, %v1037, 0
      %v1070 = vsel %vm462, %v1039, 0
      %v1072 = vsel %vm462, %v1041, 0
      %v1074 = vsel %vm462, %v1043, 0
      %v1076 = vsel %vm462, %v1045, 0
      %v1078 = vsel %vm462, %v1047, 0
      %v1080 = vsel %vm462, %v1049, 0
      %v1082 = vsel %vm462, %v1051, 0
      %v1084 = vsel %vm462, %v1053, 0
      %v1086 = vsel %vm462, %v1055, 0
      %v1088 = vsel %vm462, %v1057, 0
      %v1090 = vsel %vm462, %v1059, 0
      %v1092 = vsel %vm462, %v1061, 0
      %1094 = vmatpush.msra.mxu0 0.0
      %1095 = vmatpush.msra.mxu0 0.0
      %1096 = vmatpush.msra.mxu0 0.0
      %1097 = vmatpush.msra.mxu0 0.0
      %1098 = vmatpush.msra.mxu0 0.0
      %1099 = vmatpush.msra.mxu0 0.0
      %1100 = vmatpush.msra.mxu0 0.0
      %1101 = vmatpush.msra.mxu0 0.0
      %1102 = vmatpush.msra.mxu0 %v875
      %1103 = vmatpush.msra.mxu0 %v874
      %1104 = vmatpush.msra.mxu0 %v873
      %1105 = vmatpush.msra.mxu0 %v872
      %1106 = vmatpush.msra.mxu0 %v871
      %1107 = vmatpush.msra.mxu0 %v870
      %1108 = vmatpush.msra.mxu0 %v869
      %1109 = vmatpush.msra.mxu0 %v868
      %1110 = vmatmul.f32.gmra.mxu0 %v1062
      %v1111 = vpop.f32.mrf.mxu0
      %v1112 = vadd.f32 %v967, %v1111
      %1113 = vmatmul.f32.gmra.mxu0 %v1064
      %v1114 = vpop.f32.mrf.mxu0
      %v1115 = vadd.f32 %v970, %v1114
      %1116 = vmatmul.f32.gmra.mxu0 %v1066
      %v1117 = vpop.f32.mrf.mxu0
      %v1118 = vadd.f32 %v973, %v1117
      %1119 = vmatmul.f32.gmra.mxu0 %v1068
      %v1120 = vpop.f32.mrf.mxu0
      %v1121 = vadd.f32 %v976, %v1120
      %1122 = vmatmul.f32.gmra.mxu0 %v1070
      %v1123 = vpop.f32.mrf.mxu0
      %v1124 = vadd.f32 %v979, %v1123
      %1125 = vmatmul.f32.gmra.mxu0 %v1072
      %v1126 = vpop.f32.mrf.mxu0
      %v1127 = vadd.f32 %v982, %v1126
      %1128 = vmatmul.f32.gmra.mxu0 %v1074
      %v1129 = vpop.f32.mrf.mxu0
      %v1130 = vadd.f32 %v985, %v1129
      %1131 = vmatmul.f32.gmra.mxu0 %v1076
      %v1132 = vpop.f32.mrf.mxu0
      %v1133 = vadd.f32 %v988, %v1132
      %1134 = vmatmul.f32.gmra.mxu0 %v1078
      %v1135 = vpop.f32.mrf.mxu0
      %v1136 = vadd.f32 %v991, %v1135
      %1137 = vmatmul.f32.gmra.mxu0 %v1080
      %v1138 = vpop.f32.mrf.mxu0
      %v1139 = vadd.f32 %v994, %v1138
      %1140 = vmatmul.f32.gmra.mxu0 %v1082
      %v1141 = vpop.f32.mrf.mxu0
      %v1142 = vadd.f32 %v997, %v1141
      %1143 = vmatmul.f32.gmra.mxu0 %v1084
      %v1144 = vpop.f32.mrf.mxu0
      %v1145 = vadd.f32 %v1000, %v1144
      %1146 = vmatmul.f32.gmra.mxu0 %v1086
      %v1147 = vpop.f32.mrf.mxu0
      %v1148 = vadd.f32 %v1003, %v1147
      %1149 = vmatmul.f32.gmra.mxu0 %v1088
      %v1150 = vpop.f32.mrf.mxu0
      %v1151 = vadd.f32 %v1006, %v1150
      %1152 = vmatmul.f32.gmra.mxu0 %v1090
      %v1153 = vpop.f32.mrf.mxu0
      %v1154 = vadd.f32 %v1009, %v1153
      %1155 = vmatmul.f32.gmra.mxu0 %v1092
      %v1156 = vpop.f32.mrf.mxu0
      %v1157 = vadd.f32 %v1012, %v1156
      %1158 = vdwg.mxu0
      %s1159 = scalar_lea.vmem %s4, 128
      %v1160 = vld [vmem:[%s1159] sm:$0xff]
      %v1161 = vld [vmem:[%s1159 + $0x8] sm:$0xff]
      %v1162 = vld [vmem:[%s1159 + $0x10] sm:$0xff]
      %v1163 = vld [vmem:[%s1159 + $0x18] sm:$0xff]
      %v1164 = vld [vmem:[%s1159 + $0x20] sm:$0xff]
      %v1165 = vld [vmem:[%s1159 + $0x28] sm:$0xff]
      %v1166 = vld [vmem:[%s1159 + $0x30] sm:$0xff]
      %v1167 = vld [vmem:[%s1159 + $0x38] sm:$0xff]
      %1168 = vrot.lane.b32.xlu0 %v876, 64
      %v1169 = vpop.permute.xlu0 %1168
      %1170 = vrot.lane.b32.xlu0 %v877, 64
      %v1171 = vpop.permute.xlu0 %1170
      %1172 = vrot.lane.b32.xlu0 %v878, 64
      %v1173 = vpop.permute.xlu0 %1172
      %1174 = vrot.lane.b32.xlu0 %v879, 64
      %v1175 = vpop.permute.xlu0 %1174
      %1176 = vrot.lane.b32.xlu0 %v880, 64
      %v1177 = vpop.permute.xlu0 %1176
      %1178 = vrot.lane.b32.xlu0 %v881, 64
      %v1179 = vpop.permute.xlu0 %1178
      %1180 = vrot.lane.b32.xlu0 %v882, 64
      %v1181 = vpop.permute.xlu0 %1180
      %1182 = vrot.lane.b32.xlu0 %v883, 64
      %v1183 = vpop.permute.xlu0 %1182
      %1184 = vrot.lane.b32.xlu0 %v884, 64
      %v1185 = vpop.permute.xlu0 %1184
      %1186 = vrot.lane.b32.xlu0 %v885, 64
      %v1187 = vpop.permute.xlu0 %1186
      %1188 = vrot.lane.b32.xlu0 %v886, 64
      %v1189 = vpop.permute.xlu0 %1188
      %1190 = vrot.lane.b32.xlu0 %v887, 64
      %v1191 = vpop.permute.xlu0 %1190
      %1192 = vrot.lane.b32.xlu0 %v888, 64
      %v1193 = vpop.permute.xlu0 %1192
      %1194 = vrot.lane.b32.xlu0 %v889, 64
      %v1195 = vpop.permute.xlu0 %1194
      %1196 = vrot.lane.b32.xlu0 %v890, 64
      %v1197 = vpop.permute.xlu0 %1196
      %1198 = vrot.lane.b32.xlu0 %v891, 64
      %v1199 = vpop.permute.xlu0 %1198
      %v1200 = vsel %vm462, %v1169, 0
      %v1202 = vsel %vm462, %v1171, 0
      %v1204 = vsel %vm462, %v1173, 0
      %v1206 = vsel %vm462, %v1175, 0
      %v1208 = vsel %vm462, %v1177, 0
      %v1210 = vsel %vm462, %v1179, 0
      %v1212 = vsel %vm462, %v1181, 0
      %v1214 = vsel %vm462, %v1183, 0
      %v1216 = vsel %vm462, %v1185, 0
      %v1218 = vsel %vm462, %v1187, 0
      %v1220 = vsel %vm462, %v1189, 0
      %v1222 = vsel %vm462, %v1191, 0
      %v1224 = vsel %vm462, %v1193, 0
      %v1226 = vsel %vm462, %v1195, 0
      %v1228 = vsel %vm462, %v1197, 0
      %v1230 = vsel %vm462, %v1199, 0
      %1232 = vmatpush.msra.mxu0 0.0
      %1233 = vmatpush.msra.mxu0 0.0
      %1234 = vmatpush.msra.mxu0 0.0
      %1235 = vmatpush.msra.mxu0 0.0
      %1236 = vmatpush.msra.mxu0 0.0
      %1237 = vmatpush.msra.mxu0 0.0
      %1238 = vmatpush.msra.mxu0 0.0
      %1239 = vmatpush.msra.mxu0 0.0
      %1240 = vmatpush.msra.mxu0 %v1167
      %1241 = vmatpush.msra.mxu0 %v1166
      %1242 = vmatpush.msra.mxu0 %v1165
      %1243 = vmatpush.msra.mxu0 %v1164
      %1244 = vmatpush.msra.mxu0 %v1163
      %1245 = vmatpush.msra.mxu0 %v1162
      %1246 = vmatpush.msra.mxu0 %v1161
      %1247 = vmatpush.msra.mxu0 %v1160
      %1248 = vmatmul.f32.gmra.mxu0 %v1200
      %v1249 = vpop.f32.mrf.mxu0
      %v1250 = vadd.f32 0.0, %v1249
      %1251 = vmatmul.f32.gmra.mxu0 %v1202
      %v1252 = vpop.f32.mrf.mxu0
      %v1253 = vadd.f32 0.0, %v1252
      %1254 = vmatmul.f32.gmra.mxu0 %v1204
      %v1255 = vpop.f32.mrf.mxu0
      %v1256 = vadd.f32 0.0, %v1255
      %1257 = vmatmul.f32.gmra.mxu0 %v1206
      %v1258 = vpop.f32.mrf.mxu0
      %v1259 = vadd.f32 0.0, %v1258
      %1260 = vmatmul.f32.gmra.mxu0 %v1208
      %v1261 = vpop.f32.mrf.mxu0
      %v1262 = vadd.f32 0.0, %v1261
      %1263 = vmatmul.f32.gmra.mxu0 %v1210
      %v1264 = vpop.f32.mrf.mxu0
      %v1265 = vadd.f32 0.0, %v1264
      %1266 = vmatmul.f32.gmra.mxu0 %v1212
      %v1267 = vpop.f32.mrf.mxu0
      %v1268 = vadd.f32 0.0, %v1267
      %1269 = vmatmul.f32.gmra.mxu0 %v1214
      %v1270 = vpop.f32.mrf.mxu0
      %v1271 = vadd.f32 0.0, %v1270
      %1272 = vmatmul.f32.gmra.mxu0 %v1216
      %v1273 = vpop.f32.mrf.mxu0
      %v1274 = vadd.f32 0.0, %v1273
      %1275 = vmatmul.f32.gmra.mxu0 %v1218
      %v1276 = vpop.f32.mrf.mxu0
      %v1277 = vadd.f32 0.0, %v1276
      %1278 = vmatmul.f32.gmra.mxu0 %v1220
      %v1279 = vpop.f32.mrf.mxu0
      %v1280 = vadd.f32 0.0, %v1279
      %1281 = vmatmul.f32.gmra.mxu0 %v1222
      %v1282 = vpop.f32.mrf.mxu0
      %v1283 = vadd.f32 0.0, %v1282
      %1284 = vmatmul.f32.gmra.mxu0 %v1224
      %v1285 = vpop.f32.mrf.mxu0
      %v1286 = vadd.f32 0.0, %v1285
      %1287 = vmatmul.f32.gmra.mxu0 %v1226
      %v1288 = vpop.f32.mrf.mxu0
      %v1289 = vadd.f32 0.0, %v1288
      %1290 = vmatmul.f32.gmra.mxu0 %v1228
      %v1291 = vpop.f32.mrf.mxu0
      %v1292 = vadd.f32 0.0, %v1291
      %1293 = vmatmul.f32.gmra.mxu0 %v1230
      %v1294 = vpop.f32.mrf.mxu0
      %v1295 = vadd.f32 0.0, %v1294
      %1296 = vdwg.mxu0
      %v1297 = vadd.f32 %v1112, %v1250
      %v1298 = vadd.f32 %v1115, %v1253
      %v1299 = vadd.f32 %v1118, %v1256
      %v1300 = vadd.f32 %v1121, %v1259
      %v1301 = vadd.f32 %v1124, %v1262
      %v1302 = vadd.f32 %v1127, %v1265
      %v1303 = vadd.f32 %v1130, %v1268
      %v1304 = vadd.f32 %v1133, %v1271
      %v1305 = vadd.f32 %v1136, %v1274
      %v1306 = vadd.f32 %v1139, %v1277
      %v1307 = vadd.f32 %v1142, %v1280
      %v1308 = vadd.f32 %v1145, %v1283
      %v1309 = vadd.f32 %v1148, %v1286
      %v1310 = vadd.f32 %v1151, %v1289
      %v1311 = vadd.f32 %v1154, %v1292
      %v1312 = vadd.f32 %v1157, %v1295
      %v1313 = vld [vmem:[%s641 + $0x7] sm:$0xff]
      %v1314 = vld [vmem:[%s641 + $0x1f] sm:$0xff]
      %v1315 = vld [vmem:[%s641 + $0x37] sm:$0xff]
      %v1316 = vld [vmem:[%s641 + $0x4f] sm:$0xff]
      %v1317 = vld [vmem:[%s641 + $0x67] sm:$0xff]
      %v1318 = vld [vmem:[%s641 + $0x7f] sm:$0xff]
      %v1319 = vld [vmem:[%s641 + $0x97] sm:$0xff]
      %v1320 = vld [vmem:[%s641 + $0xaf] sm:$0xff]
      %v1321 = vld [vmem:[%s641 + $0xc7] sm:$0xff]
      %v1322 = vld [vmem:[%s641 + $0xdf] sm:$0xff]
      %v1323 = vld [vmem:[%s641 + $0xf7] sm:$0xff]
      %v1324 = vld [vmem:[%s641 + $0x10f] sm:$0xff]
      %v1325 = vld [vmem:[%s641 + $0x127] sm:$0xff]
      %v1326 = vld [vmem:[%s641 + $0x13f] sm:$0xff]
      %v1327 = vld [vmem:[%s641 + $0x157] sm:$0xff]
      %v1328 = vld [vmem:[%s641 + $0x16f] sm:$0xff]
      %s1329 = scalar_lea.vmem %s4, 192
      %v1330 = vld [vmem:[%s1329] sm:$0xff]
      %v1331 = vld [vmem:[%s1329 + $0x8] sm:$0xff]
      %v1332 = vld [vmem:[%s1329 + $0x10] sm:$0xff]
      %v1333 = vld [vmem:[%s1329 + $0x18] sm:$0xff]
      %v1334 = vld [vmem:[%s1329 + $0x20] sm:$0xff]
      %v1335 = vld [vmem:[%s1329 + $0x28] sm:$0xff]
      %v1336 = vld [vmem:[%s1329 + $0x30] sm:$0xff]
      %v1337 = vld [vmem:[%s1329 + $0x38] sm:$0xff]
      %1354 = vrot.lane.b32.xlu0 %v1313, 64
      %v1355 = vpop.permute.xlu0 %1354
      %1356 = vrot.lane.b32.xlu0 %v1314, 64
      %v1357 = vpop.permute.xlu0 %1356
      %1358 = vrot.lane.b32.xlu0 %v1315, 64
      %v1359 = vpop.permute.xlu0 %1358
      %1360 = vrot.lane.b32.xlu0 %v1316, 64
      %v1361 = vpop.permute.xlu0 %1360
      %1362 = vrot.lane.b32.xlu0 %v1317, 64
      %v1363 = vpop.permute.xlu0 %1362
      %1364 = vrot.lane.b32.xlu0 %v1318, 64
      %v1365 = vpop.permute.xlu0 %1364
      %1366 = vrot.lane.b32.xlu0 %v1319, 64
      %v1367 = vpop.permute.xlu0 %1366
      %1368 = vrot.lane.b32.xlu0 %v1320, 64
      %v1369 = vpop.permute.xlu0 %1368
      %1370 = vrot.lane.b32.xlu0 %v1321, 64
      %v1371 = vpop.permute.xlu0 %1370
      %1372 = vrot.lane.b32.xlu0 %v1322, 64
      %v1373 = vpop.permute.xlu0 %1372
      %1374 = vrot.lane.b32.xlu0 %v1323, 64
      %v1375 = vpop.permute.xlu0 %1374
      %1376 = vrot.lane.b32.xlu0 %v1324, 64
      %v1377 = vpop.permute.xlu0 %1376
      %1378 = vrot.lane.b32.xlu0 %v1325, 64
      %v1379 = vpop.permute.xlu0 %1378
      %1380 = vrot.lane.b32.xlu0 %v1326, 64
      %v1381 = vpop.permute.xlu0 %1380
      %1382 = vrot.lane.b32.xlu0 %v1327, 64
      %v1383 = vpop.permute.xlu0 %1382
      %1384 = vrot.lane.b32.xlu0 %v1328, 64
      %v1385 = vpop.permute.xlu0 %1384
      %v1386 = vsel %vm462, %v1355, 0
      %v1388 = vsel %vm462, %v1357, 0
      %v1390 = vsel %vm462, %v1359, 0
      %v1392 = vsel %vm462, %v1361, 0
      %v1394 = vsel %vm462, %v1363, 0
      %v1396 = vsel %vm462, %v1365, 0
      %v1398 = vsel %vm462, %v1367, 0
      %v1400 = vsel %vm462, %v1369, 0
      %v1402 = vsel %vm462, %v1371, 0
      %v1404 = vsel %vm462, %v1373, 0
      %v1406 = vsel %vm462, %v1375, 0
      %v1408 = vsel %vm462, %v1377, 0
      %v1410 = vsel %vm462, %v1379, 0
      %v1412 = vsel %vm462, %v1381, 0
      %v1414 = vsel %vm462, %v1383, 0
      %v1416 = vsel %vm462, %v1385, 0
      %1418 = vmatpush.msra.mxu0 0.0
      %1419 = vmatpush.msra.mxu0 0.0
      %1420 = vmatpush.msra.mxu0 0.0
      %1421 = vmatpush.msra.mxu0 0.0
      %1422 = vmatpush.msra.mxu0 0.0
      %1423 = vmatpush.msra.mxu0 0.0
      %1424 = vmatpush.msra.mxu0 0.0
      %1425 = vmatpush.msra.mxu0 0.0
      %1426 = vmatpush.msra.mxu0 %v1337
      %1427 = vmatpush.msra.mxu0 %v1336
      %1428 = vmatpush.msra.mxu0 %v1335
      %1429 = vmatpush.msra.mxu0 %v1334
      %1430 = vmatpush.msra.mxu0 %v1333
      %1431 = vmatpush.msra.mxu0 %v1332
      %1432 = vmatpush.msra.mxu0 %v1331
      %1433 = vmatpush.msra.mxu0 %v1330
      %1434 = vmatmul.f32.gmra.mxu0 %v1386
      %v1435 = vpop.f32.mrf.mxu0
      %v1436 = vadd.f32 0.0, %v1435
      %1437 = vmatmul.f32.gmra.mxu0 %v1388
      %v1438 = vpop.f32.mrf.mxu0
      %v1439 = vadd.f32 0.0, %v1438
      %1440 = vmatmul.f32.gmra.mxu0 %v1390
      %v1441 = vpop.f32.mrf.mxu0
      %v1442 = vadd.f32 0.0, %v1441
      %1443 = vmatmul.f32.gmra.mxu0 %v1392
      %v1444 = vpop.f32.mrf.mxu0
      %v1445 = vadd.f32 0.0, %v1444
      %1446 = vmatmul.f32.gmra.mxu0 %v1394
      %v1447 = vpop.f32.mrf.mxu0
      %v1448 = vadd.f32 0.0, %v1447
      %1449 = vmatmul.f32.gmra.mxu0 %v1396
      %v1450 = vpop.f32.mrf.mxu0
      %v1451 = vadd.f32 0.0, %v1450
      %1452 = vmatmul.f32.gmra.mxu0 %v1398
      %v1453 = vpop.f32.mrf.mxu0
      %v1454 = vadd.f32 0.0, %v1453
      %1455 = vmatmul.f32.gmra.mxu0 %v1400
      %v1456 = vpop.f32.mrf.mxu0
      %v1457 = vadd.f32 0.0, %v1456
      %1458 = vmatmul.f32.gmra.mxu0 %v1402
      %v1459 = vpop.f32.mrf.mxu0
      %v1460 = vadd.f32 0.0, %v1459
      %1461 = vmatmul.f32.gmra.mxu0 %v1404
      %v1462 = vpop.f32.mrf.mxu0
      %v1463 = vadd.f32 0.0, %v1462
      %1464 = vmatmul.f32.gmra.mxu0 %v1406
      %v1465 = vpop.f32.mrf.mxu0
      %v1466 = vadd.f32 0.0, %v1465
      %1467 = vmatmul.f32.gmra.mxu0 %v1408
      %v1468 = vpop.f32.mrf.mxu0
      %v1469 = vadd.f32 0.0, %v1468
      %1470 = vmatmul.f32.gmra.mxu0 %v1410
      %v1471 = vpop.f32.mrf.mxu0
      %v1472 = vadd.f32 0.0, %v1471
      %1473 = vmatmul.f32.gmra.mxu0 %v1412
      %v1474 = vpop.f32.mrf.mxu0
      %v1475 = vadd.f32 0.0, %v1474
      %1476 = vmatmul.f32.gmra.mxu0 %v1414
      %v1477 = vpop.f32.mrf.mxu0
      %v1478 = vadd.f32 0.0, %v1477
      %1479 = vmatmul.f32.gmra.mxu0 %v1416
      %v1480 = vpop.f32.mrf.mxu0
      %v1481 = vadd.f32 0.0, %v1480
      %1482 = vdwg.mxu0
      %v1483 = vadd.f32 %v1297, %v1436
      %v1484 = vadd.f32 %v1298, %v1439
      %v1485 = vadd.f32 %v1299, %v1442
      %v1486 = vadd.f32 %v1300, %v1445
      %v1487 = vadd.f32 %v1301, %v1448
      %v1488 = vadd.f32 %v1302, %v1451
      %v1489 = vadd.f32 %v1303, %v1454
      %v1490 = vadd.f32 %v1304, %v1457
      %v1491 = vadd.f32 %v1305, %v1460
      %v1492 = vadd.f32 %v1306, %v1463
      %v1493 = vadd.f32 %v1307, %v1466
      %v1494 = vadd.f32 %v1308, %v1469
      %v1495 = vadd.f32 %v1309, %v1472
      %v1496 = vadd.f32 %v1310, %v1475
      %v1497 = vadd.f32 %v1311, %v1478
      %v1498 = vadd.f32 %v1312, %v1481
      %v1499 = vld [vmem:[%s641 + $0x8] sm:$0xff]
      %v1500 = vld [vmem:[%s641 + $0x20] sm:$0xff]
      %v1501 = vld [vmem:[%s641 + $0x38] sm:$0xff]
      %v1502 = vld [vmem:[%s641 + $0x50] sm:$0xff]
      %v1503 = vld [vmem:[%s641 + $0x68] sm:$0xff]
      %v1504 = vld [vmem:[%s641 + $0x80] sm:$0xff]
      %v1505 = vld [vmem:[%s641 + $0x98] sm:$0xff]
      %v1506 = vld [vmem:[%s641 + $0xb0] sm:$0xff]
      %v1507 = vld [vmem:[%s641 + $0xc8] sm:$0xff]
      %v1508 = vld [vmem:[%s641 + $0xe0] sm:$0xff]
      %v1509 = vld [vmem:[%s641 + $0xf8] sm:$0xff]
      %v1510 = vld [vmem:[%s641 + $0x110] sm:$0xff]
      %v1511 = vld [vmem:[%s641 + $0x128] sm:$0xff]
      %v1512 = vld [vmem:[%s641 + $0x140] sm:$0xff]
      %v1513 = vld [vmem:[%s641 + $0x158] sm:$0xff]
      %v1514 = vld [vmem:[%s641 + $0x170] sm:$0xff]
      %s1515 = scalar_lea.vmem %s4, 256
      %v1516 = vld [vmem:[%s1515] sm:$0xff]
      %v1517 = vld [vmem:[%s1515 + $0x8] sm:$0xff]
      %v1518 = vld [vmem:[%s1515 + $0x10] sm:$0xff]
      %v1519 = vld [vmem:[%s1515 + $0x18] sm:$0xff]
      %v1520 = vld [vmem:[%s1515 + $0x20] sm:$0xff]
      %v1521 = vld [vmem:[%s1515 + $0x28] sm:$0xff]
      %v1522 = vld [vmem:[%s1515 + $0x30] sm:$0xff]
      %v1523 = vld [vmem:[%s1515 + $0x38] sm:$0xff]
      %v1525 = vsel %vm462, %v1499, 0
      %v1528 = vsel %vm462, %v1500, 0
      %v1531 = vsel %vm462, %v1501, 0
      %v1534 = vsel %vm462, %v1502, 0
      %v1537 = vsel %vm462, %v1503, 0
      %v1540 = vsel %vm462, %v1504, 0
      %v1543 = vsel %vm462, %v1505, 0
      %v1546 = vsel %vm462, %v1506, 0
      %v1549 = vsel %vm462, %v1507, 0
      %v1552 = vsel %vm462, %v1508, 0
      %v1555 = vsel %vm462, %v1509, 0
      %v1558 = vsel %vm462, %v1510, 0
      %v1561 = vsel %vm462, %v1511, 0
      %v1564 = vsel %vm462, %v1512, 0
      %v1567 = vsel %vm462, %v1513, 0
      %v1570 = vsel %vm462, %v1514, 0
      %1572 = vmatpush.msra.mxu0 0.0
      %1573 = vmatpush.msra.mxu0 0.0
      %1574 = vmatpush.msra.mxu0 0.0
      %1575 = vmatpush.msra.mxu0 0.0
      %1576 = vmatpush.msra.mxu0 0.0
      %1577 = vmatpush.msra.mxu0 0.0
      %1578 = vmatpush.msra.mxu0 0.0
      %1579 = vmatpush.msra.mxu0 0.0
      %1580 = vmatpush.msra.mxu0 %v1523
      %1581 = vmatpush.msra.mxu0 %v1522
      %1582 = vmatpush.msra.mxu0 %v1521
      %1583 = vmatpush.msra.mxu0 %v1520
      %1584 = vmatpush.msra.mxu0 %v1519
      %1585 = vmatpush.msra.mxu0 %v1518
      %1586 = vmatpush.msra.mxu0 %v1517
      %1587 = vmatpush.msra.mxu0 %v1516
      %1588 = vmatmul.f32.gmra.mxu0 %v1525
      %v1589 = vpop.f32.mrf.mxu0
      %v1590 = vadd.f32 0.0, %v1589
      %1591 = vmatmul.f32.gmra.mxu0 %v1528
      %v1592 = vpop.f32.mrf.mxu0
      %v1593 = vadd.f32 0.0, %v1592
      %1594 = vmatmul.f32.gmra.mxu0 %v1531
      %v1595 = vpop.f32.mrf.mxu0
      %v1596 = vadd.f32 0.0, %v1595
      %1597 = vmatmul.f32.gmra.mxu0 %v1534
      %v1598 = vpop.f32.mrf.mxu0
      %v1599 = vadd.f32 0.0, %v1598
      %1600 = vmatmul.f32.gmra.mxu0 %v1537
      %v1601 = vpop.f32.mrf.mxu0
      %v1602 = vadd.f32 0.0, %v1601
      %1603 = vmatmul.f32.gmra.mxu0 %v1540
      %v1604 = vpop.f32.mrf.mxu0
      %v1605 = vadd.f32 0.0, %v1604
      %1606 = vmatmul.f32.gmra.mxu0 %v1543
      %v1607 = vpop.f32.mrf.mxu0
      %v1608 = vadd.f32 0.0, %v1607
      %1609 = vmatmul.f32.gmra.mxu0 %v1546
      %v1610 = vpop.f32.mrf.mxu0
      %v1611 = vadd.f32 0.0, %v1610
      %1612 = vmatmul.f32.gmra.mxu0 %v1549
      %v1613 = vpop.f32.mrf.mxu0
      %v1614 = vadd.f32 0.0, %v1613
      %1615 = vmatmul.f32.gmra.mxu0 %v1552
      %v1616 = vpop.f32.mrf.mxu0
      %v1617 = vadd.f32 0.0, %v1616
      %1618 = vmatmul.f32.gmra.mxu0 %v1555
      %v1619 = vpop.f32.mrf.mxu0
      %v1620 = vadd.f32 0.0, %v1619
      %1621 = vmatmul.f32.gmra.mxu0 %v1558
      %v1622 = vpop.f32.mrf.mxu0
      %v1623 = vadd.f32 0.0, %v1622
      %1624 = vmatmul.f32.gmra.mxu0 %v1561
      %v1625 = vpop.f32.mrf.mxu0
      %v1626 = vadd.f32 0.0, %v1625
      %1627 = vmatmul.f32.gmra.mxu0 %v1564
      %v1628 = vpop.f32.mrf.mxu0
      %v1629 = vadd.f32 0.0, %v1628
      %1630 = vmatmul.f32.gmra.mxu0 %v1567
      %v1631 = vpop.f32.mrf.mxu0
      %v1632 = vadd.f32 0.0, %v1631
      %1633 = vmatmul.f32.gmra.mxu0 %v1570
      %v1634 = vpop.f32.mrf.mxu0
      %v1635 = vadd.f32 0.0, %v1634
      %1636 = vdwg.mxu0
      %v1637 = vadd.f32 %v1483, %v1590
      %v1638 = vadd.f32 %v1484, %v1593
      %v1639 = vadd.f32 %v1485, %v1596
      %v1640 = vadd.f32 %v1486, %v1599
      %v1641 = vadd.f32 %v1487, %v1602
      %v1642 = vadd.f32 %v1488, %v1605
      %v1643 = vadd.f32 %v1489, %v1608
      %v1644 = vadd.f32 %v1490, %v1611
      %v1645 = vadd.f32 %v1491, %v1614
      %v1646 = vadd.f32 %v1492, %v1617
      %v1647 = vadd.f32 %v1493, %v1620
      %v1648 = vadd.f32 %v1494, %v1623
      %v1649 = vadd.f32 %v1495, %v1626
      %v1650 = vadd.f32 %v1496, %v1629
      %v1651 = vadd.f32 %v1497, %v1632
      %v1652 = vadd.f32 %v1498, %v1635
      %s1653 = scalar_lea.vmem %s4, 320
      %v1654 = vld [vmem:[%s1653] sm:$0xff]
      %v1655 = vld [vmem:[%s1653 + $0x8] sm:$0xff]
      %v1656 = vld [vmem:[%s1653 + $0x10] sm:$0xff]
      %v1657 = vld [vmem:[%s1653 + $0x18] sm:$0xff]
      %v1658 = vld [vmem:[%s1653 + $0x20] sm:$0xff]
      %v1659 = vld [vmem:[%s1653 + $0x28] sm:$0xff]
      %v1660 = vld [vmem:[%s1653 + $0x30] sm:$0xff]
      %v1661 = vld [vmem:[%s1653 + $0x38] sm:$0xff]
      %1662 = vrot.lane.b32.xlu0 %v1499, 64
      %v1663 = vpop.permute.xlu0 %1662
      %1664 = vrot.lane.b32.xlu0 %v1500, 64
      %v1665 = vpop.permute.xlu0 %1664
      %1666 = vrot.lane.b32.xlu0 %v1501, 64
      %v1667 = vpop.permute.xlu0 %1666
      %1668 = vrot.lane.b32.xlu0 %v1502, 64
      %v1669 = vpop.permute.xlu0 %1668
      %1670 = vrot.lane.b32.xlu0 %v1503, 64
      %v1671 = vpop.permute.xlu0 %1670
      %1672 = vrot.lane.b32.xlu0 %v1504, 64
      %v1673 = vpop.permute.xlu0 %1672
      %1674 = vrot.lane.b32.xlu0 %v1505, 64
      %v1675 = vpop.permute.xlu0 %1674
      %1676 = vrot.lane.b32.xlu0 %v1506, 64
      %v1677 = vpop.permute.xlu0 %1676
      %1678 = vrot.lane.b32.xlu0 %v1507, 64
      %v1679 = vpop.permute.xlu0 %1678
      %1680 = vrot.lane.b32.xlu0 %v1508, 64
      %v1681 = vpop.permute.xlu0 %1680
      %1682 = vrot.lane.b32.xlu0 %v1509, 64
      %v1683 = vpop.permute.xlu0 %1682
      %1684 = vrot.lane.b32.xlu0 %v1510, 64
      %v1685 = vpop.permute.xlu0 %1684
      %1686 = vrot.lane.b32.xlu0 %v1511, 64
      %v1687 = vpop.permute.xlu0 %1686
      %1688 = vrot.lane.b32.xlu0 %v1512, 64
      %v1689 = vpop.permute.xlu0 %1688
      %1690 = vrot.lane.b32.xlu0 %v1513, 64
      %v1691 = vpop.permute.xlu0 %1690
      %1692 = vrot.lane.b32.xlu0 %v1514, 64
      %v1693 = vpop.permute.xlu0 %1692
      %v1694 = vsel %vm462, %v1663, 0
      %v1696 = vsel %vm462, %v1665, 0
      %v1698 = vsel %vm462, %v1667, 0
      %v1700 = vsel %vm462, %v1669, 0
      %v1702 = vsel %vm462, %v1671, 0
      %v1704 = vsel %vm462, %v1673, 0
      %v1706 = vsel %vm462, %v1675, 0
      %v1708 = vsel %vm462, %v1677, 0
      %v1710 = vsel %vm462, %v1679, 0
      %v1712 = vsel %vm462, %v1681, 0
      %v1714 = vsel %vm462, %v1683, 0
      %v1716 = vsel %vm462, %v1685, 0
      %v1718 = vsel %vm462, %v1687, 0
      %v1720 = vsel %vm462, %v1689, 0
      %v1722 = vsel %vm462, %v1691, 0
      %v1724 = vsel %vm462, %v1693, 0
      %1726 = vmatpush.msra.mxu0 0.0
      %1727 = vmatpush.msra.mxu0 0.0
      %1728 = vmatpush.msra.mxu0 0.0
      %1729 = vmatpush.msra.mxu0 0.0
      %1730 = vmatpush.msra.mxu0 0.0
      %1731 = vmatpush.msra.mxu0 0.0
      %1732 = vmatpush.msra.mxu0 0.0
      %1733 = vmatpush.msra.mxu0 0.0
      %1734 = vmatpush.msra.mxu0 %v1661
      %1735 = vmatpush.msra.mxu0 %v1660
      %1736 = vmatpush.msra.mxu0 %v1659
      %1737 = vmatpush.msra.mxu0 %v1658
      %1738 = vmatpush.msra.mxu0 %v1657
      %1739 = vmatpush.msra.mxu0 %v1656
      %1740 = vmatpush.msra.mxu0 %v1655
      %1741 = vmatpush.msra.mxu0 %v1654
      %1742 = vmatmul.f32.gmra.mxu0 %v1694
      %v1743 = vpop.f32.mrf.mxu0
      %v1744 = vadd.f32 0.0, %v1743
      %1745 = vmatmul.f32.gmra.mxu0 %v1696
      %v1746 = vpop.f32.mrf.mxu0
      %v1747 = vadd.f32 0.0, %v1746
      %1748 = vmatmul.f32.gmra.mxu0 %v1698
      %v1749 = vpop.f32.mrf.mxu0
      %v1750 = vadd.f32 0.0, %v1749
      %1751 = vmatmul.f32.gmra.mxu0 %v1700
      %v1752 = vpop.f32.mrf.mxu0
      %v1753 = vadd.f32 0.0, %v1752
      %1754 = vmatmul.f32.gmra.mxu0 %v1702
      %v1755 = vpop.f32.mrf.mxu0
      %v1756 = vadd.f32 0.0, %v1755
      %1757 = vmatmul.f32.gmra.mxu0 %v1704
      %v1758 = vpop.f32.mrf.mxu0
      %v1759 = vadd.f32 0.0, %v1758
      %1760 = vmatmul.f32.gmra.mxu0 %v1706
      %v1761 = vpop.f32.mrf.mxu0
      %v1762 = vadd.f32 0.0, %v1761
      %1763 = vmatmul.f32.gmra.mxu0 %v1708
      %v1764 = vpop.f32.mrf.mxu0
      %v1765 = vadd.f32 0.0, %v1764
      %1766 = vmatmul.f32.gmra.mxu0 %v1710
      %v1767 = vpop.f32.mrf.mxu0
      %v1768 = vadd.f32 0.0, %v1767
      %1769 = vmatmul.f32.gmra.mxu0 %v1712
      %v1770 = vpop.f32.mrf.mxu0
      %v1771 = vadd.f32 0.0, %v1770
      %1772 = vmatmul.f32.gmra.mxu0 %v1714
      %v1773 = vpop.f32.mrf.mxu0
      %v1774 = vadd.f32 0.0, %v1773
      %1775 = vmatmul.f32.gmra.mxu0 %v1716
      %v1776 = vpop.f32.mrf.mxu0
      %v1777 = vadd.f32 0.0, %v1776
      %1778 = vmatmul.f32.gmra.mxu0 %v1718
      %v1779 = vpop.f32.mrf.mxu0
      %v1780 = vadd.f32 0.0, %v1779
      %1781 = vmatmul.f32.gmra.mxu0 %v1720
      %v1782 = vpop.f32.mrf.mxu0
      %v1783 = vadd.f32 0.0, %v1782
      %1784 = vmatmul.f32.gmra.mxu0 %v1722
      %v1785 = vpop.f32.mrf.mxu0
      %v1786 = vadd.f32 0.0, %v1785
      %1787 = vmatmul.f32.gmra.mxu0 %v1724
      %v1788 = vpop.f32.mrf.mxu0
      %v1789 = vadd.f32 0.0, %v1788
      %1790 = vdwg.mxu0
      %v1791 = vadd.f32 %v1637, %v1744
      %v1792 = vadd.f32 %v1638, %v1747
      %v1793 = vadd.f32 %v1639, %v1750
      %v1794 = vadd.f32 %v1640, %v1753
      %v1795 = vadd.f32 %v1641, %v1756
      %v1796 = vadd.f32 %v1642, %v1759
      %v1797 = vadd.f32 %v1643, %v1762
      %v1798 = vadd.f32 %v1644, %v1765
      %v1799 = vadd.f32 %v1645, %v1768
      %v1800 = vadd.f32 %v1646, %v1771
      %v1801 = vadd.f32 %v1647, %v1774
      %v1802 = vadd.f32 %v1648, %v1777
      %v1803 = vadd.f32 %v1649, %v1780
      %v1804 = vadd.f32 %v1650, %v1783
      %v1805 = vadd.f32 %v1651, %v1786
      %v1806 = vadd.f32 %v1652, %v1789
      %s1807 = scalar_lea.vmem [#allocation2], 48
      %v1808 = vld [vmem:[%s1807 + $0x7] sm:$0xff]
      %v1809 = vld [vmem:[%s1807 + $0x1f] sm:$0xff]
      %v1810 = vld [vmem:[%s1807 + $0x37] sm:$0xff]
      %v1811 = vld [vmem:[%s1807 + $0x4f] sm:$0xff]
      %v1812 = vld [vmem:[%s1807 + $0x67] sm:$0xff]
      %v1813 = vld [vmem:[%s1807 + $0x7f] sm:$0xff]
      %v1814 = vld [vmem:[%s1807 + $0x97] sm:$0xff]
      %v1815 = vld [vmem:[%s1807 + $0xaf] sm:$0xff]
      %v1816 = vld [vmem:[%s1807 + $0xc7] sm:$0xff]
      %v1817 = vld [vmem:[%s1807 + $0xdf] sm:$0xff]
      %v1818 = vld [vmem:[%s1807 + $0xf7] sm:$0xff]
      %v1819 = vld [vmem:[%s1807 + $0x10f] sm:$0xff]
      %v1820 = vld [vmem:[%s1807 + $0x127] sm:$0xff]
      %v1821 = vld [vmem:[%s1807 + $0x13f] sm:$0xff]
      %v1822 = vld [vmem:[%s1807 + $0x157] sm:$0xff]
      %v1823 = vld [vmem:[%s1807 + $0x16f] sm:$0xff]
      %s1824 = scalar_lea.vmem %s4, 384
      %v1825 = vld [vmem:[%s1824] sm:$0xff]
      %v1826 = vld [vmem:[%s1824 + $0x8] sm:$0xff]
      %v1827 = vld [vmem:[%s1824 + $0x10] sm:$0xff]
      %v1828 = vld [vmem:[%s1824 + $0x18] sm:$0xff]
      %v1829 = vld [vmem:[%s1824 + $0x20] sm:$0xff]
      %v1830 = vld [vmem:[%s1824 + $0x28] sm:$0xff]
      %v1831 = vld [vmem:[%s1824 + $0x30] sm:$0xff]
      %v1832 = vld [vmem:[%s1824 + $0x38] sm:$0xff]
      %1849 = vrot.lane.b32.xlu0 %v1808, 64
      %v1850 = vpop.permute.xlu0 %1849
      %1851 = vrot.lane.b32.xlu0 %v1809, 64
      %v1852 = vpop.permute.xlu0 %1851
      %1853 = vrot.lane.b32.xlu0 %v1810, 64
      %v1854 = vpop.permute.xlu0 %1853
      %1855 = vrot.lane.b32.xlu0 %v1811, 64
      %v1856 = vpop.permute.xlu0 %1855
      %1857 = vrot.lane.b32.xlu0 %v1812, 64
      %v1858 = vpop.permute.xlu0 %1857
      %1859 = vrot.lane.b32.xlu0 %v1813, 64
      %v1860 = vpop.permute.xlu0 %1859
      %1861 = vrot.lane.b32.xlu0 %v1814, 64
      %v1862 = vpop.permute.xlu0 %1861
      %1863 = vrot.lane.b32.xlu0 %v1815, 64
      %v1864 = vpop.permute.xlu0 %1863
      %1865 = vrot.lane.b32.xlu0 %v1816, 64
      %v1866 = vpop.permute.xlu0 %1865
      %1867 = vrot.lane.b32.xlu0 %v1817, 64
      %v1868 = vpop.permute.xlu0 %1867
      %1869 = vrot.lane.b32.xlu0 %v1818, 64
      %v1870 = vpop.permute.xlu0 %1869
      %1871 = vrot.lane.b32.xlu0 %v1819, 64
      %v1872 = vpop.permute.xlu0 %1871
      %1873 = vrot.lane.b32.xlu0 %v1820, 64
      %v1874 = vpop.permute.xlu0 %1873
      %1875 = vrot.lane.b32.xlu0 %v1821, 64
      %v1876 = vpop.permute.xlu0 %1875
      %1877 = vrot.lane.b32.xlu0 %v1822, 64
      %v1878 = vpop.permute.xlu0 %1877
      %1879 = vrot.lane.b32.xlu0 %v1823, 64
      %v1880 = vpop.permute.xlu0 %1879
      %v1881 = vsel %vm462, %v1850, 0
      %v1883 = vsel %vm462, %v1852, 0
      %v1885 = vsel %vm462, %v1854, 0
      %v1887 = vsel %vm462, %v1856, 0
      %v1889 = vsel %vm462, %v1858, 0
      %v1891 = vsel %vm462, %v1860, 0
      %v1893 = vsel %vm462, %v1862, 0
      %v1895 = vsel %vm462, %v1864, 0
      %v1897 = vsel %vm462, %v1866, 0
      %v1899 = vsel %vm462, %v1868, 0
      %v1901 = vsel %vm462, %v1870, 0
      %v1903 = vsel %vm462, %v1872, 0
      %v1905 = vsel %vm462, %v1874, 0
      %v1907 = vsel %vm462, %v1876, 0
      %v1909 = vsel %vm462, %v1878, 0
      %v1911 = vsel %vm462, %v1880, 0
      %1913 = vmatpush.msra.mxu0 0.0
      %1914 = vmatpush.msra.mxu0 0.0
      %1915 = vmatpush.msra.mxu0 0.0
      %1916 = vmatpush.msra.mxu0 0.0
      %1917 = vmatpush.msra.mxu0 0.0
      %1918 = vmatpush.msra.mxu0 0.0
      %1919 = vmatpush.msra.mxu0 0.0
      %1920 = vmatpush.msra.mxu0 0.0
      %1921 = vmatpush.msra.mxu0 %v1832
      %1922 = vmatpush.msra.mxu0 %v1831
      %1923 = vmatpush.msra.mxu0 %v1830
      %1924 = vmatpush.msra.mxu0 %v1829
      %1925 = vmatpush.msra.mxu0 %v1828
      %1926 = vmatpush.msra.mxu0 %v1827
      %1927 = vmatpush.msra.mxu0 %v1826
      %1928 = vmatpush.msra.mxu0 %v1825
      %1929 = vmatmul.f32.gmra.mxu0 %v1881
      %v1930 = vpop.f32.mrf.mxu0
      %v1931 = vadd.f32 0.0, %v1930
      %1932 = vmatmul.f32.gmra.mxu0 %v1883
      %v1933 = vpop.f32.mrf.mxu0
      %v1934 = vadd.f32 0.0, %v1933
      %1935 = vmatmul.f32.gmra.mxu0 %v1885
      %v1936 = vpop.f32.mrf.mxu0
      %v1937 = vadd.f32 0.0, %v1936
      %1938 = vmatmul.f32.gmra.mxu0 %v1887
      %v1939 = vpop.f32.mrf.mxu0
      %v1940 = vadd.f32 0.0, %v1939
      %1941 = vmatmul.f32.gmra.mxu0 %v1889
      %v1942 = vpop.f32.mrf.mxu0
      %v1943 = vadd.f32 0.0, %v1942
      %1944 = vmatmul.f32.gmra.mxu0 %v1891
      %v1945 = vpop.f32.mrf.mxu0
      %v1946 = vadd.f32 0.0, %v1945
      %1947 = vmatmul.f32.gmra.mxu0 %v1893
      %v1948 = vpop.f32.mrf.mxu0
      %v1949 = vadd.f32 0.0, %v1948
      %1950 = vmatmul.f32.gmra.mxu0 %v1895
      %v1951 = vpop.f32.mrf.mxu0
      %v1952 = vadd.f32 0.0, %v1951
      %1953 = vmatmul.f32.gmra.mxu0 %v1897
      %v1954 = vpop.f32.mrf.mxu0
      %v1955 = vadd.f32 0.0, %v1954
      %1956 = vmatmul.f32.gmra.mxu0 %v1899
      %v1957 = vpop.f32.mrf.mxu0
      %v1958 = vadd.f32 0.0, %v1957
      %1959 = vmatmul.f32.gmra.mxu0 %v1901
      %v1960 = vpop.f32.mrf.mxu0
      %v1961 = vadd.f32 0.0, %v1960
      %1962 = vmatmul.f32.gmra.mxu0 %v1903
      %v1963 = vpop.f32.mrf.mxu0
      %v1964 = vadd.f32 0.0, %v1963
      %1965 = vmatmul.f32.gmra.mxu0 %v1905
      %v1966 = vpop.f32.mrf.mxu0
      %v1967 = vadd.f32 0.0, %v1966
      %1968 = vmatmul.f32.gmra.mxu0 %v1907
      %v1969 = vpop.f32.mrf.mxu0
      %v1970 = vadd.f32 0.0, %v1969
      %1971 = vmatmul.f32.gmra.mxu0 %v1909
      %v1972 = vpop.f32.mrf.mxu0
      %v1973 = vadd.f32 0.0, %v1972
      %1974 = vmatmul.f32.gmra.mxu0 %v1911
      %v1975 = vpop.f32.mrf.mxu0
      %v1976 = vadd.f32 0.0, %v1975
      %1977 = vdwg.mxu0
      %v1978 = vadd.f32 %v1791, %v1931
      %v1979 = vadd.f32 %v1792, %v1934
      %v1980 = vadd.f32 %v1793, %v1937
      %v1981 = vadd.f32 %v1794, %v1940
      %v1982 = vadd.f32 %v1795, %v1943
      %v1983 = vadd.f32 %v1796, %v1946
      %v1984 = vadd.f32 %v1797, %v1949
      %v1985 = vadd.f32 %v1798, %v1952
      %v1986 = vadd.f32 %v1799, %v1955
      %v1987 = vadd.f32 %v1800, %v1958
      %v1988 = vadd.f32 %v1801, %v1961
      %v1989 = vadd.f32 %v1802, %v1964
      %v1990 = vadd.f32 %v1803, %v1967
      %v1991 = vadd.f32 %v1804, %v1970
      %v1992 = vadd.f32 %v1805, %v1973
      %v1993 = vadd.f32 %v1806, %v1976
      %v1994 = vld [vmem:[%s1807 + $0x8] sm:$0xff]
      %v1995 = vld [vmem:[%s1807 + $0x20] sm:$0xff]
      %v1996 = vld [vmem:[%s1807 + $0x38] sm:$0xff]
      %v1997 = vld [vmem:[%s1807 + $0x50] sm:$0xff]
      %v1998 = vld [vmem:[%s1807 + $0x68] sm:$0xff]
      %v1999 = vld [vmem:[%s1807 + $0x80] sm:$0xff]
      %v2000 = vld [vmem:[%s1807 + $0x98] sm:$0xff]
      %v2001 = vld [vmem:[%s1807 + $0xb0] sm:$0xff]
      %v2002 = vld [vmem:[%s1807 + $0xc8] sm:$0xff]
      %v2003 = vld [vmem:[%s1807 + $0xe0] sm:$0xff]
      %v2004 = vld [vmem:[%s1807 + $0xf8] sm:$0xff]
      %v2005 = vld [vmem:[%s1807 + $0x110] sm:$0xff]
      %v2006 = vld [vmem:[%s1807 + $0x128] sm:$0xff]
      %v2007 = vld [vmem:[%s1807 + $0x140] sm:$0xff]
      %v2008 = vld [vmem:[%s1807 + $0x158] sm:$0xff]
      %v2009 = vld [vmem:[%s1807 + $0x170] sm:$0xff]
      %s2010 = scalar_lea.vmem %s4, 448
      %v2011 = vld [vmem:[%s2010] sm:$0xff]
      %v2012 = vld [vmem:[%s2010 + $0x8] sm:$0xff]
      %v2013 = vld [vmem:[%s2010 + $0x10] sm:$0xff]
      %v2014 = vld [vmem:[%s2010 + $0x18] sm:$0xff]
      %v2015 = vld [vmem:[%s2010 + $0x20] sm:$0xff]
      %v2016 = vld [vmem:[%s2010 + $0x28] sm:$0xff]
      %v2017 = vld [vmem:[%s2010 + $0x30] sm:$0xff]
      %v2018 = vld [vmem:[%s2010 + $0x38] sm:$0xff]
      %v2020 = vsel %vm462, %v1994, 0
      %v2023 = vsel %vm462, %v1995, 0
      %v2026 = vsel %vm462, %v1996, 0
      %v2029 = vsel %vm462, %v1997, 0
      %v2032 = vsel %vm462, %v1998, 0
      %v2035 = vsel %vm462, %v1999, 0
      %v2038 = vsel %vm462, %v2000, 0
      %v2041 = vsel %vm462, %v2001, 0
      %v2044 = vsel %vm462, %v2002, 0
      %v2047 = vsel %vm462, %v2003, 0
      %v2050 = vsel %vm462, %v2004, 0
      %v2053 = vsel %vm462, %v2005, 0
      %v2056 = vsel %vm462, %v2006, 0
      %v2059 = vsel %vm462, %v2007, 0
      %v2062 = vsel %vm462, %v2008, 0
      %v2065 = vsel %vm462, %v2009, 0
      %2067 = vmatpush.msra.mxu0 0.0
      %2068 = vmatpush.msra.mxu0 0.0
      %2069 = vmatpush.msra.mxu0 0.0
      %2070 = vmatpush.msra.mxu0 0.0
      %2071 = vmatpush.msra.mxu0 0.0
      %2072 = vmatpush.msra.mxu0 0.0
      %2073 = vmatpush.msra.mxu0 0.0
      %2074 = vmatpush.msra.mxu0 0.0
      %2075 = vmatpush.msra.mxu0 %v2018
      %2076 = vmatpush.msra.mxu0 %v2017
      %2077 = vmatpush.msra.mxu0 %v2016
      %2078 = vmatpush.msra.mxu0 %v2015
      %2079 = vmatpush.msra.mxu0 %v2014
      %2080 = vmatpush.msra.mxu0 %v2013
      %2081 = vmatpush.msra.mxu0 %v2012
      %2082 = vmatpush.msra.mxu0 %v2011
      %2083 = vmatmul.f32.gmra.mxu0 %v2020
      %v2084 = vpop.f32.mrf.mxu0
      %v2085 = vadd.f32 0.0, %v2084
      %2086 = vmatmul.f32.gmra.mxu0 %v2023
      %v2087 = vpop.f32.mrf.mxu0
      %v2088 = vadd.f32 0.0, %v2087
      %2089 = vmatmul.f32.gmra.mxu0 %v2026
      %v2090 = vpop.f32.mrf.mxu0
      %v2091 = vadd.f32 0.0, %v2090
      %2092 = vmatmul.f32.gmra.mxu0 %v2029
      %v2093 = vpop.f32.mrf.mxu0
      %v2094 = vadd.f32 0.0, %v2093
      %2095 = vmatmul.f32.gmra.mxu0 %v2032
      %v2096 = vpop.f32.mrf.mxu0
      %v2097 = vadd.f32 0.0, %v2096
      %2098 = vmatmul.f32.gmra.mxu0 %v2035
      %v2099 = vpop.f32.mrf.mxu0
      %v2100 = vadd.f32 0.0, %v2099
      %2101 = vmatmul.f32.gmra.mxu0 %v2038
      %v2102 = vpop.f32.mrf.mxu0
      %v2103 = vadd.f32 0.0, %v2102
      %2104 = vmatmul.f32.gmra.mxu0 %v2041
      %v2105 = vpop.f32.mrf.mxu0
      %v2106 = vadd.f32 0.0, %v2105
      %2107 = vmatmul.f32.gmra.mxu0 %v2044
      %v2108 = vpop.f32.mrf.mxu0
      %v2109 = vadd.f32 0.0, %v2108
      %2110 = vmatmul.f32.gmra.mxu0 %v2047
      %v2111 = vpop.f32.mrf.mxu0
      %v2112 = vadd.f32 0.0, %v2111
      %2113 = vmatmul.f32.gmra.mxu0 %v2050
      %v2114 = vpop.f32.mrf.mxu0
      %v2115 = vadd.f32 0.0, %v2114
      %2116 = vmatmul.f32.gmra.mxu0 %v2053
      %v2117 = vpop.f32.mrf.mxu0
      %v2118 = vadd.f32 0.0, %v2117
      %2119 = vmatmul.f32.gmra.mxu0 %v2056
      %v2120 = vpop.f32.mrf.mxu0
      %v2121 = vadd.f32 0.0, %v2120
      %2122 = vmatmul.f32.gmra.mxu0 %v2059
      %v2123 = vpop.f32.mrf.mxu0
      %v2124 = vadd.f32 0.0, %v2123
      %2125 = vmatmul.f32.gmra.mxu0 %v2062
      %v2126 = vpop.f32.mrf.mxu0
      %v2127 = vadd.f32 0.0, %v2126
      %2128 = vmatmul.f32.gmra.mxu0 %v2065
      %v2129 = vpop.f32.mrf.mxu0
      %v2130 = vadd.f32 0.0, %v2129
      %2131 = vdwg.mxu0
      %v2132 = vadd.f32 %v1978, %v2085
      %v2133 = vadd.f32 %v1979, %v2088
      %v2134 = vadd.f32 %v1980, %v2091
      %v2135 = vadd.f32 %v1981, %v2094
      %v2136 = vadd.f32 %v1982, %v2097
      %v2137 = vadd.f32 %v1983, %v2100
      %v2138 = vadd.f32 %v1984, %v2103
      %v2139 = vadd.f32 %v1985, %v2106
      %v2140 = vadd.f32 %v1986, %v2109
      %v2141 = vadd.f32 %v1987, %v2112
      %v2142 = vadd.f32 %v1988, %v2115
      %v2143 = vadd.f32 %v1989, %v2118
      %v2144 = vadd.f32 %v1990, %v2121
      %v2145 = vadd.f32 %v1991, %v2124
      %v2146 = vadd.f32 %v1992, %v2127
      %v2147 = vadd.f32 %v1993, %v2130
      %s2148 = scalar_lea.vmem %s4, 512
      %v2149 = vld [vmem:[%s2148] sm:$0xff]
      %v2150 = vld [vmem:[%s2148 + $0x8] sm:$0xff]
      %v2151 = vld [vmem:[%s2148 + $0x10] sm:$0xff]
      %v2152 = vld [vmem:[%s2148 + $0x18] sm:$0xff]
      %v2153 = vld [vmem:[%s2148 + $0x20] sm:$0xff]
      %v2154 = vld [vmem:[%s2148 + $0x28] sm:$0xff]
      %v2155 = vld [vmem:[%s2148 + $0x30] sm:$0xff]
      %v2156 = vld [vmem:[%s2148 + $0x38] sm:$0xff]
      %2157 = vrot.lane.b32.xlu0 %v1994, 64
      %v2158 = vpop.permute.xlu0 %2157
      %2159 = vrot.lane.b32.xlu0 %v1995, 64
      %v2160 = vpop.permute.xlu0 %2159
      %2161 = vrot.lane.b32.xlu0 %v1996, 64
      %v2162 = vpop.permute.xlu0 %2161
      %2163 = vrot.lane.b32.xlu0 %v1997, 64
      %v2164 = vpop.permute.xlu0 %2163
      %2165 = vrot.lane.b32.xlu0 %v1998, 64
      %v2166 = vpop.permute.xlu0 %2165
      %2167 = vrot.lane.b32.xlu0 %v1999, 64
      %v2168 = vpop.permute.xlu0 %2167
      %2169 = vrot.lane.b32.xlu0 %v2000, 64
      %v2170 = vpop.permute.xlu0 %2169
      %2171 = vrot.lane.b32.xlu0 %v2001, 64
      %v2172 = vpop.permute.xlu0 %2171
      %2173 = vrot.lane.b32.xlu0 %v2002, 64
      %v2174 = vpop.permute.xlu0 %2173
      %2175 = vrot.lane.b32.xlu0 %v2003, 64
      %v2176 = vpop.permute.xlu0 %2175
      %2177 = vrot.lane.b32.xlu0 %v2004, 64
      %v2178 = vpop.permute.xlu0 %2177
      %2179 = vrot.lane.b32.xlu0 %v2005, 64
      %v2180 = vpop.permute.xlu0 %2179
      %2181 = vrot.lane.b32.xlu0 %v2006, 64
      %v2182 = vpop.permute.xlu0 %2181
      %2183 = vrot.lane.b32.xlu0 %v2007, 64
      %v2184 = vpop.permute.xlu0 %2183
      %2185 = vrot.lane.b32.xlu0 %v2008, 64
      %v2186 = vpop.permute.xlu0 %2185
      %2187 = vrot.lane.b32.xlu0 %v2009, 64
      %v2188 = vpop.permute.xlu0 %2187
      %v2189 = vsel %vm462, %v2158, 0
      %v2191 = vsel %vm462, %v2160, 0
      %v2193 = vsel %vm462, %v2162, 0
      %v2195 = vsel %vm462, %v2164, 0
      %v2197 = vsel %vm462, %v2166, 0
      %v2199 = vsel %vm462, %v2168, 0
      %v2201 = vsel %vm462, %v2170, 0
      %v2203 = vsel %vm462, %v2172, 0
      %v2205 = vsel %vm462, %v2174, 0
      %v2207 = vsel %vm462, %v2176, 0
      %v2209 = vsel %vm462, %v2178, 0
      %v2211 = vsel %vm462, %v2180, 0
      %v2213 = vsel %vm462, %v2182, 0
      %v2215 = vsel %vm462, %v2184, 0
      %v2217 = vsel %vm462, %v2186, 0
      %v2219 = vsel %vm462, %v2188, 0
      %2221 = vmatpush.msra.mxu0 0.0
      %2222 = vmatpush.msra.mxu0 0.0
      %2223 = vmatpush.msra.mxu0 0.0
      %2224 = vmatpush.msra.mxu0 0.0
      %2225 = vmatpush.msra.mxu0 0.0
      %2226 = vmatpush.msra.mxu0 0.0
      %2227 = vmatpush.msra.mxu0 0.0
      %2228 = vmatpush.msra.mxu0 0.0
      %2229 = vmatpush.msra.mxu0 %v2156
      %2230 = vmatpush.msra.mxu0 %v2155
      %2231 = vmatpush.msra.mxu0 %v2154
      %2232 = vmatpush.msra.mxu0 %v2153
      %2233 = vmatpush.msra.mxu0 %v2152
      %2234 = vmatpush.msra.mxu0 %v2151
      %2235 = vmatpush.msra.mxu0 %v2150
      %2236 = vmatpush.msra.mxu0 %v2149
      %2237 = vmatmul.f32.gmra.mxu0 %v2189
      %v2238 = vpop.f32.mrf.mxu0
      %v2239 = vadd.f32 0.0, %v2238
      %2240 = vmatmul.f32.gmra.mxu0 %v2191
      %v2241 = vpop.f32.mrf.mxu0
      %v2242 = vadd.f32 0.0, %v2241
      %2243 = vmatmul.f32.gmra.mxu0 %v2193
      %v2244 = vpop.f32.mrf.mxu0
      %v2245 = vadd.f32 0.0, %v2244
      %2246 = vmatmul.f32.gmra.mxu0 %v2195
      %v2247 = vpop.f32.mrf.mxu0
      %v2248 = vadd.f32 0.0, %v2247
      %2249 = vmatmul.f32.gmra.mxu0 %v2197
      %v2250 = vpop.f32.mrf.mxu0
      %v2251 = vadd.f32 0.0, %v2250
      %2252 = vmatmul.f32.gmra.mxu0 %v2199
      %v2253 = vpop.f32.mrf.mxu0
      %v2254 = vadd.f32 0.0, %v2253
      %2255 = vmatmul.f32.gmra.mxu0 %v2201
      %v2256 = vpop.f32.mrf.mxu0
      %v2257 = vadd.f32 0.0, %v2256
      %2258 = vmatmul.f32.gmra.mxu0 %v2203
      %v2259 = vpop.f32.mrf.mxu0
      %v2260 = vadd.f32 0.0, %v2259
      %2261 = vmatmul.f32.gmra.mxu0 %v2205
      %v2262 = vpop.f32.mrf.mxu0
      %v2263 = vadd.f32 0.0, %v2262
      %2264 = vmatmul.f32.gmra.mxu0 %v2207
      %v2265 = vpop.f32.mrf.mxu0
      %v2266 = vadd.f32 0.0, %v2265
      %2267 = vmatmul.f32.gmra.mxu0 %v2209
      %v2268 = vpop.f32.mrf.mxu0
      %v2269 = vadd.f32 0.0, %v2268
      %2270 = vmatmul.f32.gmra.mxu0 %v2211
      %v2271 = vpop.f32.mrf.mxu0
      %v2272 = vadd.f32 0.0, %v2271
      %2273 = vmatmul.f32.gmra.mxu0 %v2213
      %v2274 = vpop.f32.mrf.mxu0
      %v2275 = vadd.f32 0.0, %v2274
      %2276 = vmatmul.f32.gmra.mxu0 %v2215
      %v2277 = vpop.f32.mrf.mxu0
      %v2278 = vadd.f32 0.0, %v2277
      %2279 = vmatmul.f32.gmra.mxu0 %v2217
      %v2280 = vpop.f32.mrf.mxu0
      %v2281 = vadd.f32 0.0, %v2280
      %2282 = vmatmul.f32.gmra.mxu0 %v2219
      %v2283 = vpop.f32.mrf.mxu0
      %v2284 = vadd.f32 0.0, %v2283
      %2285 = vdwg.mxu0
      %v2286 = vadd.f32 %v2132, %v2239
      %v2287 = vadd.f32 %v2133, %v2242
      %v2288 = vadd.f32 %v2134, %v2245
      %v2289 = vadd.f32 %v2135, %v2248
      %v2290 = vadd.f32 %v2136, %v2251
      %v2291 = vadd.f32 %v2137, %v2254
      %v2292 = vadd.f32 %v2138, %v2257
      %v2293 = vadd.f32 %v2139, %v2260
      %v2294 = vadd.f32 %v2140, %v2263
      %v2295 = vadd.f32 %v2141, %v2266
      %v2296 = vadd.f32 %v2142, %v2269
      %v2297 = vadd.f32 %v2143, %v2272
      %v2298 = vadd.f32 %v2144, %v2275
      %v2299 = vadd.f32 %v2145, %v2278
      %v2300 = vadd.f32 %v2146, %v2281
      %v2301 = vadd.f32 %v2147, %v2284
      %2302 = vmatpush.msra.mxu0 0.0
      %2303 = vmatpush.msra.mxu0 0.0
      %2304 = vmatpush.msra.mxu0 0.0
      %2305 = vmatpush.msra.mxu0 0.0
      %2306 = vmatpush.msra.mxu0 0.0
      %2307 = vmatpush.msra.mxu0 0.0
      %2308 = vmatpush.msra.mxu0 0.0
      %2309 = vmatpush.msra.mxu0 0.0
      %2310 = vmatpush.msra.mxu0 %v900
      %2311 = vmatpush.msra.mxu0 %v899
      %2312 = vmatpush.msra.mxu0 %v898
      %2313 = vmatpush.msra.mxu0 %v897
      %2314 = vmatpush.msra.mxu0 %v896
      %2315 = vmatpush.msra.mxu0 %v895
      %2316 = vmatpush.msra.mxu0 %v894
      %2317 = vmatpush.msra.mxu0 %v893
      %2318 = vmatmul.f32.gmra.mxu0 %v1200
      %v2319 = vpop.f32.mrf.mxu0
      %v2320 = vadd.f32 0.0, %v2319
      %2321 = vmatmul.f32.gmra.mxu0 %v1202
      %v2322 = vpop.f32.mrf.mxu0
      %v2323 = vadd.f32 0.0, %v2322
      %2324 = vmatmul.f32.gmra.mxu0 %v1204
      %v2325 = vpop.f32.mrf.mxu0
      %v2326 = vadd.f32 0.0, %v2325
      %2327 = vmatmul.f32.gmra.mxu0 %v1206
      %v2328 = vpop.f32.mrf.mxu0
      %v2329 = vadd.f32 0.0, %v2328
      %2330 = vmatmul.f32.gmra.mxu0 %v1208
      %v2331 = vpop.f32.mrf.mxu0
      %v2332 = vadd.f32 0.0, %v2331
      %2333 = vmatmul.f32.gmra.mxu0 %v1210
      %v2334 = vpop.f32.mrf.mxu0
      %v2335 = vadd.f32 0.0, %v2334
      %2336 = vmatmul.f32.gmra.mxu0 %v1212
      %v2337 = vpop.f32.mrf.mxu0
      %v2338 = vadd.f32 0.0, %v2337
      %2339 = vmatmul.f32.gmra.mxu0 %v1214
      %v2340 = vpop.f32.mrf.mxu0
      %v2341 = vadd.f32 0.0, %v2340
      %2342 = vmatmul.f32.gmra.mxu0 %v1216
      %v2343 = vpop.f32.mrf.mxu0
      %v2344 = vadd.f32 0.0, %v2343
      %2345 = vmatmul.f32.gmra.mxu0 %v1218
      %v2346 = vpop.f32.mrf.mxu0
      %v2347 = vadd.f32 0.0, %v2346
      %2348 = vmatmul.f32.gmra.mxu0 %v1220
      %v2349 = vpop.f32.mrf.mxu0
      %v2350 = vadd.f32 0.0, %v2349
      %2351 = vmatmul.f32.gmra.mxu0 %v1222
      %v2352 = vpop.f32.mrf.mxu0
      %v2353 = vadd.f32 0.0, %v2352
      %2354 = vmatmul.f32.gmra.mxu0 %v1224
      %v2355 = vpop.f32.mrf.mxu0
      %v2356 = vadd.f32 0.0, %v2355
      %2357 = vmatmul.f32.gmra.mxu0 %v1226
      %v2358 = vpop.f32.mrf.mxu0
      %v2359 = vadd.f32 0.0, %v2358
      %2360 = vmatmul.f32.gmra.mxu0 %v1228
      %v2361 = vpop.f32.mrf.mxu0
      %v2362 = vadd.f32 0.0, %v2361
      %2363 = vmatmul.f32.gmra.mxu0 %v1230
      %v2364 = vpop.f32.mrf.mxu0
      %v2365 = vadd.f32 0.0, %v2364
      %2366 = vdwg.mxu0
      %2367 = vmatpush.msra.mxu0 0.0
      %2368 = vmatpush.msra.mxu0 0.0
      %2369 = vmatpush.msra.mxu0 0.0
      %2370 = vmatpush.msra.mxu0 0.0
      %2371 = vmatpush.msra.mxu0 0.0
      %2372 = vmatpush.msra.mxu0 0.0
      %2373 = vmatpush.msra.mxu0 0.0
      %2374 = vmatpush.msra.mxu0 0.0
      %2375 = vmatpush.msra.mxu0 %v875
      %2376 = vmatpush.msra.mxu0 %v874
      %2377 = vmatpush.msra.mxu0 %v873
      %2378 = vmatpush.msra.mxu0 %v872
      %2379 = vmatpush.msra.mxu0 %v871
      %2380 = vmatpush.msra.mxu0 %v870
      %2381 = vmatpush.msra.mxu0 %v869
      %2382 = vmatpush.msra.mxu0 %v868
      %2383 = vmatmul.f32.gmra.mxu0 %v902
      %v2384 = vpop.f32.mrf.mxu0
      %v2385 = vadd.f32 %v2320, %v2384
      %2386 = vmatmul.f32.gmra.mxu0 %v905
      %v2387 = vpop.f32.mrf.mxu0
      %v2388 = vadd.f32 %v2323, %v2387
      %2389 = vmatmul.f32.gmra.mxu0 %v908
      %v2390 = vpop.f32.mrf.mxu0
      %v2391 = vadd.f32 %v2326, %v2390
      %2392 = vmatmul.f32.gmra.mxu0 %v911
      %v2393 = vpop.f32.mrf.mxu0
      %v2394 = vadd.f32 %v2329, %v2393
      %2395 = vmatmul.f32.gmra.mxu0 %v914
      %v2396 = vpop.f32.mrf.mxu0
      %v2397 = vadd.f32 %v2332, %v2396
      %2398 = vmatmul.f32.gmra.mxu0 %v917
      %v2399 = vpop.f32.mrf.mxu0
      %v2400 = vadd.f32 %v2335, %v2399
      %2401 = vmatmul.f32.gmra.mxu0 %v920
      %v2402 = vpop.f32.mrf.mxu0
      %v2403 = vadd.f32 %v2338, %v2402
      %2404 = vmatmul.f32.gmra.mxu0 %v923
      %v2405 = vpop.f32.mrf.mxu0
      %v2406 = vadd.f32 %v2341, %v2405
      %2407 = vmatmul.f32.gmra.mxu0 %v926
      %v2408 = vpop.f32.mrf.mxu0
      %v2409 = vadd.f32 %v2344, %v2408
      %2410 = vmatmul.f32.gmra.mxu0 %v929
      %v2411 = vpop.f32.mrf.mxu0
      %v2412 = vadd.f32 %v2347, %v2411
      %2413 = vmatmul.f32.gmra.mxu0 %v932
      %v2414 = vpop.f32.mrf.mxu0
      %v2415 = vadd.f32 %v2350, %v2414
      %2416 = vmatmul.f32.gmra.mxu0 %v935
      %v2417 = vpop.f32.mrf.mxu0
      %v2418 = vadd.f32 %v2353, %v2417
      %2419 = vmatmul.f32.gmra.mxu0 %v938
      %v2420 = vpop.f32.mrf.mxu0
      %v2421 = vadd.f32 %v2356, %v2420
      %2422 = vmatmul.f32.gmra.mxu0 %v941
      %v2423 = vpop.f32.mrf.mxu0
      %v2424 = vadd.f32 %v2359, %v2423
      %2425 = vmatmul.f32.gmra.mxu0 %v944
      %v2426 = vpop.f32.mrf.mxu0
      %v2427 = vadd.f32 %v2362, %v2426
      %2428 = vmatmul.f32.gmra.mxu0 %v947
      %v2429 = vpop.f32.mrf.mxu0
      %v2430 = vadd.f32 %v2365, %v2429
      %2431 = vdwg.mxu0
      %v2432 = vld [vmem:[#allocation2 + $0x9] sm:$0xff]
      %v2433 = vld [vmem:[#allocation2 + $0x21] sm:$0xff]
      %v2434 = vld [vmem:[#allocation2 + $0x39] sm:$0xff]
      %v2435 = vld [vmem:[#allocation2 + $0x51] sm:$0xff]
      %v2436 = vld [vmem:[#allocation2 + $0x69] sm:$0xff]
      %v2437 = vld [vmem:[#allocation2 + $0x81] sm:$0xff]
      %v2438 = vld [vmem:[#allocation2 + $0x99] sm:$0xff]
      %v2439 = vld [vmem:[#allocation2 + $0xb1] sm:$0xff]
      %v2440 = vld [vmem:[#allocation2 + $0xc9] sm:$0xff]
      %v2441 = vld [vmem:[#allocation2 + $0xe1] sm:$0xff]
      %v2442 = vld [vmem:[#allocation2 + $0xf9] sm:$0xff]
      %v2443 = vld [vmem:[#allocation2 + $0x111] sm:$0xff]
      %v2444 = vld [vmem:[#allocation2 + $0x129] sm:$0xff]
      %v2445 = vld [vmem:[#allocation2 + $0x141] sm:$0xff]
      %v2446 = vld [vmem:[#allocation2 + $0x159] sm:$0xff]
      %v2447 = vld [vmem:[#allocation2 + $0x171] sm:$0xff]
      %v2449 = vsel %vm462, %v2432, 0
      %v2452 = vsel %vm462, %v2433, 0
      %v2455 = vsel %vm462, %v2434, 0
      %v2458 = vsel %vm462, %v2435, 0
      %v2461 = vsel %vm462, %v2436, 0
      %v2464 = vsel %vm462, %v2437, 0
      %v2467 = vsel %vm462, %v2438, 0
      %v2470 = vsel %vm462, %v2439, 0
      %v2473 = vsel %vm462, %v2440, 0
      %v2476 = vsel %vm462, %v2441, 0
      %v2479 = vsel %vm462, %v2442, 0
      %v2482 = vsel %vm462, %v2443, 0
      %v2485 = vsel %vm462, %v2444, 0
      %v2488 = vsel %vm462, %v2445, 0
      %v2491 = vsel %vm462, %v2446, 0
      %v2494 = vsel %vm462, %v2447, 0
      %2496 = vmatpush.msra.mxu0 0.0
      %2497 = vmatpush.msra.mxu0 0.0
      %2498 = vmatpush.msra.mxu0 0.0
      %2499 = vmatpush.msra.mxu0 0.0
      %2500 = vmatpush.msra.mxu0 0.0
      %2501 = vmatpush.msra.mxu0 0.0
      %2502 = vmatpush.msra.mxu0 0.0
      %2503 = vmatpush.msra.mxu0 0.0
      %2504 = vmatpush.msra.mxu0 %v1167
      %2505 = vmatpush.msra.mxu0 %v1166
      %2506 = vmatpush.msra.mxu0 %v1165
      %2507 = vmatpush.msra.mxu0 %v1164
      %2508 = vmatpush.msra.mxu0 %v1163
      %2509 = vmatpush.msra.mxu0 %v1162
      %2510 = vmatpush.msra.mxu0 %v1161
      %2511 = vmatpush.msra.mxu0 %v1160
      %2512 = vmatmul.f32.gmra.mxu0 %v2449
      %v2513 = vpop.f32.mrf.mxu0
      %v2514 = vadd.f32 0.0, %v2513
      %2515 = vmatmul.f32.gmra.mxu0 %v2452
      %v2516 = vpop.f32.mrf.mxu0
      %v2517 = vadd.f32 0.0, %v2516
      %2518 = vmatmul.f32.gmra.mxu0 %v2455
      %v2519 = vpop.f32.mrf.mxu0
      %v2520 = vadd.f32 0.0, %v2519
      %2521 = vmatmul.f32.gmra.mxu0 %v2458
      %v2522 = vpop.f32.mrf.mxu0
      %v2523 = vadd.f32 0.0, %v2522
      %2524 = vmatmul.f32.gmra.mxu0 %v2461
      %v2525 = vpop.f32.mrf.mxu0
      %v2526 = vadd.f32 0.0, %v2525
      %2527 = vmatmul.f32.gmra.mxu0 %v2464
      %v2528 = vpop.f32.mrf.mxu0
      %v2529 = vadd.f32 0.0, %v2528
      %2530 = vmatmul.f32.gmra.mxu0 %v2467
      %v2531 = vpop.f32.mrf.mxu0
      %v2532 = vadd.f32 0.0, %v2531
      %2533 = vmatmul.f32.gmra.mxu0 %v2470
      %v2534 = vpop.f32.mrf.mxu0
      %v2535 = vadd.f32 0.0, %v2534
      %2536 = vmatmul.f32.gmra.mxu0 %v2473
      %v2537 = vpop.f32.mrf.mxu0
      %v2538 = vadd.f32 0.0, %v2537
      %2539 = vmatmul.f32.gmra.mxu0 %v2476
      %v2540 = vpop.f32.mrf.mxu0
      %v2541 = vadd.f32 0.0, %v2540
      %2542 = vmatmul.f32.gmra.mxu0 %v2479
      %v2543 = vpop.f32.mrf.mxu0
      %v2544 = vadd.f32 0.0, %v2543
      %2545 = vmatmul.f32.gmra.mxu0 %v2482
      %v2546 = vpop.f32.mrf.mxu0
      %v2547 = vadd.f32 0.0, %v2546
      %2548 = vmatmul.f32.gmra.mxu0 %v2485
      %v2549 = vpop.f32.mrf.mxu0
      %v2550 = vadd.f32 0.0, %v2549
      %2551 = vmatmul.f32.gmra.mxu0 %v2488
      %v2552 = vpop.f32.mrf.mxu0
      %v2553 = vadd.f32 0.0, %v2552
      %2554 = vmatmul.f32.gmra.mxu0 %v2491
      %v2555 = vpop.f32.mrf.mxu0
      %v2556 = vadd.f32 0.0, %v2555
      %2557 = vmatmul.f32.gmra.mxu0 %v2494
      %v2558 = vpop.f32.mrf.mxu0
      %v2559 = vadd.f32 0.0, %v2558
      %2560 = vdwg.mxu0
      %v2561 = vadd.f32 %v2385, %v2514
      %v2562 = vadd.f32 %v2388, %v2517
      %v2563 = vadd.f32 %v2391, %v2520
      %v2564 = vadd.f32 %v2394, %v2523
      %v2565 = vadd.f32 %v2397, %v2526
      %v2566 = vadd.f32 %v2400, %v2529
      %v2567 = vadd.f32 %v2403, %v2532
      %v2568 = vadd.f32 %v2406, %v2535
      %v2569 = vadd.f32 %v2409, %v2538
      %v2570 = vadd.f32 %v2412, %v2541
      %v2571 = vadd.f32 %v2415, %v2544
      %v2572 = vadd.f32 %v2418, %v2547
      %v2573 = vadd.f32 %v2421, %v2550
      %v2574 = vadd.f32 %v2424, %v2553
      %v2575 = vadd.f32 %v2427, %v2556
      %v2576 = vadd.f32 %v2430, %v2559
      %2577 = vmatpush.msra.mxu0 0.0
      %2578 = vmatpush.msra.mxu0 0.0
      %2579 = vmatpush.msra.mxu0 0.0
      %2580 = vmatpush.msra.mxu0 0.0
      %2581 = vmatpush.msra.mxu0 0.0
      %2582 = vmatpush.msra.mxu0 0.0
      %2583 = vmatpush.msra.mxu0 0.0
      %2584 = vmatpush.msra.mxu0 0.0
      %2585 = vmatpush.msra.mxu0 %v1337
      %2586 = vmatpush.msra.mxu0 %v1336
      %2587 = vmatpush.msra.mxu0 %v1335
      %2588 = vmatpush.msra.mxu0 %v1334
      %2589 = vmatpush.msra.mxu0 %v1333
      %2590 = vmatpush.msra.mxu0 %v1332
      %2591 = vmatpush.msra.mxu0 %v1331
      %2592 = vmatpush.msra.mxu0 %v1330
      %2593 = vmatmul.f32.gmra.mxu0 %v1525
      %v2594 = vpop.f32.mrf.mxu0
      %v2595 = vadd.f32 0.0, %v2594
      %2596 = vmatmul.f32.gmra.mxu0 %v1528
      %v2597 = vpop.f32.mrf.mxu0
      %v2598 = vadd.f32 0.0, %v2597
      %2599 = vmatmul.f32.gmra.mxu0 %v1531
      %v2600 = vpop.f32.mrf.mxu0
      %v2601 = vadd.f32 0.0, %v2600
      %2602 = vmatmul.f32.gmra.mxu0 %v1534
      %v2603 = vpop.f32.mrf.mxu0
      %v2604 = vadd.f32 0.0, %v2603
      %2605 = vmatmul.f32.gmra.mxu0 %v1537
      %v2606 = vpop.f32.mrf.mxu0
      %v2607 = vadd.f32 0.0, %v2606
      %2608 = vmatmul.f32.gmra.mxu0 %v1540
      %v2609 = vpop.f32.mrf.mxu0
      %v2610 = vadd.f32 0.0, %v2609
      %2611 = vmatmul.f32.gmra.mxu0 %v1543
      %v2612 = vpop.f32.mrf.mxu0
      %v2613 = vadd.f32 0.0, %v2612
      %2614 = vmatmul.f32.gmra.mxu0 %v1546
      %v2615 = vpop.f32.mrf.mxu0
      %v2616 = vadd.f32 0.0, %v2615
      %2617 = vmatmul.f32.gmra.mxu0 %v1549
      %v2618 = vpop.f32.mrf.mxu0
      %v2619 = vadd.f32 0.0, %v2618
      %2620 = vmatmul.f32.gmra.mxu0 %v1552
      %v2621 = vpop.f32.mrf.mxu0
      %v2622 = vadd.f32 0.0, %v2621
      %2623 = vmatmul.f32.gmra.mxu0 %v1555
      %v2624 = vpop.f32.mrf.mxu0
      %v2625 = vadd.f32 0.0, %v2624
      %2626 = vmatmul.f32.gmra.mxu0 %v1558
      %v2627 = vpop.f32.mrf.mxu0
      %v2628 = vadd.f32 0.0, %v2627
      %2629 = vmatmul.f32.gmra.mxu0 %v1561
      %v2630 = vpop.f32.mrf.mxu0
      %v2631 = vadd.f32 0.0, %v2630
      %2632 = vmatmul.f32.gmra.mxu0 %v1564
      %v2633 = vpop.f32.mrf.mxu0
      %v2634 = vadd.f32 0.0, %v2633
      %2635 = vmatmul.f32.gmra.mxu0 %v1567
      %v2636 = vpop.f32.mrf.mxu0
      %v2637 = vadd.f32 0.0, %v2636
      %2638 = vmatmul.f32.gmra.mxu0 %v1570
      %v2639 = vpop.f32.mrf.mxu0
      %v2640 = vadd.f32 0.0, %v2639
      %2641 = vdwg.mxu0
      %v2642 = vadd.f32 %v2561, %v2595
      %v2643 = vadd.f32 %v2562, %v2598
      %v2644 = vadd.f32 %v2563, %v2601
      %v2645 = vadd.f32 %v2564, %v2604
      %v2646 = vadd.f32 %v2565, %v2607
      %v2647 = vadd.f32 %v2566, %v2610
      %v2648 = vadd.f32 %v2567, %v2613
      %v2649 = vadd.f32 %v2568, %v2616
      %v2650 = vadd.f32 %v2569, %v2619
      %v2651 = vadd.f32 %v2570, %v2622
      %v2652 = vadd.f32 %v2571, %v2625
      %v2653 = vadd.f32 %v2572, %v2628
      %v2654 = vadd.f32 %v2573, %v2631
      %v2655 = vadd.f32 %v2574, %v2634
      %v2656 = vadd.f32 %v2575, %v2637
      %v2657 = vadd.f32 %v2576, %v2640
      %2658 = vmatpush.msra.mxu0 0.0
      %2659 = vmatpush.msra.mxu0 0.0
      %2660 = vmatpush.msra.mxu0 0.0
      %2661 = vmatpush.msra.mxu0 0.0
      %2662 = vmatpush.msra.mxu0 0.0
      %2663 = vmatpush.msra.mxu0 0.0
      %2664 = vmatpush.msra.mxu0 0.0
      %2665 = vmatpush.msra.mxu0 0.0
      %2666 = vmatpush.msra.mxu0 %v1523
      %2667 = vmatpush.msra.mxu0 %v1522
      %2668 = vmatpush.msra.mxu0 %v1521
      %2669 = vmatpush.msra.mxu0 %v1520
      %2670 = vmatpush.msra.mxu0 %v1519
      %2671 = vmatpush.msra.mxu0 %v1518
      %2672 = vmatpush.msra.mxu0 %v1517
      %2673 = vmatpush.msra.mxu0 %v1516
      %2674 = vmatmul.f32.gmra.mxu0 %v1694
      %v2675 = vpop.f32.mrf.mxu0
      %v2676 = vadd.f32 0.0, %v2675
      %2677 = vmatmul.f32.gmra.mxu0 %v1696
      %v2678 = vpop.f32.mrf.mxu0
      %v2679 = vadd.f32 0.0, %v2678
      %2680 = vmatmul.f32.gmra.mxu0 %v1698
      %v2681 = vpop.f32.mrf.mxu0
      %v2682 = vadd.f32 0.0, %v2681
      %2683 = vmatmul.f32.gmra.mxu0 %v1700
      %v2684 = vpop.f32.mrf.mxu0
      %v2685 = vadd.f32 0.0, %v2684
      %2686 = vmatmul.f32.gmra.mxu0 %v1702
      %v2687 = vpop.f32.mrf.mxu0
      %v2688 = vadd.f32 0.0, %v2687
      %2689 = vmatmul.f32.gmra.mxu0 %v1704
      %v2690 = vpop.f32.mrf.mxu0
      %v2691 = vadd.f32 0.0, %v2690
      %2692 = vmatmul.f32.gmra.mxu0 %v1706
      %v2693 = vpop.f32.mrf.mxu0
      %v2694 = vadd.f32 0.0, %v2693
      %2695 = vmatmul.f32.gmra.mxu0 %v1708
      %v2696 = vpop.f32.mrf.mxu0
      %v2697 = vadd.f32 0.0, %v2696
      %2698 = vmatmul.f32.gmra.mxu0 %v1710
      %v2699 = vpop.f32.mrf.mxu0
      %v2700 = vadd.f32 0.0, %v2699
      %2701 = vmatmul.f32.gmra.mxu0 %v1712
      %v2702 = vpop.f32.mrf.mxu0
      %v2703 = vadd.f32 0.0, %v2702
      %2704 = vmatmul.f32.gmra.mxu0 %v1714
      %v2705 = vpop.f32.mrf.mxu0
      %v2706 = vadd.f32 0.0, %v2705
      %2707 = vmatmul.f32.gmra.mxu0 %v1716
      %v2708 = vpop.f32.mrf.mxu0
      %v2709 = vadd.f32 0.0, %v2708
      %2710 = vmatmul.f32.gmra.mxu0 %v1718
      %v2711 = vpop.f32.mrf.mxu0
      %v2712 = vadd.f32 0.0, %v2711
      %2713 = vmatmul.f32.gmra.mxu0 %v1720
      %v2714 = vpop.f32.mrf.mxu0
      %v2715 = vadd.f32 0.0, %v2714
      %2716 = vmatmul.f32.gmra.mxu0 %v1722
      %v2717 = vpop.f32.mrf.mxu0
      %v2718 = vadd.f32 0.0, %v2717
      %2719 = vmatmul.f32.gmra.mxu0 %v1724
      %v2720 = vpop.f32.mrf.mxu0
      %v2721 = vadd.f32 0.0, %v2720
      %2722 = vdwg.mxu0
      %v2723 = vadd.f32 %v2642, %v2676
      %v2724 = vadd.f32 %v2643, %v2679
      %v2725 = vadd.f32 %v2644, %v2682
      %v2726 = vadd.f32 %v2645, %v2685
      %v2727 = vadd.f32 %v2646, %v2688
      %v2728 = vadd.f32 %v2647, %v2691
      %v2729 = vadd.f32 %v2648, %v2694
      %v2730 = vadd.f32 %v2649, %v2697
      %v2731 = vadd.f32 %v2650, %v2700
      %v2732 = vadd.f32 %v2651, %v2703
      %v2733 = vadd.f32 %v2652, %v2706
      %v2734 = vadd.f32 %v2653, %v2709
      %v2735 = vadd.f32 %v2654, %v2712
      %v2736 = vadd.f32 %v2655, %v2715
      %v2737 = vadd.f32 %v2656, %v2718
      %v2738 = vadd.f32 %v2657, %v2721
      %v2739 = vld [vmem:[%s641 + $0x9] sm:$0xff]
      %v2740 = vld [vmem:[%s641 + $0x21] sm:$0xff]
      %v2741 = vld [vmem:[%s641 + $0x39] sm:$0xff]
      %v2742 = vld [vmem:[%s641 + $0x51] sm:$0xff]
      %v2743 = vld [vmem:[%s641 + $0x69] sm:$0xff]
      %v2744 = vld [vmem:[%s641 + $0x81] sm:$0xff]
      %v2745 = vld [vmem:[%s641 + $0x99] sm:$0xff]
      %v2746 = vld [vmem:[%s641 + $0xb1] sm:$0xff]
      %v2747 = vld [vmem:[%s641 + $0xc9] sm:$0xff]
      %v2748 = vld [vmem:[%s641 + $0xe1] sm:$0xff]
      %v2749 = vld [vmem:[%s641 + $0xf9] sm:$0xff]
      %v2750 = vld [vmem:[%s641 + $0x111] sm:$0xff]
      %v2751 = vld [vmem:[%s641 + $0x129] sm:$0xff]
      %v2752 = vld [vmem:[%s641 + $0x141] sm:$0xff]
      %v2753 = vld [vmem:[%s641 + $0x159] sm:$0xff]
      %v2754 = vld [vmem:[%s641 + $0x171] sm:$0xff]
      %v2756 = vsel %vm462, %v2739, 0
      %v2759 = vsel %vm462, %v2740, 0
      %v2762 = vsel %vm462, %v2741, 0
      %v2765 = vsel %vm462, %v2742, 0
      %v2768 = vsel %vm462, %v2743, 0
      %v2771 = vsel %vm462, %v2744, 0
      %v2774 = vsel %vm462, %v2745, 0
      %v2777 = vsel %vm462, %v2746, 0
      %v2780 = vsel %vm462, %v2747, 0
      %v2783 = vsel %vm462, %v2748, 0
      %v2786 = vsel %vm462, %v2749, 0
      %v2789 = vsel %vm462, %v2750, 0
      %v2792 = vsel %vm462, %v2751, 0
      %v2795 = vsel %vm462, %v2752, 0
      %v2798 = vsel %vm462, %v2753, 0
      %v2801 = vsel %vm462, %v2754, 0
      %2803 = vmatpush.msra.mxu0 0.0
      %2804 = vmatpush.msra.mxu0 0.0
      %2805 = vmatpush.msra.mxu0 0.0
      %2806 = vmatpush.msra.mxu0 0.0
      %2807 = vmatpush.msra.mxu0 0.0
      %2808 = vmatpush.msra.mxu0 0.0
      %2809 = vmatpush.msra.mxu0 0.0
      %2810 = vmatpush.msra.mxu0 0.0
      %2811 = vmatpush.msra.mxu0 %v1661
      %2812 = vmatpush.msra.mxu0 %v1660
      %2813 = vmatpush.msra.mxu0 %v1659
      %2814 = vmatpush.msra.mxu0 %v1658
      %2815 = vmatpush.msra.mxu0 %v1657
      %2816 = vmatpush.msra.mxu0 %v1656
      %2817 = vmatpush.msra.mxu0 %v1655
      %2818 = vmatpush.msra.mxu0 %v1654
      %2819 = vmatmul.f32.gmra.mxu0 %v2756
      %v2820 = vpop.f32.mrf.mxu0
      %v2821 = vadd.f32 0.0, %v2820
      %2822 = vmatmul.f32.gmra.mxu0 %v2759
      %v2823 = vpop.f32.mrf.mxu0
      %v2824 = vadd.f32 0.0, %v2823
      %2825 = vmatmul.f32.gmra.mxu0 %v2762
      %v2826 = vpop.f32.mrf.mxu0
      %v2827 = vadd.f32 0.0, %v2826
      %2828 = vmatmul.f32.gmra.mxu0 %v2765
      %v2829 = vpop.f32.mrf.mxu0
      %v2830 = vadd.f32 0.0, %v2829
      %2831 = vmatmul.f32.gmra.mxu0 %v2768
      %v2832 = vpop.f32.mrf.mxu0
      %v2833 = vadd.f32 0.0, %v2832
      %2834 = vmatmul.f32.gmra.mxu0 %v2771
      %v2835 = vpop.f32.mrf.mxu0
      %v2836 = vadd.f32 0.0, %v2835
      %2837 = vmatmul.f32.gmra.mxu0 %v2774
      %v2838 = vpop.f32.mrf.mxu0
      %v2839 = vadd.f32 0.0, %v2838
      %2840 = vmatmul.f32.gmra.mxu0 %v2777
      %v2841 = vpop.f32.mrf.mxu0
      %v2842 = vadd.f32 0.0, %v2841
      %2843 = vmatmul.f32.gmra.mxu0 %v2780
      %v2844 = vpop.f32.mrf.mxu0
      %v2845 = vadd.f32 0.0, %v2844
      %2846 = vmatmul.f32.gmra.mxu0 %v2783
      %v2847 = vpop.f32.mrf.mxu0
      %v2848 = vadd.f32 0.0, %v2847
      %2849 = vmatmul.f32.gmra.mxu0 %v2786
      %v2850 = vpop.f32.mrf.mxu0
      %v2851 = vadd.f32 0.0, %v2850
      %2852 = vmatmul.f32.gmra.mxu0 %v2789
      %v2853 = vpop.f32.mrf.mxu0
      %v2854 = vadd.f32 0.0, %v2853
      %2855 = vmatmul.f32.gmra.mxu0 %v2792
      %v2856 = vpop.f32.mrf.mxu0
      %v2857 = vadd.f32 0.0, %v2856
      %2858 = vmatmul.f32.gmra.mxu0 %v2795
      %v2859 = vpop.f32.mrf.mxu0
      %v2860 = vadd.f32 0.0, %v2859
      %2861 = vmatmul.f32.gmra.mxu0 %v2798
      %v2862 = vpop.f32.mrf.mxu0
      %v2863 = vadd.f32 0.0, %v2862
      %2864 = vmatmul.f32.gmra.mxu0 %v2801
      %v2865 = vpop.f32.mrf.mxu0
      %v2866 = vadd.f32 0.0, %v2865
      %2867 = vdwg.mxu0
      %v2868 = vadd.f32 %v2723, %v2821
      %v2869 = vadd.f32 %v2724, %v2824
      %v2870 = vadd.f32 %v2725, %v2827
      %v2871 = vadd.f32 %v2726, %v2830
      %v2872 = vadd.f32 %v2727, %v2833
      %v2873 = vadd.f32 %v2728, %v2836
      %v2874 = vadd.f32 %v2729, %v2839
      %v2875 = vadd.f32 %v2730, %v2842
      %v2876 = vadd.f32 %v2731, %v2845
      %v2877 = vadd.f32 %v2732, %v2848
      %v2878 = vadd.f32 %v2733, %v2851
      %v2879 = vadd.f32 %v2734, %v2854
      %v2880 = vadd.f32 %v2735, %v2857
      %v2881 = vadd.f32 %v2736, %v2860
      %v2882 = vadd.f32 %v2737, %v2863
      %v2883 = vadd.f32 %v2738, %v2866
      %2884 = vmatpush.msra.mxu0 0.0
      %2885 = vmatpush.msra.mxu0 0.0
      %2886 = vmatpush.msra.mxu0 0.0
      %2887 = vmatpush.msra.mxu0 0.0
      %2888 = vmatpush.msra.mxu0 0.0
      %2889 = vmatpush.msra.mxu0 0.0
      %2890 = vmatpush.msra.mxu0 0.0
      %2891 = vmatpush.msra.mxu0 0.0
      %2892 = vmatpush.msra.mxu0 %v1832
      %2893 = vmatpush.msra.mxu0 %v1831
      %2894 = vmatpush.msra.mxu0 %v1830
      %2895 = vmatpush.msra.mxu0 %v1829
      %2896 = vmatpush.msra.mxu0 %v1828
      %2897 = vmatpush.msra.mxu0 %v1827
      %2898 = vmatpush.msra.mxu0 %v1826
      %2899 = vmatpush.msra.mxu0 %v1825
      %2900 = vmatmul.f32.gmra.mxu0 %v2020
      %v2901 = vpop.f32.mrf.mxu0
      %v2902 = vadd.f32 0.0, %v2901
      %2903 = vmatmul.f32.gmra.mxu0 %v2023
      %v2904 = vpop.f32.mrf.mxu0
      %v2905 = vadd.f32 0.0, %v2904
      %2906 = vmatmul.f32.gmra.mxu0 %v2026
      %v2907 = vpop.f32.mrf.mxu0
      %v2908 = vadd.f32 0.0, %v2907
      %2909 = vmatmul.f32.gmra.mxu0 %v2029
      %v2910 = vpop.f32.mrf.mxu0
      %v2911 = vadd.f32 0.0, %v2910
      %2912 = vmatmul.f32.gmra.mxu0 %v2032
      %v2913 = vpop.f32.mrf.mxu0
      %v2914 = vadd.f32 0.0, %v2913
      %2915 = vmatmul.f32.gmra.mxu0 %v2035
      %v2916 = vpop.f32.mrf.mxu0
      %v2917 = vadd.f32 0.0, %v2916
      %2918 = vmatmul.f32.gmra.mxu0 %v2038
      %v2919 = vpop.f32.mrf.mxu0
      %v2920 = vadd.f32 0.0, %v2919
      %2921 = vmatmul.f32.gmra.mxu0 %v2041
      %v2922 = vpop.f32.mrf.mxu0
      %v2923 = vadd.f32 0.0, %v2922
      %2924 = vmatmul.f32.gmra.mxu0 %v2044
      %v2925 = vpop.f32.mrf.mxu0
      %v2926 = vadd.f32 0.0, %v2925
      %2927 = vmatmul.f32.gmra.mxu0 %v2047
      %v2928 = vpop.f32.mrf.mxu0
      %v2929 = vadd.f32 0.0, %v2928
      %2930 = vmatmul.f32.gmra.mxu0 %v2050
      %v2931 = vpop.f32.mrf.mxu0
      %v2932 = vadd.f32 0.0, %v2931
      %2933 = vmatmul.f32.gmra.mxu0 %v2053
      %v2934 = vpop.f32.mrf.mxu0
      %v2935 = vadd.f32 0.0, %v2934
      %2936 = vmatmul.f32.gmra.mxu0 %v2056
      %v2937 = vpop.f32.mrf.mxu0
      %v2938 = vadd.f32 0.0, %v2937
      %2939 = vmatmul.f32.gmra.mxu0 %v2059
      %v2940 = vpop.f32.mrf.mxu0
      %v2941 = vadd.f32 0.0, %v2940
      %2942 = vmatmul.f32.gmra.mxu0 %v2062
      %v2943 = vpop.f32.mrf.mxu0
      %v2944 = vadd.f32 0.0, %v2943
      %2945 = vmatmul.f32.gmra.mxu0 %v2065
      %v2946 = vpop.f32.mrf.mxu0
      %v2947 = vadd.f32 0.0, %v2946
      %2948 = vdwg.mxu0
      %v2949 = vadd.f32 %v2868, %v2902
      %v2950 = vadd.f32 %v2869, %v2905
      %v2951 = vadd.f32 %v2870, %v2908
      %v2952 = vadd.f32 %v2871, %v2911
      %v2953 = vadd.f32 %v2872, %v2914
      %v2954 = vadd.f32 %v2873, %v2917
      %v2955 = vadd.f32 %v2874, %v2920
      %v2956 = vadd.f32 %v2875, %v2923
      %v2957 = vadd.f32 %v2876, %v2926
      %v2958 = vadd.f32 %v2877, %v2929
      %v2959 = vadd.f32 %v2878, %v2932
      %v2960 = vadd.f32 %v2879, %v2935
      %v2961 = vadd.f32 %v2880, %v2938
      %v2962 = vadd.f32 %v2881, %v2941
      %v2963 = vadd.f32 %v2882, %v2944
      %v2964 = vadd.f32 %v2883, %v2947
      %2965 = vmatpush.msra.mxu0 0.0
      %2966 = vmatpush.msra.mxu0 0.0
      %2967 = vmatpush.msra.mxu0 0.0
      %2968 = vmatpush.msra.mxu0 0.0
      %2969 = vmatpush.msra.mxu0 0.0
      %2970 = vmatpush.msra.mxu0 0.0
      %2971 = vmatpush.msra.mxu0 0.0
      %2972 = vmatpush.msra.mxu0 0.0
      %2973 = vmatpush.msra.mxu0 %v2018
      %2974 = vmatpush.msra.mxu0 %v2017
      %2975 = vmatpush.msra.mxu0 %v2016
      %2976 = vmatpush.msra.mxu0 %v2015
      %2977 = vmatpush.msra.mxu0 %v2014
      %2978 = vmatpush.msra.mxu0 %v2013
      %2979 = vmatpush.msra.mxu0 %v2012
      %2980 = vmatpush.msra.mxu0 %v2011
      %2981 = vmatmul.f32.gmra.mxu0 %v2189
      %v2982 = vpop.f32.mrf.mxu0
      %v2983 = vadd.f32 0.0, %v2982
      %2984 = vmatmul.f32.gmra.mxu0 %v2191
      %v2985 = vpop.f32.mrf.mxu0
      %v2986 = vadd.f32 0.0, %v2985
      %2987 = vmatmul.f32.gmra.mxu0 %v2193
      %v2988 = vpop.f32.mrf.mxu0
      %v2989 = vadd.f32 0.0, %v2988
      %2990 = vmatmul.f32.gmra.mxu0 %v2195
      %v2991 = vpop.f32.mrf.mxu0
      %v2992 = vadd.f32 0.0, %v2991
      %2993 = vmatmul.f32.gmra.mxu0 %v2197
      %v2994 = vpop.f32.mrf.mxu0
      %v2995 = vadd.f32 0.0, %v2994
      %2996 = vmatmul.f32.gmra.mxu0 %v2199
      %v2997 = vpop.f32.mrf.mxu0
      %v2998 = vadd.f32 0.0, %v2997
      %2999 = vmatmul.f32.gmra.mxu0 %v2201
      %v3000 = vpop.f32.mrf.mxu0
      %v3001 = vadd.f32 0.0, %v3000
      %3002 = vmatmul.f32.gmra.mxu0 %v2203
      %v3003 = vpop.f32.mrf.mxu0
      %v3004 = vadd.f32 0.0, %v3003
      %3005 = vmatmul.f32.gmra.mxu0 %v2205
      %v3006 = vpop.f32.mrf.mxu0
      %v3007 = vadd.f32 0.0, %v3006
      %3008 = vmatmul.f32.gmra.mxu0 %v2207
      %v3009 = vpop.f32.mrf.mxu0
      %v3010 = vadd.f32 0.0, %v3009
      %3011 = vmatmul.f32.gmra.mxu0 %v2209
      %v3012 = vpop.f32.mrf.mxu0
      %v3013 = vadd.f32 0.0, %v3012
      %3014 = vmatmul.f32.gmra.mxu0 %v2211
      %v3015 = vpop.f32.mrf.mxu0
      %v3016 = vadd.f32 0.0, %v3015
      %3017 = vmatmul.f32.gmra.mxu0 %v2213
      %v3018 = vpop.f32.mrf.mxu0
      %v3019 = vadd.f32 0.0, %v3018
      %3020 = vmatmul.f32.gmra.mxu0 %v2215
      %v3021 = vpop.f32.mrf.mxu0
      %v3022 = vadd.f32 0.0, %v3021
      %3023 = vmatmul.f32.gmra.mxu0 %v2217
      %v3024 = vpop.f32.mrf.mxu0
      %v3025 = vadd.f32 0.0, %v3024
      %3026 = vmatmul.f32.gmra.mxu0 %v2219
      %v3027 = vpop.f32.mrf.mxu0
      %v3028 = vadd.f32 0.0, %v3027
      %3029 = vdwg.mxu0
      %v3030 = vadd.f32 %v2949, %v2983
      %v3031 = vadd.f32 %v2950, %v2986
      %v3032 = vadd.f32 %v2951, %v2989
      %v3033 = vadd.f32 %v2952, %v2992
      %v3034 = vadd.f32 %v2953, %v2995
      %v3035 = vadd.f32 %v2954, %v2998
      %v3036 = vadd.f32 %v2955, %v3001
      %v3037 = vadd.f32 %v2956, %v3004
      %v3038 = vadd.f32 %v2957, %v3007
      %v3039 = vadd.f32 %v2958, %v3010
      %v3040 = vadd.f32 %v2959, %v3013
      %v3041 = vadd.f32 %v2960, %v3016
      %v3042 = vadd.f32 %v2961, %v3019
      %v3043 = vadd.f32 %v2962, %v3022
      %v3044 = vadd.f32 %v2963, %v3025
      %v3045 = vadd.f32 %v2964, %v3028
      %v3046 = vld [vmem:[%s1807 + $0x9] sm:$0xff]
      %v3047 = vld [vmem:[%s1807 + $0x21] sm:$0xff]
      %v3048 = vld [vmem:[%s1807 + $0x39] sm:$0xff]
      %v3049 = vld [vmem:[%s1807 + $0x51] sm:$0xff]
      %v3050 = vld [vmem:[%s1807 + $0x69] sm:$0xff]
      %v3051 = vld [vmem:[%s1807 + $0x81] sm:$0xff]
      %v3052 = vld [vmem:[%s1807 + $0x99] sm:$0xff]
      %v3053 = vld [vmem:[%s1807 + $0xb1] sm:$0xff]
      %v3054 = vld [vmem:[%s1807 + $0xc9] sm:$0xff]
      %v3055 = vld [vmem:[%s1807 + $0xe1] sm:$0xff]
      %v3056 = vld [vmem:[%s1807 + $0xf9] sm:$0xff]
      %v3057 = vld [vmem:[%s1807 + $0x111] sm:$0xff]
      %v3058 = vld [vmem:[%s1807 + $0x129] sm:$0xff]
      %v3059 = vld [vmem:[%s1807 + $0x141] sm:$0xff]
      %v3060 = vld [vmem:[%s1807 + $0x159] sm:$0xff]
      %v3061 = vld [vmem:[%s1807 + $0x171] sm:$0xff]
      %v3063 = vsel %vm462, %v3046, 0
      %v3066 = vsel %vm462, %v3047, 0
      %v3069 = vsel %vm462, %v3048, 0
      %v3072 = vsel %vm462, %v3049, 0
      %v3075 = vsel %vm462, %v3050, 0
      %v3078 = vsel %vm462, %v3051, 0
      %v3081 = vsel %vm462, %v3052, 0
      %v3084 = vsel %vm462, %v3053, 0
      %v3087 = vsel %vm462, %v3054, 0
      %v3090 = vsel %vm462, %v3055, 0
      %v3093 = vsel %vm462, %v3056, 0
      %v3096 = vsel %vm462, %v3057, 0
      %v3099 = vsel %vm462, %v3058, 0
      %v3102 = vsel %vm462, %v3059, 0
      %v3105 = vsel %vm462, %v3060, 0
      %v3108 = vsel %vm462, %v3061, 0
      %3110 = vmatpush.msra.mxu0 0.0
      %3111 = vmatpush.msra.mxu0 0.0
      %3112 = vmatpush.msra.mxu0 0.0
      %3113 = vmatpush.msra.mxu0 0.0
      %3114 = vmatpush.msra.mxu0 0.0
      %3115 = vmatpush.msra.mxu0 0.0
      %3116 = vmatpush.msra.mxu0 0.0
      %3117 = vmatpush.msra.mxu0 0.0
      %3118 = vmatpush.msra.mxu0 %v2156
      %3119 = vmatpush.msra.mxu0 %v2155
      %3120 = vmatpush.msra.mxu0 %v2154
      %3121 = vmatpush.msra.mxu0 %v2153
      %3122 = vmatpush.msra.mxu0 %v2152
      %3123 = vmatpush.msra.mxu0 %v2151
      %3124 = vmatpush.msra.mxu0 %v2150
      %3125 = vmatpush.msra.mxu0 %v2149
      %3126 = vmatmul.f32.gmra.mxu0 %v3063
      %v3127 = vpop.f32.mrf.mxu0
      %v3128 = vadd.f32 0.0, %v3127
      %3129 = vmatmul.f32.gmra.mxu0 %v3066
      %v3130 = vpop.f32.mrf.mxu0
      %v3131 = vadd.f32 0.0, %v3130
      %3132 = vmatmul.f32.gmra.mxu0 %v3069
      %v3133 = vpop.f32.mrf.mxu0
      %v3134 = vadd.f32 0.0, %v3133
      %3135 = vmatmul.f32.gmra.mxu0 %v3072
      %v3136 = vpop.f32.mrf.mxu0
      %v3137 = vadd.f32 0.0, %v3136
      %3138 = vmatmul.f32.gmra.mxu0 %v3075
      %v3139 = vpop.f32.mrf.mxu0
      %v3140 = vadd.f32 0.0, %v3139
      %3141 = vmatmul.f32.gmra.mxu0 %v3078
      %v3142 = vpop.f32.mrf.mxu0
      %v3143 = vadd.f32 0.0, %v3142
      %3144 = vmatmul.f32.gmra.mxu0 %v3081
      %v3145 = vpop.f32.mrf.mxu0
      %v3146 = vadd.f32 0.0, %v3145
      %3147 = vmatmul.f32.gmra.mxu0 %v3084
      %v3148 = vpop.f32.mrf.mxu0
      %v3149 = vadd.f32 0.0, %v3148
      %3150 = vmatmul.f32.gmra.mxu0 %v3087
      %v3151 = vpop.f32.mrf.mxu0
      %v3152 = vadd.f32 0.0, %v3151
      %3153 = vmatmul.f32.gmra.mxu0 %v3090
      %v3154 = vpop.f32.mrf.mxu0
      %v3155 = vadd.f32 0.0, %v3154
      %3156 = vmatmul.f32.gmra.mxu0 %v3093
      %v3157 = vpop.f32.mrf.mxu0
      %v3158 = vadd.f32 0.0, %v3157
      %3159 = vmatmul.f32.gmra.mxu0 %v3096
      %v3160 = vpop.f32.mrf.mxu0
      %v3161 = vadd.f32 0.0, %v3160
      %3162 = vmatmul.f32.gmra.mxu0 %v3099
      %v3163 = vpop.f32.mrf.mxu0
      %v3164 = vadd.f32 0.0, %v3163
      %3165 = vmatmul.f32.gmra.mxu0 %v3102
      %v3166 = vpop.f32.mrf.mxu0
      %v3167 = vadd.f32 0.0, %v3166
      %3168 = vmatmul.f32.gmra.mxu0 %v3105
      %v3169 = vpop.f32.mrf.mxu0
      %v3170 = vadd.f32 0.0, %v3169
      %3171 = vmatmul.f32.gmra.mxu0 %v3108
      %v3172 = vpop.f32.mrf.mxu0
      %v3173 = vadd.f32 0.0, %v3172
      %3174 = vdwg.mxu0
      %v3175 = vadd.f32 %v3030, %v3128
      %v3176 = vadd.f32 %v3031, %v3131
      %v3177 = vadd.f32 %v3032, %v3134
      %v3178 = vadd.f32 %v3033, %v3137
      %v3179 = vadd.f32 %v3034, %v3140
      %v3180 = vadd.f32 %v3035, %v3143
      %v3181 = vadd.f32 %v3036, %v3146
      %v3182 = vadd.f32 %v3037, %v3149
      %v3183 = vadd.f32 %v3038, %v3152
      %v3184 = vadd.f32 %v3039, %v3155
      %v3185 = vadd.f32 %v3040, %v3158
      %v3186 = vadd.f32 %v3041, %v3161
      %v3187 = vadd.f32 %v3042, %v3164
      %v3188 = vadd.f32 %v3043, %v3167
      %v3189 = vadd.f32 %v3044, %v3170
      %v3190 = vadd.f32 %v3045, %v3173
      %v3191 = vld [vmem:[%s5] sm:$0x1]
      %v3193 = vperm.slane %v3191, 0
      %v3195 = vadd.f32 %v2286, %v3193
      %v3196 = vadd.f32 %v2287, %v3193
      %v3197 = vadd.f32 %v2288, %v3193
      %v3198 = vadd.f32 %v2289, %v3193
      %v3199 = vadd.f32 %v2290, %v3193
      %v3200 = vadd.f32 %v2291, %v3193
      %v3201 = vadd.f32 %v2292, %v3193
      %v3202 = vadd.f32 %v2293, %v3193
      %v3203 = vadd.f32 %v2294, %v3193
      %v3204 = vadd.f32 %v2295, %v3193
      %v3205 = vadd.f32 %v2296, %v3193
      %v3206 = vadd.f32 %v2297, %v3193
      %v3207 = vadd.f32 %v2298, %v3193
      %v3208 = vadd.f32 %v2299, %v3193
      %v3209 = vadd.f32 %v2300, %v3193
      %v3210 = vadd.f32 %v2301, %v3193
      %v3211 = vmax.f32 %v3195, 0.0
      %v3212 = vmax.f32 %v3196, 0.0
      %v3213 = vmax.f32 %v3197, 0.0
      %v3214 = vmax.f32 %v3198, 0.0
      %v3215 = vmax.f32 %v3199, 0.0
      %v3216 = vmax.f32 %v3200, 0.0
      %v3217 = vmax.f32 %v3201, 0.0
      %v3218 = vmax.f32 %v3202, 0.0
      %v3219 = vmax.f32 %v3203, 0.0
      %v3220 = vmax.f32 %v3204, 0.0
      %v3221 = vmax.f32 %v3205, 0.0
      %v3222 = vmax.f32 %v3206, 0.0
      %v3223 = vmax.f32 %v3207, 0.0
      %v3224 = vmax.f32 %v3208, 0.0
      %v3225 = vmax.f32 %v3209, 0.0
      %v3226 = vmax.f32 %v3210, 0.0
      %s3227 = scalar_lea.vmem [#allocation3], 24
      %vm3228 = vcmask 261120
      %3229 = vst.msk [vmem:[%s3227 + $0x8] sm:$0xff] %vm3228, %v3211
      %3230 = vst.msk [vmem:[%s3227 + $0x20] sm:$0xff] %vm3228, %v3212
      %3231 = vst.msk [vmem:[%s3227 + $0x38] sm:$0xff] %vm3228, %v3213
      %3232 = vst.msk [vmem:[%s3227 + $0x50] sm:$0xff] %vm3228, %v3214
      %3233 = vst.msk [vmem:[%s3227 + $0x68] sm:$0xff] %vm3228, %v3215
      %3234 = vst.msk [vmem:[%s3227 + $0x80] sm:$0xff] %vm3228, %v3216
      %3235 = vst.msk [vmem:[%s3227 + $0x98] sm:$0xff] %vm3228, %v3217
      %3236 = vst.msk [vmem:[%s3227 + $0xb0] sm:$0xff] %vm3228, %v3218
      %3237 = vst.msk [vmem:[%s3227 + $0xc8] sm:$0xff] %vm3228, %v3219
      %3238 = vst.msk [vmem:[%s3227 + $0xe0] sm:$0xff] %vm3228, %v3220
      %3239 = vst.msk [vmem:[%s3227 + $0xf8] sm:$0xff] %vm3228, %v3221
      %3240 = vst.msk [vmem:[%s3227 + $0x110] sm:$0xff] %vm3228, %v3222
      %3241 = vst.msk [vmem:[%s3227 + $0x128] sm:$0xff] %vm3228, %v3223
      %3242 = vst.msk [vmem:[%s3227 + $0x140] sm:$0xff] %vm3228, %v3224
      %3243 = vst.msk [vmem:[%s3227 + $0x158] sm:$0xff] %vm3228, %v3225
      %3244 = vst.msk [vmem:[%s3227 + $0x170] sm:$0xff] %vm3228, %v3226
      %v3245 = vld [vmem:[%s5] sm:$0x1]
      %v3247 = vperm.slane %v3245, 0
      %v3249 = vadd.f32 %v3175, %v3247
      %v3250 = vadd.f32 %v3176, %v3247
      %v3251 = vadd.f32 %v3177, %v3247
      %v3252 = vadd.f32 %v3178, %v3247
      %v3253 = vadd.f32 %v3179, %v3247
      %v3254 = vadd.f32 %v3180, %v3247
      %v3255 = vadd.f32 %v3181, %v3247
      %v3256 = vadd.f32 %v3182, %v3247
      %v3257 = vadd.f32 %v3183, %v3247
      %v3258 = vadd.f32 %v3184, %v3247
      %v3259 = vadd.f32 %v3185, %v3247
      %v3260 = vadd.f32 %v3186, %v3247
      %v3261 = vadd.f32 %v3187, %v3247
      %v3262 = vadd.f32 %v3188, %v3247
      %v3263 = vadd.f32 %v3189, %v3247
      %v3264 = vadd.f32 %v3190, %v3247
      %v3265 = vmax.f32 %v3249, 0.0
      %v3266 = vmax.f32 %v3250, 0.0
      %v3267 = vmax.f32 %v3251, 0.0
      %v3268 = vmax.f32 %v3252, 0.0
      %v3269 = vmax.f32 %v3253, 0.0
      %v3270 = vmax.f32 %v3254, 0.0
      %v3271 = vmax.f32 %v3255, 0.0
      %v3272 = vmax.f32 %v3256, 0.0
      %v3273 = vmax.f32 %v3257, 0.0
      %v3274 = vmax.f32 %v3258, 0.0
      %v3275 = vmax.f32 %v3259, 0.0
      %v3276 = vmax.f32 %v3260, 0.0
      %v3277 = vmax.f32 %v3261, 0.0
      %v3278 = vmax.f32 %v3262, 0.0
      %v3279 = vmax.f32 %v3263, 0.0
      %v3280 = vmax.f32 %v3264, 0.0
      %3297 = vrot.lane.b32.xlu0 %v3265, 32
      %v3298 = vpop.permute.xlu0 %3297
      %3299 = vrot.lane.b32.xlu0 %v3266, 32
      %v3300 = vpop.permute.xlu0 %3299
      %3301 = vrot.lane.b32.xlu0 %v3267, 32
      %v3302 = vpop.permute.xlu0 %3301
      %3303 = vrot.lane.b32.xlu0 %v3268, 32
      %v3304 = vpop.permute.xlu0 %3303
      %3305 = vrot.lane.b32.xlu0 %v3269, 32
      %v3306 = vpop.permute.xlu0 %3305
      %3307 = vrot.lane.b32.xlu0 %v3270, 32
      %v3308 = vpop.permute.xlu0 %3307
      %3309 = vrot.lane.b32.xlu0 %v3271, 32
      %v3310 = vpop.permute.xlu0 %3309
      %3311 = vrot.lane.b32.xlu0 %v3272, 32
      %v3312 = vpop.permute.xlu0 %3311
      %3313 = vrot.lane.b32.xlu0 %v3273, 32
      %v3314 = vpop.permute.xlu0 %3313
      %3315 = vrot.lane.b32.xlu0 %v3274, 32
      %v3316 = vpop.permute.xlu0 %3315
      %3317 = vrot.lane.b32.xlu0 %v3275, 32
      %v3318 = vpop.permute.xlu0 %3317
      %3319 = vrot.lane.b32.xlu0 %v3276, 32
      %v3320 = vpop.permute.xlu0 %3319
      %3321 = vrot.lane.b32.xlu0 %v3277, 32
      %v3322 = vpop.permute.xlu0 %3321
      %3323 = vrot.lane.b32.xlu0 %v3278, 32
      %v3324 = vpop.permute.xlu0 %3323
      %3325 = vrot.lane.b32.xlu0 %v3279, 32
      %v3326 = vpop.permute.xlu0 %3325
      %3327 = vrot.lane.b32.xlu0 %v3280, 32
      %v3328 = vpop.permute.xlu0 %3327
      %3345 = vst.msk [vmem:[%s3227 + $0x8] sm:$0xff] %vm738, %v3298
      %3346 = vst.msk [vmem:[%s3227 + $0x20] sm:$0xff] %vm738, %v3300
      %3347 = vst.msk [vmem:[%s3227 + $0x38] sm:$0xff] %vm738, %v3302
      %3348 = vst.msk [vmem:[%s3227 + $0x50] sm:$0xff] %vm738, %v3304
      %3349 = vst.msk [vmem:[%s3227 + $0x68] sm:$0xff] %vm738, %v3306
      %3350 = vst.msk [vmem:[%s3227 + $0x80] sm:$0xff] %vm738, %v3308
      %3351 = vst.msk [vmem:[%s3227 + $0x98] sm:$0xff] %vm738, %v3310
      %3352 = vst.msk [vmem:[%s3227 + $0xb0] sm:$0xff] %vm738, %v3312
      %3353 = vst.msk [vmem:[%s3227 + $0xc8] sm:$0xff] %vm738, %v3314
      %3354 = vst.msk [vmem:[%s3227 + $0xe0] sm:$0xff] %vm738, %v3316
      %3355 = vst.msk [vmem:[%s3227 + $0xf8] sm:$0xff] %vm738, %v3318
      %3356 = vst.msk [vmem:[%s3227 + $0x110] sm:$0xff] %vm738, %v3320
      %3357 = vst.msk [vmem:[%s3227 + $0x128] sm:$0xff] %vm738, %v3322
      %3358 = vst.msk [vmem:[%s3227 + $0x140] sm:$0xff] %vm738, %v3324
      %3359 = vst.msk [vmem:[%s3227 + $0x158] sm:$0xff] %vm738, %v3326
      %3360 = vst.msk [vmem:[%s3227 + $0x170] sm:$0xff] %vm738, %v3328
      %v3361 = vld [vmem:[#allocation3 + $0x7] sm:$0xff]
      %v3362 = vld [vmem:[#allocation3 + $0x1f] sm:$0xff]
      %v3363 = vld [vmem:[#allocation3 + $0x37] sm:$0xff]
      %v3364 = vld [vmem:[#allocation3 + $0x4f] sm:$0xff]
      %v3365 = vld [vmem:[#allocation3 + $0x67] sm:$0xff]
      %v3366 = vld [vmem:[#allocation3 + $0x7f] sm:$0xff]
      %v3367 = vld [vmem:[#allocation3 + $0x97] sm:$0xff]
      %v3368 = vld [vmem:[#allocation3 + $0xaf] sm:$0xff]
      %v3369 = vld [vmem:[#allocation3 + $0xc7] sm:$0xff]
      %v3370 = vld [vmem:[#allocation3 + $0xdf] sm:$0xff]
      %v3371 = vld [vmem:[#allocation3 + $0xf7] sm:$0xff]
      %v3372 = vld [vmem:[#allocation3 + $0x10f] sm:$0xff]
      %v3373 = vld [vmem:[#allocation3 + $0x127] sm:$0xff]
      %v3374 = vld [vmem:[#allocation3 + $0x13f] sm:$0xff]
      %v3375 = vld [vmem:[#allocation3 + $0x157] sm:$0xff]
      %v3376 = vld [vmem:[#allocation3 + $0x16f] sm:$0xff]
      %v3377 = vld [vmem:[%s6] sm:$0xff]
      %v3378 = vld [vmem:[%s6 + $0x8] sm:$0xff]
      %v3379 = vld [vmem:[%s6 + $0x10] sm:$0xff]
      %v3380 = vld [vmem:[%s6 + $0x18] sm:$0xff]
      %v3381 = vld [vmem:[#allocation3 + $0x8] sm:$0xff]
      %v3382 = vld [vmem:[#allocation3 + $0x20] sm:$0xff]
      %v3383 = vld [vmem:[#allocation3 + $0x38] sm:$0xff]
      %v3384 = vld [vmem:[#allocation3 + $0x50] sm:$0xff]
      %v3385 = vld [vmem:[#allocation3 + $0x68] sm:$0xff]
      %v3386 = vld [vmem:[#allocation3 + $0x80] sm:$0xff]
      %v3387 = vld [vmem:[#allocation3 + $0x98] sm:$0xff]
      %v3388 = vld [vmem:[#allocation3 + $0xb0] sm:$0xff]
      %v3389 = vld [vmem:[#allocation3 + $0xc8] sm:$0xff]
      %v3390 = vld [vmem:[#allocation3 + $0xe0] sm:$0xff]
      %v3391 = vld [vmem:[#allocation3 + $0xf8] sm:$0xff]
      %v3392 = vld [vmem:[#allocation3 + $0x110] sm:$0xff]
      %v3393 = vld [vmem:[#allocation3 + $0x128] sm:$0xff]
      %v3394 = vld [vmem:[#allocation3 + $0x140] sm:$0xff]
      %v3395 = vld [vmem:[#allocation3 + $0x158] sm:$0xff]
      %v3396 = vld [vmem:[#allocation3 + $0x170] sm:$0xff]
      %s3397 = scalar_lea.vmem %s6, 32
      %v3398 = vld [vmem:[%s3397] sm:$0xff]
      %v3399 = vld [vmem:[%s3397 + $0x8] sm:$0xff]
      %v3400 = vld [vmem:[%s3397 + $0x10] sm:$0xff]
      %v3401 = vld [vmem:[%s3397 + $0x18] sm:$0xff]
      %v3403 = vsel %vm3228, %v3381, 0
      %v3406 = vsel %vm3228, %v3382, 0
      %v3409 = vsel %vm3228, %v3383, 0
      %v3412 = vsel %vm3228, %v3384, 0
      %v3415 = vsel %vm3228, %v3385, 0
      %v3418 = vsel %vm3228, %v3386, 0
      %v3421 = vsel %vm3228, %v3387, 0
      %v3424 = vsel %vm3228, %v3388, 0
      %v3427 = vsel %vm3228, %v3389, 0
      %v3430 = vsel %vm3228, %v3390, 0
      %v3433 = vsel %vm3228, %v3391, 0
      %v3436 = vsel %vm3228, %v3392, 0
      %v3439 = vsel %vm3228, %v3393, 0
      %v3442 = vsel %vm3228, %v3394, 0
      %v3445 = vsel %vm3228, %v3395, 0
      %v3448 = vsel %vm3228, %v3396, 0
      %3450 = vmatpush.msra.mxu0 0.0
      %3451 = vmatpush.msra.mxu0 0.0
      %3452 = vmatpush.msra.mxu0 0.0
      %3453 = vmatpush.msra.mxu0 0.0
      %3454 = vmatpush.msra.mxu0 0.0
      %3455 = vmatpush.msra.mxu0 0.0
      %3456 = vmatpush.msra.mxu0 0.0
      %3457 = vmatpush.msra.mxu0 0.0
      %3458 = vmatpush.msra.mxu0 0.0
      %3459 = vmatpush.msra.mxu0 0.0
      %3460 = vmatpush.msra.mxu0 0.0
      %3461 = vmatpush.msra.mxu0 0.0
      %3462 = vmatpush.msra.mxu0 %v3401
      %3463 = vmatpush.msra.mxu0 %v3400
      %3464 = vmatpush.msra.mxu0 %v3399
      %3465 = vmatpush.msra.mxu0 %v3398
      %3466 = vmatmul.f32.gmra.mxu0 %v3403
      %v3467 = vpop.f32.mrf.mxu0
      %v3468 = vadd.f32 0.0, %v3467
      %3469 = vmatmul.f32.gmra.mxu0 %v3406
      %v3470 = vpop.f32.mrf.mxu0
      %v3471 = vadd.f32 0.0, %v3470
      %3472 = vmatmul.f32.gmra.mxu0 %v3409
      %v3473 = vpop.f32.mrf.mxu0
      %v3474 = vadd.f32 0.0, %v3473
      %3475 = vmatmul.f32.gmra.mxu0 %v3412
      %v3476 = vpop.f32.mrf.mxu0
      %v3477 = vadd.f32 0.0, %v3476
      %3478 = vmatmul.f32.gmra.mxu0 %v3415
      %v3479 = vpop.f32.mrf.mxu0
      %v3480 = vadd.f32 0.0, %v3479
      %3481 = vmatmul.f32.gmra.mxu0 %v3418
      %v3482 = vpop.f32.mrf.mxu0
      %v3483 = vadd.f32 0.0, %v3482
      %3484 = vmatmul.f32.gmra.mxu0 %v3421
      %v3485 = vpop.f32.mrf.mxu0
      %v3486 = vadd.f32 0.0, %v3485
      %3487 = vmatmul.f32.gmra.mxu0 %v3424
      %v3488 = vpop.f32.mrf.mxu0
      %v3489 = vadd.f32 0.0, %v3488
      %3490 = vmatmul.f32.gmra.mxu0 %v3427
      %v3491 = vpop.f32.mrf.mxu0
      %v3492 = vadd.f32 0.0, %v3491
      %3493 = vmatmul.f32.gmra.mxu0 %v3430
      %v3494 = vpop.f32.mrf.mxu0
      %v3495 = vadd.f32 0.0, %v3494
      %3496 = vmatmul.f32.gmra.mxu0 %v3433
      %v3497 = vpop.f32.mrf.mxu0
      %v3498 = vadd.f32 0.0, %v3497
      %3499 = vmatmul.f32.gmra.mxu0 %v3436
      %v3500 = vpop.f32.mrf.mxu0
      %v3501 = vadd.f32 0.0, %v3500
      %3502 = vmatmul.f32.gmra.mxu0 %v3439
      %v3503 = vpop.f32.mrf.mxu0
      %v3504 = vadd.f32 0.0, %v3503
      %3505 = vmatmul.f32.gmra.mxu0 %v3442
      %v3506 = vpop.f32.mrf.mxu0
      %v3507 = vadd.f32 0.0, %v3506
      %3508 = vmatmul.f32.gmra.mxu0 %v3445
      %v3509 = vpop.f32.mrf.mxu0
      %v3510 = vadd.f32 0.0, %v3509
      %3511 = vmatmul.f32.gmra.mxu0 %v3448
      %v3512 = vpop.f32.mrf.mxu0
      %v3513 = vadd.f32 0.0, %v3512
      %3514 = vdwg.mxu0
      %3531 = vrot.lane.b32.xlu0 %v3361, 96
      %v3532 = vpop.permute.xlu0 %3531
      %3533 = vrot.lane.b32.xlu0 %v3362, 96
      %v3534 = vpop.permute.xlu0 %3533
      %3535 = vrot.lane.b32.xlu0 %v3363, 96
      %v3536 = vpop.permute.xlu0 %3535
      %3537 = vrot.lane.b32.xlu0 %v3364, 96
      %v3538 = vpop.permute.xlu0 %3537
      %3539 = vrot.lane.b32.xlu0 %v3365, 96
      %v3540 = vpop.permute.xlu0 %3539
      %3541 = vrot.lane.b32.xlu0 %v3366, 96
      %v3542 = vpop.permute.xlu0 %3541
      %3543 = vrot.lane.b32.xlu0 %v3367, 96
      %v3544 = vpop.permute.xlu0 %3543
      %3545 = vrot.lane.b32.xlu0 %v3368, 96
      %v3546 = vpop.permute.xlu0 %3545
      %3547 = vrot.lane.b32.xlu0 %v3369, 96
      %v3548 = vpop.permute.xlu0 %3547
      %3549 = vrot.lane.b32.xlu0 %v3370, 96
      %v3550 = vpop.permute.xlu0 %3549
      %3551 = vrot.lane.b32.xlu0 %v3371, 96
      %v3552 = vpop.permute.xlu0 %3551
      %3553 = vrot.lane.b32.xlu0 %v3372, 96
      %v3554 = vpop.permute.xlu0 %3553
      %3555 = vrot.lane.b32.xlu0 %v3373, 96
      %v3556 = vpop.permute.xlu0 %3555
      %3557 = vrot.lane.b32.xlu0 %v3374, 96
      %v3558 = vpop.permute.xlu0 %3557
      %3559 = vrot.lane.b32.xlu0 %v3375, 96
      %v3560 = vpop.permute.xlu0 %3559
      %3561 = vrot.lane.b32.xlu0 %v3376, 96
      %v3562 = vpop.permute.xlu0 %3561
      %v3563 = vsel %vm3228, %v3532, 0
      %v3565 = vsel %vm3228, %v3534, 0
      %v3567 = vsel %vm3228, %v3536, 0
      %v3569 = vsel %vm3228, %v3538, 0
      %v3571 = vsel %vm3228, %v3540, 0
      %v3573 = vsel %vm3228, %v3542, 0
      %v3575 = vsel %vm3228, %v3544, 0
      %v3577 = vsel %vm3228, %v3546, 0
      %v3579 = vsel %vm3228, %v3548, 0
      %v3581 = vsel %vm3228, %v3550, 0
      %v3583 = vsel %vm3228, %v3552, 0
      %v3585 = vsel %vm3228, %v3554, 0
      %v3587 = vsel %vm3228, %v3556, 0
      %v3589 = vsel %vm3228, %v3558, 0
      %v3591 = vsel %vm3228, %v3560, 0
      %v3593 = vsel %vm3228, %v3562, 0
      %3595 = vmatpush.msra.mxu0 0.0
      %3596 = vmatpush.msra.mxu0 0.0
      %3597 = vmatpush.msra.mxu0 0.0
      %3598 = vmatpush.msra.mxu0 0.0
      %3599 = vmatpush.msra.mxu0 0.0
      %3600 = vmatpush.msra.mxu0 0.0
      %3601 = vmatpush.msra.mxu0 0.0
      %3602 = vmatpush.msra.mxu0 0.0
      %3603 = vmatpush.msra.mxu0 0.0
      %3604 = vmatpush.msra.mxu0 0.0
      %3605 = vmatpush.msra.mxu0 0.0
      %3606 = vmatpush.msra.mxu0 0.0
      %3607 = vmatpush.msra.mxu0 %v3380
      %3608 = vmatpush.msra.mxu0 %v3379
      %3609 = vmatpush.msra.mxu0 %v3378
      %3610 = vmatpush.msra.mxu0 %v3377
      %3611 = vmatmul.f32.gmra.mxu0 %v3563
      %v3612 = vpop.f32.mrf.mxu0
      %v3613 = vadd.f32 %v3468, %v3612
      %3614 = vmatmul.f32.gmra.mxu0 %v3565
      %v3615 = vpop.f32.mrf.mxu0
      %v3616 = vadd.f32 %v3471, %v3615
      %3617 = vmatmul.f32.gmra.mxu0 %v3567
      %v3618 = vpop.f32.mrf.mxu0
      %v3619 = vadd.f32 %v3474, %v3618
      %3620 = vmatmul.f32.gmra.mxu0 %v3569
      %v3621 = vpop.f32.mrf.mxu0
      %v3622 = vadd.f32 %v3477, %v3621
      %3623 = vmatmul.f32.gmra.mxu0 %v3571
      %v3624 = vpop.f32.mrf.mxu0
      %v3625 = vadd.f32 %v3480, %v3624
      %3626 = vmatmul.f32.gmra.mxu0 %v3573
      %v3627 = vpop.f32.mrf.mxu0
      %v3628 = vadd.f32 %v3483, %v3627
      %3629 = vmatmul.f32.gmra.mxu0 %v3575
      %v3630 = vpop.f32.mrf.mxu0
      %v3631 = vadd.f32 %v3486, %v3630
      %3632 = vmatmul.f32.gmra.mxu0 %v3577
      %v3633 = vpop.f32.mrf.mxu0
      %v3634 = vadd.f32 %v3489, %v3633
      %3635 = vmatmul.f32.gmra.mxu0 %v3579
      %v3636 = vpop.f32.mrf.mxu0
      %v3637 = vadd.f32 %v3492, %v3636
      %3638 = vmatmul.f32.gmra.mxu0 %v3581
      %v3639 = vpop.f32.mrf.mxu0
      %v3640 = vadd.f32 %v3495, %v3639
      %3641 = vmatmul.f32.gmra.mxu0 %v3583
      %v3642 = vpop.f32.mrf.mxu0
      %v3643 = vadd.f32 %v3498, %v3642
      %3644 = vmatmul.f32.gmra.mxu0 %v3585
      %v3645 = vpop.f32.mrf.mxu0
      %v3646 = vadd.f32 %v3501, %v3645
      %3647 = vmatmul.f32.gmra.mxu0 %v3587
      %v3648 = vpop.f32.mrf.mxu0
      %v3649 = vadd.f32 %v3504, %v3648
      %3650 = vmatmul.f32.gmra.mxu0 %v3589
      %v3651 = vpop.f32.mrf.mxu0
      %v3652 = vadd.f32 %v3507, %v3651
      %3653 = vmatmul.f32.gmra.mxu0 %v3591
      %v3654 = vpop.f32.mrf.mxu0
      %v3655 = vadd.f32 %v3510, %v3654
      %3656 = vmatmul.f32.gmra.mxu0 %v3593
      %v3657 = vpop.f32.mrf.mxu0
      %v3658 = vadd.f32 %v3513, %v3657
      %3659 = vdwg.mxu0
      %s3660 = scalar_lea.vmem %s6, 64
      %v3661 = vld [vmem:[%s3660] sm:$0xff]
      %v3662 = vld [vmem:[%s3660 + $0x8] sm:$0xff]
      %v3663 = vld [vmem:[%s3660 + $0x10] sm:$0xff]
      %v3664 = vld [vmem:[%s3660 + $0x18] sm:$0xff]
      %3665 = vrot.lane.b32.xlu0 %v3381, 96
      %v3666 = vpop.permute.xlu0 %3665
      %3667 = vrot.lane.b32.xlu0 %v3382, 96
      %v3668 = vpop.permute.xlu0 %3667
      %3669 = vrot.lane.b32.xlu0 %v3383, 96
      %v3670 = vpop.permute.xlu0 %3669
      %3671 = vrot.lane.b32.xlu0 %v3384, 96
      %v3672 = vpop.permute.xlu0 %3671
      %3673 = vrot.lane.b32.xlu0 %v3385, 96
      %v3674 = vpop.permute.xlu0 %3673
      %3675 = vrot.lane.b32.xlu0 %v3386, 96
      %v3676 = vpop.permute.xlu0 %3675
      %3677 = vrot.lane.b32.xlu0 %v3387, 96
      %v3678 = vpop.permute.xlu0 %3677
      %3679 = vrot.lane.b32.xlu0 %v3388, 96
      %v3680 = vpop.permute.xlu0 %3679
      %3681 = vrot.lane.b32.xlu0 %v3389, 96
      %v3682 = vpop.permute.xlu0 %3681
      %3683 = vrot.lane.b32.xlu0 %v3390, 96
      %v3684 = vpop.permute.xlu0 %3683
      %3685 = vrot.lane.b32.xlu0 %v3391, 96
      %v3686 = vpop.permute.xlu0 %3685
      %3687 = vrot.lane.b32.xlu0 %v3392, 96
      %v3688 = vpop.permute.xlu0 %3687
      %3689 = vrot.lane.b32.xlu0 %v3393, 96
      %v3690 = vpop.permute.xlu0 %3689
      %3691 = vrot.lane.b32.xlu0 %v3394, 96
      %v3692 = vpop.permute.xlu0 %3691
      %3693 = vrot.lane.b32.xlu0 %v3395, 96
      %v3694 = vpop.permute.xlu0 %3693
      %3695 = vrot.lane.b32.xlu0 %v3396, 96
      %v3696 = vpop.permute.xlu0 %3695
      %v3697 = vsel %vm3228, %v3666, 0
      %v3699 = vsel %vm3228, %v3668, 0
      %v3701 = vsel %vm3228, %v3670, 0
      %v3703 = vsel %vm3228, %v3672, 0
      %v3705 = vsel %vm3228, %v3674, 0
      %v3707 = vsel %vm3228, %v3676, 0
      %v3709 = vsel %vm3228, %v3678, 0
      %v3711 = vsel %vm3228, %v3680, 0
      %v3713 = vsel %vm3228, %v3682, 0
      %v3715 = vsel %vm3228, %v3684, 0
      %v3717 = vsel %vm3228, %v3686, 0
      %v3719 = vsel %vm3228, %v3688, 0
      %v3721 = vsel %vm3228, %v3690, 0
      %v3723 = vsel %vm3228, %v3692, 0
      %v3725 = vsel %vm3228, %v3694, 0
      %v3727 = vsel %vm3228, %v3696, 0
      %3729 = vmatpush.msra.mxu0 0.0
      %3730 = vmatpush.msra.mxu0 0.0
      %3731 = vmatpush.msra.mxu0 0.0
      %3732 = vmatpush.msra.mxu0 0.0
      %3733 = vmatpush.msra.mxu0 0.0
      %3734 = vmatpush.msra.mxu0 0.0
      %3735 = vmatpush.msra.mxu0 0.0
      %3736 = vmatpush.msra.mxu0 0.0
      %3737 = vmatpush.msra.mxu0 0.0
      %3738 = vmatpush.msra.mxu0 0.0
      %3739 = vmatpush.msra.mxu0 0.0
      %3740 = vmatpush.msra.mxu0 0.0
      %3741 = vmatpush.msra.mxu0 %v3664
      %3742 = vmatpush.msra.mxu0 %v3663
      %3743 = vmatpush.msra.mxu0 %v3662
      %3744 = vmatpush.msra.mxu0 %v3661
      %3745 = vmatmul.f32.gmra.mxu0 %v3697
      %v3746 = vpop.f32.mrf.mxu0
      %v3747 = vadd.f32 0.0, %v3746
      %3748 = vmatmul.f32.gmra.mxu0 %v3699
      %v3749 = vpop.f32.mrf.mxu0
      %v3750 = vadd.f32 0.0, %v3749
      %3751 = vmatmul.f32.gmra.mxu0 %v3701
      %v3752 = vpop.f32.mrf.mxu0
      %v3753 = vadd.f32 0.0, %v3752
      %3754 = vmatmul.f32.gmra.mxu0 %v3703
      %v3755 = vpop.f32.mrf.mxu0
      %v3756 = vadd.f32 0.0, %v3755
      %3757 = vmatmul.f32.gmra.mxu0 %v3705
      %v3758 = vpop.f32.mrf.mxu0
      %v3759 = vadd.f32 0.0, %v3758
      %3760 = vmatmul.f32.gmra.mxu0 %v3707
      %v3761 = vpop.f32.mrf.mxu0
      %v3762 = vadd.f32 0.0, %v3761
      %3763 = vmatmul.f32.gmra.mxu0 %v3709
      %v3764 = vpop.f32.mrf.mxu0
      %v3765 = vadd.f32 0.0, %v3764
      %3766 = vmatmul.f32.gmra.mxu0 %v3711
      %v3767 = vpop.f32.mrf.mxu0
      %v3768 = vadd.f32 0.0, %v3767
      %3769 = vmatmul.f32.gmra.mxu0 %v3713
      %v3770 = vpop.f32.mrf.mxu0
      %v3771 = vadd.f32 0.0, %v3770
      %3772 = vmatmul.f32.gmra.mxu0 %v3715
      %v3773 = vpop.f32.mrf.mxu0
      %v3774 = vadd.f32 0.0, %v3773
      %3775 = vmatmul.f32.gmra.mxu0 %v3717
      %v3776 = vpop.f32.mrf.mxu0
      %v3777 = vadd.f32 0.0, %v3776
      %3778 = vmatmul.f32.gmra.mxu0 %v3719
      %v3779 = vpop.f32.mrf.mxu0
      %v3780 = vadd.f32 0.0, %v3779
      %3781 = vmatmul.f32.gmra.mxu0 %v3721
      %v3782 = vpop.f32.mrf.mxu0
      %v3783 = vadd.f32 0.0, %v3782
      %3784 = vmatmul.f32.gmra.mxu0 %v3723
      %v3785 = vpop.f32.mrf.mxu0
      %v3786 = vadd.f32 0.0, %v3785
      %3787 = vmatmul.f32.gmra.mxu0 %v3725
      %v3788 = vpop.f32.mrf.mxu0
      %v3789 = vadd.f32 0.0, %v3788
      %3790 = vmatmul.f32.gmra.mxu0 %v3727
      %v3791 = vpop.f32.mrf.mxu0
      %v3792 = vadd.f32 0.0, %v3791
      %3793 = vdwg.mxu0
      %v3794 = vadd.f32 %v3613, %v3747
      %v3795 = vadd.f32 %v3616, %v3750
      %v3796 = vadd.f32 %v3619, %v3753
      %v3797 = vadd.f32 %v3622, %v3756
      %v3798 = vadd.f32 %v3625, %v3759
      %v3799 = vadd.f32 %v3628, %v3762
      %v3800 = vadd.f32 %v3631, %v3765
      %v3801 = vadd.f32 %v3634, %v3768
      %v3802 = vadd.f32 %v3637, %v3771
      %v3803 = vadd.f32 %v3640, %v3774
      %v3804 = vadd.f32 %v3643, %v3777
      %v3805 = vadd.f32 %v3646, %v3780
      %v3806 = vadd.f32 %v3649, %v3783
      %v3807 = vadd.f32 %v3652, %v3786
      %v3808 = vadd.f32 %v3655, %v3789
      %v3809 = vadd.f32 %v3658, %v3792
      %v3810 = vld [vmem:[%s3227 + $0x7] sm:$0xff]
      %v3811 = vld [vmem:[%s3227 + $0x1f] sm:$0xff]
      %v3812 = vld [vmem:[%s3227 + $0x37] sm:$0xff]
      %v3813 = vld [vmem:[%s3227 + $0x4f] sm:$0xff]
      %v3814 = vld [vmem:[%s3227 + $0x67] sm:$0xff]
      %v3815 = vld [vmem:[%s3227 + $0x7f] sm:$0xff]
      %v3816 = vld [vmem:[%s3227 + $0x97] sm:$0xff]
      %v3817 = vld [vmem:[%s3227 + $0xaf] sm:$0xff]
      %v3818 = vld [vmem:[%s3227 + $0xc7] sm:$0xff]
      %v3819 = vld [vmem:[%s3227 + $0xdf] sm:$0xff]
      %v3820 = vld [vmem:[%s3227 + $0xf7] sm:$0xff]
      %v3821 = vld [vmem:[%s3227 + $0x10f] sm:$0xff]
      %v3822 = vld [vmem:[%s3227 + $0x127] sm:$0xff]
      %v3823 = vld [vmem:[%s3227 + $0x13f] sm:$0xff]
      %v3824 = vld [vmem:[%s3227 + $0x157] sm:$0xff]
      %v3825 = vld [vmem:[%s3227 + $0x16f] sm:$0xff]
      %s3826 = scalar_lea.vmem %s6, 96
      %v3827 = vld [vmem:[%s3826] sm:$0xff]
      %v3828 = vld [vmem:[%s3826 + $0x8] sm:$0xff]
      %v3829 = vld [vmem:[%s3826 + $0x10] sm:$0xff]
      %v3830 = vld [vmem:[%s3826 + $0x18] sm:$0xff]
      %3847 = vrot.lane.b32.xlu0 %v3810, 96
      %v3848 = vpop.permute.xlu0 %3847
      %3849 = vrot.lane.b32.xlu0 %v3811, 96
      %v3850 = vpop.permute.xlu0 %3849
      %3851 = vrot.lane.b32.xlu0 %v3812, 96
      %v3852 = vpop.permute.xlu0 %3851
      %3853 = vrot.lane.b32.xlu0 %v3813, 96
      %v3854 = vpop.permute.xlu0 %3853
      %3855 = vrot.lane.b32.xlu0 %v3814, 96
      %v3856 = vpop.permute.xlu0 %3855
      %3857 = vrot.lane.b32.xlu0 %v3815, 96
      %v3858 = vpop.permute.xlu0 %3857
      %3859 = vrot.lane.b32.xlu0 %v3816, 96
      %v3860 = vpop.permute.xlu0 %3859
      %3861 = vrot.lane.b32.xlu0 %v3817, 96
      %v3862 = vpop.permute.xlu0 %3861
      %3863 = vrot.lane.b32.xlu0 %v3818, 96
      %v3864 = vpop.permute.xlu0 %3863
      %3865 = vrot.lane.b32.xlu0 %v3819, 96
      %v3866 = vpop.permute.xlu0 %3865
      %3867 = vrot.lane.b32.xlu0 %v3820, 96
      %v3868 = vpop.permute.xlu0 %3867
      %3869 = vrot.lane.b32.xlu0 %v3821, 96
      %v3870 = vpop.permute.xlu0 %3869
      %3871 = vrot.lane.b32.xlu0 %v3822, 96
      %v3872 = vpop.permute.xlu0 %3871
      %3873 = vrot.lane.b32.xlu0 %v3823, 96
      %v3874 = vpop.permute.xlu0 %3873
      %3875 = vrot.lane.b32.xlu0 %v3824, 96
      %v3876 = vpop.permute.xlu0 %3875
      %3877 = vrot.lane.b32.xlu0 %v3825, 96
      %v3878 = vpop.permute.xlu0 %3877
      %v3879 = vsel %vm3228, %v3848, 0
      %v3881 = vsel %vm3228, %v3850, 0
      %v3883 = vsel %vm3228, %v3852, 0
      %v3885 = vsel %vm3228, %v3854, 0
      %v3887 = vsel %vm3228, %v3856, 0
      %v3889 = vsel %vm3228, %v3858, 0
      %v3891 = vsel %vm3228, %v3860, 0
      %v3893 = vsel %vm3228, %v3862, 0
      %v3895 = vsel %vm3228, %v3864, 0
      %v3897 = vsel %vm3228, %v3866, 0
      %v3899 = vsel %vm3228, %v3868, 0
      %v3901 = vsel %vm3228, %v3870, 0
      %v3903 = vsel %vm3228, %v3872, 0
      %v3905 = vsel %vm3228, %v3874, 0
      %v3907 = vsel %vm3228, %v3876, 0
      %v3909 = vsel %vm3228, %v3878, 0
      %3911 = vmatpush.msra.mxu0 0.0
      %3912 = vmatpush.msra.mxu0 0.0
      %3913 = vmatpush.msra.mxu0 0.0
      %3914 = vmatpush.msra.mxu0 0.0
      %3915 = vmatpush.msra.mxu0 0.0
      %3916 = vmatpush.msra.mxu0 0.0
      %3917 = vmatpush.msra.mxu0 0.0
      %3918 = vmatpush.msra.mxu0 0.0
      %3919 = vmatpush.msra.mxu0 0.0
      %3920 = vmatpush.msra.mxu0 0.0
      %3921 = vmatpush.msra.mxu0 0.0
      %3922 = vmatpush.msra.mxu0 0.0
      %3923 = vmatpush.msra.mxu0 %v3830
      %3924 = vmatpush.msra.mxu0 %v3829
      %3925 = vmatpush.msra.mxu0 %v3828
      %3926 = vmatpush.msra.mxu0 %v3827
      %3927 = vmatmul.f32.gmra.mxu0 %v3879
      %v3928 = vpop.f32.mrf.mxu0
      %v3929 = vadd.f32 0.0, %v3928
      %3930 = vmatmul.f32.gmra.mxu0 %v3881
      %v3931 = vpop.f32.mrf.mxu0
      %v3932 = vadd.f32 0.0, %v3931
      %3933 = vmatmul.f32.gmra.mxu0 %v3883
      %v3934 = vpop.f32.mrf.mxu0
      %v3935 = vadd.f32 0.0, %v3934
      %3936 = vmatmul.f32.gmra.mxu0 %v3885
      %v3937 = vpop.f32.mrf.mxu0
      %v3938 = vadd.f32 0.0, %v3937
      %3939 = vmatmul.f32.gmra.mxu0 %v3887
      %v3940 = vpop.f32.mrf.mxu0
      %v3941 = vadd.f32 0.0, %v3940
      %3942 = vmatmul.f32.gmra.mxu0 %v3889
      %v3943 = vpop.f32.mrf.mxu0
      %v3944 = vadd.f32 0.0, %v3943
      %3945 = vmatmul.f32.gmra.mxu0 %v3891
      %v3946 = vpop.f32.mrf.mxu0
      %v3947 = vadd.f32 0.0, %v3946
      %3948 = vmatmul.f32.gmra.mxu0 %v3893
      %v3949 = vpop.f32.mrf.mxu0
      %v3950 = vadd.f32 0.0, %v3949
      %3951 = vmatmul.f32.gmra.mxu0 %v3895
      %v3952 = vpop.f32.mrf.mxu0
      %v3953 = vadd.f32 0.0, %v3952
      %3954 = vmatmul.f32.gmra.mxu0 %v3897
      %v3955 = vpop.f32.mrf.mxu0
      %v3956 = vadd.f32 0.0, %v3955
      %3957 = vmatmul.f32.gmra.mxu0 %v3899
      %v3958 = vpop.f32.mrf.mxu0
      %v3959 = vadd.f32 0.0, %v3958
      %3960 = vmatmul.f32.gmra.mxu0 %v3901
      %v3961 = vpop.f32.mrf.mxu0
      %v3962 = vadd.f32 0.0, %v3961
      %3963 = vmatmul.f32.gmra.mxu0 %v3903
      %v3964 = vpop.f32.mrf.mxu0
      %v3965 = vadd.f32 0.0, %v3964
      %3966 = vmatmul.f32.gmra.mxu0 %v3905
      %v3967 = vpop.f32.mrf.mxu0
      %v3968 = vadd.f32 0.0, %v3967
      %3969 = vmatmul.f32.gmra.mxu0 %v3907
      %v3970 = vpop.f32.mrf.mxu0
      %v3971 = vadd.f32 0.0, %v3970
      %3972 = vmatmul.f32.gmra.mxu0 %v3909
      %v3973 = vpop.f32.mrf.mxu0
      %v3974 = vadd.f32 0.0, %v3973
      %3975 = vdwg.mxu0
      %v3976 = vadd.f32 %v3794, %v3929
      %v3977 = vadd.f32 %v3795, %v3932
      %v3978 = vadd.f32 %v3796, %v3935
      %v3979 = vadd.f32 %v3797, %v3938
      %v3980 = vadd.f32 %v3798, %v3941
      %v3981 = vadd.f32 %v3799, %v3944
      %v3982 = vadd.f32 %v3800, %v3947
      %v3983 = vadd.f32 %v3801, %v3950
      %v3984 = vadd.f32 %v3802, %v3953
      %v3985 = vadd.f32 %v3803, %v3956
      %v3986 = vadd.f32 %v3804, %v3959
      %v3987 = vadd.f32 %v3805, %v3962
      %v3988 = vadd.f32 %v3806, %v3965
      %v3989 = vadd.f32 %v3807, %v3968
      %v3990 = vadd.f32 %v3808, %v3971
      %v3991 = vadd.f32 %v3809, %v3974
      %v3992 = vld [vmem:[%s3227 + $0x8] sm:$0xff]
      %v3993 = vld [vmem:[%s3227 + $0x20] sm:$0xff]
      %v3994 = vld [vmem:[%s3227 + $0x38] sm:$0xff]
      %v3995 = vld [vmem:[%s3227 + $0x50] sm:$0xff]
      %v3996 = vld [vmem:[%s3227 + $0x68] sm:$0xff]
      %v3997 = vld [vmem:[%s3227 + $0x80] sm:$0xff]
      %v3998 = vld [vmem:[%s3227 + $0x98] sm:$0xff]
      %v3999 = vld [vmem:[%s3227 + $0xb0] sm:$0xff]
      %v4000 = vld [vmem:[%s3227 + $0xc8] sm:$0xff]
      %v4001 = vld [vmem:[%s3227 + $0xe0] sm:$0xff]
      %v4002 = vld [vmem:[%s3227 + $0xf8] sm:$0xff]
      %v4003 = vld [vmem:[%s3227 + $0x110] sm:$0xff]
      %v4004 = vld [vmem:[%s3227 + $0x128] sm:$0xff]
      %v4005 = vld [vmem:[%s3227 + $0x140] sm:$0xff]
      %v4006 = vld [vmem:[%s3227 + $0x158] sm:$0xff]
      %v4007 = vld [vmem:[%s3227 + $0x170] sm:$0xff]
      %s4008 = scalar_lea.vmem %s6, 128
      %v4009 = vld [vmem:[%s4008] sm:$0xff]
      %v4010 = vld [vmem:[%s4008 + $0x8] sm:$0xff]
      %v4011 = vld [vmem:[%s4008 + $0x10] sm:$0xff]
      %v4012 = vld [vmem:[%s4008 + $0x18] sm:$0xff]
      %v4014 = vsel %vm3228, %v3992, 0
      %v4017 = vsel %vm3228, %v3993, 0
      %v4020 = vsel %vm3228, %v3994, 0
      %v4023 = vsel %vm3228, %v3995, 0
      %v4026 = vsel %vm3228, %v3996, 0
      %v4029 = vsel %vm3228, %v3997, 0
      %v4032 = vsel %vm3228, %v3998, 0
      %v4035 = vsel %vm3228, %v3999, 0
      %v4038 = vsel %vm3228, %v4000, 0
      %v4041 = vsel %vm3228, %v4001, 0
      %v4044 = vsel %vm3228, %v4002, 0
      %v4047 = vsel %vm3228, %v4003, 0
      %v4050 = vsel %vm3228, %v4004, 0
      %v4053 = vsel %vm3228, %v4005, 0
      %v4056 = vsel %vm3228, %v4006, 0
      %v4059 = vsel %vm3228, %v4007, 0
      %4061 = vmatpush.msra.mxu0 0.0
      %4062 = vmatpush.msra.mxu0 0.0
      %4063 = vmatpush.msra.mxu0 0.0
      %4064 = vmatpush.msra.mxu0 0.0
      %4065 = vmatpush.msra.mxu0 0.0
      %4066 = vmatpush.msra.mxu0 0.0
      %4067 = vmatpush.msra.mxu0 0.0
      %4068 = vmatpush.msra.mxu0 0.0
      %4069 = vmatpush.msra.mxu0 0.0
      %4070 = vmatpush.msra.mxu0 0.0
      %4071 = vmatpush.msra.mxu0 0.0
      %4072 = vmatpush.msra.mxu0 0.0
      %4073 = vmatpush.msra.mxu0 %v4012
      %4074 = vmatpush.msra.mxu0 %v4011
      %4075 = vmatpush.msra.mxu0 %v4010
      %4076 = vmatpush.msra.mxu0 %v4009
      %4077 = vmatmul.f32.gmra.mxu0 %v4014
      %v4078 = vpop.f32.mrf.mxu0
      %v4079 = vadd.f32 0.0, %v4078
      %4080 = vmatmul.f32.gmra.mxu0 %v4017
      %v4081 = vpop.f32.mrf.mxu0
      %v4082 = vadd.f32 0.0, %v4081
      %4083 = vmatmul.f32.gmra.mxu0 %v4020
      %v4084 = vpop.f32.mrf.mxu0
      %v4085 = vadd.f32 0.0, %v4084
      %4086 = vmatmul.f32.gmra.mxu0 %v4023
      %v4087 = vpop.f32.mrf.mxu0
      %v4088 = vadd.f32 0.0, %v4087
      %4089 = vmatmul.f32.gmra.mxu0 %v4026
      %v4090 = vpop.f32.mrf.mxu0
      %v4091 = vadd.f32 0.0, %v4090
      %4092 = vmatmul.f32.gmra.mxu0 %v4029
      %v4093 = vpop.f32.mrf.mxu0
      %v4094 = vadd.f32 0.0, %v4093
      %4095 = vmatmul.f32.gmra.mxu0 %v4032
      %v4096 = vpop.f32.mrf.mxu0
      %v4097 = vadd.f32 0.0, %v4096
      %4098 = vmatmul.f32.gmra.mxu0 %v4035
      %v4099 = vpop.f32.mrf.mxu0
      %v4100 = vadd.f32 0.0, %v4099
      %4101 = vmatmul.f32.gmra.mxu0 %v4038
      %v4102 = vpop.f32.mrf.mxu0
      %v4103 = vadd.f32 0.0, %v4102
      %4104 = vmatmul.f32.gmra.mxu0 %v4041
      %v4105 = vpop.f32.mrf.mxu0
      %v4106 = vadd.f32 0.0, %v4105
      %4107 = vmatmul.f32.gmra.mxu0 %v4044
      %v4108 = vpop.f32.mrf.mxu0
      %v4109 = vadd.f32 0.0, %v4108
      %4110 = vmatmul.f32.gmra.mxu0 %v4047
      %v4111 = vpop.f32.mrf.mxu0
      %v4112 = vadd.f32 0.0, %v4111
      %4113 = vmatmul.f32.gmra.mxu0 %v4050
      %v4114 = vpop.f32.mrf.mxu0
      %v4115 = vadd.f32 0.0, %v4114
      %4116 = vmatmul.f32.gmra.mxu0 %v4053
      %v4117 = vpop.f32.mrf.mxu0
      %v4118 = vadd.f32 0.0, %v4117
      %4119 = vmatmul.f32.gmra.mxu0 %v4056
      %v4120 = vpop.f32.mrf.mxu0
      %v4121 = vadd.f32 0.0, %v4120
      %4122 = vmatmul.f32.gmra.mxu0 %v4059
      %v4123 = vpop.f32.mrf.mxu0
      %v4124 = vadd.f32 0.0, %v4123
      %4125 = vdwg.mxu0
      %v4126 = vadd.f32 %v3976, %v4079
      %v4127 = vadd.f32 %v3977, %v4082
      %v4128 = vadd.f32 %v3978, %v4085
      %v4129 = vadd.f32 %v3979, %v4088
      %v4130 = vadd.f32 %v3980, %v4091
      %v4131 = vadd.f32 %v3981, %v4094
      %v4132 = vadd.f32 %v3982, %v4097
      %v4133 = vadd.f32 %v3983, %v4100
      %v4134 = vadd.f32 %v3984, %v4103
      %v4135 = vadd.f32 %v3985, %v4106
      %v4136 = vadd.f32 %v3986, %v4109
      %v4137 = vadd.f32 %v3987, %v4112
      %v4138 = vadd.f32 %v3988, %v4115
      %v4139 = vadd.f32 %v3989, %v4118
      %v4140 = vadd.f32 %v3990, %v4121
      %v4141 = vadd.f32 %v3991, %v4124
      %s4142 = scalar_lea.vmem %s6, 160
      %v4143 = vld [vmem:[%s4142] sm:$0xff]
      %v4144 = vld [vmem:[%s4142 + $0x8] sm:$0xff]
      %v4145 = vld [vmem:[%s4142 + $0x10] sm:$0xff]
      %v4146 = vld [vmem:[%s4142 + $0x18] sm:$0xff]
      %4147 = vrot.lane.b32.xlu0 %v3992, 96
      %v4148 = vpop.permute.xlu0 %4147
      %4149 = vrot.lane.b32.xlu0 %v3993, 96
      %v4150 = vpop.permute.xlu0 %4149
      %4151 = vrot.lane.b32.xlu0 %v3994, 96
      %v4152 = vpop.permute.xlu0 %4151
      %4153 = vrot.lane.b32.xlu0 %v3995, 96
      %v4154 = vpop.permute.xlu0 %4153
      %4155 = vrot.lane.b32.xlu0 %v3996, 96
      %v4156 = vpop.permute.xlu0 %4155
      %4157 = vrot.lane.b32.xlu0 %v3997, 96
      %v4158 = vpop.permute.xlu0 %4157
      %4159 = vrot.lane.b32.xlu0 %v3998, 96
      %v4160 = vpop.permute.xlu0 %4159
      %4161 = vrot.lane.b32.xlu0 %v3999, 96
      %v4162 = vpop.permute.xlu0 %4161
      %4163 = vrot.lane.b32.xlu0 %v4000, 96
      %v4164 = vpop.permute.xlu0 %4163
      %4165 = vrot.lane.b32.xlu0 %v4001, 96
      %v4166 = vpop.permute.xlu0 %4165
      %4167 = vrot.lane.b32.xlu0 %v4002, 96
      %v4168 = vpop.permute.xlu0 %4167
      %4169 = vrot.lane.b32.xlu0 %v4003, 96
      %v4170 = vpop.permute.xlu0 %4169
      %4171 = vrot.lane.b32.xlu0 %v4004, 96
      %v4172 = vpop.permute.xlu0 %4171
      %4173 = vrot.lane.b32.xlu0 %v4005, 96
      %v4174 = vpop.permute.xlu0 %4173
      %4175 = vrot.lane.b32.xlu0 %v4006, 96
      %v4176 = vpop.permute.xlu0 %4175
      %4177 = vrot.lane.b32.xlu0 %v4007, 96
      %v4178 = vpop.permute.xlu0 %4177
      %v4179 = vsel %vm3228, %v4148, 0
      %v4181 = vsel %vm3228, %v4150, 0
      %v4183 = vsel %vm3228, %v4152, 0
      %v4185 = vsel %vm3228, %v4154, 0
      %v4187 = vsel %vm3228, %v4156, 0
      %v4189 = vsel %vm3228, %v4158, 0
      %v4191 = vsel %vm3228, %v4160, 0
      %v4193 = vsel %vm3228, %v4162, 0
      %v4195 = vsel %vm3228, %v4164, 0
      %v4197 = vsel %vm3228, %v4166, 0
      %v4199 = vsel %vm3228, %v4168, 0
      %v4201 = vsel %vm3228, %v4170, 0
      %v4203 = vsel %vm3228, %v4172, 0
      %v4205 = vsel %vm3228, %v4174, 0
      %v4207 = vsel %vm3228, %v4176, 0
      %v4209 = vsel %vm3228, %v4178, 0
      %4211 = vmatpush.msra.mxu0 0.0
      %4212 = vmatpush.msra.mxu0 0.0
      %4213 = vmatpush.msra.mxu0 0.0
      %4214 = vmatpush.msra.mxu0 0.0
      %4215 = vmatpush.msra.mxu0 0.0
      %4216 = vmatpush.msra.mxu0 0.0
      %4217 = vmatpush.msra.mxu0 0.0
      %4218 = vmatpush.msra.mxu0 0.0
      %4219 = vmatpush.msra.mxu0 0.0
      %4220 = vmatpush.msra.mxu0 0.0
      %4221 = vmatpush.msra.mxu0 0.0
      %4222 = vmatpush.msra.mxu0 0.0
      %4223 = vmatpush.msra.mxu0 %v4146
      %4224 = vmatpush.msra.mxu0 %v4145
      %4225 = vmatpush.msra.mxu0 %v4144
      %4226 = vmatpush.msra.mxu0 %v4143
      %4227 = vmatmul.f32.gmra.mxu0 %v4179
      %v4228 = vpop.f32.mrf.mxu0
      %v4229 = vadd.f32 0.0, %v4228
      %4230 = vmatmul.f32.gmra.mxu0 %v4181
      %v4231 = vpop.f32.mrf.mxu0
      %v4232 = vadd.f32 0.0, %v4231
      %4233 = vmatmul.f32.gmra.mxu0 %v4183
      %v4234 = vpop.f32.mrf.mxu0
      %v4235 = vadd.f32 0.0, %v4234
      %4236 = vmatmul.f32.gmra.mxu0 %v4185
      %v4237 = vpop.f32.mrf.mxu0
      %v4238 = vadd.f32 0.0, %v4237
      %4239 = vmatmul.f32.gmra.mxu0 %v4187
      %v4240 = vpop.f32.mrf.mxu0
      %v4241 = vadd.f32 0.0, %v4240
      %4242 = vmatmul.f32.gmra.mxu0 %v4189
      %v4243 = vpop.f32.mrf.mxu0
      %v4244 = vadd.f32 0.0, %v4243
      %4245 = vmatmul.f32.gmra.mxu0 %v4191
      %v4246 = vpop.f32.mrf.mxu0
      %v4247 = vadd.f32 0.0, %v4246
      %4248 = vmatmul.f32.gmra.mxu0 %v4193
      %v4249 = vpop.f32.mrf.mxu0
      %v4250 = vadd.f32 0.0, %v4249
      %4251 = vmatmul.f32.gmra.mxu0 %v4195
      %v4252 = vpop.f32.mrf.mxu0
      %v4253 = vadd.f32 0.0, %v4252
      %4254 = vmatmul.f32.gmra.mxu0 %v4197
      %v4255 = vpop.f32.mrf.mxu0
      %v4256 = vadd.f32 0.0, %v4255
      %4257 = vmatmul.f32.gmra.mxu0 %v4199
      %v4258 = vpop.f32.mrf.mxu0
      %v4259 = vadd.f32 0.0, %v4258
      %4260 = vmatmul.f32.gmra.mxu0 %v4201
      %v4261 = vpop.f32.mrf.mxu0
      %v4262 = vadd.f32 0.0, %v4261
      %4263 = vmatmul.f32.gmra.mxu0 %v4203
      %v4264 = vpop.f32.mrf.mxu0
      %v4265 = vadd.f32 0.0, %v4264
      %4266 = vmatmul.f32.gmra.mxu0 %v4205
      %v4267 = vpop.f32.mrf.mxu0
      %v4268 = vadd.f32 0.0, %v4267
      %4269 = vmatmul.f32.gmra.mxu0 %v4207
      %v4270 = vpop.f32.mrf.mxu0
      %v4271 = vadd.f32 0.0, %v4270
      %4272 = vmatmul.f32.gmra.mxu0 %v4209
      %v4273 = vpop.f32.mrf.mxu0
      %v4274 = vadd.f32 0.0, %v4273
      %4275 = vdwg.mxu0
      %v4276 = vadd.f32 %v4126, %v4229
      %v4277 = vadd.f32 %v4127, %v4232
      %v4278 = vadd.f32 %v4128, %v4235
      %v4279 = vadd.f32 %v4129, %v4238
      %v4280 = vadd.f32 %v4130, %v4241
      %v4281 = vadd.f32 %v4131, %v4244
      %v4282 = vadd.f32 %v4132, %v4247
      %v4283 = vadd.f32 %v4133, %v4250
      %v4284 = vadd.f32 %v4134, %v4253
      %v4285 = vadd.f32 %v4135, %v4256
      %v4286 = vadd.f32 %v4136, %v4259
      %v4287 = vadd.f32 %v4137, %v4262
      %v4288 = vadd.f32 %v4138, %v4265
      %v4289 = vadd.f32 %v4139, %v4268
      %v4290 = vadd.f32 %v4140, %v4271
      %v4291 = vadd.f32 %v4141, %v4274
      %s4292 = scalar_lea.vmem [#allocation3], 48
      %v4293 = vld [vmem:[%s4292 + $0x7] sm:$0xff]
      %v4294 = vld [vmem:[%s4292 + $0x1f] sm:$0xff]
      %v4295 = vld [vmem:[%s4292 + $0x37] sm:$0xff]
      %v4296 = vld [vmem:[%s4292 + $0x4f] sm:$0xff]
      %v4297 = vld [vmem:[%s4292 + $0x67] sm:$0xff]
      %v4298 = vld [vmem:[%s4292 + $0x7f] sm:$0xff]
      %v4299 = vld [vmem:[%s4292 + $0x97] sm:$0xff]
      %v4300 = vld [vmem:[%s4292 + $0xaf] sm:$0xff]
      %v4301 = vld [vmem:[%s4292 + $0xc7] sm:$0xff]
      %v4302 = vld [vmem:[%s4292 + $0xdf] sm:$0xff]
      %v4303 = vld [vmem:[%s4292 + $0xf7] sm:$0xff]
      %v4304 = vld [vmem:[%s4292 + $0x10f] sm:$0xff]
      %v4305 = vld [vmem:[%s4292 + $0x127] sm:$0xff]
      %v4306 = vld [vmem:[%s4292 + $0x13f] sm:$0xff]
      %v4307 = vld [vmem:[%s4292 + $0x157] sm:$0xff]
      %v4308 = vld [vmem:[%s4292 + $0x16f] sm:$0xff]
      %s4309 = scalar_lea.vmem %s6, 192
      %v4310 = vld [vmem:[%s4309] sm:$0xff]
      %v4311 = vld [vmem:[%s4309 + $0x8] sm:$0xff]
      %v4312 = vld [vmem:[%s4309 + $0x10] sm:$0xff]
      %v4313 = vld [vmem:[%s4309 + $0x18] sm:$0xff]
      %4330 = vrot.lane.b32.xlu0 %v4293, 96
      %v4331 = vpop.permute.xlu0 %4330
      %4332 = vrot.lane.b32.xlu0 %v4294, 96
      %v4333 = vpop.permute.xlu0 %4332
      %4334 = vrot.lane.b32.xlu0 %v4295, 96
      %v4335 = vpop.permute.xlu0 %4334
      %4336 = vrot.lane.b32.xlu0 %v4296, 96
      %v4337 = vpop.permute.xlu0 %4336
      %4338 = vrot.lane.b32.xlu0 %v4297, 96
      %v4339 = vpop.permute.xlu0 %4338
      %4340 = vrot.lane.b32.xlu0 %v4298, 96
      %v4341 = vpop.permute.xlu0 %4340
      %4342 = vrot.lane.b32.xlu0 %v4299, 96
      %v4343 = vpop.permute.xlu0 %4342
      %4344 = vrot.lane.b32.xlu0 %v4300, 96
      %v4345 = vpop.permute.xlu0 %4344
      %4346 = vrot.lane.b32.xlu0 %v4301, 96
      %v4347 = vpop.permute.xlu0 %4346
      %4348 = vrot.lane.b32.xlu0 %v4302, 96
      %v4349 = vpop.permute.xlu0 %4348
      %4350 = vrot.lane.b32.xlu0 %v4303, 96
      %v4351 = vpop.permute.xlu0 %4350
      %4352 = vrot.lane.b32.xlu0 %v4304, 96
      %v4353 = vpop.permute.xlu0 %4352
      %4354 = vrot.lane.b32.xlu0 %v4305, 96
      %v4355 = vpop.permute.xlu0 %4354
      %4356 = vrot.lane.b32.xlu0 %v4306, 96
      %v4357 = vpop.permute.xlu0 %4356
      %4358 = vrot.lane.b32.xlu0 %v4307, 96
      %v4359 = vpop.permute.xlu0 %4358
      %4360 = vrot.lane.b32.xlu0 %v4308, 96
      %v4361 = vpop.permute.xlu0 %4360
      %v4362 = vsel %vm3228, %v4331, 0
      %v4364 = vsel %vm3228, %v4333, 0
      %v4366 = vsel %vm3228, %v4335, 0
      %v4368 = vsel %vm3228, %v4337, 0
      %v4370 = vsel %vm3228, %v4339, 0
      %v4372 = vsel %vm3228, %v4341, 0
      %v4374 = vsel %vm3228, %v4343, 0
      %v4376 = vsel %vm3228, %v4345, 0
      %v4378 = vsel %vm3228, %v4347, 0
      %v4380 = vsel %vm3228, %v4349, 0
      %v4382 = vsel %vm3228, %v4351, 0
      %v4384 = vsel %vm3228, %v4353, 0
      %v4386 = vsel %vm3228, %v4355, 0
      %v4388 = vsel %vm3228, %v4357, 0
      %v4390 = vsel %vm3228, %v4359, 0
      %v4392 = vsel %vm3228, %v4361, 0
      %4394 = vmatpush.msra.mxu0 0.0
      %4395 = vmatpush.msra.mxu0 0.0
      %4396 = vmatpush.msra.mxu0 0.0
      %4397 = vmatpush.msra.mxu0 0.0
      %4398 = vmatpush.msra.mxu0 0.0
      %4399 = vmatpush.msra.mxu0 0.0
      %4400 = vmatpush.msra.mxu0 0.0
      %4401 = vmatpush.msra.mxu0 0.0
      %4402 = vmatpush.msra.mxu0 0.0
      %4403 = vmatpush.msra.mxu0 0.0
      %4404 = vmatpush.msra.mxu0 0.0
      %4405 = vmatpush.msra.mxu0 0.0
      %4406 = vmatpush.msra.mxu0 %v4313
      %4407 = vmatpush.msra.mxu0 %v4312
      %4408 = vmatpush.msra.mxu0 %v4311
      %4409 = vmatpush.msra.mxu0 %v4310
      %4410 = vmatmul.f32.gmra.mxu0 %v4362
      %v4411 = vpop.f32.mrf.mxu0
      %v4412 = vadd.f32 0.0, %v4411
      %4413 = vmatmul.f32.gmra.mxu0 %v4364
      %v4414 = vpop.f32.mrf.mxu0
      %v4415 = vadd.f32 0.0, %v4414
      %4416 = vmatmul.f32.gmra.mxu0 %v4366
      %v4417 = vpop.f32.mrf.mxu0
      %v4418 = vadd.f32 0.0, %v4417
      %4419 = vmatmul.f32.gmra.mxu0 %v4368
      %v4420 = vpop.f32.mrf.mxu0
      %v4421 = vadd.f32 0.0, %v4420
      %4422 = vmatmul.f32.gmra.mxu0 %v4370
      %v4423 = vpop.f32.mrf.mxu0
      %v4424 = vadd.f32 0.0, %v4423
      %4425 = vmatmul.f32.gmra.mxu0 %v4372
      %v4426 = vpop.f32.mrf.mxu0
      %v4427 = vadd.f32 0.0, %v4426
      %4428 = vmatmul.f32.gmra.mxu0 %v4374
      %v4429 = vpop.f32.mrf.mxu0
      %v4430 = vadd.f32 0.0, %v4429
      %4431 = vmatmul.f32.gmra.mxu0 %v4376
      %v4432 = vpop.f32.mrf.mxu0
      %v4433 = vadd.f32 0.0, %v4432
      %4434 = vmatmul.f32.gmra.mxu0 %v4378
      %v4435 = vpop.f32.mrf.mxu0
      %v4436 = vadd.f32 0.0, %v4435
      %4437 = vmatmul.f32.gmra.mxu0 %v4380
      %v4438 = vpop.f32.mrf.mxu0
      %v4439 = vadd.f32 0.0, %v4438
      %4440 = vmatmul.f32.gmra.mxu0 %v4382
      %v4441 = vpop.f32.mrf.mxu0
      %v4442 = vadd.f32 0.0, %v4441
      %4443 = vmatmul.f32.gmra.mxu0 %v4384
      %v4444 = vpop.f32.mrf.mxu0
      %v4445 = vadd.f32 0.0, %v4444
      %4446 = vmatmul.f32.gmra.mxu0 %v4386
      %v4447 = vpop.f32.mrf.mxu0
      %v4448 = vadd.f32 0.0, %v4447
      %4449 = vmatmul.f32.gmra.mxu0 %v4388
      %v4450 = vpop.f32.mrf.mxu0
      %v4451 = vadd.f32 0.0, %v4450
      %4452 = vmatmul.f32.gmra.mxu0 %v4390
      %v4453 = vpop.f32.mrf.mxu0
      %v4454 = vadd.f32 0.0, %v4453
      %4455 = vmatmul.f32.gmra.mxu0 %v4392
      %v4456 = vpop.f32.mrf.mxu0
      %v4457 = vadd.f32 0.0, %v4456
      %4458 = vdwg.mxu0
      %v4459 = vadd.f32 %v4276, %v4412
      %v4460 = vadd.f32 %v4277, %v4415
      %v4461 = vadd.f32 %v4278, %v4418
      %v4462 = vadd.f32 %v4279, %v4421
      %v4463 = vadd.f32 %v4280, %v4424
      %v4464 = vadd.f32 %v4281, %v4427
      %v4465 = vadd.f32 %v4282, %v4430
      %v4466 = vadd.f32 %v4283, %v4433
      %v4467 = vadd.f32 %v4284, %v4436
      %v4468 = vadd.f32 %v4285, %v4439
      %v4469 = vadd.f32 %v4286, %v4442
      %v4470 = vadd.f32 %v4287, %v4445
      %v4471 = vadd.f32 %v4288, %v4448
      %v4472 = vadd.f32 %v4289, %v4451
      %v4473 = vadd.f32 %v4290, %v4454
      %v4474 = vadd.f32 %v4291, %v4457
      %v4475 = vld [vmem:[%s4292 + $0x8] sm:$0xff]
      %v4476 = vld [vmem:[%s4292 + $0x20] sm:$0xff]
      %v4477 = vld [vmem:[%s4292 + $0x38] sm:$0xff]
      %v4478 = vld [vmem:[%s4292 + $0x50] sm:$0xff]
      %v4479 = vld [vmem:[%s4292 + $0x68] sm:$0xff]
      %v4480 = vld [vmem:[%s4292 + $0x80] sm:$0xff]
      %v4481 = vld [vmem:[%s4292 + $0x98] sm:$0xff]
      %v4482 = vld [vmem:[%s4292 + $0xb0] sm:$0xff]
      %v4483 = vld [vmem:[%s4292 + $0xc8] sm:$0xff]
      %v4484 = vld [vmem:[%s4292 + $0xe0] sm:$0xff]
      %v4485 = vld [vmem:[%s4292 + $0xf8] sm:$0xff]
      %v4486 = vld [vmem:[%s4292 + $0x110] sm:$0xff]
      %v4487 = vld [vmem:[%s4292 + $0x128] sm:$0xff]
      %v4488 = vld [vmem:[%s4292 + $0x140] sm:$0xff]
      %v4489 = vld [vmem:[%s4292 + $0x158] sm:$0xff]
      %v4490 = vld [vmem:[%s4292 + $0x170] sm:$0xff]
      %s4491 = scalar_lea.vmem %s6, 224
      %v4492 = vld [vmem:[%s4491] sm:$0xff]
      %v4493 = vld [vmem:[%s4491 + $0x8] sm:$0xff]
      %v4494 = vld [vmem:[%s4491 + $0x10] sm:$0xff]
      %v4495 = vld [vmem:[%s4491 + $0x18] sm:$0xff]
      %v4497 = vsel %vm3228, %v4475, 0
      %v4500 = vsel %vm3228, %v4476, 0
      %v4503 = vsel %vm3228, %v4477, 0
      %v4506 = vsel %vm3228, %v4478, 0
      %v4509 = vsel %vm3228, %v4479, 0
      %v4512 = vsel %vm3228, %v4480, 0
      %v4515 = vsel %vm3228, %v4481, 0
      %v4518 = vsel %vm3228, %v4482, 0
      %v4521 = vsel %vm3228, %v4483, 0
      %v4524 = vsel %vm3228, %v4484, 0
      %v4527 = vsel %vm3228, %v4485, 0
      %v4530 = vsel %vm3228, %v4486, 0
      %v4533 = vsel %vm3228, %v4487, 0
      %v4536 = vsel %vm3228, %v4488, 0
      %v4539 = vsel %vm3228, %v4489, 0
      %v4542 = vsel %vm3228, %v4490, 0
      %4544 = vmatpush.msra.mxu0 0.0
      %4545 = vmatpush.msra.mxu0 0.0
      %4546 = vmatpush.msra.mxu0 0.0
      %4547 = vmatpush.msra.mxu0 0.0
      %4548 = vmatpush.msra.mxu0 0.0
      %4549 = vmatpush.msra.mxu0 0.0
      %4550 = vmatpush.msra.mxu0 0.0
      %4551 = vmatpush.msra.mxu0 0.0
      %4552 = vmatpush.msra.mxu0 0.0
      %4553 = vmatpush.msra.mxu0 0.0
      %4554 = vmatpush.msra.mxu0 0.0
      %4555 = vmatpush.msra.mxu0 0.0
      %4556 = vmatpush.msra.mxu0 %v4495
      %4557 = vmatpush.msra.mxu0 %v4494
      %4558 = vmatpush.msra.mxu0 %v4493
      %4559 = vmatpush.msra.mxu0 %v4492
      %4560 = vmatmul.f32.gmra.mxu0 %v4497
      %v4561 = vpop.f32.mrf.mxu0
      %v4562 = vadd.f32 0.0, %v4561
      %4563 = vmatmul.f32.gmra.mxu0 %v4500
      %v4564 = vpop.f32.mrf.mxu0
      %v4565 = vadd.f32 0.0, %v4564
      %4566 = vmatmul.f32.gmra.mxu0 %v4503
      %v4567 = vpop.f32.mrf.mxu0
      %v4568 = vadd.f32 0.0, %v4567
      %4569 = vmatmul.f32.gmra.mxu0 %v4506
      %v4570 = vpop.f32.mrf.mxu0
      %v4571 = vadd.f32 0.0, %v4570
      %4572 = vmatmul.f32.gmra.mxu0 %v4509
      %v4573 = vpop.f32.mrf.mxu0
      %v4574 = vadd.f32 0.0, %v4573
      %4575 = vmatmul.f32.gmra.mxu0 %v4512
      %v4576 = vpop.f32.mrf.mxu0
      %v4577 = vadd.f32 0.0, %v4576
      %4578 = vmatmul.f32.gmra.mxu0 %v4515
      %v4579 = vpop.f32.mrf.mxu0
      %v4580 = vadd.f32 0.0, %v4579
      %4581 = vmatmul.f32.gmra.mxu0 %v4518
      %v4582 = vpop.f32.mrf.mxu0
      %v4583 = vadd.f32 0.0, %v4582
      %4584 = vmatmul.f32.gmra.mxu0 %v4521
      %v4585 = vpop.f32.mrf.mxu0
      %v4586 = vadd.f32 0.0, %v4585
      %4587 = vmatmul.f32.gmra.mxu0 %v4524
      %v4588 = vpop.f32.mrf.mxu0
      %v4589 = vadd.f32 0.0, %v4588
      %4590 = vmatmul.f32.gmra.mxu0 %v4527
      %v4591 = vpop.f32.mrf.mxu0
      %v4592 = vadd.f32 0.0, %v4591
      %4593 = vmatmul.f32.gmra.mxu0 %v4530
      %v4594 = vpop.f32.mrf.mxu0
      %v4595 = vadd.f32 0.0, %v4594
      %4596 = vmatmul.f32.gmra.mxu0 %v4533
      %v4597 = vpop.f32.mrf.mxu0
      %v4598 = vadd.f32 0.0, %v4597
      %4599 = vmatmul.f32.gmra.mxu0 %v4536
      %v4600 = vpop.f32.mrf.mxu0
      %v4601 = vadd.f32 0.0, %v4600
      %4602 = vmatmul.f32.gmra.mxu0 %v4539
      %v4603 = vpop.f32.mrf.mxu0
      %v4604 = vadd.f32 0.0, %v4603
      %4605 = vmatmul.f32.gmra.mxu0 %v4542
      %v4606 = vpop.f32.mrf.mxu0
      %v4607 = vadd.f32 0.0, %v4606
      %4608 = vdwg.mxu0
      %v4609 = vadd.f32 %v4459, %v4562
      %v4610 = vadd.f32 %v4460, %v4565
      %v4611 = vadd.f32 %v4461, %v4568
      %v4612 = vadd.f32 %v4462, %v4571
      %v4613 = vadd.f32 %v4463, %v4574
      %v4614 = vadd.f32 %v4464, %v4577
      %v4615 = vadd.f32 %v4465, %v4580
      %v4616 = vadd.f32 %v4466, %v4583
      %v4617 = vadd.f32 %v4467, %v4586
      %v4618 = vadd.f32 %v4468, %v4589
      %v4619 = vadd.f32 %v4469, %v4592
      %v4620 = vadd.f32 %v4470, %v4595
      %v4621 = vadd.f32 %v4471, %v4598
      %v4622 = vadd.f32 %v4472, %v4601
      %v4623 = vadd.f32 %v4473, %v4604
      %v4624 = vadd.f32 %v4474, %v4607
      %s4625 = scalar_lea.vmem %s6, 256
      %v4626 = vld [vmem:[%s4625] sm:$0xff]
      %v4627 = vld [vmem:[%s4625 + $0x8] sm:$0xff]
      %v4628 = vld [vmem:[%s4625 + $0x10] sm:$0xff]
      %v4629 = vld [vmem:[%s4625 + $0x18] sm:$0xff]
      %4630 = vrot.lane.b32.xlu0 %v4475, 96
      %v4631 = vpop.permute.xlu0 %4630
      %4632 = vrot.lane.b32.xlu0 %v4476, 96
      %v4633 = vpop.permute.xlu0 %4632
      %4634 = vrot.lane.b32.xlu0 %v4477, 96
      %v4635 = vpop.permute.xlu0 %4634
      %4636 = vrot.lane.b32.xlu0 %v4478, 96
      %v4637 = vpop.permute.xlu0 %4636
      %4638 = vrot.lane.b32.xlu0 %v4479, 96
      %v4639 = vpop.permute.xlu0 %4638
      %4640 = vrot.lane.b32.xlu0 %v4480, 96
      %v4641 = vpop.permute.xlu0 %4640
      %4642 = vrot.lane.b32.xlu0 %v4481, 96
      %v4643 = vpop.permute.xlu0 %4642
      %4644 = vrot.lane.b32.xlu0 %v4482, 96
      %v4645 = vpop.permute.xlu0 %4644
      %4646 = vrot.lane.b32.xlu0 %v4483, 96
      %v4647 = vpop.permute.xlu0 %4646
      %4648 = vrot.lane.b32.xlu0 %v4484, 96
      %v4649 = vpop.permute.xlu0 %4648
      %4650 = vrot.lane.b32.xlu0 %v4485, 96
      %v4651 = vpop.permute.xlu0 %4650
      %4652 = vrot.lane.b32.xlu0 %v4486, 96
      %v4653 = vpop.permute.xlu0 %4652
      %4654 = vrot.lane.b32.xlu0 %v4487, 96
      %v4655 = vpop.permute.xlu0 %4654
      %4656 = vrot.lane.b32.xlu0 %v4488, 96
      %v4657 = vpop.permute.xlu0 %4656
      %4658 = vrot.lane.b32.xlu0 %v4489, 96
      %v4659 = vpop.permute.xlu0 %4658
      %4660 = vrot.lane.b32.xlu0 %v4490, 96
      %v4661 = vpop.permute.xlu0 %4660
      %v4662 = vsel %vm3228, %v4631, 0
      %v4664 = vsel %vm3228, %v4633, 0
      %v4666 = vsel %vm3228, %v4635, 0
      %v4668 = vsel %vm3228, %v4637, 0
      %v4670 = vsel %vm3228, %v4639, 0
      %v4672 = vsel %vm3228, %v4641, 0
      %v4674 = vsel %vm3228, %v4643, 0
      %v4676 = vsel %vm3228, %v4645, 0
      %v4678 = vsel %vm3228, %v4647, 0
      %v4680 = vsel %vm3228, %v4649, 0
      %v4682 = vsel %vm3228, %v4651, 0
      %v4684 = vsel %vm3228, %v4653, 0
      %v4686 = vsel %vm3228, %v4655, 0
      %v4688 = vsel %vm3228, %v4657, 0
      %v4690 = vsel %vm3228, %v4659, 0
      %v4692 = vsel %vm3228, %v4661, 0
      %4694 = vmatpush.msra.mxu0 0.0
      %4695 = vmatpush.msra.mxu0 0.0
      %4696 = vmatpush.msra.mxu0 0.0
      %4697 = vmatpush.msra.mxu0 0.0
      %4698 = vmatpush.msra.mxu0 0.0
      %4699 = vmatpush.msra.mxu0 0.0
      %4700 = vmatpush.msra.mxu0 0.0
      %4701 = vmatpush.msra.mxu0 0.0
      %4702 = vmatpush.msra.mxu0 0.0
      %4703 = vmatpush.msra.mxu0 0.0
      %4704 = vmatpush.msra.mxu0 0.0
      %4705 = vmatpush.msra.mxu0 0.0
      %4706 = vmatpush.msra.mxu0 %v4629
      %4707 = vmatpush.msra.mxu0 %v4628
      %4708 = vmatpush.msra.mxu0 %v4627
      %4709 = vmatpush.msra.mxu0 %v4626
      %4710 = vmatmul.f32.gmra.mxu0 %v4662
      %v4711 = vpop.f32.mrf.mxu0
      %v4712 = vadd.f32 0.0, %v4711
      %4713 = vmatmul.f32.gmra.mxu0 %v4664
      %v4714 = vpop.f32.mrf.mxu0
      %v4715 = vadd.f32 0.0, %v4714
      %4716 = vmatmul.f32.gmra.mxu0 %v4666
      %v4717 = vpop.f32.mrf.mxu0
      %v4718 = vadd.f32 0.0, %v4717
      %4719 = vmatmul.f32.gmra.mxu0 %v4668
      %v4720 = vpop.f32.mrf.mxu0
      %v4721 = vadd.f32 0.0, %v4720
      %4722 = vmatmul.f32.gmra.mxu0 %v4670
      %v4723 = vpop.f32.mrf.mxu0
      %v4724 = vadd.f32 0.0, %v4723
      %4725 = vmatmul.f32.gmra.mxu0 %v4672
      %v4726 = vpop.f32.mrf.mxu0
      %v4727 = vadd.f32 0.0, %v4726
      %4728 = vmatmul.f32.gmra.mxu0 %v4674
      %v4729 = vpop.f32.mrf.mxu0
      %v4730 = vadd.f32 0.0, %v4729
      %4731 = vmatmul.f32.gmra.mxu0 %v4676
      %v4732 = vpop.f32.mrf.mxu0
      %v4733 = vadd.f32 0.0, %v4732
      %4734 = vmatmul.f32.gmra.mxu0 %v4678
      %v4735 = vpop.f32.mrf.mxu0
      %v4736 = vadd.f32 0.0, %v4735
      %4737 = vmatmul.f32.gmra.mxu0 %v4680
      %v4738 = vpop.f32.mrf.mxu0
      %v4739 = vadd.f32 0.0, %v4738
      %4740 = vmatmul.f32.gmra.mxu0 %v4682
      %v4741 = vpop.f32.mrf.mxu0
      %v4742 = vadd.f32 0.0, %v4741
      %4743 = vmatmul.f32.gmra.mxu0 %v4684
      %v4744 = vpop.f32.mrf.mxu0
      %v4745 = vadd.f32 0.0, %v4744
      %4746 = vmatmul.f32.gmra.mxu0 %v4686
      %v4747 = vpop.f32.mrf.mxu0
      %v4748 = vadd.f32 0.0, %v4747
      %4749 = vmatmul.f32.gmra.mxu0 %v4688
      %v4750 = vpop.f32.mrf.mxu0
      %v4751 = vadd.f32 0.0, %v4750
      %4752 = vmatmul.f32.gmra.mxu0 %v4690
      %v4753 = vpop.f32.mrf.mxu0
      %v4754 = vadd.f32 0.0, %v4753
      %4755 = vmatmul.f32.gmra.mxu0 %v4692
      %v4756 = vpop.f32.mrf.mxu0
      %v4757 = vadd.f32 0.0, %v4756
      %4758 = vdwg.mxu0
      %v4759 = vadd.f32 %v4609, %v4712
      %v4760 = vadd.f32 %v4610, %v4715
      %v4761 = vadd.f32 %v4611, %v4718
      %v4762 = vadd.f32 %v4612, %v4721
      %v4763 = vadd.f32 %v4613, %v4724
      %v4764 = vadd.f32 %v4614, %v4727
      %v4765 = vadd.f32 %v4615, %v4730
      %v4766 = vadd.f32 %v4616, %v4733
      %v4767 = vadd.f32 %v4617, %v4736
      %v4768 = vadd.f32 %v4618, %v4739
      %v4769 = vadd.f32 %v4619, %v4742
      %v4770 = vadd.f32 %v4620, %v4745
      %v4771 = vadd.f32 %v4621, %v4748
      %v4772 = vadd.f32 %v4622, %v4751
      %v4773 = vadd.f32 %v4623, %v4754
      %v4774 = vadd.f32 %v4624, %v4757
      %4775 = vmatpush.msra.mxu0 0.0
      %4776 = vmatpush.msra.mxu0 0.0
      %4777 = vmatpush.msra.mxu0 0.0
      %4778 = vmatpush.msra.mxu0 0.0
      %4779 = vmatpush.msra.mxu0 0.0
      %4780 = vmatpush.msra.mxu0 0.0
      %4781 = vmatpush.msra.mxu0 0.0
      %4782 = vmatpush.msra.mxu0 0.0
      %4783 = vmatpush.msra.mxu0 0.0
      %4784 = vmatpush.msra.mxu0 0.0
      %4785 = vmatpush.msra.mxu0 0.0
      %4786 = vmatpush.msra.mxu0 0.0
      %4787 = vmatpush.msra.mxu0 %v3401
      %4788 = vmatpush.msra.mxu0 %v3400
      %4789 = vmatpush.msra.mxu0 %v3399
      %4790 = vmatpush.msra.mxu0 %v3398
      %4791 = vmatmul.f32.gmra.mxu0 %v3697
      %v4792 = vpop.f32.mrf.mxu0
      %v4793 = vadd.f32 0.0, %v4792
      %4794 = vmatmul.f32.gmra.mxu0 %v3699
      %v4795 = vpop.f32.mrf.mxu0
      %v4796 = vadd.f32 0.0, %v4795
      %4797 = vmatmul.f32.gmra.mxu0 %v3701
      %v4798 = vpop.f32.mrf.mxu0
      %v4799 = vadd.f32 0.0, %v4798
      %4800 = vmatmul.f32.gmra.mxu0 %v3703
      %v4801 = vpop.f32.mrf.mxu0
      %v4802 = vadd.f32 0.0, %v4801
      %4803 = vmatmul.f32.gmra.mxu0 %v3705
      %v4804 = vpop.f32.mrf.mxu0
      %v4805 = vadd.f32 0.0, %v4804
      %4806 = vmatmul.f32.gmra.mxu0 %v3707
      %v4807 = vpop.f32.mrf.mxu0
      %v4808 = vadd.f32 0.0, %v4807
      %4809 = vmatmul.f32.gmra.mxu0 %v3709
      %v4810 = vpop.f32.mrf.mxu0
      %v4811 = vadd.f32 0.0, %v4810
      %4812 = vmatmul.f32.gmra.mxu0 %v3711
      %v4813 = vpop.f32.mrf.mxu0
      %v4814 = vadd.f32 0.0, %v4813
      %4815 = vmatmul.f32.gmra.mxu0 %v3713
      %v4816 = vpop.f32.mrf.mxu0
      %v4817 = vadd.f32 0.0, %v4816
      %4818 = vmatmul.f32.gmra.mxu0 %v3715
      %v4819 = vpop.f32.mrf.mxu0
      %v4820 = vadd.f32 0.0, %v4819
      %4821 = vmatmul.f32.gmra.mxu0 %v3717
      %v4822 = vpop.f32.mrf.mxu0
      %v4823 = vadd.f32 0.0, %v4822
      %4824 = vmatmul.f32.gmra.mxu0 %v3719
      %v4825 = vpop.f32.mrf.mxu0
      %v4826 = vadd.f32 0.0, %v4825
      %4827 = vmatmul.f32.gmra.mxu0 %v3721
      %v4828 = vpop.f32.mrf.mxu0
      %v4829 = vadd.f32 0.0, %v4828
      %4830 = vmatmul.f32.gmra.mxu0 %v3723
      %v4831 = vpop.f32.mrf.mxu0
      %v4832 = vadd.f32 0.0, %v4831
      %4833 = vmatmul.f32.gmra.mxu0 %v3725
      %v4834 = vpop.f32.mrf.mxu0
      %v4835 = vadd.f32 0.0, %v4834
      %4836 = vmatmul.f32.gmra.mxu0 %v3727
      %v4837 = vpop.f32.mrf.mxu0
      %v4838 = vadd.f32 0.0, %v4837
      %4839 = vdwg.mxu0
      %4840 = vmatpush.msra.mxu0 0.0
      %4841 = vmatpush.msra.mxu0 0.0
      %4842 = vmatpush.msra.mxu0 0.0
      %4843 = vmatpush.msra.mxu0 0.0
      %4844 = vmatpush.msra.mxu0 0.0
      %4845 = vmatpush.msra.mxu0 0.0
      %4846 = vmatpush.msra.mxu0 0.0
      %4847 = vmatpush.msra.mxu0 0.0
      %4848 = vmatpush.msra.mxu0 0.0
      %4849 = vmatpush.msra.mxu0 0.0
      %4850 = vmatpush.msra.mxu0 0.0
      %4851 = vmatpush.msra.mxu0 0.0
      %4852 = vmatpush.msra.mxu0 %v3380
      %4853 = vmatpush.msra.mxu0 %v3379
      %4854 = vmatpush.msra.mxu0 %v3378
      %4855 = vmatpush.msra.mxu0 %v3377
      %4856 = vmatmul.f32.gmra.mxu0 %v3403
      %v4857 = vpop.f32.mrf.mxu0
      %v4858 = vadd.f32 %v4793, %v4857
      %4859 = vmatmul.f32.gmra.mxu0 %v3406
      %v4860 = vpop.f32.mrf.mxu0
      %v4861 = vadd.f32 %v4796, %v4860
      %4862 = vmatmul.f32.gmra.mxu0 %v3409
      %v4863 = vpop.f32.mrf.mxu0
      %v4864 = vadd.f32 %v4799, %v4863
      %4865 = vmatmul.f32.gmra.mxu0 %v3412
      %v4866 = vpop.f32.mrf.mxu0
      %v4867 = vadd.f32 %v4802, %v4866
      %4868 = vmatmul.f32.gmra.mxu0 %v3415
      %v4869 = vpop.f32.mrf.mxu0
      %v4870 = vadd.f32 %v4805, %v4869
      %4871 = vmatmul.f32.gmra.mxu0 %v3418
      %v4872 = vpop.f32.mrf.mxu0
      %v4873 = vadd.f32 %v4808, %v4872
      %4874 = vmatmul.f32.gmra.mxu0 %v3421
      %v4875 = vpop.f32.mrf.mxu0
      %v4876 = vadd.f32 %v4811, %v4875
      %4877 = vmatmul.f32.gmra.mxu0 %v3424
      %v4878 = vpop.f32.mrf.mxu0
      %v4879 = vadd.f32 %v4814, %v4878
      %4880 = vmatmul.f32.gmra.mxu0 %v3427
      %v4881 = vpop.f32.mrf.mxu0
      %v4882 = vadd.f32 %v4817, %v4881
      %4883 = vmatmul.f32.gmra.mxu0 %v3430
      %v4884 = vpop.f32.mrf.mxu0
      %v4885 = vadd.f32 %v4820, %v4884
      %4886 = vmatmul.f32.gmra.mxu0 %v3433
      %v4887 = vpop.f32.mrf.mxu0
      %v4888 = vadd.f32 %v4823, %v4887
      %4889 = vmatmul.f32.gmra.mxu0 %v3436
      %v4890 = vpop.f32.mrf.mxu0
      %v4891 = vadd.f32 %v4826, %v4890
      %4892 = vmatmul.f32.gmra.mxu0 %v3439
      %v4893 = vpop.f32.mrf.mxu0
      %v4894 = vadd.f32 %v4829, %v4893
      %4895 = vmatmul.f32.gmra.mxu0 %v3442
      %v4896 = vpop.f32.mrf.mxu0
      %v4897 = vadd.f32 %v4832, %v4896
      %4898 = vmatmul.f32.gmra.mxu0 %v3445
      %v4899 = vpop.f32.mrf.mxu0
      %v4900 = vadd.f32 %v4835, %v4899
      %4901 = vmatmul.f32.gmra.mxu0 %v3448
      %v4902 = vpop.f32.mrf.mxu0
      %v4903 = vadd.f32 %v4838, %v4902
      %4904 = vdwg.mxu0
      %v4905 = vld [vmem:[#allocation3 + $0x9] sm:$0xff]
      %v4906 = vld [vmem:[#allocation3 + $0x21] sm:$0xff]
      %v4907 = vld [vmem:[#allocation3 + $0x39] sm:$0xff]
      %v4908 = vld [vmem:[#allocation3 + $0x51] sm:$0xff]
      %v4909 = vld [vmem:[#allocation3 + $0x69] sm:$0xff]
      %v4910 = vld [vmem:[#allocation3 + $0x81] sm:$0xff]
      %v4911 = vld [vmem:[#allocation3 + $0x99] sm:$0xff]
      %v4912 = vld [vmem:[#allocation3 + $0xb1] sm:$0xff]
      %v4913 = vld [vmem:[#allocation3 + $0xc9] sm:$0xff]
      %v4914 = vld [vmem:[#allocation3 + $0xe1] sm:$0xff]
      %v4915 = vld [vmem:[#allocation3 + $0xf9] sm:$0xff]
      %v4916 = vld [vmem:[#allocation3 + $0x111] sm:$0xff]
      %v4917 = vld [vmem:[#allocation3 + $0x129] sm:$0xff]
      %v4918 = vld [vmem:[#allocation3 + $0x141] sm:$0xff]
      %v4919 = vld [vmem:[#allocation3 + $0x159] sm:$0xff]
      %v4920 = vld [vmem:[#allocation3 + $0x171] sm:$0xff]
      %v4922 = vsel %vm3228, %v4905, 0
      %v4925 = vsel %vm3228, %v4906, 0
      %v4928 = vsel %vm3228, %v4907, 0
      %v4931 = vsel %vm3228, %v4908, 0
      %v4934 = vsel %vm3228, %v4909, 0
      %v4937 = vsel %vm3228, %v4910, 0
      %v4940 = vsel %vm3228, %v4911, 0
      %v4943 = vsel %vm3228, %v4912, 0
      %v4946 = vsel %vm3228, %v4913, 0
      %v4949 = vsel %vm3228, %v4914, 0
      %v4952 = vsel %vm3228, %v4915, 0
      %v4955 = vsel %vm3228, %v4916, 0
      %v4958 = vsel %vm3228, %v4917, 0
      %v4961 = vsel %vm3228, %v4918, 0
      %v4964 = vsel %vm3228, %v4919, 0
      %v4967 = vsel %vm3228, %v4920, 0
      %4969 = vmatpush.msra.mxu0 0.0
      %4970 = vmatpush.msra.mxu0 0.0
      %4971 = vmatpush.msra.mxu0 0.0
      %4972 = vmatpush.msra.mxu0 0.0
      %4973 = vmatpush.msra.mxu0 0.0
      %4974 = vmatpush.msra.mxu0 0.0
      %4975 = vmatpush.msra.mxu0 0.0
      %4976 = vmatpush.msra.mxu0 0.0
      %4977 = vmatpush.msra.mxu0 0.0
      %4978 = vmatpush.msra.mxu0 0.0
      %4979 = vmatpush.msra.mxu0 0.0
      %4980 = vmatpush.msra.mxu0 0.0
      %4981 = vmatpush.msra.mxu0 %v3664
      %4982 = vmatpush.msra.mxu0 %v3663
      %4983 = vmatpush.msra.mxu0 %v3662
      %4984 = vmatpush.msra.mxu0 %v3661
      %4985 = vmatmul.f32.gmra.mxu0 %v4922
      %v4986 = vpop.f32.mrf.mxu0
      %v4987 = vadd.f32 0.0, %v4986
      %4988 = vmatmul.f32.gmra.mxu0 %v4925
      %v4989 = vpop.f32.mrf.mxu0
      %v4990 = vadd.f32 0.0, %v4989
      %4991 = vmatmul.f32.gmra.mxu0 %v4928
      %v4992 = vpop.f32.mrf.mxu0
      %v4993 = vadd.f32 0.0, %v4992
      %4994 = vmatmul.f32.gmra.mxu0 %v4931
      %v4995 = vpop.f32.mrf.mxu0
      %v4996 = vadd.f32 0.0, %v4995
      %4997 = vmatmul.f32.gmra.mxu0 %v4934
      %v4998 = vpop.f32.mrf.mxu0
      %v4999 = vadd.f32 0.0, %v4998
      %5000 = vmatmul.f32.gmra.mxu0 %v4937
      %v5001 = vpop.f32.mrf.mxu0
      %v5002 = vadd.f32 0.0, %v5001
      %5003 = vmatmul.f32.gmra.mxu0 %v4940
      %v5004 = vpop.f32.mrf.mxu0
      %v5005 = vadd.f32 0.0, %v5004
      %5006 = vmatmul.f32.gmra.mxu0 %v4943
      %v5007 = vpop.f32.mrf.mxu0
      %v5008 = vadd.f32 0.0, %v5007
      %5009 = vmatmul.f32.gmra.mxu0 %v4946
      %v5010 = vpop.f32.mrf.mxu0
      %v5011 = vadd.f32 0.0, %v5010
      %5012 = vmatmul.f32.gmra.mxu0 %v4949
      %v5013 = vpop.f32.mrf.mxu0
      %v5014 = vadd.f32 0.0, %v5013
      %5015 = vmatmul.f32.gmra.mxu0 %v4952
      %v5016 = vpop.f32.mrf.mxu0
      %v5017 = vadd.f32 0.0, %v5016
      %5018 = vmatmul.f32.gmra.mxu0 %v4955
      %v5019 = vpop.f32.mrf.mxu0
      %v5020 = vadd.f32 0.0, %v5019
      %5021 = vmatmul.f32.gmra.mxu0 %v4958
      %v5022 = vpop.f32.mrf.mxu0
      %v5023 = vadd.f32 0.0, %v5022
      %5024 = vmatmul.f32.gmra.mxu0 %v4961
      %v5025 = vpop.f32.mrf.mxu0
      %v5026 = vadd.f32 0.0, %v5025
      %5027 = vmatmul.f32.gmra.mxu0 %v4964
      %v5028 = vpop.f32.mrf.mxu0
      %v5029 = vadd.f32 0.0, %v5028
      %5030 = vmatmul.f32.gmra.mxu0 %v4967
      %v5031 = vpop.f32.mrf.mxu0
      %v5032 = vadd.f32 0.0, %v5031
      %5033 = vdwg.mxu0
      %v5034 = vadd.f32 %v4858, %v4987
      %v5035 = vadd.f32 %v4861, %v4990
      %v5036 = vadd.f32 %v4864, %v4993
      %v5037 = vadd.f32 %v4867, %v4996
      %v5038 = vadd.f32 %v4870, %v4999
      %v5039 = vadd.f32 %v4873, %v5002
      %v5040 = vadd.f32 %v4876, %v5005
      %v5041 = vadd.f32 %v4879, %v5008
      %v5042 = vadd.f32 %v4882, %v5011
      %v5043 = vadd.f32 %v4885, %v5014
      %v5044 = vadd.f32 %v4888, %v5017
      %v5045 = vadd.f32 %v4891, %v5020
      %v5046 = vadd.f32 %v4894, %v5023
      %v5047 = vadd.f32 %v4897, %v5026
      %v5048 = vadd.f32 %v4900, %v5029
      %v5049 = vadd.f32 %v4903, %v5032
      %5050 = vmatpush.msra.mxu0 0.0
      %5051 = vmatpush.msra.mxu0 0.0
      %5052 = vmatpush.msra.mxu0 0.0
      %5053 = vmatpush.msra.mxu0 0.0
      %5054 = vmatpush.msra.mxu0 0.0
      %5055 = vmatpush.msra.mxu0 0.0
      %5056 = vmatpush.msra.mxu0 0.0
      %5057 = vmatpush.msra.mxu0 0.0
      %5058 = vmatpush.msra.mxu0 0.0
      %5059 = vmatpush.msra.mxu0 0.0
      %5060 = vmatpush.msra.mxu0 0.0
      %5061 = vmatpush.msra.mxu0 0.0
      %5062 = vmatpush.msra.mxu0 %v3830
      %5063 = vmatpush.msra.mxu0 %v3829
      %5064 = vmatpush.msra.mxu0 %v3828
      %5065 = vmatpush.msra.mxu0 %v3827
      %5066 = vmatmul.f32.gmra.mxu0 %v4014
      %v5067 = vpop.f32.mrf.mxu0
      %v5068 = vadd.f32 0.0, %v5067
      %5069 = vmatmul.f32.gmra.mxu0 %v4017
      %v5070 = vpop.f32.mrf.mxu0
      %v5071 = vadd.f32 0.0, %v5070
      %5072 = vmatmul.f32.gmra.mxu0 %v4020
      %v5073 = vpop.f32.mrf.mxu0
      %v5074 = vadd.f32 0.0, %v5073
      %5075 = vmatmul.f32.gmra.mxu0 %v4023
      %v5076 = vpop.f32.mrf.mxu0
      %v5077 = vadd.f32 0.0, %v5076
      %5078 = vmatmul.f32.gmra.mxu0 %v4026
      %v5079 = vpop.f32.mrf.mxu0
      %v5080 = vadd.f32 0.0, %v5079
      %5081 = vmatmul.f32.gmra.mxu0 %v4029
      %v5082 = vpop.f32.mrf.mxu0
      %v5083 = vadd.f32 0.0, %v5082
      %5084 = vmatmul.f32.gmra.mxu0 %v4032
      %v5085 = vpop.f32.mrf.mxu0
      %v5086 = vadd.f32 0.0, %v5085
      %5087 = vmatmul.f32.gmra.mxu0 %v4035
      %v5088 = vpop.f32.mrf.mxu0
      %v5089 = vadd.f32 0.0, %v5088
      %5090 = vmatmul.f32.gmra.mxu0 %v4038
      %v5091 = vpop.f32.mrf.mxu0
      %v5092 = vadd.f32 0.0, %v5091
      %5093 = vmatmul.f32.gmra.mxu0 %v4041
      %v5094 = vpop.f32.mrf.mxu0
      %v5095 = vadd.f32 0.0, %v5094
      %5096 = vmatmul.f32.gmra.mxu0 %v4044
      %v5097 = vpop.f32.mrf.mxu0
      %v5098 = vadd.f32 0.0, %v5097
      %5099 = vmatmul.f32.gmra.mxu0 %v4047
      %v5100 = vpop.f32.mrf.mxu0
      %v5101 = vadd.f32 0.0, %v5100
      %5102 = vmatmul.f32.gmra.mxu0 %v4050
      %v5103 = vpop.f32.mrf.mxu0
      %v5104 = vadd.f32 0.0, %v5103
      %5105 = vmatmul.f32.gmra.mxu0 %v4053
      %v5106 = vpop.f32.mrf.mxu0
      %v5107 = vadd.f32 0.0, %v5106
      %5108 = vmatmul.f32.gmra.mxu0 %v4056
      %v5109 = vpop.f32.mrf.mxu0
      %v5110 = vadd.f32 0.0, %v5109
      %5111 = vmatmul.f32.gmra.mxu0 %v4059
      %v5112 = vpop.f32.mrf.mxu0
      %v5113 = vadd.f32 0.0, %v5112
      %5114 = vdwg.mxu0
      %v5115 = vadd.f32 %v5034, %v5068
      %v5116 = vadd.f32 %v5035, %v5071
      %v5117 = vadd.f32 %v5036, %v5074
      %v5118 = vadd.f32 %v5037, %v5077
      %v5119 = vadd.f32 %v5038, %v5080
      %v5120 = vadd.f32 %v5039, %v5083
      %v5121 = vadd.f32 %v5040, %v5086
      %v5122 = vadd.f32 %v5041, %v5089
      %v5123 = vadd.f32 %v5042, %v5092
      %v5124 = vadd.f32 %v5043, %v5095
      %v5125 = vadd.f32 %v5044, %v5098
      %v5126 = vadd.f32 %v5045, %v5101
      %v5127 = vadd.f32 %v5046, %v5104
      %v5128 = vadd.f32 %v5047, %v5107
      %v5129 = vadd.f32 %v5048, %v5110
      %v5130 = vadd.f32 %v5049, %v5113
      %5131 = vmatpush.msra.mxu0 0.0
      %5132 = vmatpush.msra.mxu0 0.0
      %5133 = vmatpush.msra.mxu0 0.0
      %5134 = vmatpush.msra.mxu0 0.0
      %5135 = vmatpush.msra.mxu0 0.0
      %5136 = vmatpush.msra.mxu0 0.0
      %5137 = vmatpush.msra.mxu0 0.0
      %5138 = vmatpush.msra.mxu0 0.0
      %5139 = vmatpush.msra.mxu0 0.0
      %5140 = vmatpush.msra.mxu0 0.0
      %5141 = vmatpush.msra.mxu0 0.0
      %5142 = vmatpush.msra.mxu0 0.0
      %5143 = vmatpush.msra.mxu0 %v4012
      %5144 = vmatpush.msra.mxu0 %v4011
      %5145 = vmatpush.msra.mxu0 %v4010
      %5146 = vmatpush.msra.mxu0 %v4009
      %5147 = vmatmul.f32.gmra.mxu0 %v4179
      %v5148 = vpop.f32.mrf.mxu0
      %v5149 = vadd.f32 0.0, %v5148
      %5150 = vmatmul.f32.gmra.mxu0 %v4181
      %v5151 = vpop.f32.mrf.mxu0
      %v5152 = vadd.f32 0.0, %v5151
      %5153 = vmatmul.f32.gmra.mxu0 %v4183
      %v5154 = vpop.f32.mrf.mxu0
      %v5155 = vadd.f32 0.0, %v5154
      %5156 = vmatmul.f32.gmra.mxu0 %v4185
      %v5157 = vpop.f32.mrf.mxu0
      %v5158 = vadd.f32 0.0, %v5157
      %5159 = vmatmul.f32.gmra.mxu0 %v4187
      %v5160 = vpop.f32.mrf.mxu0
      %v5161 = vadd.f32 0.0, %v5160
      %5162 = vmatmul.f32.gmra.mxu0 %v4189
      %v5163 = vpop.f32.mrf.mxu0
      %v5164 = vadd.f32 0.0, %v5163
      %5165 = vmatmul.f32.gmra.mxu0 %v4191
      %v5166 = vpop.f32.mrf.mxu0
      %v5167 = vadd.f32 0.0, %v5166
      %5168 = vmatmul.f32.gmra.mxu0 %v4193
      %v5169 = vpop.f32.mrf.mxu0
      %v5170 = vadd.f32 0.0, %v5169
      %5171 = vmatmul.f32.gmra.mxu0 %v4195
      %v5172 = vpop.f32.mrf.mxu0
      %v5173 = vadd.f32 0.0, %v5172
      %5174 = vmatmul.f32.gmra.mxu0 %v4197
      %v5175 = vpop.f32.mrf.mxu0
      %v5176 = vadd.f32 0.0, %v5175
      %5177 = vmatmul.f32.gmra.mxu0 %v4199
      %v5178 = vpop.f32.mrf.mxu0
      %v5179 = vadd.f32 0.0, %v5178
      %5180 = vmatmul.f32.gmra.mxu0 %v4201
      %v5181 = vpop.f32.mrf.mxu0
      %v5182 = vadd.f32 0.0, %v5181
      %5183 = vmatmul.f32.gmra.mxu0 %v4203
      %v5184 = vpop.f32.mrf.mxu0
      %v5185 = vadd.f32 0.0, %v5184
      %5186 = vmatmul.f32.gmra.mxu0 %v4205
      %v5187 = vpop.f32.mrf.mxu0
      %v5188 = vadd.f32 0.0, %v5187
      %5189 = vmatmul.f32.gmra.mxu0 %v4207
      %v5190 = vpop.f32.mrf.mxu0
      %v5191 = vadd.f32 0.0, %v5190
      %5192 = vmatmul.f32.gmra.mxu0 %v4209
      %v5193 = vpop.f32.mrf.mxu0
      %v5194 = vadd.f32 0.0, %v5193
      %5195 = vdwg.mxu0
      %v5196 = vadd.f32 %v5115, %v5149
      %v5197 = vadd.f32 %v5116, %v5152
      %v5198 = vadd.f32 %v5117, %v5155
      %v5199 = vadd.f32 %v5118, %v5158
      %v5200 = vadd.f32 %v5119, %v5161
      %v5201 = vadd.f32 %v5120, %v5164
      %v5202 = vadd.f32 %v5121, %v5167
      %v5203 = vadd.f32 %v5122, %v5170
      %v5204 = vadd.f32 %v5123, %v5173
      %v5205 = vadd.f32 %v5124, %v5176
      %v5206 = vadd.f32 %v5125, %v5179
      %v5207 = vadd.f32 %v5126, %v5182
      %v5208 = vadd.f32 %v5127, %v5185
      %v5209 = vadd.f32 %v5128, %v5188
      %v5210 = vadd.f32 %v5129, %v5191
      %v5211 = vadd.f32 %v5130, %v5194
      %v5212 = vld [vmem:[%s3227 + $0x9] sm:$0xff]
      %v5213 = vld [vmem:[%s3227 + $0x21] sm:$0xff]
      %v5214 = vld [vmem:[%s3227 + $0x39] sm:$0xff]
      %v5215 = vld [vmem:[%s3227 + $0x51] sm:$0xff]
      %v5216 = vld [vmem:[%s3227 + $0x69] sm:$0xff]
      %v5217 = vld [vmem:[%s3227 + $0x81] sm:$0xff]
      %v5218 = vld [vmem:[%s3227 + $0x99] sm:$0xff]
      %v5219 = vld [vmem:[%s3227 + $0xb1] sm:$0xff]
      %v5220 = vld [vmem:[%s3227 + $0xc9] sm:$0xff]
      %v5221 = vld [vmem:[%s3227 + $0xe1] sm:$0xff]
      %v5222 = vld [vmem:[%s3227 + $0xf9] sm:$0xff]
      %v5223 = vld [vmem:[%s3227 + $0x111] sm:$0xff]
      %v5224 = vld [vmem:[%s3227 + $0x129] sm:$0xff]
      %v5225 = vld [vmem:[%s3227 + $0x141] sm:$0xff]
      %v5226 = vld [vmem:[%s3227 + $0x159] sm:$0xff]
      %v5227 = vld [vmem:[%s3227 + $0x171] sm:$0xff]
      %v5229 = vsel %vm3228, %v5212, 0
      %v5232 = vsel %vm3228, %v5213, 0
      %v5235 = vsel %vm3228, %v5214, 0
      %v5238 = vsel %vm3228, %v5215, 0
      %v5241 = vsel %vm3228, %v5216, 0
      %v5244 = vsel %vm3228, %v5217, 0
      %v5247 = vsel %vm3228, %v5218, 0
      %v5250 = vsel %vm3228, %v5219, 0
      %v5253 = vsel %vm3228, %v5220, 0
      %v5256 = vsel %vm3228, %v5221, 0
      %v5259 = vsel %vm3228, %v5222, 0
      %v5262 = vsel %vm3228, %v5223, 0
      %v5265 = vsel %vm3228, %v5224, 0
      %v5268 = vsel %vm3228, %v5225, 0
      %v5271 = vsel %vm3228, %v5226, 0
      %v5274 = vsel %vm3228, %v5227, 0
      %5276 = vmatpush.msra.mxu0 0.0
      %5277 = vmatpush.msra.mxu0 0.0
      %5278 = vmatpush.msra.mxu0 0.0
      %5279 = vmatpush.msra.mxu0 0.0
      %5280 = vmatpush.msra.mxu0 0.0
      %5281 = vmatpush.msra.mxu0 0.0
      %5282 = vmatpush.msra.mxu0 0.0
      %5283 = vmatpush.msra.mxu0 0.0
      %5284 = vmatpush.msra.mxu0 0.0
      %5285 = vmatpush.msra.mxu0 0.0
      %5286 = vmatpush.msra.mxu0 0.0
      %5287 = vmatpush.msra.mxu0 0.0
      %5288 = vmatpush.msra.mxu0 %v4146
      %5289 = vmatpush.msra.mxu0 %v4145
      %5290 = vmatpush.msra.mxu0 %v4144
      %5291 = vmatpush.msra.mxu0 %v4143
      %5292 = vmatmul.f32.gmra.mxu0 %v5229
      %v5293 = vpop.f32.mrf.mxu0
      %v5294 = vadd.f32 0.0, %v5293
      %5295 = vmatmul.f32.gmra.mxu0 %v5232
      %v5296 = vpop.f32.mrf.mxu0
      %v5297 = vadd.f32 0.0, %v5296
      %5298 = vmatmul.f32.gmra.mxu0 %v5235
      %v5299 = vpop.f32.mrf.mxu0
      %v5300 = vadd.f32 0.0, %v5299
      %5301 = vmatmul.f32.gmra.mxu0 %v5238
      %v5302 = vpop.f32.mrf.mxu0
      %v5303 = vadd.f32 0.0, %v5302
      %5304 = vmatmul.f32.gmra.mxu0 %v5241
      %v5305 = vpop.f32.mrf.mxu0
      %v5306 = vadd.f32 0.0, %v5305
      %5307 = vmatmul.f32.gmra.mxu0 %v5244
      %v5308 = vpop.f32.mrf.mxu0
      %v5309 = vadd.f32 0.0, %v5308
      %5310 = vmatmul.f32.gmra.mxu0 %v5247
      %v5311 = vpop.f32.mrf.mxu0
      %v5312 = vadd.f32 0.0, %v5311
      %5313 = vmatmul.f32.gmra.mxu0 %v5250
      %v5314 = vpop.f32.mrf.mxu0
      %v5315 = vadd.f32 0.0, %v5314
      %5316 = vmatmul.f32.gmra.mxu0 %v5253
      %v5317 = vpop.f32.mrf.mxu0
      %v5318 = vadd.f32 0.0, %v5317
      %5319 = vmatmul.f32.gmra.mxu0 %v5256
      %v5320 = vpop.f32.mrf.mxu0
      %v5321 = vadd.f32 0.0, %v5320
      %5322 = vmatmul.f32.gmra.mxu0 %v5259
      %v5323 = vpop.f32.mrf.mxu0
      %v5324 = vadd.f32 0.0, %v5323
      %5325 = vmatmul.f32.gmra.mxu0 %v5262
      %v5326 = vpop.f32.mrf.mxu0
      %v5327 = vadd.f32 0.0, %v5326
      %5328 = vmatmul.f32.gmra.mxu0 %v5265
      %v5329 = vpop.f32.mrf.mxu0
      %v5330 = vadd.f32 0.0, %v5329
      %5331 = vmatmul.f32.gmra.mxu0 %v5268
      %v5332 = vpop.f32.mrf.mxu0
      %v5333 = vadd.f32 0.0, %v5332
      %5334 = vmatmul.f32.gmra.mxu0 %v5271
      %v5335 = vpop.f32.mrf.mxu0
      %v5336 = vadd.f32 0.0, %v5335
      %5337 = vmatmul.f32.gmra.mxu0 %v5274
      %v5338 = vpop.f32.mrf.mxu0
      %v5339 = vadd.f32 0.0, %v5338
      %5340 = vdwg.mxu0
      %v5341 = vadd.f32 %v5196, %v5294
      %v5342 = vadd.f32 %v5197, %v5297
      %v5343 = vadd.f32 %v5198, %v5300
      %v5344 = vadd.f32 %v5199, %v5303
      %v5345 = vadd.f32 %v5200, %v5306
      %v5346 = vadd.f32 %v5201, %v5309
      %v5347 = vadd.f32 %v5202, %v5312
      %v5348 = vadd.f32 %v5203, %v5315
      %v5349 = vadd.f32 %v5204, %v5318
      %v5350 = vadd.f32 %v5205, %v5321
      %v5351 = vadd.f32 %v5206, %v5324
      %v5352 = vadd.f32 %v5207, %v5327
      %v5353 = vadd.f32 %v5208, %v5330
      %v5354 = vadd.f32 %v5209, %v5333
      %v5355 = vadd.f32 %v5210, %v5336
      %v5356 = vadd.f32 %v5211, %v5339
      %5357 = vmatpush.msra.mxu0 0.0
      %5358 = vmatpush.msra.mxu0 0.0
      %5359 = vmatpush.msra.mxu0 0.0
      %5360 = vmatpush.msra.mxu0 0.0
      %5361 = vmatpush.msra.mxu0 0.0
      %5362 = vmatpush.msra.mxu0 0.0
      %5363 = vmatpush.msra.mxu0 0.0
      %5364 = vmatpush.msra.mxu0 0.0
      %5365 = vmatpush.msra.mxu0 0.0
      %5366 = vmatpush.msra.mxu0 0.0
      %5367 = vmatpush.msra.mxu0 0.0
      %5368 = vmatpush.msra.mxu0 0.0
      %5369 = vmatpush.msra.mxu0 %v4313
      %5370 = vmatpush.msra.mxu0 %v4312
      %5371 = vmatpush.msra.mxu0 %v4311
      %5372 = vmatpush.msra.mxu0 %v4310
      %5373 = vmatmul.f32.gmra.mxu0 %v4497
      %v5374 = vpop.f32.mrf.mxu0
      %v5375 = vadd.f32 0.0, %v5374
      %5376 = vmatmul.f32.gmra.mxu0 %v4500
      %v5377 = vpop.f32.mrf.mxu0
      %v5378 = vadd.f32 0.0, %v5377
      %5379 = vmatmul.f32.gmra.mxu0 %v4503
      %v5380 = vpop.f32.mrf.mxu0
      %v5381 = vadd.f32 0.0, %v5380
      %5382 = vmatmul.f32.gmra.mxu0 %v4506
      %v5383 = vpop.f32.mrf.mxu0
      %v5384 = vadd.f32 0.0, %v5383
      %5385 = vmatmul.f32.gmra.mxu0 %v4509
      %v5386 = vpop.f32.mrf.mxu0
      %v5387 = vadd.f32 0.0, %v5386
      %5388 = vmatmul.f32.gmra.mxu0 %v4512
      %v5389 = vpop.f32.mrf.mxu0
      %v5390 = vadd.f32 0.0, %v5389
      %5391 = vmatmul.f32.gmra.mxu0 %v4515
      %v5392 = vpop.f32.mrf.mxu0
      %v5393 = vadd.f32 0.0, %v5392
      %5394 = vmatmul.f32.gmra.mxu0 %v4518
      %v5395 = vpop.f32.mrf.mxu0
      %v5396 = vadd.f32 0.0, %v5395
      %5397 = vmatmul.f32.gmra.mxu0 %v4521
      %v5398 = vpop.f32.mrf.mxu0
      %v5399 = vadd.f32 0.0, %v5398
      %5400 = vmatmul.f32.gmra.mxu0 %v4524
      %v5401 = vpop.f32.mrf.mxu0
      %v5402 = vadd.f32 0.0, %v5401
      %5403 = vmatmul.f32.gmra.mxu0 %v4527
      %v5404 = vpop.f32.mrf.mxu0
      %v5405 = vadd.f32 0.0, %v5404
      %5406 = vmatmul.f32.gmra.mxu0 %v4530
      %v5407 = vpop.f32.mrf.mxu0
      %v5408 = vadd.f32 0.0, %v5407
      %5409 = vmatmul.f32.gmra.mxu0 %v4533
      %v5410 = vpop.f32.mrf.mxu0
      %v5411 = vadd.f32 0.0, %v5410
      %5412 = vmatmul.f32.gmra.mxu0 %v4536
      %v5413 = vpop.f32.mrf.mxu0
      %v5414 = vadd.f32 0.0, %v5413
      %5415 = vmatmul.f32.gmra.mxu0 %v4539
      %v5416 = vpop.f32.mrf.mxu0
      %v5417 = vadd.f32 0.0, %v5416
      %5418 = vmatmul.f32.gmra.mxu0 %v4542
      %v5419 = vpop.f32.mrf.mxu0
      %v5420 = vadd.f32 0.0, %v5419
      %5421 = vdwg.mxu0
      %v5422 = vadd.f32 %v5341, %v5375
      %v5423 = vadd.f32 %v5342, %v5378
      %v5424 = vadd.f32 %v5343, %v5381
      %v5425 = vadd.f32 %v5344, %v5384
      %v5426 = vadd.f32 %v5345, %v5387
      %v5427 = vadd.f32 %v5346, %v5390
      %v5428 = vadd.f32 %v5347, %v5393
      %v5429 = vadd.f32 %v5348, %v5396
      %v5430 = vadd.f32 %v5349, %v5399
      %v5431 = vadd.f32 %v5350, %v5402
      %v5432 = vadd.f32 %v5351, %v5405
      %v5433 = vadd.f32 %v5352, %v5408
      %v5434 = vadd.f32 %v5353, %v5411
      %v5435 = vadd.f32 %v5354, %v5414
      %v5436 = vadd.f32 %v5355, %v5417
      %v5437 = vadd.f32 %v5356, %v5420
      %5438 = vmatpush.msra.mxu0 0.0
      %5439 = vmatpush.msra.mxu0 0.0
      %5440 = vmatpush.msra.mxu0 0.0
      %5441 = vmatpush.msra.mxu0 0.0
      %5442 = vmatpush.msra.mxu0 0.0
      %5443 = vmatpush.msra.mxu0 0.0
      %5444 = vmatpush.msra.mxu0 0.0
      %5445 = vmatpush.msra.mxu0 0.0
      %5446 = vmatpush.msra.mxu0 0.0
      %5447 = vmatpush.msra.mxu0 0.0
      %5448 = vmatpush.msra.mxu0 0.0
      %5449 = vmatpush.msra.mxu0 0.0
      %5450 = vmatpush.msra.mxu0 %v4495
      %5451 = vmatpush.msra.mxu0 %v4494
      %5452 = vmatpush.msra.mxu0 %v4493
      %5453 = vmatpush.msra.mxu0 %v4492
      %5454 = vmatmul.f32.gmra.mxu0 %v4662
      %v5455 = vpop.f32.mrf.mxu0
      %v5456 = vadd.f32 0.0, %v5455
      %5457 = vmatmul.f32.gmra.mxu0 %v4664
      %v5458 = vpop.f32.mrf.mxu0
      %v5459 = vadd.f32 0.0, %v5458
      %5460 = vmatmul.f32.gmra.mxu0 %v4666
      %v5461 = vpop.f32.mrf.mxu0
      %v5462 = vadd.f32 0.0, %v5461
      %5463 = vmatmul.f32.gmra.mxu0 %v4668
      %v5464 = vpop.f32.mrf.mxu0
      %v5465 = vadd.f32 0.0, %v5464
      %5466 = vmatmul.f32.gmra.mxu0 %v4670
      %v5467 = vpop.f32.mrf.mxu0
      %v5468 = vadd.f32 0.0, %v5467
      %5469 = vmatmul.f32.gmra.mxu0 %v4672
      %v5470 = vpop.f32.mrf.mxu0
      %v5471 = vadd.f32 0.0, %v5470
      %5472 = vmatmul.f32.gmra.mxu0 %v4674
      %v5473 = vpop.f32.mrf.mxu0
      %v5474 = vadd.f32 0.0, %v5473
      %5475 = vmatmul.f32.gmra.mxu0 %v4676
      %v5476 = vpop.f32.mrf.mxu0
      %v5477 = vadd.f32 0.0, %v5476
      %5478 = vmatmul.f32.gmra.mxu0 %v4678
      %v5479 = vpop.f32.mrf.mxu0
      %v5480 = vadd.f32 0.0, %v5479
      %5481 = vmatmul.f32.gmra.mxu0 %v4680
      %v5482 = vpop.f32.mrf.mxu0
      %v5483 = vadd.f32 0.0, %v5482
      %5484 = vmatmul.f32.gmra.mxu0 %v4682
      %v5485 = vpop.f32.mrf.mxu0
      %v5486 = vadd.f32 0.0, %v5485
      %5487 = vmatmul.f32.gmra.mxu0 %v4684
      %v5488 = vpop.f32.mrf.mxu0
      %v5489 = vadd.f32 0.0, %v5488
      %5490 = vmatmul.f32.gmra.mxu0 %v4686
      %v5491 = vpop.f32.mrf.mxu0
      %v5492 = vadd.f32 0.0, %v5491
      %5493 = vmatmul.f32.gmra.mxu0 %v4688
      %v5494 = vpop.f32.mrf.mxu0
      %v5495 = vadd.f32 0.0, %v5494
      %5496 = vmatmul.f32.gmra.mxu0 %v4690
      %v5497 = vpop.f32.mrf.mxu0
      %v5498 = vadd.f32 0.0, %v5497
      %5499 = vmatmul.f32.gmra.mxu0 %v4692
      %v5500 = vpop.f32.mrf.mxu0
      %v5501 = vadd.f32 0.0, %v5500
      %5502 = vdwg.mxu0
      %v5503 = vadd.f32 %v5422, %v5456
      %v5504 = vadd.f32 %v5423, %v5459
      %v5505 = vadd.f32 %v5424, %v5462
      %v5506 = vadd.f32 %v5425, %v5465
      %v5507 = vadd.f32 %v5426, %v5468
      %v5508 = vadd.f32 %v5427, %v5471
      %v5509 = vadd.f32 %v5428, %v5474
      %v5510 = vadd.f32 %v5429, %v5477
      %v5511 = vadd.f32 %v5430, %v5480
      %v5512 = vadd.f32 %v5431, %v5483
      %v5513 = vadd.f32 %v5432, %v5486
      %v5514 = vadd.f32 %v5433, %v5489
      %v5515 = vadd.f32 %v5434, %v5492
      %v5516 = vadd.f32 %v5435, %v5495
      %v5517 = vadd.f32 %v5436, %v5498
      %v5518 = vadd.f32 %v5437, %v5501
      %v5519 = vld [vmem:[%s4292 + $0x9] sm:$0xff]
      %v5520 = vld [vmem:[%s4292 + $0x21] sm:$0xff]
      %v5521 = vld [vmem:[%s4292 + $0x39] sm:$0xff]
      %v5522 = vld [vmem:[%s4292 + $0x51] sm:$0xff]
      %v5523 = vld [vmem:[%s4292 + $0x69] sm:$0xff]
      %v5524 = vld [vmem:[%s4292 + $0x81] sm:$0xff]
      %v5525 = vld [vmem:[%s4292 + $0x99] sm:$0xff]
      %v5526 = vld [vmem:[%s4292 + $0xb1] sm:$0xff]
      %v5527 = vld [vmem:[%s4292 + $0xc9] sm:$0xff]
      %v5528 = vld [vmem:[%s4292 + $0xe1] sm:$0xff]
      %v5529 = vld [vmem:[%s4292 + $0xf9] sm:$0xff]
      %v5530 = vld [vmem:[%s4292 + $0x111] sm:$0xff]
      %v5531 = vld [vmem:[%s4292 + $0x129] sm:$0xff]
      %v5532 = vld [vmem:[%s4292 + $0x141] sm:$0xff]
      %v5533 = vld [vmem:[%s4292 + $0x159] sm:$0xff]
      %v5534 = vld [vmem:[%s4292 + $0x171] sm:$0xff]
      %v5536 = vsel %vm3228, %v5519, 0
      %v5539 = vsel %vm3228, %v5520, 0
      %v5542 = vsel %vm3228, %v5521, 0
      %v5545 = vsel %vm3228, %v5522, 0
      %v5548 = vsel %vm3228, %v5523, 0
      %v5551 = vsel %vm3228, %v5524, 0
      %v5554 = vsel %vm3228, %v5525, 0
      %v5557 = vsel %vm3228, %v5526, 0
      %v5560 = vsel %vm3228, %v5527, 0
      %v5563 = vsel %vm3228, %v5528, 0
      %v5566 = vsel %vm3228, %v5529, 0
      %v5569 = vsel %vm3228, %v5530, 0
      %v5572 = vsel %vm3228, %v5531, 0
      %v5575 = vsel %vm3228, %v5532, 0
      %v5578 = vsel %vm3228, %v5533, 0
      %v5581 = vsel %vm3228, %v5534, 0
      %5583 = vmatpush.msra.mxu0 0.0
      %5584 = vmatpush.msra.mxu0 0.0
      %5585 = vmatpush.msra.mxu0 0.0
      %5586 = vmatpush.msra.mxu0 0.0
      %5587 = vmatpush.msra.mxu0 0.0
      %5588 = vmatpush.msra.mxu0 0.0
      %5589 = vmatpush.msra.mxu0 0.0
      %5590 = vmatpush.msra.mxu0 0.0
      %5591 = vmatpush.msra.mxu0 0.0
      %5592 = vmatpush.msra.mxu0 0.0
      %5593 = vmatpush.msra.mxu0 0.0
      %5594 = vmatpush.msra.mxu0 0.0
      %5595 = vmatpush.msra.mxu0 %v4629
      %5596 = vmatpush.msra.mxu0 %v4628
      %5597 = vmatpush.msra.mxu0 %v4627
      %5598 = vmatpush.msra.mxu0 %v4626
      %5599 = vmatmul.f32.gmra.mxu0 %v5536
      %v5600 = vpop.f32.mrf.mxu0
      %v5601 = vadd.f32 0.0, %v5600
      %5602 = vmatmul.f32.gmra.mxu0 %v5539
      %v5603 = vpop.f32.mrf.mxu0
      %v5604 = vadd.f32 0.0, %v5603
      %5605 = vmatmul.f32.gmra.mxu0 %v5542
      %v5606 = vpop.f32.mrf.mxu0
      %v5607 = vadd.f32 0.0, %v5606
      %5608 = vmatmul.f32.gmra.mxu0 %v5545
      %v5609 = vpop.f32.mrf.mxu0
      %v5610 = vadd.f32 0.0, %v5609
      %5611 = vmatmul.f32.gmra.mxu0 %v5548
      %v5612 = vpop.f32.mrf.mxu0
      %v5613 = vadd.f32 0.0, %v5612
      %5614 = vmatmul.f32.gmra.mxu0 %v5551
      %v5615 = vpop.f32.mrf.mxu0
      %v5616 = vadd.f32 0.0, %v5615
      %5617 = vmatmul.f32.gmra.mxu0 %v5554
      %v5618 = vpop.f32.mrf.mxu0
      %v5619 = vadd.f32 0.0, %v5618
      %5620 = vmatmul.f32.gmra.mxu0 %v5557
      %v5621 = vpop.f32.mrf.mxu0
      %v5622 = vadd.f32 0.0, %v5621
      %5623 = vmatmul.f32.gmra.mxu0 %v5560
      %v5624 = vpop.f32.mrf.mxu0
      %v5625 = vadd.f32 0.0, %v5624
      %5626 = vmatmul.f32.gmra.mxu0 %v5563
      %v5627 = vpop.f32.mrf.mxu0
      %v5628 = vadd.f32 0.0, %v5627
      %5629 = vmatmul.f32.gmra.mxu0 %v5566
      %v5630 = vpop.f32.mrf.mxu0
      %v5631 = vadd.f32 0.0, %v5630
      %5632 = vmatmul.f32.gmra.mxu0 %v5569
      %v5633 = vpop.f32.mrf.mxu0
      %v5634 = vadd.f32 0.0, %v5633
      %5635 = vmatmul.f32.gmra.mxu0 %v5572
      %v5636 = vpop.f32.mrf.mxu0
      %v5637 = vadd.f32 0.0, %v5636
      %5638 = vmatmul.f32.gmra.mxu0 %v5575
      %v5639 = vpop.f32.mrf.mxu0
      %v5640 = vadd.f32 0.0, %v5639
      %5641 = vmatmul.f32.gmra.mxu0 %v5578
      %v5642 = vpop.f32.mrf.mxu0
      %v5643 = vadd.f32 0.0, %v5642
      %5644 = vmatmul.f32.gmra.mxu0 %v5581
      %v5645 = vpop.f32.mrf.mxu0
      %v5646 = vadd.f32 0.0, %v5645
      %5647 = vdwg.mxu0
      %v5648 = vadd.f32 %v5503, %v5601
      %v5649 = vadd.f32 %v5504, %v5604
      %v5650 = vadd.f32 %v5505, %v5607
      %v5651 = vadd.f32 %v5506, %v5610
      %v5652 = vadd.f32 %v5507, %v5613
      %v5653 = vadd.f32 %v5508, %v5616
      %v5654 = vadd.f32 %v5509, %v5619
      %v5655 = vadd.f32 %v5510, %v5622
      %v5656 = vadd.f32 %v5511, %v5625
      %v5657 = vadd.f32 %v5512, %v5628
      %v5658 = vadd.f32 %v5513, %v5631
      %v5659 = vadd.f32 %v5514, %v5634
      %v5660 = vadd.f32 %v5515, %v5637
      %v5661 = vadd.f32 %v5516, %v5640
      %v5662 = vadd.f32 %v5517, %v5643
      %v5663 = vadd.f32 %v5518, %v5646
      %v5664 = vld [vmem:[%s7] sm:$0x1]
      %v5666 = vperm.slane %v5664, 0
      %v5668 = vadd.f32 %v4759, %v5666
      %v5669 = vadd.f32 %v4760, %v5666
      %v5670 = vadd.f32 %v4761, %v5666
      %v5671 = vadd.f32 %v4762, %v5666
      %v5672 = vadd.f32 %v4763, %v5666
      %v5673 = vadd.f32 %v4764, %v5666
      %v5674 = vadd.f32 %v4765, %v5666
      %v5675 = vadd.f32 %v4766, %v5666
      %v5676 = vadd.f32 %v4767, %v5666
      %v5677 = vadd.f32 %v4768, %v5666
      %v5678 = vadd.f32 %v4769, %v5666
      %v5679 = vadd.f32 %v4770, %v5666
      %v5680 = vadd.f32 %v4771, %v5666
      %v5681 = vadd.f32 %v4772, %v5666
      %v5682 = vadd.f32 %v4773, %v5666
      %v5683 = vadd.f32 %v4774, %v5666
      %v5684 = vmax.f32 %v5668, 0.0
      %v5685 = vmax.f32 %v5669, 0.0
      %v5686 = vmax.f32 %v5670, 0.0
      %v5687 = vmax.f32 %v5671, 0.0
      %v5688 = vmax.f32 %v5672, 0.0
      %v5689 = vmax.f32 %v5673, 0.0
      %v5690 = vmax.f32 %v5674, 0.0
      %v5691 = vmax.f32 %v5675, 0.0
      %v5692 = vmax.f32 %v5676, 0.0
      %v5693 = vmax.f32 %v5677, 0.0
      %v5694 = vmax.f32 %v5678, 0.0
      %v5695 = vmax.f32 %v5679, 0.0
      %v5696 = vmax.f32 %v5680, 0.0
      %v5697 = vmax.f32 %v5681, 0.0
      %v5698 = vmax.f32 %v5682, 0.0
      %v5699 = vmax.f32 %v5683, 0.0
      %5700 = vst.msk [vmem:[%s3227 + $0x8] sm:$0xff] %vm3228, %v5684
      %5701 = vst.msk [vmem:[%s3227 + $0x20] sm:$0xff] %vm3228, %v5685
      %5702 = vst.msk [vmem:[%s3227 + $0x38] sm:$0xff] %vm3228, %v5686
      %5703 = vst.msk [vmem:[%s3227 + $0x50] sm:$0xff] %vm3228, %v5687
      %5704 = vst.msk [vmem:[%s3227 + $0x68] sm:$0xff] %vm3228, %v5688
      %5705 = vst.msk [vmem:[%s3227 + $0x80] sm:$0xff] %vm3228, %v5689
      %5706 = vst.msk [vmem:[%s3227 + $0x98] sm:$0xff] %vm3228, %v5690
      %5707 = vst.msk [vmem:[%s3227 + $0xb0] sm:$0xff] %vm3228, %v5691
      %5708 = vst.msk [vmem:[%s3227 + $0xc8] sm:$0xff] %vm3228, %v5692
      %5709 = vst.msk [vmem:[%s3227 + $0xe0] sm:$0xff] %vm3228, %v5693
      %5710 = vst.msk [vmem:[%s3227 + $0xf8] sm:$0xff] %vm3228, %v5694
      %5711 = vst.msk [vmem:[%s3227 + $0x110] sm:$0xff] %vm3228, %v5695
      %5712 = vst.msk [vmem:[%s3227 + $0x128] sm:$0xff] %vm3228, %v5696
      %5713 = vst.msk [vmem:[%s3227 + $0x140] sm:$0xff] %vm3228, %v5697
      %5714 = vst.msk [vmem:[%s3227 + $0x158] sm:$0xff] %vm3228, %v5698
      %5715 = vst.msk [vmem:[%s3227 + $0x170] sm:$0xff] %vm3228, %v5699
      %v5716 = vld [vmem:[%s7] sm:$0x1]
      %v5718 = vperm.slane %v5716, 0
      %v5720 = vadd.f32 %v5648, %v5718
      %v5721 = vadd.f32 %v5649, %v5718
      %v5722 = vadd.f32 %v5650, %v5718
      %v5723 = vadd.f32 %v5651, %v5718
      %v5724 = vadd.f32 %v5652, %v5718
      %v5725 = vadd.f32 %v5653, %v5718
      %v5726 = vadd.f32 %v5654, %v5718
      %v5727 = vadd.f32 %v5655, %v5718
      %v5728 = vadd.f32 %v5656, %v5718
      %v5729 = vadd.f32 %v5657, %v5718
      %v5730 = vadd.f32 %v5658, %v5718
      %v5731 = vadd.f32 %v5659, %v5718
      %v5732 = vadd.f32 %v5660, %v5718
      %v5733 = vadd.f32 %v5661, %v5718
      %v5734 = vadd.f32 %v5662, %v5718
      %v5735 = vadd.f32 %v5663, %v5718
      %v5736 = vmax.f32 %v5720, 0.0
      %v5737 = vmax.f32 %v5721, 0.0
      %v5738 = vmax.f32 %v5722, 0.0
      %v5739 = vmax.f32 %v5723, 0.0
      %v5740 = vmax.f32 %v5724, 0.0
      %v5741 = vmax.f32 %v5725, 0.0
      %v5742 = vmax.f32 %v5726, 0.0
      %v5743 = vmax.f32 %v5727, 0.0
      %v5744 = vmax.f32 %v5728, 0.0
      %v5745 = vmax.f32 %v5729, 0.0
      %v5746 = vmax.f32 %v5730, 0.0
      %v5747 = vmax.f32 %v5731, 0.0
      %v5748 = vmax.f32 %v5732, 0.0
      %v5749 = vmax.f32 %v5733, 0.0
      %v5750 = vmax.f32 %v5734, 0.0
      %v5751 = vmax.f32 %v5735, 0.0
      %5768 = vrot.lane.b32.xlu0 %v5736, 32
      %v5769 = vpop.permute.xlu0 %5768
      %5770 = vrot.lane.b32.xlu0 %v5737, 32
      %v5771 = vpop.permute.xlu0 %5770
      %5772 = vrot.lane.b32.xlu0 %v5738, 32
      %v5773 = vpop.permute.xlu0 %5772
      %5774 = vrot.lane.b32.xlu0 %v5739, 32
      %v5775 = vpop.permute.xlu0 %5774
      %5776 = vrot.lane.b32.xlu0 %v5740, 32
      %v5777 = vpop.permute.xlu0 %5776
      %5778 = vrot.lane.b32.xlu0 %v5741, 32
      %v5779 = vpop.permute.xlu0 %5778
      %5780 = vrot.lane.b32.xlu0 %v5742, 32
      %v5781 = vpop.permute.xlu0 %5780
      %5782 = vrot.lane.b32.xlu0 %v5743, 32
      %v5783 = vpop.permute.xlu0 %5782
      %5784 = vrot.lane.b32.xlu0 %v5744, 32
      %v5785 = vpop.permute.xlu0 %5784
      %5786 = vrot.lane.b32.xlu0 %v5745, 32
      %v5787 = vpop.permute.xlu0 %5786
      %5788 = vrot.lane.b32.xlu0 %v5746, 32
      %v5789 = vpop.permute.xlu0 %5788
      %5790 = vrot.lane.b32.xlu0 %v5747, 32
      %v5791 = vpop.permute.xlu0 %5790
      %5792 = vrot.lane.b32.xlu0 %v5748, 32
      %v5793 = vpop.permute.xlu0 %5792
      %5794 = vrot.lane.b32.xlu0 %v5749, 32
      %v5795 = vpop.permute.xlu0 %5794
      %5796 = vrot.lane.b32.xlu0 %v5750, 32
      %v5797 = vpop.permute.xlu0 %5796
      %5798 = vrot.lane.b32.xlu0 %v5751, 32
      %v5799 = vpop.permute.xlu0 %5798
      %5816 = vst.msk [vmem:[%s3227 + $0x8] sm:$0xff] %vm738, %v5769
      %5817 = vst.msk [vmem:[%s3227 + $0x20] sm:$0xff] %vm738, %v5771
      %5818 = vst.msk [vmem:[%s3227 + $0x38] sm:$0xff] %vm738, %v5773
      %5819 = vst.msk [vmem:[%s3227 + $0x50] sm:$0xff] %vm738, %v5775
      %5820 = vst.msk [vmem:[%s3227 + $0x68] sm:$0xff] %vm738, %v5777
      %5821 = vst.msk [vmem:[%s3227 + $0x80] sm:$0xff] %vm738, %v5779
      %5822 = vst.msk [vmem:[%s3227 + $0x98] sm:$0xff] %vm738, %v5781
      %5823 = vst.msk [vmem:[%s3227 + $0xb0] sm:$0xff] %vm738, %v5783
      %5824 = vst.msk [vmem:[%s3227 + $0xc8] sm:$0xff] %vm738, %v5785
      %5825 = vst.msk [vmem:[%s3227 + $0xe0] sm:$0xff] %vm738, %v5787
      %5826 = vst.msk [vmem:[%s3227 + $0xf8] sm:$0xff] %vm738, %v5789
      %5827 = vst.msk [vmem:[%s3227 + $0x110] sm:$0xff] %vm738, %v5791
      %5828 = vst.msk [vmem:[%s3227 + $0x128] sm:$0xff] %vm738, %v5793
      %5829 = vst.msk [vmem:[%s3227 + $0x140] sm:$0xff] %vm738, %v5795
      %5830 = vst.msk [vmem:[%s3227 + $0x158] sm:$0xff] %vm738, %v5797
      %5831 = vst.msk [vmem:[%s3227 + $0x170] sm:$0xff] %vm738, %v5799
      %s5832 = sld [smem:[#allocation4]]
      %v5833 = vld [vmem:[#allocation3 + $0x7] sm:$0xff]
      %v5834 = vld [vmem:[#allocation3 + $0x1f] sm:$0xff]
      %v5835 = vld [vmem:[#allocation3 + $0x37] sm:$0xff]
      %v5836 = vld [vmem:[#allocation3 + $0x4f] sm:$0xff]
      %v5837 = vld [vmem:[#allocation3 + $0x67] sm:$0xff]
      %v5838 = vld [vmem:[#allocation3 + $0x7f] sm:$0xff]
      %v5839 = vld [vmem:[#allocation3 + $0x97] sm:$0xff]
      %v5840 = vld [vmem:[#allocation3 + $0xaf] sm:$0xff]
      %v5841 = vld [vmem:[#allocation3 + $0xc7] sm:$0xff]
      %v5842 = vld [vmem:[#allocation3 + $0xdf] sm:$0xff]
      %v5843 = vld [vmem:[#allocation3 + $0xf7] sm:$0xff]
      %v5844 = vld [vmem:[#allocation3 + $0x10f] sm:$0xff]
      %v5845 = vld [vmem:[#allocation3 + $0x127] sm:$0xff]
      %v5846 = vld [vmem:[#allocation3 + $0x13f] sm:$0xff]
      %v5847 = vld [vmem:[#allocation3 + $0x157] sm:$0xff]
      %v5848 = vld [vmem:[#allocation3 + $0x16f] sm:$0xff]
      %v5849 = vld [vmem:[%s8] sm:$0x1]
      %v5851 = vperm.slane %v5849, 0
      %5852 = vrot.lane.b32.xlu0 %v5851, 32
      %v5853 = vpop.permute.xlu0 %5852
      %v5855 = vmul.f32 %v5833, %v5853
      %v5856 = vmul.f32 %v5834, %v5853
      %v5857 = vmul.f32 %v5835, %v5853
      %v5858 = vmul.f32 %v5836, %v5853
      %v5859 = vmul.f32 %v5837, %v5853
      %v5860 = vmul.f32 %v5838, %v5853
      %v5861 = vmul.f32 %v5839, %v5853
      %v5862 = vmul.f32 %v5840, %v5853
      %v5863 = vmul.f32 %v5841, %v5853
      %v5864 = vmul.f32 %v5842, %v5853
      %v5865 = vmul.f32 %v5843, %v5853
      %v5866 = vmul.f32 %v5844, %v5853
      %v5867 = vmul.f32 %v5845, %v5853
      %v5868 = vmul.f32 %v5846, %v5853
      %v5869 = vmul.f32 %v5847, %v5853
      %v5870 = vmul.f32 %v5848, %v5853
      %v5871 = vadd.f32 %v5855, 0.0
      %v5872 = vadd.f32 %v5856, 0.0
      %v5873 = vadd.f32 %v5857, 0.0
      %v5874 = vadd.f32 %v5858, 0.0
      %v5875 = vadd.f32 %v5859, 0.0
      %v5876 = vadd.f32 %v5860, 0.0
      %v5877 = vadd.f32 %v5861, 0.0
      %v5878 = vadd.f32 %v5862, 0.0
      %v5879 = vadd.f32 %v5863, 0.0
      %v5880 = vadd.f32 %v5864, 0.0
      %v5881 = vadd.f32 %v5865, 0.0
      %v5882 = vadd.f32 %v5866, 0.0
      %v5883 = vadd.f32 %v5867, 0.0
      %v5884 = vadd.f32 %v5868, 0.0
      %v5885 = vadd.f32 %v5869, 0.0
      %v5886 = vadd.f32 %v5870, 0.0
      %v5887 = vld [vmem:[#allocation3 + $0x8] sm:$0xff]
      %v5888 = vld [vmem:[#allocation3 + $0x20] sm:$0xff]
      %v5889 = vld [vmem:[#allocation3 + $0x38] sm:$0xff]
      %v5890 = vld [vmem:[#allocation3 + $0x50] sm:$0xff]
      %v5891 = vld [vmem:[#allocation3 + $0x68] sm:$0xff]
      %v5892 = vld [vmem:[#allocation3 + $0x80] sm:$0xff]
      %v5893 = vld [vmem:[#allocation3 + $0x98] sm:$0xff]
      %v5894 = vld [vmem:[#allocation3 + $0xb0] sm:$0xff]
      %v5895 = vld [vmem:[#allocation3 + $0xc8] sm:$0xff]
      %v5896 = vld [vmem:[#allocation3 + $0xe0] sm:$0xff]
      %v5897 = vld [vmem:[#allocation3 + $0xf8] sm:$0xff]
      %v5898 = vld [vmem:[#allocation3 + $0x110] sm:$0xff]
      %v5899 = vld [vmem:[#allocation3 + $0x128] sm:$0xff]
      %v5900 = vld [vmem:[#allocation3 + $0x140] sm:$0xff]
      %v5901 = vld [vmem:[#allocation3 + $0x158] sm:$0xff]
      %v5902 = vld [vmem:[#allocation3 + $0x170] sm:$0xff]
      %s5903 = scalar_lea.vmem %s8, 1
      %v5904 = vld [vmem:[%s5903] sm:$0x1]
      %v5906 = vperm.slane %v5904, 0
      %v5908 = vmul.f32 %v5887, %v5906
      %v5909 = vmul.f32 %v5888, %v5906
      %v5910 = vmul.f32 %v5889, %v5906
      %v5911 = vmul.f32 %v5890, %v5906
      %v5912 = vmul.f32 %v5891, %v5906
      %v5913 = vmul.f32 %v5892, %v5906
      %v5914 = vmul.f32 %v5893, %v5906
      %v5915 = vmul.f32 %v5894, %v5906
      %v5916 = vmul.f32 %v5895, %v5906
      %v5917 = vmul.f32 %v5896, %v5906
      %v5918 = vmul.f32 %v5897, %v5906
      %v5919 = vmul.f32 %v5898, %v5906
      %v5920 = vmul.f32 %v5899, %v5906
      %v5921 = vmul.f32 %v5900, %v5906
      %v5922 = vmul.f32 %v5901, %v5906
      %v5923 = vmul.f32 %v5902, %v5906
      %5940 = vrot.lane.b32.xlu0 %v5908, 32
      %v5941 = vpop.permute.xlu0 %5940
      %5942 = vrot.lane.b32.xlu0 %v5909, 32
      %v5943 = vpop.permute.xlu0 %5942
      %5944 = vrot.lane.b32.xlu0 %v5910, 32
      %v5945 = vpop.permute.xlu0 %5944
      %5946 = vrot.lane.b32.xlu0 %v5911, 32
      %v5947 = vpop.permute.xlu0 %5946
      %5948 = vrot.lane.b32.xlu0 %v5912, 32
      %v5949 = vpop.permute.xlu0 %5948
      %5950 = vrot.lane.b32.xlu0 %v5913, 32
      %v5951 = vpop.permute.xlu0 %5950
      %5952 = vrot.lane.b32.xlu0 %v5914, 32
      %v5953 = vpop.permute.xlu0 %5952
      %5954 = vrot.lane.b32.xlu0 %v5915, 32
      %v5955 = vpop.permute.xlu0 %5954
      %5956 = vrot.lane.b32.xlu0 %v5916, 32
      %v5957 = vpop.permute.xlu0 %5956
      %5958 = vrot.lane.b32.xlu0 %v5917, 32
      %v5959 = vpop.permute.xlu0 %5958
      %5960 = vrot.lane.b32.xlu0 %v5918, 32
      %v5961 = vpop.permute.xlu0 %5960
      %5962 = vrot.lane.b32.xlu0 %v5919, 32
      %v5963 = vpop.permute.xlu0 %5962
      %5964 = vrot.lane.b32.xlu0 %v5920, 32
      %v5965 = vpop.permute.xlu0 %5964
      %5966 = vrot.lane.b32.xlu0 %v5921, 32
      %v5967 = vpop.permute.xlu0 %5966
      %5968 = vrot.lane.b32.xlu0 %v5922, 32
      %v5969 = vpop.permute.xlu0 %5968
      %5970 = vrot.lane.b32.xlu0 %v5923, 32
      %v5971 = vpop.permute.xlu0 %5970
      %v5988 = vadd.f32 %v5871, %v5941
      %v5989 = vadd.f32 %v5872, %v5943
      %v5990 = vadd.f32 %v5873, %v5945
      %v5991 = vadd.f32 %v5874, %v5947
      %v5992 = vadd.f32 %v5875, %v5949
      %v5993 = vadd.f32 %v5876, %v5951
      %v5994 = vadd.f32 %v5877, %v5953
      %v5995 = vadd.f32 %v5878, %v5955
      %v5996 = vadd.f32 %v5879, %v5957
      %v5997 = vadd.f32 %v5880, %v5959
      %v5998 = vadd.f32 %v5881, %v5961
      %v5999 = vadd.f32 %v5882, %v5963
      %v6000 = vadd.f32 %v5883, %v5965
      %v6001 = vadd.f32 %v5884, %v5967
      %v6002 = vadd.f32 %v5885, %v5969
      %v6003 = vadd.f32 %v5886, %v5971
      %s6004 = scalar_lea.vmem %s8, 2
      %v6005 = vld [vmem:[%s6004] sm:$0x1]
      %v6007 = vperm.slane %v6005, 0
      %6008 = vrot.lane.b32.xlu0 %v6007, 32
      %v6009 = vpop.permute.xlu0 %6008
      %v6011 = vmul.f32 %v5887, %v6009
      %v6012 = vmul.f32 %v5888, %v6009
      %v6013 = vmul.f32 %v5889, %v6009
      %v6014 = vmul.f32 %v5890, %v6009
      %v6015 = vmul.f32 %v5891, %v6009
      %v6016 = vmul.f32 %v5892, %v6009
      %v6017 = vmul.f32 %v5893, %v6009
      %v6018 = vmul.f32 %v5894, %v6009
      %v6019 = vmul.f32 %v5895, %v6009
      %v6020 = vmul.f32 %v5896, %v6009
      %v6021 = vmul.f32 %v5897, %v6009
      %v6022 = vmul.f32 %v5898, %v6009
      %v6023 = vmul.f32 %v5899, %v6009
      %v6024 = vmul.f32 %v5900, %v6009
      %v6025 = vmul.f32 %v5901, %v6009
      %v6026 = vmul.f32 %v5902, %v6009
      %v6027 = vadd.f32 %v5988, %v6011
      %v6028 = vadd.f32 %v5989, %v6012
      %v6029 = vadd.f32 %v5990, %v6013
      %v6030 = vadd.f32 %v5991, %v6014
      %v6031 = vadd.f32 %v5992, %v6015
      %v6032 = vadd.f32 %v5993, %v6016
      %v6033 = vadd.f32 %v5994, %v6017
      %v6034 = vadd.f32 %v5995, %v6018
      %v6035 = vadd.f32 %v5996, %v6019
      %v6036 = vadd.f32 %v5997, %v6020
      %v6037 = vadd.f32 %v5998, %v6021
      %v6038 = vadd.f32 %v5999, %v6022
      %v6039 = vadd.f32 %v6000, %v6023
      %v6040 = vadd.f32 %v6001, %v6024
      %v6041 = vadd.f32 %v6002, %v6025
      %v6042 = vadd.f32 %v6003, %v6026
      %v6043 = vld [vmem:[%s3227 + $0x7] sm:$0xff]
      %v6044 = vld [vmem:[%s3227 + $0x1f] sm:$0xff]
      %v6045 = vld [vmem:[%s3227 + $0x37] sm:$0xff]
      %v6046 = vld [vmem:[%s3227 + $0x4f] sm:$0xff]
      %v6047 = vld [vmem:[%s3227 + $0x67] sm:$0xff]
      %v6048 = vld [vmem:[%s3227 + $0x7f] sm:$0xff]
      %v6049 = vld [vmem:[%s3227 + $0x97] sm:$0xff]
      %v6050 = vld [vmem:[%s3227 + $0xaf] sm:$0xff]
      %v6051 = vld [vmem:[%s3227 + $0xc7] sm:$0xff]
      %v6052 = vld [vmem:[%s3227 + $0xdf] sm:$0xff]
      %v6053 = vld [vmem:[%s3227 + $0xf7] sm:$0xff]
      %v6054 = vld [vmem:[%s3227 + $0x10f] sm:$0xff]
      %v6055 = vld [vmem:[%s3227 + $0x127] sm:$0xff]
      %v6056 = vld [vmem:[%s3227 + $0x13f] sm:$0xff]
      %v6057 = vld [vmem:[%s3227 + $0x157] sm:$0xff]
      %v6058 = vld [vmem:[%s3227 + $0x16f] sm:$0xff]
      %s6059 = scalar_lea.vmem %s8, 3
      %v6060 = vld [vmem:[%s6059] sm:$0x1]
      %v6062 = vperm.slane %v6060, 0
      %6063 = vrot.lane.b32.xlu0 %v6062, 32
      %v6064 = vpop.permute.xlu0 %6063
      %v6066 = vmul.f32 %v6043, %v6064
      %v6067 = vmul.f32 %v6044, %v6064
      %v6068 = vmul.f32 %v6045, %v6064
      %v6069 = vmul.f32 %v6046, %v6064
      %v6070 = vmul.f32 %v6047, %v6064
      %v6071 = vmul.f32 %v6048, %v6064
      %v6072 = vmul.f32 %v6049, %v6064
      %v6073 = vmul.f32 %v6050, %v6064
      %v6074 = vmul.f32 %v6051, %v6064
      %v6075 = vmul.f32 %v6052, %v6064
      %v6076 = vmul.f32 %v6053, %v6064
      %v6077 = vmul.f32 %v6054, %v6064
      %v6078 = vmul.f32 %v6055, %v6064
      %v6079 = vmul.f32 %v6056, %v6064
      %v6080 = vmul.f32 %v6057, %v6064
      %v6081 = vmul.f32 %v6058, %v6064
      %v6082 = vadd.f32 %v6027, %v6066
      %v6083 = vadd.f32 %v6028, %v6067
      %v6084 = vadd.f32 %v6029, %v6068
      %v6085 = vadd.f32 %v6030, %v6069
      %v6086 = vadd.f32 %v6031, %v6070
      %v6087 = vadd.f32 %v6032, %v6071
      %v6088 = vadd.f32 %v6033, %v6072
      %v6089 = vadd.f32 %v6034, %v6073
      %v6090 = vadd.f32 %v6035, %v6074
      %v6091 = vadd.f32 %v6036, %v6075
      %v6092 = vadd.f32 %v6037, %v6076
      %v6093 = vadd.f32 %v6038, %v6077
      %v6094 = vadd.f32 %v6039, %v6078
      %v6095 = vadd.f32 %v6040, %v6079
      %v6096 = vadd.f32 %v6041, %v6080
      %v6097 = vadd.f32 %v6042, %v6081
      %v6098 = vld [vmem:[%s3227 + $0x8] sm:$0xff]
      %v6099 = vld [vmem:[%s3227 + $0x20] sm:$0xff]
      %v6100 = vld [vmem:[%s3227 + $0x38] sm:$0xff]
      %v6101 = vld [vmem:[%s3227 + $0x50] sm:$0xff]
      %v6102 = vld [vmem:[%s3227 + $0x68] sm:$0xff]
      %v6103 = vld [vmem:[%s3227 + $0x80] sm:$0xff]
      %v6104 = vld [vmem:[%s3227 + $0x98] sm:$0xff]
      %v6105 = vld [vmem:[%s3227 + $0xb0] sm:$0xff]
      %v6106 = vld [vmem:[%s3227 + $0xc8] sm:$0xff]
      %v6107 = vld [vmem:[%s3227 + $0xe0] sm:$0xff]
      %v6108 = vld [vmem:[%s3227 + $0xf8] sm:$0xff]
      %v6109 = vld [vmem:[%s3227 + $0x110] sm:$0xff]
      %v6110 = vld [vmem:[%s3227 + $0x128] sm:$0xff]
      %v6111 = vld [vmem:[%s3227 + $0x140] sm:$0xff]
      %v6112 = vld [vmem:[%s3227 + $0x158] sm:$0xff]
      %v6113 = vld [vmem:[%s3227 + $0x170] sm:$0xff]
      %s6114 = scalar_lea.vmem %s8, 4
      %v6115 = vld [vmem:[%s6114] sm:$0x1]
      %v6117 = vperm.slane %v6115, 0
      %v6119 = vmul.f32 %v6098, %v6117
      %v6120 = vmul.f32 %v6099, %v6117
      %v6121 = vmul.f32 %v6100, %v6117
      %v6122 = vmul.f32 %v6101, %v6117
      %v6123 = vmul.f32 %v6102, %v6117
      %v6124 = vmul.f32 %v6103, %v6117
      %v6125 = vmul.f32 %v6104, %v6117
      %v6126 = vmul.f32 %v6105, %v6117
      %v6127 = vmul.f32 %v6106, %v6117
      %v6128 = vmul.f32 %v6107, %v6117
      %v6129 = vmul.f32 %v6108, %v6117
      %v6130 = vmul.f32 %v6109, %v6117
      %v6131 = vmul.f32 %v6110, %v6117
      %v6132 = vmul.f32 %v6111, %v6117
      %v6133 = vmul.f32 %v6112, %v6117
      %v6134 = vmul.f32 %v6113, %v6117
      %6151 = vrot.lane.b32.xlu0 %v6119, 32
      %v6152 = vpop.permute.xlu0 %6151
      %6153 = vrot.lane.b32.xlu0 %v6120, 32
      %v6154 = vpop.permute.xlu0 %6153
      %6155 = vrot.lane.b32.xlu0 %v6121, 32
      %v6156 = vpop.permute.xlu0 %6155
      %6157 = vrot.lane.b32.xlu0 %v6122, 32
      %v6158 = vpop.permute.xlu0 %6157
      %6159 = vrot.lane.b32.xlu0 %v6123, 32
      %v6160 = vpop.permute.xlu0 %6159
      %6161 = vrot.lane.b32.xlu0 %v6124, 32
      %v6162 = vpop.permute.xlu0 %6161
      %6163 = vrot.lane.b32.xlu0 %v6125, 32
      %v6164 = vpop.permute.xlu0 %6163
      %6165 = vrot.lane.b32.xlu0 %v6126, 32
      %v6166 = vpop.permute.xlu0 %6165
      %6167 = vrot.lane.b32.xlu0 %v6127, 32
      %v6168 = vpop.permute.xlu0 %6167
      %6169 = vrot.lane.b32.xlu0 %v6128, 32
      %v6170 = vpop.permute.xlu0 %6169
      %6171 = vrot.lane.b32.xlu0 %v6129, 32
      %v6172 = vpop.permute.xlu0 %6171
      %6173 = vrot.lane.b32.xlu0 %v6130, 32
      %v6174 = vpop.permute.xlu0 %6173
      %6175 = vrot.lane.b32.xlu0 %v6131, 32
      %v6176 = vpop.permute.xlu0 %6175
      %6177 = vrot.lane.b32.xlu0 %v6132, 32
      %v6178 = vpop.permute.xlu0 %6177
      %6179 = vrot.lane.b32.xlu0 %v6133, 32
      %v6180 = vpop.permute.xlu0 %6179
      %6181 = vrot.lane.b32.xlu0 %v6134, 32
      %v6182 = vpop.permute.xlu0 %6181
      %v6199 = vadd.f32 %v6082, %v6152
      %v6200 = vadd.f32 %v6083, %v6154
      %v6201 = vadd.f32 %v6084, %v6156
      %v6202 = vadd.f32 %v6085, %v6158
      %v6203 = vadd.f32 %v6086, %v6160
      %v6204 = vadd.f32 %v6087, %v6162
      %v6205 = vadd.f32 %v6088, %v6164
      %v6206 = vadd.f32 %v6089, %v6166
      %v6207 = vadd.f32 %v6090, %v6168
      %v6208 = vadd.f32 %v6091, %v6170
      %v6209 = vadd.f32 %v6092, %v6172
      %v6210 = vadd.f32 %v6093, %v6174
      %v6211 = vadd.f32 %v6094, %v6176
      %v6212 = vadd.f32 %v6095, %v6178
      %v6213 = vadd.f32 %v6096, %v6180
      %v6214 = vadd.f32 %v6097, %v6182
      %s6215 = scalar_lea.vmem %s8, 5
      %v6216 = vld [vmem:[%s6215] sm:$0x1]
      %v6218 = vperm.slane %v6216, 0
      %6219 = vrot.lane.b32.xlu0 %v6218, 32
      %v6220 = vpop.permute.xlu0 %6219
      %v6222 = vmul.f32 %v6098, %v6220
      %v6223 = vmul.f32 %v6099, %v6220
      %v6224 = vmul.f32 %v6100, %v6220
      %v6225 = vmul.f32 %v6101, %v6220
      %v6226 = vmul.f32 %v6102, %v6220
      %v6227 = vmul.f32 %v6103, %v6220
      %v6228 = vmul.f32 %v6104, %v6220
      %v6229 = vmul.f32 %v6105, %v6220
      %v6230 = vmul.f32 %v6106, %v6220
      %v6231 = vmul.f32 %v6107, %v6220
      %v6232 = vmul.f32 %v6108, %v6220
      %v6233 = vmul.f32 %v6109, %v6220
      %v6234 = vmul.f32 %v6110, %v6220
      %v6235 = vmul.f32 %v6111, %v6220
      %v6236 = vmul.f32 %v6112, %v6220
      %v6237 = vmul.f32 %v6113, %v6220
      %v6238 = vadd.f32 %v6199, %v6222
      %v6239 = vadd.f32 %v6200, %v6223
      %v6240 = vadd.f32 %v6201, %v6224
      %v6241 = vadd.f32 %v6202, %v6225
      %v6242 = vadd.f32 %v6203, %v6226
      %v6243 = vadd.f32 %v6204, %v6227
      %v6244 = vadd.f32 %v6205, %v6228
      %v6245 = vadd.f32 %v6206, %v6229
      %v6246 = vadd.f32 %v6207, %v6230
      %v6247 = vadd.f32 %v6208, %v6231
      %v6248 = vadd.f32 %v6209, %v6232
      %v6249 = vadd.f32 %v6210, %v6233
      %v6250 = vadd.f32 %v6211, %v6234
      %v6251 = vadd.f32 %v6212, %v6235
      %v6252 = vadd.f32 %v6213, %v6236
      %v6253 = vadd.f32 %v6214, %v6237
      %v6254 = vld [vmem:[%s4292 + $0x7] sm:$0xff]
      %v6255 = vld [vmem:[%s4292 + $0x1f] sm:$0xff]
      %v6256 = vld [vmem:[%s4292 + $0x37] sm:$0xff]
      %v6257 = vld [vmem:[%s4292 + $0x4f] sm:$0xff]
      %v6258 = vld [vmem:[%s4292 + $0x67] sm:$0xff]
      %v6259 = vld [vmem:[%s4292 + $0x7f] sm:$0xff]
      %v6260 = vld [vmem:[%s4292 + $0x97] sm:$0xff]
      %v6261 = vld [vmem:[%s4292 + $0xaf] sm:$0xff]
      %v6262 = vld [vmem:[%s4292 + $0xc7] sm:$0xff]
      %v6263 = vld [vmem:[%s4292 + $0xdf] sm:$0xff]
      %v6264 = vld [vmem:[%s4292 + $0xf7] sm:$0xff]
      %v6265 = vld [vmem:[%s4292 + $0x10f] sm:$0xff]
      %v6266 = vld [vmem:[%s4292 + $0x127] sm:$0xff]
      %v6267 = vld [vmem:[%s4292 + $0x13f] sm:$0xff]
      %v6268 = vld [vmem:[%s4292 + $0x157] sm:$0xff]
      %v6269 = vld [vmem:[%s4292 + $0x16f] sm:$0xff]
      %s6270 = scalar_lea.vmem %s8, 6
      %v6271 = vld [vmem:[%s6270] sm:$0x1]
      %v6273 = vperm.slane %v6271, 0
      %6274 = vrot.lane.b32.xlu0 %v6273, 32
      %v6275 = vpop.permute.xlu0 %6274
      %v6277 = vmul.f32 %v6254, %v6275
      %v6278 = vmul.f32 %v6255, %v6275
      %v6279 = vmul.f32 %v6256, %v6275
      %v6280 = vmul.f32 %v6257, %v6275
      %v6281 = vmul.f32 %v6258, %v6275
      %v6282 = vmul.f32 %v6259, %v6275
      %v6283 = vmul.f32 %v6260, %v6275
      %v6284 = vmul.f32 %v6261, %v6275
      %v6285 = vmul.f32 %v6262, %v6275
      %v6286 = vmul.f32 %v6263, %v6275
      %v6287 = vmul.f32 %v6264, %v6275
      %v6288 = vmul.f32 %v6265, %v6275
      %v6289 = vmul.f32 %v6266, %v6275
      %v6290 = vmul.f32 %v6267, %v6275
      %v6291 = vmul.f32 %v6268, %v6275
      %v6292 = vmul.f32 %v6269, %v6275
      %v6293 = vadd.f32 %v6238, %v6277
      %v6294 = vadd.f32 %v6239, %v6278
      %v6295 = vadd.f32 %v6240, %v6279
      %v6296 = vadd.f32 %v6241, %v6280
      %v6297 = vadd.f32 %v6242, %v6281
      %v6298 = vadd.f32 %v6243, %v6282
      %v6299 = vadd.f32 %v6244, %v6283
      %v6300 = vadd.f32 %v6245, %v6284
      %v6301 = vadd.f32 %v6246, %v6285
      %v6302 = vadd.f32 %v6247, %v6286
      %v6303 = vadd.f32 %v6248, %v6287
      %v6304 = vadd.f32 %v6249, %v6288
      %v6305 = vadd.f32 %v6250, %v6289
      %v6306 = vadd.f32 %v6251, %v6290
      %v6307 = vadd.f32 %v6252, %v6291
      %v6308 = vadd.f32 %v6253, %v6292
      %v6309 = vld [vmem:[%s4292 + $0x8] sm:$0xff]
      %v6310 = vld [vmem:[%s4292 + $0x20] sm:$0xff]
      %v6311 = vld [vmem:[%s4292 + $0x38] sm:$0xff]
      %v6312 = vld [vmem:[%s4292 + $0x50] sm:$0xff]
      %v6313 = vld [vmem:[%s4292 + $0x68] sm:$0xff]
      %v6314 = vld [vmem:[%s4292 + $0x80] sm:$0xff]
      %v6315 = vld [vmem:[%s4292 + $0x98] sm:$0xff]
      %v6316 = vld [vmem:[%s4292 + $0xb0] sm:$0xff]
      %v6317 = vld [vmem:[%s4292 + $0xc8] sm:$0xff]
      %v6318 = vld [vmem:[%s4292 + $0xe0] sm:$0xff]
      %v6319 = vld [vmem:[%s4292 + $0xf8] sm:$0xff]
      %v6320 = vld [vmem:[%s4292 + $0x110] sm:$0xff]
      %v6321 = vld [vmem:[%s4292 + $0x128] sm:$0xff]
      %v6322 = vld [vmem:[%s4292 + $0x140] sm:$0xff]
      %v6323 = vld [vmem:[%s4292 + $0x158] sm:$0xff]
      %v6324 = vld [vmem:[%s4292 + $0x170] sm:$0xff]
      %s6325 = scalar_lea.vmem %s8, 7
      %v6326 = vld [vmem:[%s6325] sm:$0x1]
      %v6328 = vperm.slane %v6326, 0
      %v6330 = vmul.f32 %v6309, %v6328
      %v6331 = vmul.f32 %v6310, %v6328
      %v6332 = vmul.f32 %v6311, %v6328
      %v6333 = vmul.f32 %v6312, %v6328
      %v6334 = vmul.f32 %v6313, %v6328
      %v6335 = vmul.f32 %v6314, %v6328
      %v6336 = vmul.f32 %v6315, %v6328
      %v6337 = vmul.f32 %v6316, %v6328
      %v6338 = vmul.f32 %v6317, %v6328
      %v6339 = vmul.f32 %v6318, %v6328
      %v6340 = vmul.f32 %v6319, %v6328
      %v6341 = vmul.f32 %v6320, %v6328
      %v6342 = vmul.f32 %v6321, %v6328
      %v6343 = vmul.f32 %v6322, %v6328
      %v6344 = vmul.f32 %v6323, %v6328
      %v6345 = vmul.f32 %v6324, %v6328
      %6362 = vrot.lane.b32.xlu0 %v6330, 32
      %v6363 = vpop.permute.xlu0 %6362
      %6364 = vrot.lane.b32.xlu0 %v6331, 32
      %v6365 = vpop.permute.xlu0 %6364
      %6366 = vrot.lane.b32.xlu0 %v6332, 32
      %v6367 = vpop.permute.xlu0 %6366
      %6368 = vrot.lane.b32.xlu0 %v6333, 32
      %v6369 = vpop.permute.xlu0 %6368
      %6370 = vrot.lane.b32.xlu0 %v6334, 32
      %v6371 = vpop.permute.xlu0 %6370
      %6372 = vrot.lane.b32.xlu0 %v6335, 32
      %v6373 = vpop.permute.xlu0 %6372
      %6374 = vrot.lane.b32.xlu0 %v6336, 32
      %v6375 = vpop.permute.xlu0 %6374
      %6376 = vrot.lane.b32.xlu0 %v6337, 32
      %v6377 = vpop.permute.xlu0 %6376
      %6378 = vrot.lane.b32.xlu0 %v6338, 32
      %v6379 = vpop.permute.xlu0 %6378
      %6380 = vrot.lane.b32.xlu0 %v6339, 32
      %v6381 = vpop.permute.xlu0 %6380
      %6382 = vrot.lane.b32.xlu0 %v6340, 32
      %v6383 = vpop.permute.xlu0 %6382
      %6384 = vrot.lane.b32.xlu0 %v6341, 32
      %v6385 = vpop.permute.xlu0 %6384
      %6386 = vrot.lane.b32.xlu0 %v6342, 32
      %v6387 = vpop.permute.xlu0 %6386
      %6388 = vrot.lane.b32.xlu0 %v6343, 32
      %v6389 = vpop.permute.xlu0 %6388
      %6390 = vrot.lane.b32.xlu0 %v6344, 32
      %v6391 = vpop.permute.xlu0 %6390
      %6392 = vrot.lane.b32.xlu0 %v6345, 32
      %v6393 = vpop.permute.xlu0 %6392
      %v6410 = vadd.f32 %v6293, %v6363
      %v6411 = vadd.f32 %v6294, %v6365
      %v6412 = vadd.f32 %v6295, %v6367
      %v6413 = vadd.f32 %v6296, %v6369
      %v6414 = vadd.f32 %v6297, %v6371
      %v6415 = vadd.f32 %v6298, %v6373
      %v6416 = vadd.f32 %v6299, %v6375
      %v6417 = vadd.f32 %v6300, %v6377
      %v6418 = vadd.f32 %v6301, %v6379
      %v6419 = vadd.f32 %v6302, %v6381
      %v6420 = vadd.f32 %v6303, %v6383
      %v6421 = vadd.f32 %v6304, %v6385
      %v6422 = vadd.f32 %v6305, %v6387
      %v6423 = vadd.f32 %v6306, %v6389
      %v6424 = vadd.f32 %v6307, %v6391
      %v6425 = vadd.f32 %v6308, %v6393
      %s6426 = scalar_lea.vmem %s8, 8
      %v6427 = vld [vmem:[%s6426] sm:$0x1]
      %v6429 = vperm.slane %v6427, 0
      %6430 = vrot.lane.b32.xlu0 %v6429, 32
      %v6431 = vpop.permute.xlu0 %6430
      %v6433 = vmul.f32 %v6309, %v6431
      %v6434 = vmul.f32 %v6310, %v6431
      %v6435 = vmul.f32 %v6311, %v6431
      %v6436 = vmul.f32 %v6312, %v6431
      %v6437 = vmul.f32 %v6313, %v6431
      %v6438 = vmul.f32 %v6314, %v6431
      %v6439 = vmul.f32 %v6315, %v6431
      %v6440 = vmul.f32 %v6316, %v6431
      %v6441 = vmul.f32 %v6317, %v6431
      %v6442 = vmul.f32 %v6318, %v6431
      %v6443 = vmul.f32 %v6319, %v6431
      %v6444 = vmul.f32 %v6320, %v6431
      %v6445 = vmul.f32 %v6321, %v6431
      %v6446 = vmul.f32 %v6322, %v6431
      %v6447 = vmul.f32 %v6323, %v6431
      %v6448 = vmul.f32 %v6324, %v6431
      %v6449 = vadd.f32 %v6410, %v6433
      %v6450 = vadd.f32 %v6411, %v6434
      %v6451 = vadd.f32 %v6412, %v6435
      %v6452 = vadd.f32 %v6413, %v6436
      %v6453 = vadd.f32 %v6414, %v6437
      %v6454 = vadd.f32 %v6415, %v6438
      %v6455 = vadd.f32 %v6416, %v6439
      %v6456 = vadd.f32 %v6417, %v6440
      %v6457 = vadd.f32 %v6418, %v6441
      %v6458 = vadd.f32 %v6419, %v6442
      %v6459 = vadd.f32 %v6420, %v6443
      %v6460 = vadd.f32 %v6421, %v6444
      %v6461 = vadd.f32 %v6422, %v6445
      %v6462 = vadd.f32 %v6423, %v6446
      %v6463 = vadd.f32 %v6424, %v6447
      %v6464 = vadd.f32 %v6425, %v6448
      %6481 = vrot.lane.b32.xlu0 %v6449, 96
      %v6482 = vpop.permute.xlu0 %6481
      %6483 = vrot.lane.b32.xlu0 %v6450, 96
      %v6484 = vpop.permute.xlu0 %6483
      %6485 = vrot.lane.b32.xlu0 %v6451, 96
      %v6486 = vpop.permute.xlu0 %6485
      %6487 = vrot.lane.b32.xlu0 %v6452, 96
      %v6488 = vpop.permute.xlu0 %6487
      %6489 = vrot.lane.b32.xlu0 %v6453, 96
      %v6490 = vpop.permute.xlu0 %6489
      %6491 = vrot.lane.b32.xlu0 %v6454, 96
      %v6492 = vpop.permute.xlu0 %6491
      %6493 = vrot.lane.b32.xlu0 %v6455, 96
      %v6494 = vpop.permute.xlu0 %6493
      %6495 = vrot.lane.b32.xlu0 %v6456, 96
      %v6496 = vpop.permute.xlu0 %6495
      %6497 = vrot.lane.b32.xlu0 %v6457, 96
      %v6498 = vpop.permute.xlu0 %6497
      %6499 = vrot.lane.b32.xlu0 %v6458, 96
      %v6500 = vpop.permute.xlu0 %6499
      %6501 = vrot.lane.b32.xlu0 %v6459, 96
      %v6502 = vpop.permute.xlu0 %6501
      %6503 = vrot.lane.b32.xlu0 %v6460, 96
      %v6504 = vpop.permute.xlu0 %6503
      %6505 = vrot.lane.b32.xlu0 %v6461, 96
      %v6506 = vpop.permute.xlu0 %6505
      %6507 = vrot.lane.b32.xlu0 %v6462, 96
      %v6508 = vpop.permute.xlu0 %6507
      %6509 = vrot.lane.b32.xlu0 %v6463, 96
      %v6510 = vpop.permute.xlu0 %6509
      %6511 = vrot.lane.b32.xlu0 %v6464, 96
      %v6512 = vpop.permute.xlu0 %6511
      %v6529 = vsel %vm3228, %v6482, 0.0
      %6530 = vadd.xlane.f32.xlu0 %v6529
      %v6531 = vpop.xlane.xlu0 %6530
      %v6532 = vsel %vm3228, %v6484, 0.0
      %6533 = vadd.xlane.f32.xlu0 %v6532
      %v6534 = vpop.xlane.xlu0 %6533
      %v6535 = vsel %vm3228, %v6486, 0.0
      %6536 = vadd.xlane.f32.xlu0 %v6535
      %v6537 = vpop.xlane.xlu0 %6536
      %v6538 = vsel %vm3228, %v6488, 0.0
      %6539 = vadd.xlane.f32.xlu0 %v6538
      %v6540 = vpop.xlane.xlu0 %6539
      %v6541 = vsel %vm3228, %v6490, 0.0
      %6542 = vadd.xlane.f32.xlu0 %v6541
      %v6543 = vpop.xlane.xlu0 %6542
      %v6544 = vsel %vm3228, %v6492, 0.0
      %6545 = vadd.xlane.f32.xlu0 %v6544
      %v6546 = vpop.xlane.xlu0 %6545
      %v6547 = vsel %vm3228, %v6494, 0.0
      %6548 = vadd.xlane.f32.xlu0 %v6547
      %v6549 = vpop.xlane.xlu0 %6548
      %v6550 = vsel %vm3228, %v6496, 0.0
      %6551 = vadd.xlane.f32.xlu0 %v6550
      %v6552 = vpop.xlane.xlu0 %6551
      %v6553 = vsel %vm3228, %v6498, 0.0
      %6554 = vadd.xlane.f32.xlu0 %v6553
      %v6555 = vpop.xlane.xlu0 %6554
      %v6556 = vsel %vm3228, %v6500, 0.0
      %6557 = vadd.xlane.f32.xlu0 %v6556
      %v6558 = vpop.xlane.xlu0 %6557
      %v6559 = vsel %vm3228, %v6502, 0.0
      %6560 = vadd.xlane.f32.xlu0 %v6559
      %v6561 = vpop.xlane.xlu0 %6560
      %v6562 = vsel %vm3228, %v6504, 0.0
      %6563 = vadd.xlane.f32.xlu0 %v6562
      %v6564 = vpop.xlane.xlu0 %6563
      %v6565 = vsel %vm3228, %v6506, 0.0
      %6566 = vadd.xlane.f32.xlu0 %v6565
      %v6567 = vpop.xlane.xlu0 %6566
      %v6568 = vsel %vm3228, %v6508, 0.0
      %6569 = vadd.xlane.f32.xlu0 %v6568
      %v6570 = vpop.xlane.xlu0 %6569
      %v6571 = vsel %vm3228, %v6510, 0.0
      %6572 = vadd.xlane.f32.xlu0 %v6571
      %v6573 = vpop.xlane.xlu0 %6572
      %v6574 = vsel %vm3228, %v6512, 0.0
      %6575 = vadd.xlane.f32.xlu0 %v6574
      %v6576 = vpop.xlane.xlu0 %6575
      %v6577 = vstv %s5832
      %v6578 = vadd.f32 %v6531, %v6577
      %v6579 = vadd.f32 %v6534, %v6577
      %v6580 = vadd.f32 %v6537, %v6577
      %v6581 = vadd.f32 %v6540, %v6577
      %v6582 = vadd.f32 %v6543, %v6577
      %v6583 = vadd.f32 %v6546, %v6577
      %v6584 = vadd.f32 %v6549, %v6577
      %v6585 = vadd.f32 %v6552, %v6577
      %v6586 = vadd.f32 %v6555, %v6577
      %v6587 = vadd.f32 %v6558, %v6577
      %v6588 = vadd.f32 %v6561, %v6577
      %v6589 = vadd.f32 %v6564, %v6577
      %v6590 = vadd.f32 %v6567, %v6577
      %v6591 = vadd.f32 %v6570, %v6577
      %v6592 = vadd.f32 %v6573, %v6577
      %v6593 = vadd.f32 %v6576, %v6577
      %v6610 = vlaneseq
      %v6611 = vand.u32 %v6610, 127
      %v6612 = vperm.slane %v6578, %v6611
      %v6613 = vperm.slane %v6579, %v6611
      %v6614 = vperm.slane %v6580, %v6611
      %v6615 = vperm.slane %v6581, %v6611
      %v6616 = vperm.slane %v6582, %v6611
      %v6617 = vperm.slane %v6583, %v6611
      %v6618 = vperm.slane %v6584, %v6611
      %v6619 = vperm.slane %v6585, %v6611
      %v6620 = vperm.slane %v6586, %v6611
      %v6621 = vperm.slane %v6587, %v6611
      %v6622 = vperm.slane %v6588, %v6611
      %v6623 = vperm.slane %v6589, %v6611
      %v6624 = vperm.slane %v6590, %v6611
      %v6625 = vperm.slane %v6591, %v6611
      %v6626 = vperm.slane %v6592, %v6611
      %v6627 = vperm.slane %v6593, %v6611
      %vm6628 = vcmask 1041409
      %v6629 = vsel %vm6628, %v6613, %v6612
      %vm6630 = vcmask 1042434
      %v6631 = vsel %vm6630, %v6614, %v6629
      %vm6632 = vcmask 1043459
      %v6633 = vsel %vm6632, %v6615, %v6631
      %vm6634 = vcmask 1044484
      %v6635 = vsel %vm6634, %v6616, %v6633
      %vm6636 = vcmask 1045509
      %v6637 = vsel %vm6636, %v6617, %v6635
      %vm6638 = vcmask 1046534
      %v6639 = vsel %vm6638, %v6618, %v6637
      %vm6640 = vcmask 1047559
      %v6641 = vsel %vm6640, %v6619, %v6639
      %v6642 = vsel %vm6628, %v6621, %v6620
      %v6643 = vsel %vm6630, %v6622, %v6642
      %v6644 = vsel %vm6632, %v6623, %v6643
      %v6645 = vsel %vm6634, %v6624, %v6644
      %v6646 = vsel %vm6636, %v6625, %v6645
      %v6647 = vsel %vm6638, %v6626, %v6646
      %v6648 = vsel %vm6640, %v6627, %v6647
      %vm6651 = vcmask 64512
      %6652 = vst.msk [vmem:[%s415] sm:$0xff] %vm6651, %v6641
      %6653 = vst.msk [vmem:[%s415 + $0x8] sm:$0xff] %vm6651, %v6648
      %v6654 = vld [vmem:[#allocation3 + $0x8] sm:$0xff]
      %v6655 = vld [vmem:[#allocation3 + $0x20] sm:$0xff]
      %v6656 = vld [vmem:[#allocation3 + $0x38] sm:$0xff]
      %v6657 = vld [vmem:[#allocation3 + $0x50] sm:$0xff]
      %v6658 = vld [vmem:[#allocation3 + $0x68] sm:$0xff]
      %v6659 = vld [vmem:[#allocation3 + $0x80] sm:$0xff]
      %v6660 = vld [vmem:[#allocation3 + $0x98] sm:$0xff]
      %v6661 = vld [vmem:[#allocation3 + $0xb0] sm:$0xff]
      %v6662 = vld [vmem:[#allocation3 + $0xc8] sm:$0xff]
      %v6663 = vld [vmem:[#allocation3 + $0xe0] sm:$0xff]
      %v6664 = vld [vmem:[#allocation3 + $0xf8] sm:$0xff]
      %v6665 = vld [vmem:[#allocation3 + $0x110] sm:$0xff]
      %v6666 = vld [vmem:[#allocation3 + $0x128] sm:$0xff]
      %v6667 = vld [vmem:[#allocation3 + $0x140] sm:$0xff]
      %v6668 = vld [vmem:[#allocation3 + $0x158] sm:$0xff]
      %v6669 = vld [vmem:[#allocation3 + $0x170] sm:$0xff]
      %v6670 = vld [vmem:[%s8] sm:$0x1]
      %v6672 = vperm.slane %v6670, 0
      %v6674 = vmul.f32 %v6654, %v6672
      %v6675 = vmul.f32 %v6655, %v6672
      %v6676 = vmul.f32 %v6656, %v6672
      %v6677 = vmul.f32 %v6657, %v6672
      %v6678 = vmul.f32 %v6658, %v6672
      %v6679 = vmul.f32 %v6659, %v6672
      %v6680 = vmul.f32 %v6660, %v6672
      %v6681 = vmul.f32 %v6661, %v6672
      %v6682 = vmul.f32 %v6662, %v6672
      %v6683 = vmul.f32 %v6663, %v6672
      %v6684 = vmul.f32 %v6664, %v6672
      %v6685 = vmul.f32 %v6665, %v6672
      %v6686 = vmul.f32 %v6666, %v6672
      %v6687 = vmul.f32 %v6667, %v6672
      %v6688 = vmul.f32 %v6668, %v6672
      %v6689 = vmul.f32 %v6669, %v6672
      %v6690 = vadd.f32 %v6674, 0.0
      %v6691 = vadd.f32 %v6675, 0.0
      %v6692 = vadd.f32 %v6676, 0.0
      %v6693 = vadd.f32 %v6677, 0.0
      %v6694 = vadd.f32 %v6678, 0.0
      %v6695 = vadd.f32 %v6679, 0.0
      %v6696 = vadd.f32 %v6680, 0.0
      %v6697 = vadd.f32 %v6681, 0.0
      %v6698 = vadd.f32 %v6682, 0.0
      %v6699 = vadd.f32 %v6683, 0.0
      %v6700 = vadd.f32 %v6684, 0.0
      %v6701 = vadd.f32 %v6685, 0.0
      %v6702 = vadd.f32 %v6686, 0.0
      %v6703 = vadd.f32 %v6687, 0.0
      %v6704 = vadd.f32 %v6688, 0.0
      %v6705 = vadd.f32 %v6689, 0.0
      %v6706 = vld [vmem:[%s5903] sm:$0x1]
      %v6708 = vperm.slane %v6706, 0
      %6709 = vrot.lane.b32.xlu0 %v6708, 32
      %v6710 = vpop.permute.xlu0 %6709
      %v6712 = vmul.f32 %v6654, %v6710
      %v6713 = vmul.f32 %v6655, %v6710
      %v6714 = vmul.f32 %v6656, %v6710
      %v6715 = vmul.f32 %v6657, %v6710
      %v6716 = vmul.f32 %v6658, %v6710
      %v6717 = vmul.f32 %v6659, %v6710
      %v6718 = vmul.f32 %v6660, %v6710
      %v6719 = vmul.f32 %v6661, %v6710
      %v6720 = vmul.f32 %v6662, %v6710
      %v6721 = vmul.f32 %v6663, %v6710
      %v6722 = vmul.f32 %v6664, %v6710
      %v6723 = vmul.f32 %v6665, %v6710
      %v6724 = vmul.f32 %v6666, %v6710
      %v6725 = vmul.f32 %v6667, %v6710
      %v6726 = vmul.f32 %v6668, %v6710
      %v6727 = vmul.f32 %v6669, %v6710
      %6744 = vrot.lane.b32.xlu0 %v6712, 96
      %v6745 = vpop.permute.xlu0 %6744
      %6746 = vrot.lane.b32.xlu0 %v6713, 96
      %v6747 = vpop.permute.xlu0 %6746
      %6748 = vrot.lane.b32.xlu0 %v6714, 96
      %v6749 = vpop.permute.xlu0 %6748
      %6750 = vrot.lane.b32.xlu0 %v6715, 96
      %v6751 = vpop.permute.xlu0 %6750
      %6752 = vrot.lane.b32.xlu0 %v6716, 96
      %v6753 = vpop.permute.xlu0 %6752
      %6754 = vrot.lane.b32.xlu0 %v6717, 96
      %v6755 = vpop.permute.xlu0 %6754
      %6756 = vrot.lane.b32.xlu0 %v6718, 96
      %v6757 = vpop.permute.xlu0 %6756
      %6758 = vrot.lane.b32.xlu0 %v6719, 96
      %v6759 = vpop.permute.xlu0 %6758
      %6760 = vrot.lane.b32.xlu0 %v6720, 96
      %v6761 = vpop.permute.xlu0 %6760
      %6762 = vrot.lane.b32.xlu0 %v6721, 96
      %v6763 = vpop.permute.xlu0 %6762
      %6764 = vrot.lane.b32.xlu0 %v6722, 96
      %v6765 = vpop.permute.xlu0 %6764
      %6766 = vrot.lane.b32.xlu0 %v6723, 96
      %v6767 = vpop.permute.xlu0 %6766
      %6768 = vrot.lane.b32.xlu0 %v6724, 96
      %v6769 = vpop.permute.xlu0 %6768
      %6770 = vrot.lane.b32.xlu0 %v6725, 96
      %v6771 = vpop.permute.xlu0 %6770
      %6772 = vrot.lane.b32.xlu0 %v6726, 96
      %v6773 = vpop.permute.xlu0 %6772
      %6774 = vrot.lane.b32.xlu0 %v6727, 96
      %v6775 = vpop.permute.xlu0 %6774
      %v6792 = vadd.f32 %v6690, %v6745
      %v6793 = vadd.f32 %v6691, %v6747
      %v6794 = vadd.f32 %v6692, %v6749
      %v6795 = vadd.f32 %v6693, %v6751
      %v6796 = vadd.f32 %v6694, %v6753
      %v6797 = vadd.f32 %v6695, %v6755
      %v6798 = vadd.f32 %v6696, %v6757
      %v6799 = vadd.f32 %v6697, %v6759
      %v6800 = vadd.f32 %v6698, %v6761
      %v6801 = vadd.f32 %v6699, %v6763
      %v6802 = vadd.f32 %v6700, %v6765
      %v6803 = vadd.f32 %v6701, %v6767
      %v6804 = vadd.f32 %v6702, %v6769
      %v6805 = vadd.f32 %v6703, %v6771
      %v6806 = vadd.f32 %v6704, %v6773
      %v6807 = vadd.f32 %v6705, %v6775
      %v6808 = vld [vmem:[#allocation3 + $0x9] sm:$0xff]
      %v6809 = vld [vmem:[#allocation3 + $0x21] sm:$0xff]
      %v6810 = vld [vmem:[#allocation3 + $0x39] sm:$0xff]
      %v6811 = vld [vmem:[#allocation3 + $0x51] sm:$0xff]
      %v6812 = vld [vmem:[#allocation3 + $0x69] sm:$0xff]
      %v6813 = vld [vmem:[#allocation3 + $0x81] sm:$0xff]
      %v6814 = vld [vmem:[#allocation3 + $0x99] sm:$0xff]
      %v6815 = vld [vmem:[#allocation3 + $0xb1] sm:$0xff]
      %v6816 = vld [vmem:[#allocation3 + $0xc9] sm:$0xff]
      %v6817 = vld [vmem:[#allocation3 + $0xe1] sm:$0xff]
      %v6818 = vld [vmem:[#allocation3 + $0xf9] sm:$0xff]
      %v6819 = vld [vmem:[#allocation3 + $0x111] sm:$0xff]
      %v6820 = vld [vmem:[#allocation3 + $0x129] sm:$0xff]
      %v6821 = vld [vmem:[#allocation3 + $0x141] sm:$0xff]
      %v6822 = vld [vmem:[#allocation3 + $0x159] sm:$0xff]
      %v6823 = vld [vmem:[#allocation3 + $0x171] sm:$0xff]
      %v6824 = vld [vmem:[%s6004] sm:$0x1]
      %v6826 = vperm.slane %v6824, 0
      %v6828 = vmul.f32 %v6808, %v6826
      %v6829 = vmul.f32 %v6809, %v6826
      %v6830 = vmul.f32 %v6810, %v6826
      %v6831 = vmul.f32 %v6811, %v6826
      %v6832 = vmul.f32 %v6812, %v6826
      %v6833 = vmul.f32 %v6813, %v6826
      %v6834 = vmul.f32 %v6814, %v6826
      %v6835 = vmul.f32 %v6815, %v6826
      %v6836 = vmul.f32 %v6816, %v6826
      %v6837 = vmul.f32 %v6817, %v6826
      %v6838 = vmul.f32 %v6818, %v6826
      %v6839 = vmul.f32 %v6819, %v6826
      %v6840 = vmul.f32 %v6820, %v6826
      %v6841 = vmul.f32 %v6821, %v6826
      %v6842 = vmul.f32 %v6822, %v6826
      %v6843 = vmul.f32 %v6823, %v6826
      %v6844 = vadd.f32 %v6792, %v6828
      %v6845 = vadd.f32 %v6793, %v6829
      %v6846 = vadd.f32 %v6794, %v6830
      %v6847 = vadd.f32 %v6795, %v6831
      %v6848 = vadd.f32 %v6796, %v6832
      %v6849 = vadd.f32 %v6797, %v6833
      %v6850 = vadd.f32 %v6798, %v6834
      %v6851 = vadd.f32 %v6799, %v6835
      %v6852 = vadd.f32 %v6800, %v6836
      %v6853 = vadd.f32 %v6801, %v6837
      %v6854 = vadd.f32 %v6802, %v6838
      %v6855 = vadd.f32 %v6803, %v6839
      %v6856 = vadd.f32 %v6804, %v6840
      %v6857 = vadd.f32 %v6805, %v6841
      %v6858 = vadd.f32 %v6806, %v6842
      %v6859 = vadd.f32 %v6807, %v6843
      %v6860 = vld [vmem:[%s3227 + $0x8] sm:$0xff]
      %v6861 = vld [vmem:[%s3227 + $0x20] sm:$0xff]
      %v6862 = vld [vmem:[%s3227 + $0x38] sm:$0xff]
      %v6863 = vld [vmem:[%s3227 + $0x50] sm:$0xff]
      %v6864 = vld [vmem:[%s3227 + $0x68] sm:$0xff]
      %v6865 = vld [vmem:[%s3227 + $0x80] sm:$0xff]
      %v6866 = vld [vmem:[%s3227 + $0x98] sm:$0xff]
      %v6867 = vld [vmem:[%s3227 + $0xb0] sm:$0xff]
      %v6868 = vld [vmem:[%s3227 + $0xc8] sm:$0xff]
      %v6869 = vld [vmem:[%s3227 + $0xe0] sm:$0xff]
      %v6870 = vld [vmem:[%s3227 + $0xf8] sm:$0xff]
      %v6871 = vld [vmem:[%s3227 + $0x110] sm:$0xff]
      %v6872 = vld [vmem:[%s3227 + $0x128] sm:$0xff]
      %v6873 = vld [vmem:[%s3227 + $0x140] sm:$0xff]
      %v6874 = vld [vmem:[%s3227 + $0x158] sm:$0xff]
      %v6875 = vld [vmem:[%s3227 + $0x170] sm:$0xff]
      %v6876 = vld [vmem:[%s6059] sm:$0x1]
      %v6878 = vperm.slane %v6876, 0
      %v6880 = vmul.f32 %v6860, %v6878
      %v6881 = vmul.f32 %v6861, %v6878
      %v6882 = vmul.f32 %v6862, %v6878
      %v6883 = vmul.f32 %v6863, %v6878
      %v6884 = vmul.f32 %v6864, %v6878
      %v6885 = vmul.f32 %v6865, %v6878
      %v6886 = vmul.f32 %v6866, %v6878
      %v6887 = vmul.f32 %v6867, %v6878
      %v6888 = vmul.f32 %v6868, %v6878
      %v6889 = vmul.f32 %v6869, %v6878
      %v6890 = vmul.f32 %v6870, %v6878
      %v6891 = vmul.f32 %v6871, %v6878
      %v6892 = vmul.f32 %v6872, %v6878
      %v6893 = vmul.f32 %v6873, %v6878
      %v6894 = vmul.f32 %v6874, %v6878
      %v6895 = vmul.f32 %v6875, %v6878
      %v6896 = vadd.f32 %v6844, %v6880
      %v6897 = vadd.f32 %v6845, %v6881
      %v6898 = vadd.f32 %v6846, %v6882
      %v6899 = vadd.f32 %v6847, %v6883
      %v6900 = vadd.f32 %v6848, %v6884
      %v6901 = vadd.f32 %v6849, %v6885
      %v6902 = vadd.f32 %v6850, %v6886
      %v6903 = vadd.f32 %v6851, %v6887
      %v6904 = vadd.f32 %v6852, %v6888
      %v6905 = vadd.f32 %v6853, %v6889
      %v6906 = vadd.f32 %v6854, %v6890
      %v6907 = vadd.f32 %v6855, %v6891
      %v6908 = vadd.f32 %v6856, %v6892
      %v6909 = vadd.f32 %v6857, %v6893
      %v6910 = vadd.f32 %v6858, %v6894
      %v6911 = vadd.f32 %v6859, %v6895
      %v6912 = vld [vmem:[%s6114] sm:$0x1]
      %v6914 = vperm.slane %v6912, 0
      %6915 = vrot.lane.b32.xlu0 %v6914, 32
      %v6916 = vpop.permute.xlu0 %6915
      %v6918 = vmul.f32 %v6860, %v6916
      %v6919 = vmul.f32 %v6861, %v6916
      %v6920 = vmul.f32 %v6862, %v6916
      %v6921 = vmul.f32 %v6863, %v6916
      %v6922 = vmul.f32 %v6864, %v6916
      %v6923 = vmul.f32 %v6865, %v6916
      %v6924 = vmul.f32 %v6866, %v6916
      %v6925 = vmul.f32 %v6867, %v6916
      %v6926 = vmul.f32 %v6868, %v6916
      %v6927 = vmul.f32 %v6869, %v6916
      %v6928 = vmul.f32 %v6870, %v6916
      %v6929 = vmul.f32 %v6871, %v6916
      %v6930 = vmul.f32 %v6872, %v6916
      %v6931 = vmul.f32 %v6873, %v6916
      %v6932 = vmul.f32 %v6874, %v6916
      %v6933 = vmul.f32 %v6875, %v6916
      %6950 = vrot.lane.b32.xlu0 %v6918, 96
      %v6951 = vpop.permute.xlu0 %6950
      %6952 = vrot.lane.b32.xlu0 %v6919, 96
      %v6953 = vpop.permute.xlu0 %6952
      %6954 = vrot.lane.b32.xlu0 %v6920, 96
      %v6955 = vpop.permute.xlu0 %6954
      %6956 = vrot.lane.b32.xlu0 %v6921, 96
      %v6957 = vpop.permute.xlu0 %6956
      %6958 = vrot.lane.b32.xlu0 %v6922, 96
      %v6959 = vpop.permute.xlu0 %6958
      %6960 = vrot.lane.b32.xlu0 %v6923, 96
      %v6961 = vpop.permute.xlu0 %6960
      %6962 = vrot.lane.b32.xlu0 %v6924, 96
      %v6963 = vpop.permute.xlu0 %6962
      %6964 = vrot.lane.b32.xlu0 %v6925, 96
      %v6965 = vpop.permute.xlu0 %6964
      %6966 = vrot.lane.b32.xlu0 %v6926, 96
      %v6967 = vpop.permute.xlu0 %6966
      %6968 = vrot.lane.b32.xlu0 %v6927, 96
      %v6969 = vpop.permute.xlu0 %6968
      %6970 = vrot.lane.b32.xlu0 %v6928, 96
      %v6971 = vpop.permute.xlu0 %6970
      %6972 = vrot.lane.b32.xlu0 %v6929, 96
      %v6973 = vpop.permute.xlu0 %6972
      %6974 = vrot.lane.b32.xlu0 %v6930, 96
      %v6975 = vpop.permute.xlu0 %6974
      %6976 = vrot.lane.b32.xlu0 %v6931, 96
      %v6977 = vpop.permute.xlu0 %6976
      %6978 = vrot.lane.b32.xlu0 %v6932, 96
      %v6979 = vpop.permute.xlu0 %6978
      %6980 = vrot.lane.b32.xlu0 %v6933, 96
      %v6981 = vpop.permute.xlu0 %6980
      %v6998 = vadd.f32 %v6896, %v6951
      %v6999 = vadd.f32 %v6897, %v6953
      %v7000 = vadd.f32 %v6898, %v6955
      %v7001 = vadd.f32 %v6899, %v6957
      %v7002 = vadd.f32 %v6900, %v6959
      %v7003 = vadd.f32 %v6901, %v6961
      %v7004 = vadd.f32 %v6902, %v6963
      %v7005 = vadd.f32 %v6903, %v6965
      %v7006 = vadd.f32 %v6904, %v6967
      %v7007 = vadd.f32 %v6905, %v6969
      %v7008 = vadd.f32 %v6906, %v6971
      %v7009 = vadd.f32 %v6907, %v6973
      %v7010 = vadd.f32 %v6908, %v6975
      %v7011 = vadd.f32 %v6909, %v6977
      %v7012 = vadd.f32 %v6910, %v6979
      %v7013 = vadd.f32 %v6911, %v6981
      %v7014 = vld [vmem:[%s3227 + $0x9] sm:$0xff]
      %v7015 = vld [vmem:[%s3227 + $0x21] sm:$0xff]
      %v7016 = vld [vmem:[%s3227 + $0x39] sm:$0xff]
      %v7017 = vld [vmem:[%s3227 + $0x51] sm:$0xff]
      %v7018 = vld [vmem:[%s3227 + $0x69] sm:$0xff]
      %v7019 = vld [vmem:[%s3227 + $0x81] sm:$0xff]
      %v7020 = vld [vmem:[%s3227 + $0x99] sm:$0xff]
      %v7021 = vld [vmem:[%s3227 + $0xb1] sm:$0xff]
      %v7022 = vld [vmem:[%s3227 + $0xc9] sm:$0xff]
      %v7023 = vld [vmem:[%s3227 + $0xe1] sm:$0xff]
      %v7024 = vld [vmem:[%s3227 + $0xf9] sm:$0xff]
      %v7025 = vld [vmem:[%s3227 + $0x111] sm:$0xff]
      %v7026 = vld [vmem:[%s3227 + $0x129] sm:$0xff]
      %v7027 = vld [vmem:[%s3227 + $0x141] sm:$0xff]
      %v7028 = vld [vmem:[%s3227 + $0x159] sm:$0xff]
      %v7029 = vld [vmem:[%s3227 + $0x171] sm:$0xff]
      %v7030 = vld [vmem:[%s6215] sm:$0x1]
      %v7032 = vperm.slane %v7030, 0
      %v7034 = vmul.f32 %v7014, %v7032
      %v7035 = vmul.f32 %v7015, %v7032
      %v7036 = vmul.f32 %v7016, %v7032
      %v7037 = vmul.f32 %v7017, %v7032
      %v7038 = vmul.f32 %v7018, %v7032
      %v7039 = vmul.f32 %v7019, %v7032
      %v7040 = vmul.f32 %v7020, %v7032
      %v7041 = vmul.f32 %v7021, %v7032
      %v7042 = vmul.f32 %v7022, %v7032
      %v7043 = vmul.f32 %v7023, %v7032
      %v7044 = vmul.f32 %v7024, %v7032
      %v7045 = vmul.f32 %v7025, %v7032
      %v7046 = vmul.f32 %v7026, %v7032
      %v7047 = vmul.f32 %v7027, %v7032
      %v7048 = vmul.f32 %v7028, %v7032
      %v7049 = vmul.f32 %v7029, %v7032
      %v7050 = vadd.f32 %v6998, %v7034
      %v7051 = vadd.f32 %v6999, %v7035
      %v7052 = vadd.f32 %v7000, %v7036
      %v7053 = vadd.f32 %v7001, %v7037
      %v7054 = vadd.f32 %v7002, %v7038
      %v7055 = vadd.f32 %v7003, %v7039
      %v7056 = vadd.f32 %v7004, %v7040
      %v7057 = vadd.f32 %v7005, %v7041
      %v7058 = vadd.f32 %v7006, %v7042
      %v7059 = vadd.f32 %v7007, %v7043
      %v7060 = vadd.f32 %v7008, %v7044
      %v7061 = vadd.f32 %v7009, %v7045
      %v7062 = vadd.f32 %v7010, %v7046
      %v7063 = vadd.f32 %v7011, %v7047
      %v7064 = vadd.f32 %v7012, %v7048
      %v7065 = vadd.f32 %v7013, %v7049
      %v7066 = vld [vmem:[%s4292 + $0x8] sm:$0xff]
      %v7067 = vld [vmem:[%s4292 + $0x20] sm:$0xff]
      %v7068 = vld [vmem:[%s4292 + $0x38] sm:$0xff]
      %v7069 = vld [vmem:[%s4292 + $0x50] sm:$0xff]
      %v7070 = vld [vmem:[%s4292 + $0x68] sm:$0xff]
      %v7071 = vld [vmem:[%s4292 + $0x80] sm:$0xff]
      %v7072 = vld [vmem:[%s4292 + $0x98] sm:$0xff]
      %v7073 = vld [vmem:[%s4292 + $0xb0] sm:$0xff]
      %v7074 = vld [vmem:[%s4292 + $0xc8] sm:$0xff]
      %v7075 = vld [vmem:[%s4292 + $0xe0] sm:$0xff]
      %v7076 = vld [vmem:[%s4292 + $0xf8] sm:$0xff]
      %v7077 = vld [vmem:[%s4292 + $0x110] sm:$0xff]
      %v7078 = vld [vmem:[%s4292 + $0x128] sm:$0xff]
      %v7079 = vld [vmem:[%s4292 + $0x140] sm:$0xff]
      %v7080 = vld [vmem:[%s4292 + $0x158] sm:$0xff]
      %v7081 = vld [vmem:[%s4292 + $0x170] sm:$0xff]
      %v7082 = vld [vmem:[%s6270] sm:$0x1]
      %v7084 = vperm.slane %v7082, 0
      %v7086 = vmul.f32 %v7066, %v7084
      %v7087 = vmul.f32 %v7067, %v7084
      %v7088 = vmul.f32 %v7068, %v7084
      %v7089 = vmul.f32 %v7069, %v7084
      %v7090 = vmul.f32 %v7070, %v7084
      %v7091 = vmul.f32 %v7071, %v7084
      %v7092 = vmul.f32 %v7072, %v7084
      %v7093 = vmul.f32 %v7073, %v7084
      %v7094 = vmul.f32 %v7074, %v7084
      %v7095 = vmul.f32 %v7075, %v7084
      %v7096 = vmul.f32 %v7076, %v7084
      %v7097 = vmul.f32 %v7077, %v7084
      %v7098 = vmul.f32 %v7078, %v7084
      %v7099 = vmul.f32 %v7079, %v7084
      %v7100 = vmul.f32 %v7080, %v7084
      %v7101 = vmul.f32 %v7081, %v7084
      %v7102 = vadd.f32 %v7050, %v7086
      %v7103 = vadd.f32 %v7051, %v7087
      %v7104 = vadd.f32 %v7052, %v7088
      %v7105 = vadd.f32 %v7053, %v7089
      %v7106 = vadd.f32 %v7054, %v7090
      %v7107 = vadd.f32 %v7055, %v7091
      %v7108 = vadd.f32 %v7056, %v7092
      %v7109 = vadd.f32 %v7057, %v7093
      %v7110 = vadd.f32 %v7058, %v7094
      %v7111 = vadd.f32 %v7059, %v7095
      %v7112 = vadd.f32 %v7060, %v7096
      %v7113 = vadd.f32 %v7061, %v7097
      %v7114 = vadd.f32 %v7062, %v7098
      %v7115 = vadd.f32 %v7063, %v7099
      %v7116 = vadd.f32 %v7064, %v7100
      %v7117 = vadd.f32 %v7065, %v7101
      %v7118 = vld [vmem:[%s6325] sm:$0x1]
      %v7120 = vperm.slane %v7118, 0
      %7121 = vrot.lane.b32.xlu0 %v7120, 32
      %v7122 = vpop.permute.xlu0 %7121
      %v7124 = vmul.f32 %v7066, %v7122
      %v7125 = vmul.f32 %v7067, %v7122
      %v7126 = vmul.f32 %v7068, %v7122
      %v7127 = vmul.f32 %v7069, %v7122
      %v7128 = vmul.f32 %v7070, %v7122
      %v7129 = vmul.f32 %v7071, %v7122
      %v7130 = vmul.f32 %v7072, %v7122
      %v7131 = vmul.f32 %v7073, %v7122
      %v7132 = vmul.f32 %v7074, %v7122
      %v7133 = vmul.f32 %v7075, %v7122
      %v7134 = vmul.f32 %v7076, %v7122
      %v7135 = vmul.f32 %v7077, %v7122
      %v7136 = vmul.f32 %v7078, %v7122
      %v7137 = vmul.f32 %v7079, %v7122
      %v7138 = vmul.f32 %v7080, %v7122
      %v7139 = vmul.f32 %v7081, %v7122
      %7156 = vrot.lane.b32.xlu0 %v7124, 96
      %v7157 = vpop.permute.xlu0 %7156
      %7158 = vrot.lane.b32.xlu0 %v7125, 96
      %v7159 = vpop.permute.xlu0 %7158
      %7160 = vrot.lane.b32.xlu0 %v7126, 96
      %v7161 = vpop.permute.xlu0 %7160
      %7162 = vrot.lane.b32.xlu0 %v7127, 96
      %v7163 = vpop.permute.xlu0 %7162
      %7164 = vrot.lane.b32.xlu0 %v7128, 96
      %v7165 = vpop.permute.xlu0 %7164
      %7166 = vrot.lane.b32.xlu0 %v7129, 96
      %v7167 = vpop.permute.xlu0 %7166
      %7168 = vrot.lane.b32.xlu0 %v7130, 96
      %v7169 = vpop.permute.xlu0 %7168
      %7170 = vrot.lane.b32.xlu0 %v7131, 96
      %v7171 = vpop.permute.xlu0 %7170
      %7172 = vrot.lane.b32.xlu0 %v7132, 96
      %v7173 = vpop.permute.xlu0 %7172
      %7174 = vrot.lane.b32.xlu0 %v7133, 96
      %v7175 = vpop.permute.xlu0 %7174
      %7176 = vrot.lane.b32.xlu0 %v7134, 96
      %v7177 = vpop.permute.xlu0 %7176
      %7178 = vrot.lane.b32.xlu0 %v7135, 96
      %v7179 = vpop.permute.xlu0 %7178
      %7180 = vrot.lane.b32.xlu0 %v7136, 96
      %v7181 = vpop.permute.xlu0 %7180
      %7182 = vrot.lane.b32.xlu0 %v7137, 96
      %v7183 = vpop.permute.xlu0 %7182
      %7184 = vrot.lane.b32.xlu0 %v7138, 96
      %v7185 = vpop.permute.xlu0 %7184
      %7186 = vrot.lane.b32.xlu0 %v7139, 96
      %v7187 = vpop.permute.xlu0 %7186
      %v7204 = vadd.f32 %v7102, %v7157
      %v7205 = vadd.f32 %v7103, %v7159
      %v7206 = vadd.f32 %v7104, %v7161
      %v7207 = vadd.f32 %v7105, %v7163
      %v7208 = vadd.f32 %v7106, %v7165
      %v7209 = vadd.f32 %v7107, %v7167
      %v7210 = vadd.f32 %v7108, %v7169
      %v7211 = vadd.f32 %v7109, %v7171
      %v7212 = vadd.f32 %v7110, %v7173
      %v7213 = vadd.f32 %v7111, %v7175
      %v7214 = vadd.f32 %v7112, %v7177
      %v7215 = vadd.f32 %v7113, %v7179
      %v7216 = vadd.f32 %v7114, %v7181
      %v7217 = vadd.f32 %v7115, %v7183
      %v7218 = vadd.f32 %v7116, %v7185
      %v7219 = vadd.f32 %v7117, %v7187
      %v7220 = vld [vmem:[%s4292 + $0x9] sm:$0xff]
      %v7221 = vld [vmem:[%s4292 + $0x21] sm:$0xff]
      %v7222 = vld [vmem:[%s4292 + $0x39] sm:$0xff]
      %v7223 = vld [vmem:[%s4292 + $0x51] sm:$0xff]
      %v7224 = vld [vmem:[%s4292 + $0x69] sm:$0xff]
      %v7225 = vld [vmem:[%s4292 + $0x81] sm:$0xff]
      %v7226 = vld [vmem:[%s4292 + $0x99] sm:$0xff]
      %v7227 = vld [vmem:[%s4292 + $0xb1] sm:$0xff]
      %v7228 = vld [vmem:[%s4292 + $0xc9] sm:$0xff]
      %v7229 = vld [vmem:[%s4292 + $0xe1] sm:$0xff]
      %v7230 = vld [vmem:[%s4292 + $0xf9] sm:$0xff]
      %v7231 = vld [vmem:[%s4292 + $0x111] sm:$0xff]
      %v7232 = vld [vmem:[%s4292 + $0x129] sm:$0xff]
      %v7233 = vld [vmem:[%s4292 + $0x141] sm:$0xff]
      %v7234 = vld [vmem:[%s4292 + $0x159] sm:$0xff]
      %v7235 = vld [vmem:[%s4292 + $0x171] sm:$0xff]
      %v7236 = vld [vmem:[%s6426] sm:$0x1]
      %v7238 = vperm.slane %v7236, 0
      %v7240 = vmul.f32 %v7220, %v7238
      %v7241 = vmul.f32 %v7221, %v7238
      %v7242 = vmul.f32 %v7222, %v7238
      %v7243 = vmul.f32 %v7223, %v7238
      %v7244 = vmul.f32 %v7224, %v7238
      %v7245 = vmul.f32 %v7225, %v7238
      %v7246 = vmul.f32 %v7226, %v7238
      %v7247 = vmul.f32 %v7227, %v7238
      %v7248 = vmul.f32 %v7228, %v7238
      %v7249 = vmul.f32 %v7229, %v7238
      %v7250 = vmul.f32 %v7230, %v7238
      %v7251 = vmul.f32 %v7231, %v7238
      %v7252 = vmul.f32 %v7232, %v7238
      %v7253 = vmul.f32 %v7233, %v7238
      %v7254 = vmul.f32 %v7234, %v7238
      %v7255 = vmul.f32 %v7235, %v7238
      %v7256 = vadd.f32 %v7204, %v7240
      %v7257 = vadd.f32 %v7205, %v7241
      %v7258 = vadd.f32 %v7206, %v7242
      %v7259 = vadd.f32 %v7207, %v7243
      %v7260 = vadd.f32 %v7208, %v7244
      %v7261 = vadd.f32 %v7209, %v7245
      %v7262 = vadd.f32 %v7210, %v7246
      %v7263 = vadd.f32 %v7211, %v7247
      %v7264 = vadd.f32 %v7212, %v7248
      %v7265 = vadd.f32 %v7213, %v7249
      %v7266 = vadd.f32 %v7214, %v7250
      %v7267 = vadd.f32 %v7215, %v7251
      %v7268 = vadd.f32 %v7216, %v7252
      %v7269 = vadd.f32 %v7217, %v7253
      %v7270 = vadd.f32 %v7218, %v7254
      %v7271 = vadd.f32 %v7219, %v7255
      %v7272 = vsel %vm3228, %v7256, 0.0
      %7273 = vadd.xlane.f32.xlu0 %v7272
      %v7274 = vpop.xlane.xlu0 %7273
      %v7275 = vsel %vm3228, %v7257, 0.0
      %7276 = vadd.xlane.f32.xlu0 %v7275
      %v7277 = vpop.xlane.xlu0 %7276
      %v7278 = vsel %vm3228, %v7258, 0.0
      %7279 = vadd.xlane.f32.xlu0 %v7278
      %v7280 = vpop.xlane.xlu0 %7279
      %v7281 = vsel %vm3228, %v7259, 0.0
      %7282 = vadd.xlane.f32.xlu0 %v7281
      %v7283 = vpop.xlane.xlu0 %7282
      %v7284 = vsel %vm3228, %v7260, 0.0
      %7285 = vadd.xlane.f32.xlu0 %v7284
      %v7286 = vpop.xlane.xlu0 %7285
      %v7287 = vsel %vm3228, %v7261, 0.0
      %7288 = vadd.xlane.f32.xlu0 %v7287
      %v7289 = vpop.xlane.xlu0 %7288
      %v7290 = vsel %vm3228, %v7262, 0.0
      %7291 = vadd.xlane.f32.xlu0 %v7290
      %v7292 = vpop.xlane.xlu0 %7291
      %v7293 = vsel %vm3228, %v7263, 0.0
      %7294 = vadd.xlane.f32.xlu0 %v7293
      %v7295 = vpop.xlane.xlu0 %7294
      %v7296 = vsel %vm3228, %v7264, 0.0
      %7297 = vadd.xlane.f32.xlu0 %v7296
      %v7298 = vpop.xlane.xlu0 %7297
      %v7299 = vsel %vm3228, %v7265, 0.0
      %7300 = vadd.xlane.f32.xlu0 %v7299
      %v7301 = vpop.xlane.xlu0 %7300
      %v7302 = vsel %vm3228, %v7266, 0.0
      %7303 = vadd.xlane.f32.xlu0 %v7302
      %v7304 = vpop.xlane.xlu0 %7303
      %v7305 = vsel %vm3228, %v7267, 0.0
      %7306 = vadd.xlane.f32.xlu0 %v7305
      %v7307 = vpop.xlane.xlu0 %7306
      %v7308 = vsel %vm3228, %v7268, 0.0
      %7309 = vadd.xlane.f32.xlu0 %v7308
      %v7310 = vpop.xlane.xlu0 %7309
      %v7311 = vsel %vm3228, %v7269, 0.0
      %7312 = vadd.xlane.f32.xlu0 %v7311
      %v7313 = vpop.xlane.xlu0 %7312
      %v7314 = vsel %vm3228, %v7270, 0.0
      %7315 = vadd.xlane.f32.xlu0 %v7314
      %v7316 = vpop.xlane.xlu0 %7315
      %v7317 = vsel %vm3228, %v7271, 0.0
      %7318 = vadd.xlane.f32.xlu0 %v7317
      %v7319 = vpop.xlane.xlu0 %7318
      %v7320 = vadd.f32 %v7274, %v6577
      %v7321 = vadd.f32 %v7277, %v6577
      %v7322 = vadd.f32 %v7280, %v6577
      %v7323 = vadd.f32 %v7283, %v6577
      %v7324 = vadd.f32 %v7286, %v6577
      %v7325 = vadd.f32 %v7289, %v6577
      %v7326 = vadd.f32 %v7292, %v6577
      %v7327 = vadd.f32 %v7295, %v6577
      %v7328 = vadd.f32 %v7298, %v6577
      %v7329 = vadd.f32 %v7301, %v6577
      %v7330 = vadd.f32 %v7304, %v6577
      %v7331 = vadd.f32 %v7307, %v6577
      %v7332 = vadd.f32 %v7310, %v6577
      %v7333 = vadd.f32 %v7313, %v6577
      %v7334 = vadd.f32 %v7316, %v6577
      %v7335 = vadd.f32 %v7319, %v6577
      %v7352 = vperm.slane %v7320, %v6611
      %v7353 = vperm.slane %v7321, %v6611
      %v7354 = vperm.slane %v7322, %v6611
      %v7355 = vperm.slane %v7323, %v6611
      %v7356 = vperm.slane %v7324, %v6611
      %v7357 = vperm.slane %v7325, %v6611
      %v7358 = vperm.slane %v7326, %v6611
      %v7359 = vperm.slane %v7327, %v6611
      %v7360 = vperm.slane %v7328, %v6611
      %v7361 = vperm.slane %v7329, %v6611
      %v7362 = vperm.slane %v7330, %v6611
      %v7363 = vperm.slane %v7331, %v6611
      %v7364 = vperm.slane %v7332, %v6611
      %v7365 = vperm.slane %v7333, %v6611
      %v7366 = vperm.slane %v7334, %v6611
      %v7367 = vperm.slane %v7335, %v6611
      %v7368 = vsel %vm6628, %v7353, %v7352
      %v7369 = vsel %vm6630, %v7354, %v7368
      %v7370 = vsel %vm6632, %v7355, %v7369
      %v7371 = vsel %vm6634, %v7356, %v7370
      %v7372 = vsel %vm6636, %v7357, %v7371
      %v7373 = vsel %vm6638, %v7358, %v7372
      %v7374 = vsel %vm6640, %v7359, %v7373
      %v7375 = vsel %vm6628, %v7361, %v7360
      %v7376 = vsel %vm6630, %v7362, %v7375
      %v7377 = vsel %vm6632, %v7363, %v7376
      %v7378 = vsel %vm6634, %v7364, %v7377
      %v7379 = vsel %vm6636, %v7365, %v7378
      %v7380 = vsel %vm6638, %v7366, %v7379
      %v7381 = vsel %vm6640, %v7367, %v7380
      %7384 = vst.msk [vmem:[%s420] sm:$0xff] %vm6651, %v7374
      %7385 = vst.msk [vmem:[%s420 + $0x8] sm:$0xff] %vm6651, %v7381
      %p7386 = scmp.lt.s32.totalorder %s24, 1
      %s7387 = scalar_select %p7386, %s24, 1
      %s7388 = smul.addr %s7387, 2
      %s7389 = smul.addr %s7388, 8
      %s7390 = scalar_lea.vmem %s10, %s7389
      %p7391 = scmp.lt.s32.totalorder %s24, 1
      %s7392 = scalar_select %p7391, %s24, 1
      %s7393 = smul.addr %s7392, 2
      %s7394 = smul.addr %s7393, 8
      %s7395 = scalar_lea.vmem %s11, %s7394
      // Predicated region
      $region61: #{upsampling1_forward.1} parent=59 // pred_check
        %p7396 = pneg %p262
      $region62: #{upsampling1_forward.1} parent=59 // pred_check_branch
        %7398 = sbr.rel (%p7396) target = $region64
      $region63: #{upsampling1_forward.1} parent=59 // pred_region
        _
      $region64: #{upsampling1_forward.1} parent=59 // pred_fallthru
        _
      // Predicated region
      $region65: #{upsampling1_forward.1} parent=59 // pred_check
        %p7399 = pneg %p288
      $region66: #{upsampling1_forward.1} parent=59 // pred_check_branch
        %7401 = sbr.rel (%p7399) target = $region68
      $region67: #{upsampling1_forward.1} parent=59 // pred_region
        _
      $region68: #{upsampling1_forward.1} parent=59 // pred_fallthru
        _
    $region60: #{upsampling1_forward.1} parent=5 // pred_fallthru
      _
    %p7402 = scmp.le.s32.totalorder 2, %s19
    // Predicated region
    $region69: #{upsampling1_forward.1} parent=5 // pred_check
      %p7403 = pneg %p7402
    $region70: #{upsampling1_forward.1} parent=5 // pred_check_branch
      %7405 = sbr.rel (%p7403) target = $region72
    $region71: #{upsampling1_forward.1} parent=5 // pred_region
      %s7406 = ssub.s32 %s19, 2
      // Predicated region
      $region73: #{upsampling1_forward.1} parent=71 // pred_check
        %p7407 = pneg %p268
      $region74: #{upsampling1_forward.1} parent=71 // pred_check_branch
        %7409 = sbr.rel (%p7407) target = $region76
      $region75: #{upsampling1_forward.1} parent=71 // pred_region
        %p7410 = scmp.lt.s32.totalorder %s25, 1
        %s7411 = scalar_select %p7410, %s25, 1
        %s7412 = smul.addr %s7411, 2
        %s7413 = smul.addr %s7412, 8
        %s7414 = scalar_lea.vmem %s10, %s7413
      $region76: #{upsampling1_forward.1} parent=71 // pred_fallthru
        _
      // Predicated region
      $region77: #{upsampling1_forward.1} parent=71 // pred_check
        %p7415 = pneg %p294
      $region78: #{upsampling1_forward.1} parent=71 // pred_check_branch
        %7417 = sbr.rel (%p7415) target = $region80
      $region79: #{upsampling1_forward.1} parent=71 // pred_region
        %p7418 = scmp.lt.s32.totalorder %s25, 1
        %s7419 = scalar_select %p7418, %s25, 1
        %s7420 = smul.addr %s7419, 2
        %s7421 = smul.addr %s7420, 8
        %s7422 = scalar_lea.vmem %s11, %s7421
      $region80: #{upsampling1_forward.1} parent=71 // pred_fallthru
        _
    $region72: #{upsampling1_forward.1} parent=5 // pred_fallthru
      _
  $region6: #{upsampling1_forward.1} parent=0 // loop_footer
    %s23 = sadd.s32 1, %s19
  $region7: #{upsampling1_forward.1} parent=0 // loop_footer_branch
    %18 = sbr.rel target = $region3
  $region8: #{upsampling1_forward.1} parent=0 // loop_exit
    _

</llo_original>
